<compile_context>
chip_gen: v5e
topology: v5e:2x2
jax: 0.10.0
libtpu: 0.0.40
codegen_flags: <defaults>
</compile_context>

<pallas_src>
import jax
import jax.numpy as jnp
from jax import lax
from jax.experimental import pallas as pl
from jax.experimental.pallas import tpu as pltpu

PAD_IDX = 1
NEG_INF = -1e9               # Python float: must NOT be a jax/np array (kernel capture)
MXU_DTYPE = jnp.bfloat16     # MXU operand dtype; accumulation / gate math stays f32


# ----------------------------------------------------------------------------
# helpers
# ----------------------------------------------------------------------------
def _softmax(x, axis):
    m = jnp.max(x, axis=axis, keepdims=True)
    e = jnp.exp(x - m)
    return e / jnp.sum(e, axis=axis, keepdims=True)


def _pick_tile(dim, prefs):
    """Largest preferred tile that divides `dim`, else the full dim."""
    for p in prefs:
        if dim % p == 0:
            return p
    return dim


def _batch_tile(B):
    for tb in (64, 32, 16, 8):
        if B % tb == 0:
            return tb
    return B


# ----------------------------------------------------------------------------
# Pallas kernel 1: tiled matmul + bias (+ ReLU)  (used for linear1 / linear2)
# ----------------------------------------------------------------------------
def linear(x, w, b, act=None):
    # x: (M, K), w: (K, N), b: (N,)
    M, K = x.shape
    N = w.shape[1]
    tm = _pick_tile(M, (256, 128))
    tn = _pick_tile(N, (256, 128))
    tk = _pick_tile(K, (512, 256, 128))

    def kernel(x_ref, w_ref, b_ref, o_ref, acc_ref):
        @pl.when(pl.program_id(2) == 0)
        def _():
            acc_ref[...] = jnp.zeros_like(acc_ref)

        acc_ref[...] += jnp.dot(x_ref[...].astype(MXU_DTYPE),
                                w_ref[...].astype(MXU_DTYPE),
                                preferred_element_type=jnp.float32)

        @pl.when(pl.program_id(2) == pl.num_programs(2) - 1)
        def _():
            y = acc_ref[...] + b_ref[...]
            if act == "relu":
                y = jnp.maximum(y, 0.0)
            o_ref[...] = y

    return pl.pallas_call(
        kernel,
        out_shape=jax.ShapeDtypeStruct((M, N), jnp.float32),
        grid=(M // tm, N // tn, K // tk),
        in_specs=[pl.BlockSpec((tm, tk), lambda i, j, k: (i, k)),
                  pl.BlockSpec((tk, tn), lambda i, j, k: (k, j)),
                  pl.BlockSpec((1, tn), lambda i, j, k: (0, j))],
        out_specs=pl.BlockSpec((tm, tn), lambda i, j, k: (i, j)),
        scratch_shapes=[pltpu.VMEM((tm, tn), jnp.float32)],
        compiler_params=pltpu.CompilerParams(
            dimension_semantics=("parallel", "parallel", "arbitrary")),
    )(x, w, b.reshape(1, N))


# ----------------------------------------------------------------------------
# Pallas kernel 2: fused CharCNN  (conv1d over word length + ReLU + max-pool)
# Input layout is (Lw, rows, Cin) so convolution windows are first-axis reads.
# ----------------------------------------------------------------------------
def _charcnn_kernel(e_ref, w_ref, b_ref, o_ref):
    Lw = e_ref.shape[0]
    K, Cin, Cout = w_ref.shape
    tr = e_ref.shape[1]
    P = Lw - K + 1
    bias = b_ref[...]                                           # (1, Cout)
    wks = [w_ref[k].astype(MXU_DTYPE) for k in range(K)]        # K x (Cin, Cout)
    pooled = jnp.zeros((tr, Cout), jnp.float32)
    for p in range(P):                                          # static unroll
        acc = jnp.zeros((tr, Cout), jnp.float32)
        for k in range(K):
            acc = acc + jnp.dot(e_ref[p + k].astype(MXU_DTYPE), wks[k],
                                preferred_element_type=jnp.float32)
        pooled = jnp.maximum(pooled, jnp.maximum(acc + bias, 0.0))
    o_ref[...] = pooled


def char_cnn(chars, params):
    # chars: (B, L, Lw) int32 -> (B, L, c_embed)
    B, L, Lw = chars.shape
    emb = params["char_table"][chars]                           # XLA gather
    Cout, Cin, K = params["conv_w"].shape
    R = B * L
    e = jnp.transpose(emb.reshape(R, Lw, Cin), (1, 0, 2))       # (Lw, R, Cin)
    w = jnp.transpose(params["conv_w"], (2, 1, 0))              # (K, Cin, Cout)
    tr = _pick_tile(R, (256, 128))
    out = pl.pallas_call(
        _charcnn_kernel,
        out_shape=jax.ShapeDtypeStruct((R, Cout), jnp.float32),
        grid=(R // tr,),
        in_specs=[pl.BlockSpec((Lw, tr, Cin), lambda i: (0, i, 0)),
                  pl.BlockSpec((K, Cin, Cout), lambda i: (0, 0, 0)),
                  pl.BlockSpec((1, Cout), lambda i: (0, 0))],
        out_specs=pl.BlockSpec((tr, Cout), lambda i: (i, 0)),
        compiler_params=pltpu.CompilerParams(dimension_semantics=("parallel",)),
    )(e, w, params["conv_b"].reshape(1, Cout))
    return out.reshape(B, L, Cout)


# ----------------------------------------------------------------------------
# Pallas kernel 3: fused bidirectional GRU (input projection + both recurrences)
# PyTorch gate order (r, z, n) and update rule are reproduced exactly.
# Activations are time-major (L, B, D) inside the kernel.
# ----------------------------------------------------------------------------
def _bigru_kernel(x_ref, wif_ref, bif_ref, whf_ref, bhf_ref,
                  wib_ref, bib_ref, whb_ref, bhb_ref,
                  of_ref, ob_ref, hf_ref, hb_ref):
    L = x_ref.shape[0]
    H = hf_ref.shape[1]
    hf_ref[...] = jnp.zeros_like(hf_ref)
    hb_ref[...] = jnp.zeros_like(hb_ref)

    # hoist weight loads / casts out of the time loop
    wif = wif_ref[...].astype(MXU_DTYPE)
    wib = wib_ref[...].astype(MXU_DTYPE)
    whf = whf_ref[...]
    whb = whb_ref[...]
    bif = bif_ref[...]
    bib = bib_ref[...]
    bhf = bhf_ref[...]
    bhb = bhb_ref[...]

    def cell(gx, h, whh, bhh):
        gh = jnp.dot(h, whh, preferred_element_type=jnp.float32) + bhh
        r = jax.nn.sigmoid(gx[:, :H] + gh[:, :H])
        z = jax.nn.sigmoid(gx[:, H:2 * H] + gh[:, H:2 * H])
        n = jnp.tanh(gx[:, 2 * H:] + r * gh[:, 2 * H:])
        return (1.0 - z) * n + z * h

    @pl.loop(0, L)
    def _(t):
        rt = L - 1 - t
        gxf = jnp.dot(x_ref[t].astype(MXU_DTYPE), wif,
                      preferred_element_type=jnp.float32) + bif
        gxb = jnp.dot(x_ref[rt].astype(MXU_DTYPE), wib,
                      preferred_element_type=jnp.float32) + bib
        hf = cell(gxf, hf_ref[...], whf, bhf)
        hb = cell(gxb, hb_ref[...], whb, bhb)
        hf_ref[...] = hf
        hb_ref[...] = hb
        of_ref[t] = hf
        ob_ref[rt] = hb


def bigru(x, p):
    """Bidirectional single-layer GRU, batch_first, PyTorch semantics."""
    B, L, Din = x.shape
    H = p["w_hh_f"].shape[1]
    tb = _batch_tile(B)
    xt = jnp.transpose(x, (1, 0, 2))                            # (L, B, Din)
    of, ob = pl.pallas_call(
        _bigru_kernel,
        out_shape=(jax.ShapeDtypeStruct((L, B, H), jnp.float32),
                   jax.ShapeDtypeStruct((L, B, H), jnp.float32)),
        grid=(B // tb,),
        in_specs=[pl.BlockSpec((L, tb, Din), lambda b: (0, b, 0)),
                  pl.BlockSpec((Din, 3 * H), lambda b: (0, 0)),
                  pl.BlockSpec((1, 3 * H), lambda b: (0, 0)),
                  pl.BlockSpec((H, 3 * H), lambda b: (0, 0)),
                  pl.BlockSpec((1, 3 * H), lambda b: (0, 0)),
                  pl.BlockSpec((Din, 3 * H), lambda b: (0, 0)),
                  pl.BlockSpec((1, 3 * H), lambda b: (0, 0)),
                  pl.BlockSpec((H, 3 * H), lambda b: (0, 0)),
                  pl.BlockSpec((1, 3 * H), lambda b: (0, 0))],
        out_specs=(pl.BlockSpec((L, tb, H), lambda b: (0, b, 0)),
                   pl.BlockSpec((L, tb, H), lambda b: (0, b, 0))),
        scratch_shapes=[pltpu.VMEM((tb, H), jnp.float32),
                        pltpu.VMEM((tb, H), jnp.float32)],
        compiler_params=pltpu.CompilerParams(dimension_semantics=("parallel",)),
    )(xt,
      p["w_ih_f"].T, p["b_ih_f"].reshape(1, -1),
      p["w_hh_f"].T, p["b_hh_f"].reshape(1, -1),
      p["w_ih_b"].T, p["b_ih_b"].reshape(1, -1),
      p["w_hh_b"].T, p["b_hh_b"].reshape(1, -1))
    out = jnp.concatenate([of, ob], axis=-1)                    # (L, B, 2H)
    return jnp.transpose(out, (1, 0, 2))                        # (B, L, 2H)


# ----------------------------------------------------------------------------
# Pallas kernel 4: BiDAF attention flow (trilinear similarity + masked softmax
# + context/question mixing), one batch element per grid step.
# ----------------------------------------------------------------------------
def _make_bidaf_kernel(self_attn):
    def kernel(c_ref, q_ref, cmT_ref, qm_ref, wc_ref, wq_ref, wm_ref, o_ref):
        d = c_ref.shape[2]
        C = c_ref[0]                                            # (Lc, d)
        Q = q_ref[0]                                            # (Lq, d)
        qm = qm_ref[0]                                          # (1, Lq), 1.0 = pad
        wc = wc_ref[...]                                        # (1, d)
        wq = wq_ref[...]
        wm = wm_ref[...]

        s1 = jnp.sum(C * wc, axis=-1, keepdims=True)            # (Lc, 1)
        s2 = lax.dot_general(wq, Q, (((1,), (1,)), ((), ())),
                             preferred_element_type=jnp.float32)  # (1, Lq)
        s3 = lax.dot_general(C * wm, Q, (((1,), (1,)), ((), ())),
                             preferred_element_type=jnp.float32)  # (Lc, Lq)
        S = s1 + s2 + s3

        Sq = jnp.where(qm > 0.5, NEG_INF, S)                    # mask question pads
        A = _softmax(Sq, axis=-1)
        c2q = jnp.dot(A, Q, preferred_element_type=jnp.float32)  # (Lc, d)

        o_ref[0, :, 0:d] = C
        o_ref[0, :, d:2 * d] = c2q
        o_ref[0, :, 2 * d:3 * d] = C * c2q
        if not self_attn:
            cmT = cmT_ref[0]                                    # (Lc, 1)
            Sc = jnp.where(cmT > 0.5, NEG_INF, Sq)
            m = jnp.max(Sc, axis=-1, keepdims=True)             # (Lc, 1)
            m = jnp.where(cmT > 0.5, NEG_INF, m)
            b = _softmax(m, axis=0)                             # softmax over context
            q2c = jnp.sum(b * C, axis=0, keepdims=True)         # (1, d)
            o_ref[0, :, 3 * d:4 * d] = C * q2c
    return kernel


def attention_flow(Ce, Qe, c_mask, q_mask, p, self_attn):
    B, Lc, d = Ce.shape
    Lq = Qe.shape[1]
    mult = 3 if self_attn else 4
    cmT = c_mask.astype(jnp.float32).reshape(B, Lc, 1)
    qm = q_mask.astype(jnp.float32).reshape(B, 1, Lq)
    return pl.pallas_call(
        _make_bidaf_kernel(self_attn),
        out_shape=jax.ShapeDtypeStruct((B, Lc, mult * d), jnp.float32),
        grid=(B,),
        in_specs=[pl.BlockSpec((1, Lc, d), lambda b: (b, 0, 0)),
                  pl.BlockSpec((1, Lq, d), lambda b: (b, 0, 0)),
                  pl.BlockSpec((1, Lc, 1), lambda b: (b, 0, 0)),
                  pl.BlockSpec((1, 1, Lq), lambda b: (b, 0, 0)),
                  pl.BlockSpec((1, d), lambda b: (0, 0)),
                  pl.BlockSpec((1, d), lambda b: (0, 0)),
                  pl.BlockSpec((1, d), lambda b: (0, 0))],
        out_specs=pl.BlockSpec((1, Lc, mult * d), lambda b: (b, 0, 0)),
        compiler_params=pltpu.CompilerParams(dimension_semantics=("parallel",)),
    )(Ce, Qe, cmT, qm, p["w_c"], p["w_q"], p["w_m"])


# ----------------------------------------------------------------------------
# Pallas kernel 5: fused decoder head -- start/end logit projections + masking
# (done exactly once) + NoAnswer attention pooling + scoring, per batch row.
# Dout=1 projections are lane reductions, not 1-column MXU matmuls.
# ----------------------------------------------------------------------------
def _decoder_head_kernel(m1_ref, m2_ref, ctx_ref, cmT_ref,
                         ws_ref, bs_ref, we_ref, be_ref, naw_ref, nab_ref,
                         s_ref, e_ref, na_ref):
    d = ctx_ref.shape[2]
    M1 = m1_ref[0]                                              # (Lc, d)
    M2 = m2_ref[0]
    ctx = ctx_ref[0]                                            # (Lc, d)
    cmT = cmT_ref[0]                                            # (Lc, 1), 1.0 = pad

    s = jnp.sum(M1 * ws_ref[...], axis=-1, keepdims=True) + bs_ref[...]   # (Lc, 1)
    e = jnp.sum(M2 * we_ref[...], axis=-1, keepdims=True) + be_ref[...]
    s = jnp.where(cmT > 0.5, NEG_INF, s)
    e = jnp.where(cmT > 0.5, NEG_INF, e)

    a = _softmax(s, axis=0)                                     # (Lc, 1)
    bt = _softmax(e, axis=0)
    v1 = jnp.sum(a * ctx, axis=0, keepdims=True)                # (1, d)
    v2 = jnp.sum(bt * ctx, axis=0, keepdims=True)

    naw = naw_ref[...]                                          # (1, 2d)
    score = (jnp.sum(v1 * naw[:, :d], axis=-1, keepdims=True)
             + jnp.sum(v2 * naw[:, d:], axis=-1, keepdims=True)
             + nab_ref[...])                                    # (1, 1)

    s_ref[0] = s
    e_ref[0] = e
    na_ref[0] = score


def decoder_head(M1, M2, ctx, c_mask, params):
    B, Lc, d = ctx.shape
    cmT = c_mask.astype(jnp.float32).reshape(B, Lc, 1)
    s, e, na = pl.pallas_call(
        _decoder_head_kernel,
        out_shape=(jax.ShapeDtypeStruct((B, Lc, 1), jnp.float32),
                   jax.ShapeDtypeStruct((B, Lc, 1), jnp.float32),
                   jax.ShapeDtypeStruct((B, 1, 1), jnp.float32)),
        grid=(B,),
        in_specs=[pl.BlockSpec((1, Lc, d), lambda b: (b, 0, 0)),
                  pl.BlockSpec((1, Lc, d), lambda b: (b, 0, 0)),
                  pl.BlockSpec((1, Lc, d), lambda b: (b, 0, 0)),
                  pl.BlockSpec((1, Lc, 1), lambda b: (b, 0, 0)),
                  pl.BlockSpec((1, d), lambda b: (0, 0)),
                  pl.BlockSpec((1, 1), lambda b: (0, 0)),
                  pl.BlockSpec((1, d), lambda b: (0, 0)),
                  pl.BlockSpec((1, 1), lambda b: (0, 0)),
                  pl.BlockSpec((1, 2 * d), lambda b: (0, 0)),
                  pl.BlockSpec((1, 1), lambda b: (0, 0))],
        out_specs=(pl.BlockSpec((1, Lc, 1), lambda b: (b, 0, 0)),
                   pl.BlockSpec((1, Lc, 1), lambda b: (b, 0, 0)),
                   pl.BlockSpec((1, 1, 1), lambda b: (b, 0, 0))),
        compiler_params=pltpu.CompilerParams(dimension_semantics=("parallel",)),
    )(M1, M2, ctx, cmT,
      params["dec_ws"].reshape(1, d), params["dec_bs"].reshape(1, 1),
      params["dec_we"].reshape(1, d), params["dec_be"].reshape(1, 1),
      params["na_w"].reshape(1, 2 * d), params["na_b"].reshape(1, 1))
    return s.reshape(B, Lc), e.reshape(B, Lc), na.reshape(B, 1)


# ----------------------------------------------------------------------------
# Model glue (embedding gathers, masks, residual) in plain JAX.
# ----------------------------------------------------------------------------
def input_embedding(words, chars, params):
    mask = (words == PAD_IDX)
    e_w = params["word_table"][words]                           # (B, L, w_embed)
    e_c = char_cnn(chars, params)                               # (B, L, c_embed)
    embed = jnp.concatenate([e_w, e_c], axis=-1)
    embed = bigru(embed, params["ctx_gru"])                     # (B, L, 2H)
    return jnp.where(mask[..., None], 0.0, embed)


def docqa_forward(C, Q, Cc, Qc, params):
    B, Lc = C.shape
    c_mask = (C == PAD_IDX)
    q_mask = (Q == PAD_IDX)

    ce = input_embedding(C, Cc, params)                         # (B, Lc, 2H)
    qe = input_embedding(Q, Qc, params)                         # (B, Lq, 2H)
    d = ce.shape[-1]

    G = attention_flow(ce, qe, c_mask, q_mask, params["attn"], self_attn=False)
    G = linear(G.reshape(B * Lc, 4 * d), params["lin1_w"], params["lin1_b"],
               act="relu").reshape(B, Lc, d)

    S = bigru(G, params["sgru"])
    S = jnp.where(c_mask[..., None], 0.0, S)
    S = attention_flow(S, S, c_mask, c_mask, params["sattn"], self_attn=True)
    S = linear(S.reshape(B * Lc, 3 * d), params["lin2_w"], params["lin2_b"],
               act="relu").reshape(B, Lc, d)

    M = G + S

    # SpanDecoder (BiGRU stack) + NoAnswer head (fused)
    M1 = bigru(M, params["dec_gru1"])
    M2 = bigru(M1, params["dec_gru2"])
    start_logit, end_logit, na = decoder_head(M1, M2, ce, c_mask, params)

    p1 = jnp.concatenate([start_logit, na], axis=1)             # (B, Lc + 1)
    p2 = jnp.concatenate([end_logit, na], axis=1)
    return p1, p2


# ----------------------------------------------------------------------------
# deterministic parameter construction (shapes per DocQA.__init__)
# ----------------------------------------------------------------------------
def init_params(key, w_size, w_embed, c_size, c_embed, hidden_dim,
                char_dim=20, k=5):
    keys = iter(jax.random.split(key, 64))

    def nrm(shape, scale=0.1):
        return (scale * jax.random.normal(next(keys), shape)).astype(jnp.float32)

    H = hidden_dim
    d = 2 * H
    embed_dim = w_embed + c_embed

    def gru_p(din):
        return dict(
            w_ih_f=nrm((3 * H, din)), b_ih_f=nrm((3 * H,)),
            w_hh_f=nrm((3 * H, H)), b_hh_f=nrm((3 * H,)),
            w_ih_b=nrm((3 * H, din)), b_ih_b=nrm((3 * H,)),
            w_hh_b=nrm((3 * H, H)), b_hh_b=nrm((3 * H,)),
        )

    def attn_p():
        return dict(w_c=nrm((1, d)), w_q=nrm((1, d)), w_m=nrm((1, d)))

    return dict(
        word_table=nrm((w_size, w_embed)).at[PAD_IDX].set(0.0),
        char_table=nrm((c_size, char_dim)).at[PAD_IDX].set(0.0),
        conv_w=nrm((c_embed, char_dim, k)),
        conv_b=nrm((c_embed,)),
        ctx_gru=gru_p(embed_dim),
        attn=attn_p(),
        lin1_w=nrm((8 * H, d)), lin1_b=nrm((d,)),
        sgru=gru_p(d),
        sattn=attn_p(),
        lin2_w=nrm((6 * H, d)), lin2_b=nrm((d,)),
        dec_gru1=gru_p(d),
        dec_gru2=gru_p(d),
        dec_ws=nrm((d, 1)), dec_bs=nrm((1,)),
        dec_we=nrm((d, 1)), dec_be=nrm((1,)),
        na_w=nrm((2 * d, 1)), na_b=nrm((1,)),
    )


# ----------------------------------------------------------------------------
if __name__ == "__main__":
    key = jax.random.PRNGKey(0)
    B, Lc, Lq, Lw = 2, 12, 8, 10
    w_size, w_embed, c_size, c_embed, H = 50, 16, 30, 12, 16

    k_p, k_c, k_q, k_cc, k_qc = jax.random.split(key, 5)
    params = init_params(k_p, w_size, w_embed, c_size, c_embed, H)

    C = jax.random.randint(k_c, (B, Lc), 2, w_size, dtype=jnp.int32)
    Q = jax.random.randint(k_q, (B, Lq), 2, w_size, dtype=jnp.int32)
    C = C.at[:, 10:].set(PAD_IDX)     # padded tail of context
    Q = Q.at[:, 6:].set(PAD_IDX)      # padded tail of question
    Cc = jax.random.randint(k_cc, (B, Lc, Lw), 2, c_size, dtype=jnp.int32)
    Qc = jax.random.randint(k_qc, (B, Lq, Lw), 2, c_size, dtype=jnp.int32)

    fwd = jax.jit(docqa_forward)
    p1, p2 = fwd(C, Q, Cc, Qc, params)
    jax.block_until_ready((p1, p2))

    assert p1.shape == (B, Lc + 1) and p2.shape == (B, Lc + 1)
    assert bool(jnp.all(jnp.isfinite(p1))) and bool(jnp.all(jnp.isfinite(p2)))
    print("KERNEL_OK")
</pallas_src>

<mosaic_0001>
module attributes {stable_mosaic.version = 11 : i64} {
  func.func @_charcnn_kernel(%arg0: i32, %arg1: memref<10x24x20xf32, #tpu.memory_space<vmem>>, %arg2: memref<5x20x12xf32, #tpu.memory_space<vmem>>, %arg3: memref<1x12xf32, #tpu.memory_space<vmem>>, %arg4: memref<24x12xf32, #tpu.memory_space<vmem>>) attributes {dimension_semantics = [#tpu.dimension_semantics<parallel>], iteration_bounds = array<i64: 1>, scalar_prefetch = 0 : i64, scratch_operands = 0 : i64, tpu.core_type = #tpu.core_type<tc>, window_params = [{transform_indices = @transform_0, window_bounds = array<i64: 10, 24, 20>}, {pipeline_mode = #tpu.pipeline_mode<synchronous>, transform_indices = @transform_1, window_bounds = array<i64: 5, 20, 12>}, {pipeline_mode = #tpu.pipeline_mode<synchronous>, transform_indices = @transform_2, window_bounds = array<i64: 1, 12>}, {transform_indices = @transform_3, window_bounds = array<i64: 24, 12>}]} {
    %c0 = arith.constant 0 : index
    %c0_0 = arith.constant 0 : index
    %0 = vector.load %arg3[%c0, %c0_0] : memref<1x12xf32, #tpu.memory_space<vmem>>, vector<1x12xf32>
    %c0_1 = arith.constant 0 : index
    %c0_2 = arith.constant 0 : index
    %c0_3 = arith.constant 0 : index
    %1 = vector.load %arg2[%c0_1, %c0_2, %c0_3] : memref<5x20x12xf32, #tpu.memory_space<vmem>>, vector<1x20x12xf32>
    %2 = vector.shape_cast %1 : vector<1x20x12xf32> to vector<20x12xf32>
    %3 = arith.truncf %2 : vector<20x12xf32> to vector<20x12xbf16>
    %c1 = arith.constant 1 : index
    %c0_4 = arith.constant 0 : index
    %c0_5 = arith.constant 0 : index
    %4 = vector.load %arg2[%c1, %c0_4, %c0_5] : memref<5x20x12xf32, #tpu.memory_space<vmem>>, vector<1x20x12xf32>
    %5 = vector.shape_cast %4 : vector<1x20x12xf32> to vector<20x12xf32>
    %6 = arith.truncf %5 : vector<20x12xf32> to vector<20x12xbf16>
    %c2 = arith.constant 2 : index
    %c0_6 = arith.constant 0 : index
    %c0_7 = arith.constant 0 : index
    %7 = vector.load %arg2[%c2, %c0_6, %c0_7] : memref<5x20x12xf32, #tpu.memory_space<vmem>>, vector<1x20x12xf32>
    %8 = vector.shape_cast %7 : vector<1x20x12xf32> to vector<20x12xf32>
    %9 = arith.truncf %8 : vector<20x12xf32> to vector<20x12xbf16>
    %c3 = arith.constant 3 : index
    %c0_8 = arith.constant 0 : index
    %c0_9 = arith.constant 0 : index
    %10 = vector.load %arg2[%c3, %c0_8, %c0_9] : memref<5x20x12xf32, #tpu.memory_space<vmem>>, vector<1x20x12xf32>
    %11 = vector.shape_cast %10 : vector<1x20x12xf32> to vector<20x12xf32>
    %12 = arith.truncf %11 : vector<20x12xf32> to vector<20x12xbf16>
    %c4 = arith.constant 4 : index
    %c0_10 = arith.constant 0 : index
    %c0_11 = arith.constant 0 : index
    %13 = vector.load %arg2[%c4, %c0_10, %c0_11] : memref<5x20x12xf32, #tpu.memory_space<vmem>>, vector<1x20x12xf32>
    %14 = vector.shape_cast %13 : vector<1x20x12xf32> to vector<20x12xf32>
    %15 = arith.truncf %14 : vector<20x12xf32> to vector<20x12xbf16>
    %cst = arith.constant 0.000000e+00 : f32
    %16 = vector.broadcast %cst : f32 to vector<24x12xf32>
    %cst_12 = arith.constant 0.000000e+00 : f32
    %17 = vector.broadcast %cst_12 : f32 to vector<24x12xf32>
    %c0_13 = arith.constant 0 : index
    %c0_14 = arith.constant 0 : index
    %c0_15 = arith.constant 0 : index
    %18 = vector.load %arg1[%c0_13, %c0_14, %c0_15] : memref<10x24x20xf32, #tpu.memory_space<vmem>>, vector<1x24x20xf32>
    %19 = vector.shape_cast %18 : vector<1x24x20xf32> to vector<24x20xf32>
    %20 = arith.truncf %19 : vector<24x20xf32> to vector<24x20xbf16>
    %cst_16 = arith.constant dense<0.000000e+00> : vector<24x12xf32>
    %21 = tpu.matmul %20, %3, %cst_16 {dimension_numbers = #tpu.dot_dimension_numbers<[1], [0], [0], [1], [0, 0, 1, 1], [], []>} : vector<24x20xbf16>, vector<20x12xbf16>, vector<24x12xf32> -> vector<24x12xf32>
    %22 = arith.addf %17, %21 : vector<24x12xf32>
    %c1_17 = arith.constant 1 : index
    %c0_18 = arith.constant 0 : index
    %c0_19 = arith.constant 0 : index
    %23 = vector.load %arg1[%c1_17, %c0_18, %c0_19] : memref<10x24x20xf32, #tpu.memory_space<vmem>>, vector<1x24x20xf32>
    %24 = vector.shape_cast %23 : vector<1x24x20xf32> to vector<24x20xf32>
    %25 = arith.truncf %24 : vector<24x20xf32> to vector<24x20xbf16>
    %cst_20 = arith.constant dense<0.000000e+00> : vector<24x12xf32>
    %26 = tpu.matmul %25, %6, %cst_20 {dimension_numbers = #tpu.dot_dimension_numbers<[1], [0], [0], [1], [0, 0, 1, 1], [], []>} : vector<24x20xbf16>, vector<20x12xbf16>, vector<24x12xf32> -> vector<24x12xf32>
    %27 = arith.addf %22, %26 : vector<24x12xf32>
    %c2_21 = arith.constant 2 : index
    %c0_22 = arith.constant 0 : index
    %c0_23 = arith.constant 0 : index
    %28 = vector.load %arg1[%c2_21, %c0_22, %c0_23] : memref<10x24x20xf32, #tpu.memory_space<vmem>>, vector<1x24x20xf32>
    %29 = vector.shape_cast %28 : vector<1x24x20xf32> to vector<24x20xf32>
    %30 = arith.truncf %29 : vector<24x20xf32> to vector<24x20xbf16>
    %cst_24 = arith.constant dense<0.000000e+00> : vector<24x12xf32>
    %31 = tpu.matmul %30, %9, %cst_24 {dimension_numbers = #tpu.dot_dimension_numbers<[1], [0], [0], [1], [0, 0, 1, 1], [], []>} : vector<24x20xbf16>, vector<20x12xbf16>, vector<24x12xf32> -> vector<24x12xf32>
    %32 = arith.addf %27, %31 : vector<24x12xf32>
    %c3_25 = arith.constant 3 : index
    %c0_26 = arith.constant 0 : index
    %c0_27 = arith.constant 0 : index
    %33 = vector.load %arg1[%c3_25, %c0_26, %c0_27] : memref<10x24x20xf32, #tpu.memory_space<vmem>>, vector<1x24x20xf32>
    %34 = vector.shape_cast %33 : vector<1x24x20xf32> to vector<24x20xf32>
    %35 = arith.truncf %34 : vector<24x20xf32> to vector<24x20xbf16>
    %cst_28 = arith.constant dense<0.000000e+00> : vector<24x12xf32>
    %36 = tpu.matmul %35, %12, %cst_28 {dimension_numbers = #tpu.dot_dimension_numbers<[1], [0], [0], [1], [0, 0, 1, 1], [], []>} : vector<24x20xbf16>, vector<20x12xbf16>, vector<24x12xf32> -> vector<24x12xf32>
    %37 = arith.addf %32, %36 : vector<24x12xf32>
    %c4_29 = arith.constant 4 : index
    %c0_30 = arith.constant 0 : index
    %c0_31 = arith.constant 0 : index
    %38 = vector.load %arg1[%c4_29, %c0_30, %c0_31] : memref<10x24x20xf32, #tpu.memory_space<vmem>>, vector<1x24x20xf32>
    %39 = vector.shape_cast %38 : vector<1x24x20xf32> to vector<24x20xf32>
    %40 = arith.truncf %39 : vector<24x20xf32> to vector<24x20xbf16>
    %cst_32 = arith.constant dense<0.000000e+00> : vector<24x12xf32>
    %41 = tpu.matmul %40, %15, %cst_32 {dimension_numbers = #tpu.dot_dimension_numbers<[1], [0], [0], [1], [0, 0, 1, 1], [], []>} : vector<24x20xbf16>, vector<20x12xbf16>, vector<24x12xf32> -> vector<24x12xf32>
    %42 = arith.addf %37, %41 : vector<24x12xf32>
    %43 = vector.broadcast %0 : vector<1x12xf32> to vector<24x12xf32>
    %44 = arith.addf %42, %43 : vector<24x12xf32>
    %cst_33 = arith.constant 0.000000e+00 : f32
    %45 = vector.broadcast %cst_33 : f32 to vector<24x12xf32>
    %46 = arith.maximumf %44, %45 : vector<24x12xf32>
    %47 = arith.maximumf %16, %46 : vector<24x12xf32>
    %cst_34 = arith.constant 0.000000e+00 : f32
    %48 = vector.broadcast %cst_34 : f32 to vector<24x12xf32>
    %c1_35 = arith.constant 1 : index
    %c0_36 = arith.constant 0 : index
    %c0_37 = arith.constant 0 : index
    %49 = vector.load %arg1[%c1_35, %c0_36, %c0_37] : memref<10x24x20xf32, #tpu.memory_space<vmem>>, vector<1x24x20xf32>
    %50 = vector.shape_cast %49 : vector<1x24x20xf32> to vector<24x20xf32>
    %51 = arith.truncf %50 : vector<24x20xf32> to vector<24x20xbf16>
    %cst_38 = arith.constant dense<0.000000e+00> : vector<24x12xf32>
    %52 = tpu.matmul %51, %3, %cst_38 {dimension_numbers = #tpu.dot_dimension_numbers<[1], [0], [0], [1], [0, 0, 1, 1], [], []>} : vector<24x20xbf16>, vector<20x12xbf16>, vector<24x12xf32> -> vector<24x12xf32>
    %53 = arith.addf %48, %52 : vector<24x12xf32>
    %c2_39 = arith.constant 2 : index
    %c0_40 = arith.constant 0 : index
    %c0_41 = arith.constant 0 : index
    %54 = vector.load %arg1[%c2_39, %c0_40, %c0_41] : memref<10x24x20xf32, #tpu.memory_space<vmem>>, vector<1x24x20xf32>
    %55 = vector.shape_cast %54 : vector<1x24x20xf32> to vector<24x20xf32>
    %56 = arith.truncf %55 : vector<24x20xf32> to vector<24x20xbf16>
    %cst_42 = arith.constant dense<0.000000e+00> : vector<24x12xf32>
    %57 = tpu.matmul %56, %6, %cst_42 {dimension_numbers = #tpu.dot_dimension_numbers<[1], [0], [0], [1], [0, 0, 1, 1], [], []>} : vector<24x20xbf16>, vector<20x12xbf16>, vector<24x12xf32> -> vector<24x12xf32>
    %58 = arith.addf %53, %57 : vector<24x12xf32>
    %c3_43 = arith.constant 3 : index
    %c0_44 = arith.constant 0 : index
    %c0_45 = arith.constant 0 : index
    %59 = vector.load %arg1[%c3_43, %c0_44, %c0_45] : memref<10x24x20xf32, #tpu.memory_space<vmem>>, vector<1x24x20xf32>
    %60 = vector.shape_cast %59 : vector<1x24x20xf32> to vector<24x20xf32>
    %61 = arith.truncf %60 : vector<24x20xf32> to vector<24x20xbf16>
    %cst_46 = arith.constant dense<0.000000e+00> : vector<24x12xf32>
    %62 = tpu.matmul %61, %9, %cst_46 {dimension_numbers = #tpu.dot_dimension_numbers<[1], [0], [0], [1], [0, 0, 1, 1], [], []>} : vector<24x20xbf16>, vector<20x12xbf16>, vector<24x12xf32> -> vector<24x12xf32>
    %63 = arith.addf %58, %62 : vector<24x12xf32>
    %c4_47 = arith.constant 4 : index
    %c0_48 = arith.constant 0 : index
    %c0_49 = arith.constant 0 : index
    %64 = vector.load %arg1[%c4_47, %c0_48, %c0_49] : memref<10x24x20xf32, #tpu.memory_space<vmem>>, vector<1x24x20xf32>
    %65 = vector.shape_cast %64 : vector<1x24x20xf32> to vector<24x20xf32>
    %66 = arith.truncf %65 : vector<24x20xf32> to vector<24x20xbf16>
    %cst_50 = arith.constant dense<0.000000e+00> : vector<24x12xf32>
    %67 = tpu.matmul %66, %12, %cst_50 {dimension_numbers = #tpu.dot_dimension_numbers<[1], [0], [0], [1], [0, 0, 1, 1], [], []>} : vector<24x20xbf16>, vector<20x12xbf16>, vector<24x12xf32> -> vector<24x12xf32>
    %68 = arith.addf %63, %67 : vector<24x12xf32>
    %c5 = arith.constant 5 : index
    %c0_51 = arith.constant 0 : index
    %c0_52 = arith.constant 0 : index
    %69 = vector.load %arg1[%c5, %c0_51, %c0_52] : memref<10x24x20xf32, #tpu.memory_space<vmem>>, vector<1x24x20xf32>
    %70 = vector.shape_cast %69 : vector<1x24x20xf32> to vector<24x20xf32>
    %71 = arith.truncf %70 : vector<24x20xf32> to vector<24x20xbf16>
    %cst_53 = arith.constant dense<0.000000e+00> : vector<24x12xf32>
    %72 = tpu.matmul %71, %15, %cst_53 {dimension_numbers = #tpu.dot_dimension_numbers<[1], [0], [0], [1], [0, 0, 1, 1], [], []>} : vector<24x20xbf16>, vector<20x12xbf16>, vector<24x12xf32> -> vector<24x12xf32>
    %73 = arith.addf %68, %72 : vector<24x12xf32>
    %74 = vector.broadcast %0 : vector<1x12xf32> to vector<24x12xf32>
    %75 = arith.addf %73, %74 : vector<24x12xf32>
    %cst_54 = arith.constant 0.000000e+00 : f32
    %76 = vector.broadcast %cst_54 : f32 to vector<24x12xf32>
    %77 = arith.maximumf %75, %76 : vector<24x12xf32>
    %78 = arith.maximumf %47, %77 : vector<24x12xf32>
    %cst_55 = arith.constant 0.000000e+00 : f32
    %79 = vector.broadcast %cst_55 : f32 to vector<24x12xf32>
    %c2_56 = arith.constant 2 : index
    %c0_57 = arith.constant 0 : index
    %c0_58 = arith.constant 0 : index
    %80 = vector.load %arg1[%c2_56, %c0_57, %c0_58] : memref<10x24x20xf32, #tpu.memory_space<vmem>>, vector<1x24x20xf32>
    %81 = vector.shape_cast %80 : vector<1x24x20xf32> to vector<24x20xf32>
    %82 = arith.truncf %81 : vector<24x20xf32> to vector<24x20xbf16>
    %cst_59 = arith.constant dense<0.000000e+00> : vector<24x12xf32>
    %83 = tpu.matmul %82, %3, %cst_59 {dimension_numbers = #tpu.dot_dimension_numbers<[1], [0], [0], [1], [0, 0, 1, 1], [], []>} : vector<24x20xbf16>, vector<20x12xbf16>, vector<24x12xf32> -> vector<24x12xf32>
    %84 = arith.addf %79, %83 : vector<24x12xf32>
    %c3_60 = arith.constant 3 : index
    %c0_61 = arith.constant 0 : index
    %c0_62 = arith.constant 0 : index
    %85 = vector.load %arg1[%c3_60, %c0_61, %c0_62] : memref<10x24x20xf32, #tpu.memory_space<vmem>>, vector<1x24x20xf32>
    %86 = vector.shape_cast %85 : vector<1x24x20xf32> to vector<24x20xf32>
    %87 = arith.truncf %86 : vector<24x20xf32> to vector<24x20xbf16>
    %cst_63 = arith.constant dense<0.000000e+00> : vector<24x12xf32>
    %88 = tpu.matmul %87, %6, %cst_63 {dimension_numbers = #tpu.dot_dimension_numbers<[1], [0], [0], [1], [0, 0, 1, 1], [], []>} : vector<24x20xbf16>, vector<20x12xbf16>, vector<24x12xf32> -> vector<24x12xf32>
    %89 = arith.addf %84, %88 : vector<24x12xf32>
    %c4_64 = arith.constant 4 : index
    %c0_65 = arith.constant 0 : index
    %c0_66 = arith.constant 0 : index
    %90 = vector.load %arg1[%c4_64, %c0_65, %c0_66] : memref<10x24x20xf32, #tpu.memory_space<vmem>>, vector<1x24x20xf32>
    %91 = vector.shape_cast %90 : vector<1x24x20xf32> to vector<24x20xf32>
    %92 = arith.truncf %91 : vector<24x20xf32> to vector<24x20xbf16>
    %cst_67 = arith.constant dense<0.000000e+00> : vector<24x12xf32>
    %93 = tpu.matmul %92, %9, %cst_67 {dimension_numbers = #tpu.dot_dimension_numbers<[1], [0], [0], [1], [0, 0, 1, 1], [], []>} : vector<24x20xbf16>, vector<20x12xbf16>, vector<24x12xf32> -> vector<24x12xf32>
    %94 = arith.addf %89, %93 : vector<24x12xf32>
    %c5_68 = arith.constant 5 : index
    %c0_69 = arith.constant 0 : index
    %c0_70 = arith.constant 0 : index
    %95 = vector.load %arg1[%c5_68, %c0_69, %c0_70] : memref<10x24x20xf32, #tpu.memory_space<vmem>>, vector<1x24x20xf32>
    %96 = vector.shape_cast %95 : vector<1x24x20xf32> to vector<24x20xf32>
    %97 = arith.truncf %96 : vector<24x20xf32> to vector<24x20xbf16>
    %cst_71 = arith.constant dense<0.000000e+00> : vector<24x12xf32>
    %98 = tpu.matmul %97, %12, %cst_71 {dimension_numbers = #tpu.dot_dimension_numbers<[1], [0], [0], [1], [0, 0, 1, 1], [], []>} : vector<24x20xbf16>, vector<20x12xbf16>, vector<24x12xf32> -> vector<24x12xf32>
    %99 = arith.addf %94, %98 : vector<24x12xf32>
    %c6 = arith.constant 6 : index
    %c0_72 = arith.constant 0 : index
    %c0_73 = arith.constant 0 : index
    %100 = vector.load %arg1[%c6, %c0_72, %c0_73] : memref<10x24x20xf32, #tpu.memory_space<vmem>>, vector<1x24x20xf32>
    %101 = vector.shape_cast %100 : vector<1x24x20xf32> to vector<24x20xf32>
    %102 = arith.truncf %101 : vector<24x20xf32> to vector<24x20xbf16>
    %cst_74 = arith.constant dense<0.000000e+00> : vector<24x12xf32>
    %103 = tpu.matmul %102, %15, %cst_74 {dimension_numbers = #tpu.dot_dimension_numbers<[1], [0], [0], [1], [0, 0, 1, 1], [], []>} : vector<24x20xbf16>, vector<20x12xbf16>, vector<24x12xf32> -> vector<24x12xf32>
    %104 = arith.addf %99, %103 : vector<24x12xf32>
    %105 = vector.broadcast %0 : vector<1x12xf32> to vector<24x12xf32>
    %106 = arith.addf %104, %105 : vector<24x12xf32>
    %cst_75 = arith.constant 0.000000e+00 : f32
    %107 = vector.broadcast %cst_75 : f32 to vector<24x12xf32>
    %108 = arith.maximumf %106, %107 : vector<24x12xf32>
    %109 = arith.maximumf %78, %108 : vector<24x12xf32>
    %cst_76 = arith.constant 0.000000e+00 : f32
    %110 = vector.broadcast %cst_76 : f32 to vector<24x12xf32>
    %c3_77 = arith.constant 3 : index
    %c0_78 = arith.constant 0 : index
    %c0_79 = arith.constant 0 : index
    %111 = vector.load %arg1[%c3_77, %c0_78, %c0_79] : memref<10x24x20xf32, #tpu.memory_space<vmem>>, vector<1x24x20xf32>
    %112 = vector.shape_cast %111 : vector<1x24x20xf32> to vector<24x20xf32>
    %113 = arith.truncf %112 : vector<24x20xf32> to vector<24x20xbf16>
    %cst_80 = arith.constant dense<0.000000e+00> : vector<24x12xf32>
    %114 = tpu.matmul %113, %3, %cst_80 {dimension_numbers = #tpu.dot_dimension_numbers<[1], [0], [0], [1], [0, 0, 1, 1], [], []>} : vector<24x20xbf16>, vector<20x12xbf16>, vector<24x12xf32> -> vector<24x12xf32>
    %115 = arith.addf %110, %114 : vector<24x12xf32>
    %c4_81 = arith.constant 4 : index
    %c0_82 = arith.constant 0 : index
    %c0_83 = arith.constant 0 : index
    %116 = vector.load %arg1[%c4_81, %c0_82, %c0_83] : memref<10x24x20xf32, #tpu.memory_space<vmem>>, vector<1x24x20xf32>
    %117 = vector.shape_cast %116 : vector<1x24x20xf32> to vector<24x20xf32>
    %118 = arith.truncf %117 : vector<24x20xf32> to vector<24x20xbf16>
    %cst_84 = arith.constant dense<0.000000e+00> : vector<24x12xf32>
    %119 = tpu.matmul %118, %6, %cst_84 {dimension_numbers = #tpu.dot_dimension_numbers<[1], [0], [0], [1], [0, 0, 1, 1], [], []>} : vector<24x20xbf16>, vector<20x12xbf16>, vector<24x12xf32> -> vector<24x12xf32>
    %120 = arith.addf %115, %119 : vector<24x12xf32>
    %c5_85 = arith.constant 5 : index
    %c0_86 = arith.constant 0 : index
    %c0_87 = arith.constant 0 : index
    %121 = vector.load %arg1[%c5_85, %c0_86, %c0_87] : memref<10x24x20xf32, #tpu.memory_space<vmem>>, vector<1x24x20xf32>
    %122 = vector.shape_cast %121 : vector<1x24x20xf32> to vector<24x20xf32>
    %123 = arith.truncf %122 : vector<24x20xf32> to vector<24x20xbf16>
    %cst_88 = arith.constant dense<0.000000e+00> : vector<24x12xf32>
    %124 = tpu.matmul %123, %9, %cst_88 {dimension_numbers = #tpu.dot_dimension_numbers<[1], [0], [0], [1], [0, 0, 1, 1], [], []>} : vector<24x20xbf16>, vector<20x12xbf16>, vector<24x12xf32> -> vector<24x12xf32>
    %125 = arith.addf %120, %124 : vector<24x12xf32>
    %c6_89 = arith.constant 6 : index
    %c0_90 = arith.constant 0 : index
    %c0_91 = arith.constant 0 : index
    %126 = vector.load %arg1[%c6_89, %c0_90, %c0_91] : memref<10x24x20xf32, #tpu.memory_space<vmem>>, vector<1x24x20xf32>
    %127 = vector.shape_cast %126 : vector<1x24x20xf32> to vector<24x20xf32>
    %128 = arith.truncf %127 : vector<24x20xf32> to vector<24x20xbf16>
    %cst_92 = arith.constant dense<0.000000e+00> : vector<24x12xf32>
    %129 = tpu.matmul %128, %12, %cst_92 {dimension_numbers = #tpu.dot_dimension_numbers<[1], [0], [0], [1], [0, 0, 1, 1], [], []>} : vector<24x20xbf16>, vector<20x12xbf16>, vector<24x12xf32> -> vector<24x12xf32>
    %130 = arith.addf %125, %129 : vector<24x12xf32>
    %c7 = arith.constant 7 : index
    %c0_93 = arith.constant 0 : index
    %c0_94 = arith.constant 0 : index
    %131 = vector.load %arg1[%c7, %c0_93, %c0_94] : memref<10x24x20xf32, #tpu.memory_space<vmem>>, vector<1x24x20xf32>
    %132 = vector.shape_cast %131 : vector<1x24x20xf32> to vector<24x20xf32>
    %133 = arith.truncf %132 : vector<24x20xf32> to vector<24x20xbf16>
    %cst_95 = arith.constant dense<0.000000e+00> : vector<24x12xf32>
    %134 = tpu.matmul %133, %15, %cst_95 {dimension_numbers = #tpu.dot_dimension_numbers<[1], [0], [0], [1], [0, 0, 1, 1], [], []>} : vector<24x20xbf16>, vector<20x12xbf16>, vector<24x12xf32> -> vector<24x12xf32>
    %135 = arith.addf %130, %134 : vector<24x12xf32>
    %136 = vector.broadcast %0 : vector<1x12xf32> to vector<24x12xf32>
    %137 = arith.addf %135, %136 : vector<24x12xf32>
    %cst_96 = arith.constant 0.000000e+00 : f32
    %138 = vector.broadcast %cst_96 : f32 to vector<24x12xf32>
    %139 = arith.maximumf %137, %138 : vector<24x12xf32>
    %140 = arith.maximumf %109, %139 : vector<24x12xf32>
    %cst_97 = arith.constant 0.000000e+00 : f32
    %141 = vector.broadcast %cst_97 : f32 to vector<24x12xf32>
    %c4_98 = arith.constant 4 : index
    %c0_99 = arith.constant 0 : index
    %c0_100 = arith.constant 0 : index
    %142 = vector.load %arg1[%c4_98, %c0_99, %c0_100] : memref<10x24x20xf32, #tpu.memory_space<vmem>>, vector<1x24x20xf32>
    %143 = vector.shape_cast %142 : vector<1x24x20xf32> to vector<24x20xf32>
    %144 = arith.truncf %143 : vector<24x20xf32> to vector<24x20xbf16>
    %cst_101 = arith.constant dense<0.000000e+00> : vector<24x12xf32>
    %145 = tpu.matmul %144, %3, %cst_101 {dimension_numbers = #tpu.dot_dimension_numbers<[1], [0], [0], [1], [0, 0, 1, 1], [], []>} : vector<24x20xbf16>, vector<20x12xbf16>, vector<24x12xf32> -> vector<24x12xf32>
    %146 = arith.addf %141, %145 : vector<24x12xf32>
    %c5_102 = arith.constant 5 : index
    %c0_103 = arith.constant 0 : index
    %c0_104 = arith.constant 0 : index
    %147 = vector.load %arg1[%c5_102, %c0_103, %c0_104] : memref<10x24x20xf32, #tpu.memory_space<vmem>>, vector<1x24x20xf32>
    %148 = vector.shape_cast %147 : vector<1x24x20xf32> to vector<24x20xf32>
    %149 = arith.truncf %148 : vector<24x20xf32> to vector<24x20xbf16>
    %cst_105 = arith.constant dense<0.000000e+00> : vector<24x12xf32>
    %150 = tpu.matmul %149, %6, %cst_105 {dimension_numbers = #tpu.dot_dimension_numbers<[1], [0], [0], [1], [0, 0, 1, 1], [], []>} : vector<24x20xbf16>, vector<20x12xbf16>, vector<24x12xf32> -> vector<24x12xf32>
    %151 = arith.addf %146, %150 : vector<24x12xf32>
    %c6_106 = arith.constant 6 : index
    %c0_107 = arith.constant 0 : index
    %c0_108 = arith.constant 0 : index
    %152 = vector.load %arg1[%c6_106, %c0_107, %c0_108] : memref<10x24x20xf32, #tpu.memory_space<vmem>>, vector<1x24x20xf32>
    %153 = vector.shape_cast %152 : vector<1x24x20xf32> to vector<24x20xf32>
    %154 = arith.truncf %153 : vector<24x20xf32> to vector<24x20xbf16>
    %cst_109 = arith.constant dense<0.000000e+00> : vector<24x12xf32>
    %155 = tpu.matmul %154, %9, %cst_109 {dimension_numbers = #tpu.dot_dimension_numbers<[1], [0], [0], [1], [0, 0, 1, 1], [], []>} : vector<24x20xbf16>, vector<20x12xbf16>, vector<24x12xf32> -> vector<24x12xf32>
    %156 = arith.addf %151, %155 : vector<24x12xf32>
    %c7_110 = arith.constant 7 : index
    %c0_111 = arith.constant 0 : index
    %c0_112 = arith.constant 0 : index
    %157 = vector.load %arg1[%c7_110, %c0_111, %c0_112] : memref<10x24x20xf32, #tpu.memory_space<vmem>>, vector<1x24x20xf32>
    %158 = vector.shape_cast %157 : vector<1x24x20xf32> to vector<24x20xf32>
    %159 = arith.truncf %158 : vector<24x20xf32> to vector<24x20xbf16>
    %cst_113 = arith.constant dense<0.000000e+00> : vector<24x12xf32>
    %160 = tpu.matmul %159, %12, %cst_113 {dimension_numbers = #tpu.dot_dimension_numbers<[1], [0], [0], [1], [0, 0, 1, 1], [], []>} : vector<24x20xbf16>, vector<20x12xbf16>, vector<24x12xf32> -> vector<24x12xf32>
    %161 = arith.addf %156, %160 : vector<24x12xf32>
    %c8 = arith.constant 8 : index
    %c0_114 = arith.constant 0 : index
    %c0_115 = arith.constant 0 : index
    %162 = vector.load %arg1[%c8, %c0_114, %c0_115] : memref<10x24x20xf32, #tpu.memory_space<vmem>>, vector<1x24x20xf32>
    %163 = vector.shape_cast %162 : vector<1x24x20xf32> to vector<24x20xf32>
    %164 = arith.truncf %163 : vector<24x20xf32> to vector<24x20xbf16>
    %cst_116 = arith.constant dense<0.000000e+00> : vector<24x12xf32>
    %165 = tpu.matmul %164, %15, %cst_116 {dimension_numbers = #tpu.dot_dimension_numbers<[1], [0], [0], [1], [0, 0, 1, 1], [], []>} : vector<24x20xbf16>, vector<20x12xbf16>, vector<24x12xf32> -> vector<24x12xf32>
    %166 = arith.addf %161, %165 : vector<24x12xf32>
    %167 = vector.broadcast %0 : vector<1x12xf32> to vector<24x12xf32>
    %168 = arith.addf %166, %167 : vector<24x12xf32>
    %cst_117 = arith.constant 0.000000e+00 : f32
    %169 = vector.broadcast %cst_117 : f32 to vector<24x12xf32>
    %170 = arith.maximumf %168, %169 : vector<24x12xf32>
    %171 = arith.maximumf %140, %170 : vector<24x12xf32>
    %cst_118 = arith.constant 0.000000e+00 : f32
    %172 = vector.broadcast %cst_118 : f32 to vector<24x12xf32>
    %c5_119 = arith.constant 5 : index
    %c0_120 = arith.constant 0 : index
    %c0_121 = arith.constant 0 : index
    %173 = vector.load %arg1[%c5_119, %c0_120, %c0_121] : memref<10x24x20xf32, #tpu.memory_space<vmem>>, vector<1x24x20xf32>
    %174 = vector.shape_cast %173 : vector<1x24x20xf32> to vector<24x20xf32>
    %175 = arith.truncf %174 : vector<24x20xf32> to vector<24x20xbf16>
    %cst_122 = arith.constant dense<0.000000e+00> : vector<24x12xf32>
    %176 = tpu.matmul %175, %3, %cst_122 {dimension_numbers = #tpu.dot_dimension_numbers<[1], [0], [0], [1], [0, 0, 1, 1], [], []>} : vector<24x20xbf16>, vector<20x12xbf16>, vector<24x12xf32> -> vector<24x12xf32>
    %177 = arith.addf %172, %176 : vector<24x12xf32>
    %c6_123 = arith.constant 6 : index
    %c0_124 = arith.constant 0 : index
    %c0_125 = arith.constant 0 : index
    %178 = vector.load %arg1[%c6_123, %c0_124, %c0_125] : memref<10x24x20xf32, #tpu.memory_space<vmem>>, vector<1x24x20xf32>
    %179 = vector.shape_cast %178 : vector<1x24x20xf32> to vector<24x20xf32>
    %180 = arith.truncf %179 : vector<24x20xf32> to vector<24x20xbf16>
    %cst_126 = arith.constant dense<0.000000e+00> : vector<24x12xf32>
    %181 = tpu.matmul %180, %6, %cst_126 {dimension_numbers = #tpu.dot_dimension_numbers<[1], [0], [0], [1], [0, 0, 1, 1], [], []>} : vector<24x20xbf16>, vector<20x12xbf16>, vector<24x12xf32> -> vector<24x12xf32>
    %182 = arith.addf %177, %181 : vector<24x12xf32>
    %c7_127 = arith.constant 7 : index
    %c0_128 = arith.constant 0 : index
    %c0_129 = arith.constant 0 : index
    %183 = vector.load %arg1[%c7_127, %c0_128, %c0_129] : memref<10x24x20xf32, #tpu.memory_space<vmem>>, vector<1x24x20xf32>
    %184 = vector.shape_cast %183 : vector<1x24x20xf32> to vector<24x20xf32>
    %185 = arith.truncf %184 : vector<24x20xf32> to vector<24x20xbf16>
    %cst_130 = arith.constant dense<0.000000e+00> : vector<24x12xf32>
    %186 = tpu.matmul %185, %9, %cst_130 {dimension_numbers = #tpu.dot_dimension_numbers<[1], [0], [0], [1], [0, 0, 1, 1], [], []>} : vector<24x20xbf16>, vector<20x12xbf16>, vector<24x12xf32> -> vector<24x12xf32>
    %187 = arith.addf %182, %186 : vector<24x12xf32>
    %c8_131 = arith.constant 8 : index
    %c0_132 = arith.constant 0 : index
    %c0_133 = arith.constant 0 : index
    %188 = vector.load %arg1[%c8_131, %c0_132, %c0_133] : memref<10x24x20xf32, #tpu.memory_space<vmem>>, vector<1x24x20xf32>
    %189 = vector.shape_cast %188 : vector<1x24x20xf32> to vector<24x20xf32>
    %190 = arith.truncf %189 : vector<24x20xf32> to vector<24x20xbf16>
    %cst_134 = arith.constant dense<0.000000e+00> : vector<24x12xf32>
    %191 = tpu.matmul %190, %12, %cst_134 {dimension_numbers = #tpu.dot_dimension_numbers<[1], [0], [0], [1], [0, 0, 1, 1], [], []>} : vector<24x20xbf16>, vector<20x12xbf16>, vector<24x12xf32> -> vector<24x12xf32>
    %192 = arith.addf %187, %191 : vector<24x12xf32>
    %c9 = arith.constant 9 : index
    %c0_135 = arith.constant 0 : index
    %c0_136 = arith.constant 0 : index
    %193 = vector.load %arg1[%c9, %c0_135, %c0_136] : memref<10x24x20xf32, #tpu.memory_space<vmem>>, vector<1x24x20xf32>
    %194 = vector.shape_cast %193 : vector<1x24x20xf32> to vector<24x20xf32>
    %195 = arith.truncf %194 : vector<24x20xf32> to vector<24x20xbf16>
    %cst_137 = arith.constant dense<0.000000e+00> : vector<24x12xf32>
    %196 = tpu.matmul %195, %15, %cst_137 {dimension_numbers = #tpu.dot_dimension_numbers<[1], [0], [0], [1], [0, 0, 1, 1], [], []>} : vector<24x20xbf16>, vector<20x12xbf16>, vector<24x12xf32> -> vector<24x12xf32>
    %197 = arith.addf %192, %196 : vector<24x12xf32>
    %198 = vector.broadcast %0 : vector<1x12xf32> to vector<24x12xf32>
    %199 = arith.addf %197, %198 : vector<24x12xf32>
    %cst_138 = arith.constant 0.000000e+00 : f32
    %200 = vector.broadcast %cst_138 : f32 to vector<24x12xf32>
    %201 = arith.maximumf %199, %200 : vector<24x12xf32>
    %202 = arith.maximumf %171, %201 : vector<24x12xf32>
    %c0_139 = arith.constant 0 : index
    %c0_140 = arith.constant 0 : index
    %203 = vector.load %arg4[%c0_139, %c0_140] : memref<24x12xf32, #tpu.memory_space<vmem>>, vector<24x12xf32>
    tpu.vector_store %arg4[%c0_139, %c0_140], %202 {strides = array<i32>} : memref<24x12xf32, #tpu.memory_space<vmem>>, vector<24x12xf32>,
    return
  }
  func.func @transform_0(%arg0: i32) -> (i32, i32, i32) {
    %c0_i32 = arith.constant 0 : i32
    %c0_i32_0 = arith.constant 0 : i32
    %c0_i32_1 = arith.constant 0 : i32
    return %c0_i32, %arg0, %c0_i32_0 : i32, i32, i32
  }
  func.func @transform_1(%arg0: i32) -> (i32, i32, i32) {
    %c0_i32 = arith.constant 0 : i32
    %c0_i32_0 = arith.constant 0 : i32
    %c0_i32_1 = arith.constant 0 : i32
    %c0_i32_2 = arith.constant 0 : i32
    return %c0_i32, %c0_i32_0, %c0_i32_1 : i32, i32, i32
  }
  func.func @transform_2(%arg0: i32) -> (i32, i32) {
    %c0_i32 = arith.constant 0 : i32
    %c0_i32_0 = arith.constant 0 : i32
    %c0_i32_1 = arith.constant 0 : i32
    return %c0_i32, %c0_i32_0 : i32, i32
  }
  func.func @transform_3(%arg0: i32) -> (i32, i32) {
    %c0_i32 = arith.constant 0 : i32
    %c0_i32_0 = arith.constant 0 : i32
    return %arg0, %c0_i32 : i32, i32
  }
}

module attributes {stable_mosaic.version = 11 : i64} {
  func.func @_bigru_kernel(%arg0: i32, %arg1: memref<12x2x28xf32, #tpu.memory_space<vmem>>, %arg2: memref<28x48xf32, #tpu.memory_space<vmem>>, %arg3: memref<1x48xf32, #tpu.memory_space<vmem>>, %arg4: memref<16x48xf32, #tpu.memory_space<vmem>>, %arg5: memref<1x48xf32, #tpu.memory_space<vmem>>, %arg6: memref<28x48xf32, #tpu.memory_space<vmem>>, %arg7: memref<1x48xf32, #tpu.memory_space<vmem>>, %arg8: memref<16x48xf32, #tpu.memory_space<vmem>>, %arg9: memref<1x48xf32, #tpu.memory_space<vmem>>, %arg10: memref<12x2x16xf32, #tpu.memory_space<vmem>>, %arg11: memref<12x2x16xf32, #tpu.memory_space<vmem>>, %arg12: memref<2x16xf32, #tpu.memory_space<vmem>>, %arg13: memref<2x16xf32, #tpu.memory_space<vmem>>) attributes {dimension_semantics = [#tpu.dimension_semantics<parallel>], iteration_bounds = array<i64: 1>, scalar_prefetch = 0 : i64, scratch_operands = 2 : i64, tpu.core_type = #tpu.core_type<tc>, window_params = [{transform_indices = @transform_0, window_bounds = array<i64: 12, 2, 28>}, {pipeline_mode = #tpu.pipeline_mode<synchronous>, transform_indices = @transform_1, window_bounds = array<i64: 28, 48>}, {pipeline_mode = #tpu.pipeline_mode<synchronous>, transform_indices = @transform_2, window_bounds = array<i64: 1, 48>}, {pipeline_mode = #tpu.pipeline_mode<synchronous>, transform_indices = @transform_3, window_bounds = array<i64: 16, 48>}, {pipeline_mode = #tpu.pipeline_mode<synchronous>, transform_indices = @transform_4, window_bounds = array<i64: 1, 48>}, {pipeline_mode = #tpu.pipeline_mode<synchronous>, transform_indices = @transform_5, window_bounds = array<i64: 28, 48>}, {pipeline_mode = #tpu.pipeline_mode<synchronous>, transform_indices = @transform_6, window_bounds = array<i64: 1, 48>}, {pipeline_mode = #tpu.pipeline_mode<synchronous>, transform_indices = @transform_7, window_bounds = array<i64: 16, 48>}, {pipeline_mode = #tpu.pipeline_mode<synchronous>, transform_indices = @transform_8, window_bounds = array<i64: 1, 48>}, {transform_indices = @transform_9, window_bounds = array<i64: 12, 2, 16>}, {transform_indices = @transform_10, window_bounds = array<i64: 12, 2, 16>}]} {
    %cst = arith.constant 0.000000e+00 : f32
    %0 = vector.broadcast %cst : f32 to vector<2x16xf32>
    %c0 = arith.constant 0 : index
    %c0_0 = arith.constant 0 : index
    %1 = vector.load %arg12[%c0, %c0_0] : memref<2x16xf32, #tpu.memory_space<vmem>>, vector<2x16xf32>
    tpu.vector_store %arg12[%c0, %c0_0], %0 {strides = array<i32>} : memref<2x16xf32, #tpu.memory_space<vmem>>, vector<2x16xf32>,
    %cst_1 = arith.constant 0.000000e+00 : f32
    %2 = vector.broadcast %cst_1 : f32 to vector<2x16xf32>
    %c0_2 = arith.constant 0 : index
    %c0_3 = arith.constant 0 : index
    %3 = vector.load %arg13[%c0_2, %c0_3] : memref<2x16xf32, #tpu.memory_space<vmem>>, vector<2x16xf32>
    tpu.vector_store %arg13[%c0_2, %c0_3], %2 {strides = array<i32>} : memref<2x16xf32, #tpu.memory_space<vmem>>, vector<2x16xf32>,
    %c0_4 = arith.constant 0 : index
    %c0_5 = arith.constant 0 : index
    %4 = vector.load %arg2[%c0_4, %c0_5] : memref<28x48xf32, #tpu.memory_space<vmem>>, vector<28x48xf32>
    %5 = arith.truncf %4 : vector<28x48xf32> to vector<28x48xbf16>
    %c0_6 = arith.constant 0 : index
    %c0_7 = arith.constant 0 : index
    %6 = vector.load %arg6[%c0_6, %c0_7] : memref<28x48xf32, #tpu.memory_space<vmem>>, vector<28x48xf32>
    %7 = arith.truncf %6 : vector<28x48xf32> to vector<28x48xbf16>
    %c0_8 = arith.constant 0 : index
    %c0_9 = arith.constant 0 : index
    %8 = vector.load %arg4[%c0_8, %c0_9] : memref<16x48xf32, #tpu.memory_space<vmem>>, vector<16x48xf32>
    %c0_10 = arith.constant 0 : index
    %c0_11 = arith.constant 0 : index
    %9 = vector.load %arg8[%c0_10, %c0_11] : memref<16x48xf32, #tpu.memory_space<vmem>>, vector<16x48xf32>
    %c0_12 = arith.constant 0 : index
    %c0_13 = arith.constant 0 : index
    %10 = vector.load %arg3[%c0_12, %c0_13] : memref<1x48xf32, #tpu.memory_space<vmem>>, vector<1x48xf32>
    %c0_14 = arith.constant 0 : index
    %c0_15 = arith.constant 0 : index
    %11 = vector.load %arg7[%c0_14, %c0_15] : memref<1x48xf32, #tpu.memory_space<vmem>>, vector<1x48xf32>
    %c0_16 = arith.constant 0 : index
    %c0_17 = arith.constant 0 : index
    %12 = vector.load %arg5[%c0_16, %c0_17] : memref<1x48xf32, #tpu.memory_space<vmem>>, vector<1x48xf32>
    %c0_18 = arith.constant 0 : index
    %c0_19 = arith.constant 0 : index
    %13 = vector.load %arg9[%c0_18, %c0_19] : memref<1x48xf32, #tpu.memory_space<vmem>>, vector<1x48xf32>
    %c0_i32 = arith.constant 0 : i32
    %c12_i32 = arith.constant 12 : i32
    %14 = arith.addi %c0_i32, %c12_i32 : i32
    %c1_i32 = arith.constant 1 : i32
    scf.for %arg14 = %c0_i32 to %14 step %c1_i32  : i32 {
      %c1_i32_21 = arith.constant 1 : i32
      %15 = arith.muli %arg14, %c1_i32_21 : i32
      %c0_i32_22 = arith.constant 0 : i32
      %16 = arith.addi %c0_i32_22, %15 : i32
      %c11_i32 = arith.constant 11 : i32
      %17 = arith.subi %c11_i32, %16 : i32
      %18 = arith.index_cast %16 : i32 to index
      %c0_23 = arith.constant 0 : index
      %c0_24 = arith.constant 0 : index
      %19 = vector.load %arg1[%18, %c0_23, %c0_24] : memref<12x2x28xf32, #tpu.memory_space<vmem>>, vector<1x2x28xf32>
      %20 = vector.shape_cast %19 : vector<1x2x28xf32> to vector<2x28xf32>
      %21 = arith.truncf %20 : vector<2x28xf32> to vector<2x28xbf16>
      %cst_25 = arith.constant dense<0.000000e+00> : vector<2x48xf32>
      %22 = tpu.matmul %21, %5, %cst_25 {dimension_numbers = #tpu.dot_dimension_numbers<[1], [0], [0], [1], [0, 0, 1, 1], [], []>} : vector<2x28xbf16>, vector<28x48xbf16>, vector<2x48xf32> -> vector<2x48xf32>
      %23 = vector.broadcast %10 : vector<1x48xf32> to vector<2x48xf32>
      %24 = arith.addf %22, %23 : vector<2x48xf32>
      %25 = arith.index_cast %17 : i32 to index
      %c0_26 = arith.constant 0 : index
      %c0_27 = arith.constant 0 : index
      %26 = vector.load %arg1[%25, %c0_26, %c0_27] : memref<12x2x28xf32, #tpu.memory_space<vmem>>, vector<1x2x28xf32>
      %27 = vector.shape_cast %26 : vector<1x2x28xf32> to vector<2x28xf32>
      %28 = arith.truncf %27 : vector<2x28xf32> to vector<2x28xbf16>
      %cst_28 = arith.constant dense<0.000000e+00> : vector<2x48xf32>
      %29 = tpu.matmul %28, %7, %cst_28 {dimension_numbers = #tpu.dot_dimension_numbers<[1], [0], [0], [1], [0, 0, 1, 1], [], []>} : vector<2x28xbf16>, vector<28x48xbf16>, vector<2x48xf32> -> vector<2x48xf32>
      %30 = vector.broadcast %11 : vector<1x48xf32> to vector<2x48xf32>
      %31 = arith.addf %29, %30 : vector<2x48xf32>
      %c0_29 = arith.constant 0 : index
      %c0_30 = arith.constant 0 : index
      %32 = vector.load %arg12[%c0_29, %c0_30] : memref<2x16xf32, #tpu.memory_space<vmem>>, vector<2x16xf32>
      %cst_31 = arith.constant dense<0.000000e+00> : vector<2x48xf32>
      %33 = tpu.matmul %32, %8, %cst_31 {dimension_numbers = #tpu.dot_dimension_numbers<[1], [0], [0], [1], [0, 0, 1, 1], [], []>} : vector<2x16xf32>, vector<16x48xf32>, vector<2x48xf32> -> vector<2x48xf32>
      %34 = vector.broadcast %12 : vector<1x48xf32> to vector<2x48xf32>
      %35 = arith.addf %33, %34 : vector<2x48xf32>
      %36 = vector.extract_strided_slice %24 {offsets = [0, 0], sizes = [2, 16], strides = [1, 1]} : vector<2x48xf32> to vector<2x16xf32>
      %37 = vector.extract_strided_slice %35 {offsets = [0, 0], sizes = [2, 16], strides = [1, 1]} : vector<2x48xf32> to vector<2x16xf32>
      %38 = arith.addf %36, %37 : vector<2x16xf32>
      %39 = arith.negf %38 : vector<2x16xf32>
      %40 = math.exp %39 : vector<2x16xf32>
      %cst_32 = arith.constant 1.000000e+00 : f32
      %41 = vector.broadcast %cst_32 : f32 to vector<2x16xf32>
      %42 = arith.addf %41, %40 : vector<2x16xf32>
      %43 = arith.divf %41, %42 : vector<2x16xf32>
      %44 = vector.extract_strided_slice %24 {offsets = [0, 16], sizes = [2, 16], strides = [1, 1]} : vector<2x48xf32> to vector<2x16xf32>
      %45 = vector.extract_strided_slice %35 {offsets = [0, 16], sizes = [2, 16], strides = [1, 1]} : vector<2x48xf32> to vector<2x16xf32>
      %46 = arith.addf %44, %45 : vector<2x16xf32>
      %47 = arith.negf %46 : vector<2x16xf32>
      %48 = math.exp %47 : vector<2x16xf32>
      %cst_33 = arith.constant 1.000000e+00 : f32
      %49 = vector.broadcast %cst_33 : f32 to vector<2x16xf32>
      %50 = arith.addf %49, %48 : vector<2x16xf32>
      %51 = arith.divf %49, %50 : vector<2x16xf32>
      %52 = vector.extract_strided_slice %24 {offsets = [0, 32], sizes = [2, 16], strides = [1, 1]} : vector<2x48xf32> to vector<2x16xf32>
      %53 = vector.extract_strided_slice %35 {offsets = [0, 32], sizes = [2, 16], strides = [1, 1]} : vector<2x48xf32> to vector<2x16xf32>
      %54 = arith.mulf %43, %53 : vector<2x16xf32>
      %55 = arith.addf %52, %54 : vector<2x16xf32>
      %56 = math.tanh %55 : vector<2x16xf32>
      %cst_34 = arith.constant 1.000000e+00 : f32
      %57 = vector.broadcast %cst_34 : f32 to vector<2x16xf32>
      %58 = arith.subf %57, %51 : vector<2x16xf32>
      %59 = arith.mulf %58, %56 : vector<2x16xf32>
      %60 = arith.mulf %51, %32 : vector<2x16xf32>
      %61 = arith.addf %59, %60 : vector<2x16xf32>
      %c0_35 = arith.constant 0 : index
      %c0_36 = arith.constant 0 : index
      %62 = vector.load %arg13[%c0_35, %c0_36] : memref<2x16xf32, #tpu.memory_space<vmem>>, vector<2x16xf32>
      %cst_37 = arith.constant dense<0.000000e+00> : vector<2x48xf32>
      %63 = tpu.matmul %62, %9, %cst_37 {dimension_numbers = #tpu.dot_dimension_numbers<[1], [0], [0], [1], [0, 0, 1, 1], [], []>} : vector<2x16xf32>, vector<16x48xf32>, vector<2x48xf32> -> vector<2x48xf32>
      %64 = vector.broadcast %13 : vector<1x48xf32> to vector<2x48xf32>
      %65 = arith.addf %63, %64 : vector<2x48xf32>
      %66 = vector.extract_strided_slice %31 {offsets = [0, 0], sizes = [2, 16], strides = [1, 1]} : vector<2x48xf32> to vector<2x16xf32>
      %67 = vector.extract_strided_slice %65 {offsets = [0, 0], sizes = [2, 16], strides = [1, 1]} : vector<2x48xf32> to vector<2x16xf32>
      %68 = arith.addf %66, %67 : vector<2x16xf32>
      %69 = arith.negf %68 : vector<2x16xf32>
      %70 = math.exp %69 : vector<2x16xf32>
      %cst_38 = arith.constant 1.000000e+00 : f32
      %71 = vector.broadcast %cst_38 : f32 to vector<2x16xf32>
      %72 = arith.addf %71, %70 : vector<2x16xf32>
      %73 = arith.divf %71, %72 : vector<2x16xf32>
      %74 = vector.extract_strided_slice %31 {offsets = [0, 16], sizes = [2, 16], strides = [1, 1]} : vector<2x48xf32> to vector<2x16xf32>
      %75 = vector.extract_strided_slice %65 {offsets = [0, 16], sizes = [2, 16], strides = [1, 1]} : vector<2x48xf32> to vector<2x16xf32>
      %76 = arith.addf %74, %75 : vector<2x16xf32>
      %77 = arith.negf %76 : vector<2x16xf32>
      %78 = math.exp %77 : vector<2x16xf32>
      %cst_39 = arith.constant 1.000000e+00 : f32
      %79 = vector.broadcast %cst_39 : f32 to vector<2x16xf32>
      %80 = arith.addf %79, %78 : vector<2x16xf32>
      %81 = arith.divf %79, %80 : vector<2x16xf32>
      %82 = vector.extract_strided_slice %31 {offsets = [0, 32], sizes = [2, 16], strides = [1, 1]} : vector<2x48xf32> to vector<2x16xf32>
      %83 = vector.extract_strided_slice %65 {offsets = [0, 32], sizes = [2, 16], strides = [1, 1]} : vector<2x48xf32> to vector<2x16xf32>
      %84 = arith.mulf %73, %83 : vector<2x16xf32>
      %85 = arith.addf %82, %84 : vector<2x16xf32>
      %86 = math.tanh %85 : vector<2x16xf32>
      %cst_40 = arith.constant 1.000000e+00 : f32
      %87 = vector.broadcast %cst_40 : f32 to vector<2x16xf32>
      %88 = arith.subf %87, %81 : vector<2x16xf32>
      %89 = arith.mulf %88, %86 : vector<2x16xf32>
      %90 = arith.mulf %81, %62 : vector<2x16xf32>
      %91 = arith.addf %89, %90 : vector<2x16xf32>
      %c0_41 = arith.constant 0 : index
      %c0_42 = arith.constant 0 : index
      %92 = vector.load %arg12[%c0_41, %c0_42] : memref<2x16xf32, #tpu.memory_space<vmem>>, vector<2x16xf32>
      tpu.vector_store %arg12[%c0_41, %c0_42], %61 {strides = array<i32>} : memref<2x16xf32, #tpu.memory_space<vmem>>, vector<2x16xf32>,
      %c0_43 = arith.constant 0 : index
      %c0_44 = arith.constant 0 : index
      %93 = vector.load %arg13[%c0_43, %c0_44] : memref<2x16xf32, #tpu.memory_space<vmem>>, vector<2x16xf32>
      tpu.vector_store %arg13[%c0_43, %c0_44], %91 {strides = array<i32>} : memref<2x16xf32, #tpu.memory_space<vmem>>, vector<2x16xf32>,
      %94 = arith.index_cast %16 : i32 to index
      %c0_45 = arith.constant 0 : index
      %c0_46 = arith.constant 0 : index
      %95 = vector.load %arg10[%94, %c0_45, %c0_46] : memref<12x2x16xf32, #tpu.memory_space<vmem>>, vector<1x2x16xf32>
      %96 = vector.shape_cast %95 : vector<1x2x16xf32> to vector<2x16xf32>
      %97 = vector.shape_cast %61 : vector<2x16xf32> to vector<1x2x16xf32>
      tpu.vector_store %arg10[%94, %c0_45, %c0_46], %97 {strides = array<i32>} : memref<12x2x16xf32, #tpu.memory_space<vmem>>, vector<1x2x16xf32>,
      %98 = arith.index_cast %17 : i32 to index
      %c0_47 = arith.constant 0 : index
      %c0_48 = arith.constant 0 : index
      %99 = vector.load %arg11[%98, %c0_47, %c0_48] : memref<12x2x16xf32, #tpu.memory_space<vmem>>, vector<1x2x16xf32>
      %100 = vector.shape_cast %99 : vector<1x2x16xf32> to vector<2x16xf32>
      %101 = vector.shape_cast %91 : vector<2x16xf32> to vector<1x2x16xf32>
      tpu.vector_store %arg11[%98, %c0_47, %c0_48], %101 {strides = array<i32>} : memref<12x2x16xf32, #tpu.memory_space<vmem>>, vector<1x2x16xf32>,
    }
    %c12_i32_20 = arith.constant 12 : i32
    return
  }
  func.func @transform_0(%arg0: i32) -> (i32, i32, i32) {
    %c0_i32 = arith.constant 0 : i32
    %c0_i32_0 = arith.constant 0 : i32
    %c0_i32_1 = arith.constant 0 : i32
    return %c0_i32, %arg0, %c0_i32_0 : i32, i32, i32
  }
  func.func @transform_1(%arg0: i32) -> (i32, i32) {
    %c0_i32 = arith.constant 0 : i32
    %c0_i32_0 = arith.constant 0 : i32
    %c0_i32_1 = arith.constant 0 : i32
    return %c0_i32, %c0_i32_0 : i32, i32
  }
  func.func @transform_2(%arg0: i32) -> (i32, i32) {
    %c0_i32 = arith.constant 0 : i32
    %c0_i32_0 = arith.constant 0 : i32
    %c0_i32_1 = arith.constant 0 : i32
    return %c0_i32, %c0_i32_0 : i32, i32
  }
  func.func @transform_3(%arg0: i32) -> (i32, i32) {
    %c0_i32 = arith.constant 0 : i32
    %c0_i32_0 = arith.constant 0 : i32
    %c0_i32_1 = arith.constant 0 : i32
    return %c0_i32, %c0_i32_0 : i32, i32
  }
  func.func @transform_4(%arg0: i32) -> (i32, i32) {
    %c0_i32 = arith.constant 0 : i32
    %c0_i32_0 = arith.constant 0 : i32
    %c0_i32_1 = arith.constant 0 : i32
    return %c0_i32, %c0_i32_0 : i32, i32
  }
  func.func @transform_5(%arg0: i32) -> (i32, i32) {
    %c0_i32 = arith.constant 0 : i32
    %c0_i32_0 = arith.constant 0 : i32
    %c0_i32_1 = arith.constant 0 : i32
    return %c0_i32, %c0_i32_0 : i32, i32
  }
  func.func @transform_6(%arg0: i32) -> (i32, i32) {
    %c0_i32 = arith.constant 0 : i32
    %c0_i32_0 = arith.constant 0 : i32
    %c0_i32_1 = arith.constant 0 : i32
    return %c0_i32, %c0_i32_0 : i32, i32
  }
  func.func @transform_7(%arg0: i32) -> (i32, i32) {
    %c0_i32 = arith.constant 0 : i32
    %c0_i32_0 = arith.constant 0 : i32
    %c0_i32_1 = arith.constant 0 : i32
    return %c0_i32, %c0_i32_0 : i32, i32
  }
  func.func @transform_8(%arg0: i32) -> (i32, i32) {
    %c0_i32 = arith.constant 0 : i32
    %c0_i32_0 = arith.constant 0 : i32
    %c0_i32_1 = arith.constant 0 : i32
    return %c0_i32, %c0_i32_0 : i32, i32
  }
  func.func @transform_9(%arg0: i32) -> (i32, i32, i32) {
    %c0_i32 = arith.constant 0 : i32
    %c0_i32_0 = arith.constant 0 : i32
    %c0_i32_1 = arith.constant 0 : i32
    return %c0_i32, %arg0, %c0_i32_0 : i32, i32, i32
  }
  func.func @transform_10(%arg0: i32) -> (i32, i32, i32) {
    %c0_i32 = arith.constant 0 : i32
    %c0_i32_0 = arith.constant 0 : i32
    %c0_i32_1 = arith.constant 0 : i32
    return %c0_i32, %arg0, %c0_i32_0 : i32, i32, i32
  }
}

module attributes {stable_mosaic.version = 11 : i64} {
  func.func @_charcnn_kernel(%arg0: i32, %arg1: memref<10x16x20xf32, #tpu.memory_space<vmem>>, %arg2: memref<5x20x12xf32, #tpu.memory_space<vmem>>, %arg3: memref<1x12xf32, #tpu.memory_space<vmem>>, %arg4: memref<16x12xf32, #tpu.memory_space<vmem>>) attributes {dimension_semantics = [#tpu.dimension_semantics<parallel>], iteration_bounds = array<i64: 1>, scalar_prefetch = 0 : i64, scratch_operands = 0 : i64, tpu.core_type = #tpu.core_type<tc>, window_params = [{transform_indices = @transform_0, window_bounds = array<i64: 10, 16, 20>}, {pipeline_mode = #tpu.pipeline_mode<synchronous>, transform_indices = @transform_1, window_bounds = array<i64: 5, 20, 12>}, {pipeline_mode = #tpu.pipeline_mode<synchronous>, transform_indices = @transform_2, window_bounds = array<i64: 1, 12>}, {transform_indices = @transform_3, window_bounds = array<i64: 16, 12>}]} {
    %c0 = arith.constant 0 : index
    %c0_0 = arith.constant 0 : index
    %0 = vector.load %arg3[%c0, %c0_0] : memref<1x12xf32, #tpu.memory_space<vmem>>, vector<1x12xf32>
    %c0_1 = arith.constant 0 : index
    %c0_2 = arith.constant 0 : index
    %c0_3 = arith.constant 0 : index
    %1 = vector.load %arg2[%c0_1, %c0_2, %c0_3] : memref<5x20x12xf32, #tpu.memory_space<vmem>>, vector<1x20x12xf32>
    %2 = vector.shape_cast %1 : vector<1x20x12xf32> to vector<20x12xf32>
    %3 = arith.truncf %2 : vector<20x12xf32> to vector<20x12xbf16>
    %c1 = arith.constant 1 : index
    %c0_4 = arith.constant 0 : index
    %c0_5 = arith.constant 0 : index
    %4 = vector.load %arg2[%c1, %c0_4, %c0_5] : memref<5x20x12xf32, #tpu.memory_space<vmem>>, vector<1x20x12xf32>
    %5 = vector.shape_cast %4 : vector<1x20x12xf32> to vector<20x12xf32>
    %6 = arith.truncf %5 : vector<20x12xf32> to vector<20x12xbf16>
    %c2 = arith.constant 2 : index
    %c0_6 = arith.constant 0 : index
    %c0_7 = arith.constant 0 : index
    %7 = vector.load %arg2[%c2, %c0_6, %c0_7] : memref<5x20x12xf32, #tpu.memory_space<vmem>>, vector<1x20x12xf32>
    %8 = vector.shape_cast %7 : vector<1x20x12xf32> to vector<20x12xf32>
    %9 = arith.truncf %8 : vector<20x12xf32> to vector<20x12xbf16>
    %c3 = arith.constant 3 : index
    %c0_8 = arith.constant 0 : index
    %c0_9 = arith.constant 0 : index
    %10 = vector.load %arg2[%c3, %c0_8, %c0_9] : memref<5x20x12xf32, #tpu.memory_space<vmem>>, vector<1x20x12xf32>
    %11 = vector.shape_cast %10 : vector<1x20x12xf32> to vector<20x12xf32>
    %12 = arith.truncf %11 : vector<20x12xf32> to vector<20x12xbf16>
    %c4 = arith.constant 4 : index
    %c0_10 = arith.constant 0 : index
    %c0_11 = arith.constant 0 : index
    %13 = vector.load %arg2[%c4, %c0_10, %c0_11] : memref<5x20x12xf32, #tpu.memory_space<vmem>>, vector<1x20x12xf32>
    %14 = vector.shape_cast %13 : vector<1x20x12xf32> to vector<20x12xf32>
    %15 = arith.truncf %14 : vector<20x12xf32> to vector<20x12xbf16>
    %cst = arith.constant 0.000000e+00 : f32
    %16 = vector.broadcast %cst : f32 to vector<16x12xf32>
    %cst_12 = arith.constant 0.000000e+00 : f32
    %17 = vector.broadcast %cst_12 : f32 to vector<16x12xf32>
    %c0_13 = arith.constant 0 : index
    %c0_14 = arith.constant 0 : index
    %c0_15 = arith.constant 0 : index
    %18 = vector.load %arg1[%c0_13, %c0_14, %c0_15] : memref<10x16x20xf32, #tpu.memory_space<vmem>>, vector<1x16x20xf32>
    %19 = vector.shape_cast %18 : vector<1x16x20xf32> to vector<16x20xf32>
    %20 = arith.truncf %19 : vector<16x20xf32> to vector<16x20xbf16>
    %cst_16 = arith.constant dense<0.000000e+00> : vector<16x12xf32>
    %21 = tpu.matmul %20, %3, %cst_16 {dimension_numbers = #tpu.dot_dimension_numbers<[1], [0], [0], [1], [0, 0, 1, 1], [], []>} : vector<16x20xbf16>, vector<20x12xbf16>, vector<16x12xf32> -> vector<16x12xf32>
    %22 = arith.addf %17, %21 : vector<16x12xf32>
    %c1_17 = arith.constant 1 : index
    %c0_18 = arith.constant 0 : index
    %c0_19 = arith.constant 0 : index
    %23 = vector.load %arg1[%c1_17, %c0_18, %c0_19] : memref<10x16x20xf32, #tpu.memory_space<vmem>>, vector<1x16x20xf32>
    %24 = vector.shape_cast %23 : vector<1x16x20xf32> to vector<16x20xf32>
    %25 = arith.truncf %24 : vector<16x20xf32> to vector<16x20xbf16>
    %cst_20 = arith.constant dense<0.000000e+00> : vector<16x12xf32>
    %26 = tpu.matmul %25, %6, %cst_20 {dimension_numbers = #tpu.dot_dimension_numbers<[1], [0], [0], [1], [0, 0, 1, 1], [], []>} : vector<16x20xbf16>, vector<20x12xbf16>, vector<16x12xf32> -> vector<16x12xf32>
    %27 = arith.addf %22, %26 : vector<16x12xf32>
    %c2_21 = arith.constant 2 : index
    %c0_22 = arith.constant 0 : index
    %c0_23 = arith.constant 0 : index
    %28 = vector.load %arg1[%c2_21, %c0_22, %c0_23] : memref<10x16x20xf32, #tpu.memory_space<vmem>>, vector<1x16x20xf32>
    %29 = vector.shape_cast %28 : vector<1x16x20xf32> to vector<16x20xf32>
    %30 = arith.truncf %29 : vector<16x20xf32> to vector<16x20xbf16>
    %cst_24 = arith.constant dense<0.000000e+00> : vector<16x12xf32>
    %31 = tpu.matmul %30, %9, %cst_24 {dimension_numbers = #tpu.dot_dimension_numbers<[1], [0], [0], [1], [0, 0, 1, 1], [], []>} : vector<16x20xbf16>, vector<20x12xbf16>, vector<16x12xf32> -> vector<16x12xf32>
    %32 = arith.addf %27, %31 : vector<16x12xf32>
    %c3_25 = arith.constant 3 : index
    %c0_26 = arith.constant 0 : index
    %c0_27 = arith.constant 0 : index
    %33 = vector.load %arg1[%c3_25, %c0_26, %c0_27] : memref<10x16x20xf32, #tpu.memory_space<vmem>>, vector<1x16x20xf32>
    %34 = vector.shape_cast %33 : vector<1x16x20xf32> to vector<16x20xf32>
    %35 = arith.truncf %34 : vector<16x20xf32> to vector<16x20xbf16>
    %cst_28 = arith.constant dense<0.000000e+00> : vector<16x12xf32>
    %36 = tpu.matmul %35, %12, %cst_28 {dimension_numbers = #tpu.dot_dimension_numbers<[1], [0], [0], [1], [0, 0, 1, 1], [], []>} : vector<16x20xbf16>, vector<20x12xbf16>, vector<16x12xf32> -> vector<16x12xf32>
    %37 = arith.addf %32, %36 : vector<16x12xf32>
    %c4_29 = arith.constant 4 : index
    %c0_30 = arith.constant 0 : index
    %c0_31 = arith.constant 0 : index
    %38 = vector.load %arg1[%c4_29, %c0_30, %c0_31] : memref<10x16x20xf32, #tpu.memory_space<vmem>>, vector<1x16x20xf32>
    %39 = vector.shape_cast %38 : vector<1x16x20xf32> to vector<16x20xf32>
    %40 = arith.truncf %39 : vector<16x20xf32> to vector<16x20xbf16>
    %cst_32 = arith.constant dense<0.000000e+00> : vector<16x12xf32>
    %41 = tpu.matmul %40, %15, %cst_32 {dimension_numbers = #tpu.dot_dimension_numbers<[1], [0], [0], [1], [0, 0, 1, 1], [], []>} : vector<16x20xbf16>, vector<20x12xbf16>, vector<16x12xf32> -> vector<16x12xf32>
    %42 = arith.addf %37, %41 : vector<16x12xf32>
    %43 = vector.broadcast %0 : vector<1x12xf32> to vector<16x12xf32>
    %44 = arith.addf %42, %43 : vector<16x12xf32>
    %cst_33 = arith.constant 0.000000e+00 : f32
    %45 = vector.broadcast %cst_33 : f32 to vector<16x12xf32>
    %46 = arith.maximumf %44, %45 : vector<16x12xf32>
    %47 = arith.maximumf %16, %46 : vector<16x12xf32>
    %cst_34 = arith.constant 0.000000e+00 : f32
    %48 = vector.broadcast %cst_34 : f32 to vector<16x12xf32>
    %c1_35 = arith.constant 1 : index
    %c0_36 = arith.constant 0 : index
    %c0_37 = arith.constant 0 : index
    %49 = vector.load %arg1[%c1_35, %c0_36, %c0_37] : memref<10x16x20xf32, #tpu.memory_space<vmem>>, vector<1x16x20xf32>
    %50 = vector.shape_cast %49 : vector<1x16x20xf32> to vector<16x20xf32>
    %51 = arith.truncf %50 : vector<16x20xf32> to vector<16x20xbf16>
    %cst_38 = arith.constant dense<0.000000e+00> : vector<16x12xf32>
    %52 = tpu.matmul %51, %3, %cst_38 {dimension_numbers = #tpu.dot_dimension_numbers<[1], [0], [0], [1], [0, 0, 1, 1], [], []>} : vector<16x20xbf16>, vector<20x12xbf16>, vector<16x12xf32> -> vector<16x12xf32>
    %53 = arith.addf %48, %52 : vector<16x12xf32>
    %c2_39 = arith.constant 2 : index
    %c0_40 = arith.constant 0 : index
    %c0_41 = arith.constant 0 : index
    %54 = vector.load %arg1[%c2_39, %c0_40, %c0_41] : memref<10x16x20xf32, #tpu.memory_space<vmem>>, vector<1x16x20xf32>
    %55 = vector.shape_cast %54 : vector<1x16x20xf32> to vector<16x20xf32>
    %56 = arith.truncf %55 : vector<16x20xf32> to vector<16x20xbf16>
    %cst_42 = arith.constant dense<0.000000e+00> : vector<16x12xf32>
    %57 = tpu.matmul %56, %6, %cst_42 {dimension_numbers = #tpu.dot_dimension_numbers<[1], [0], [0], [1], [0, 0, 1, 1], [], []>} : vector<16x20xbf16>, vector<20x12xbf16>, vector<16x12xf32> -> vector<16x12xf32>
    %58 = arith.addf %53, %57 : vector<16x12xf32>
    %c3_43 = arith.constant 3 : index
    %c0_44 = arith.constant 0 : index
    %c0_45 = arith.constant 0 : index
    %59 = vector.load %arg1[%c3_43, %c0_44, %c0_45] : memref<10x16x20xf32, #tpu.memory_space<vmem>>, vector<1x16x20xf32>
    %60 = vector.shape_cast %59 : vector<1x16x20xf32> to vector<16x20xf32>
    %61 = arith.truncf %60 : vector<16x20xf32> to vector<16x20xbf16>
    %cst_46 = arith.constant dense<0.000000e+00> : vector<16x12xf32>
    %62 = tpu.matmul %61, %9, %cst_46 {dimension_numbers = #tpu.dot_dimension_numbers<[1], [0], [0], [1], [0, 0, 1, 1], [], []>} : vector<16x20xbf16>, vector<20x12xbf16>, vector<16x12xf32> -> vector<16x12xf32>
    %63 = arith.addf %58, %62 : vector<16x12xf32>
    %c4_47 = arith.constant 4 : index
    %c0_48 = arith.constant 0 : index
    %c0_49 = arith.constant 0 : index
    %64 = vector.load %arg1[%c4_47, %c0_48, %c0_49] : memref<10x16x20xf32, #tpu.memory_space<vmem>>, vector<1x16x20xf32>
    %65 = vector.shape_cast %64 : vector<1x16x20xf32> to vector<16x20xf32>
    %66 = arith.truncf %65 : vector<16x20xf32> to vector<16x20xbf16>
    %cst_50 = arith.constant dense<0.000000e+00> : vector<16x12xf32>
    %67 = tpu.matmul %66, %12, %cst_50 {dimension_numbers = #tpu.dot_dimension_numbers<[1], [0], [0], [1], [0, 0, 1, 1], [], []>} : vector<16x20xbf16>, vector<20x12xbf16>, vector<16x12xf32> -> vector<16x12xf32>
    %68 = arith.addf %63, %67 : vector<16x12xf32>
    %c5 = arith.constant 5 : index
    %c0_51 = arith.constant 0 : index
    %c0_52 = arith.constant 0 : index
    %69 = vector.load %arg1[%c5, %c0_51, %c0_52] : memref<10x16x20xf32, #tpu.memory_space<vmem>>, vector<1x16x20xf32>
    %70 = vector.shape_cast %69 : vector<1x16x20xf32> to vector<16x20xf32>
    %71 = arith.truncf %70 : vector<16x20xf32> to vector<16x20xbf16>
    %cst_53 = arith.constant dense<0.000000e+00> : vector<16x12xf32>
    %72 = tpu.matmul %71, %15, %cst_53 {dimension_numbers = #tpu.dot_dimension_numbers<[1], [0], [0], [1], [0, 0, 1, 1], [], []>} : vector<16x20xbf16>, vector<20x12xbf16>, vector<16x12xf32> -> vector<16x12xf32>
    %73 = arith.addf %68, %72 : vector<16x12xf32>
    %74 = vector.broadcast %0 : vector<1x12xf32> to vector<16x12xf32>
    %75 = arith.addf %73, %74 : vector<16x12xf32>
    %cst_54 = arith.constant 0.000000e+00 : f32
    %76 = vector.broadcast %cst_54 : f32 to vector<16x12xf32>
    %77 = arith.maximumf %75, %76 : vector<16x12xf32>
    %78 = arith.maximumf %47, %77 : vector<16x12xf32>
    %cst_55 = arith.constant 0.000000e+00 : f32
    %79 = vector.broadcast %cst_55 : f32 to vector<16x12xf32>
    %c2_56 = arith.constant 2 : index
    %c0_57 = arith.constant 0 : index
    %c0_58 = arith.constant 0 : index
    %80 = vector.load %arg1[%c2_56, %c0_57, %c0_58] : memref<10x16x20xf32, #tpu.memory_space<vmem>>, vector<1x16x20xf32>
    %81 = vector.shape_cast %80 : vector<1x16x20xf32> to vector<16x20xf32>
    %82 = arith.truncf %81 : vector<16x20xf32> to vector<16x20xbf16>
    %cst_59 = arith.constant dense<0.000000e+00> : vector<16x12xf32>
    %83 = tpu.matmul %82, %3, %cst_59 {dimension_numbers = #tpu.dot_dimension_numbers<[1], [0], [0], [1], [0, 0, 1, 1], [], []>} : vector<16x20xbf16>, vector<20x12xbf16>, vector<16x12xf32> -> vector<16x12xf32>
    %84 = arith.addf %79, %83 : vector<16x12xf32>
    %c3_60 = arith.constant 3 : index
    %c0_61 = arith.constant 0 : index
    %c0_62 = arith.constant 0 : index
    %85 = vector.load %arg1[%c3_60, %c0_61, %c0_62] : memref<10x16x20xf32, #tpu.memory_space<vmem>>, vector<1x16x20xf32>
    %86 = vector.shape_cast %85 : vector<1x16x20xf32> to vector<16x20xf32>
    %87 = arith.truncf %86 : vector<16x20xf32> to vector<16x20xbf16>
    %cst_63 = arith.constant dense<0.000000e+00> : vector<16x12xf32>
    %88 = tpu.matmul %87, %6, %cst_63 {dimension_numbers = #tpu.dot_dimension_numbers<[1], [0], [0], [1], [0, 0, 1, 1], [], []>} : vector<16x20xbf16>, vector<20x12xbf16>, vector<16x12xf32> -> vector<16x12xf32>
    %89 = arith.addf %84, %88 : vector<16x12xf32>
    %c4_64 = arith.constant 4 : index
    %c0_65 = arith.constant 0 : index
    %c0_66 = arith.constant 0 : index
    %90 = vector.load %arg1[%c4_64, %c0_65, %c0_66] : memref<10x16x20xf32, #tpu.memory_space<vmem>>, vector<1x16x20xf32>
    %91 = vector.shape_cast %90 : vector<1x16x20xf32> to vector<16x20xf32>
    %92 = arith.truncf %91 : vector<16x20xf32> to vector<16x20xbf16>
    %cst_67 = arith.constant dense<0.000000e+00> : vector<16x12xf32>
    %93 = tpu.matmul %92, %9, %cst_67 {dimension_numbers = #tpu.dot_dimension_numbers<[1], [0], [0], [1], [0, 0, 1, 1], [], []>} : vector<16x20xbf16>, vector<20x12xbf16>, vector<16x12xf32> -> vector<16x12xf32>
    %94 = arith.addf %89, %93 : vector<16x12xf32>
    %c5_68 = arith.constant 5 : index
    %c0_69 = arith.constant 0 : index
    %c0_70 = arith.constant 0 : index
    %95 = vector.load %arg1[%c5_68, %c0_69, %c0_70] : memref<10x16x20xf32, #tpu.memory_space<vmem>>, vector<1x16x20xf32>
    %96 = vector.shape_cast %95 : vector<1x16x20xf32> to vector<16x20xf32>
    %97 = arith.truncf %96 : vector<16x20xf32> to vector<16x20xbf16>
    %cst_71 = arith.constant dense<0.000000e+00> : vector<16x12xf32>
    %98 = tpu.matmul %97, %12, %cst_71 {dimension_numbers = #tpu.dot_dimension_numbers<[1], [0], [0], [1], [0, 0, 1, 1], [], []>} : vector<16x20xbf16>, vector<20x12xbf16>, vector<16x12xf32> -> vector<16x12xf32>
    %99 = arith.addf %94, %98 : vector<16x12xf32>
    %c6 = arith.constant 6 : index
    %c0_72 = arith.constant 0 : index
    %c0_73 = arith.constant 0 : index
    %100 = vector.load %arg1[%c6, %c0_72, %c0_73] : memref<10x16x20xf32, #tpu.memory_space<vmem>>, vector<1x16x20xf32>
    %101 = vector.shape_cast %100 : vector<1x16x20xf32> to vector<16x20xf32>
    %102 = arith.truncf %101 : vector<16x20xf32> to vector<16x20xbf16>
    %cst_74 = arith.constant dense<0.000000e+00> : vector<16x12xf32>
    %103 = tpu.matmul %102, %15, %cst_74 {dimension_numbers = #tpu.dot_dimension_numbers<[1], [0], [0], [1], [0, 0, 1, 1], [], []>} : vector<16x20xbf16>, vector<20x12xbf16>, vector<16x12xf32> -> vector<16x12xf32>
    %104 = arith.addf %99, %103 : vector<16x12xf32>
    %105 = vector.broadcast %0 : vector<1x12xf32> to vector<16x12xf32>
    %106 = arith.addf %104, %105 : vector<16x12xf32>
    %cst_75 = arith.constant 0.000000e+00 : f32
    %107 = vector.broadcast %cst_75 : f32 to vector<16x12xf32>
    %108 = arith.maximumf %106, %107 : vector<16x12xf32>
    %109 = arith.maximumf %78, %108 : vector<16x12xf32>
    %cst_76 = arith.constant 0.000000e+00 : f32
    %110 = vector.broadcast %cst_76 : f32 to vector<16x12xf32>
    %c3_77 = arith.constant 3 : index
    %c0_78 = arith.constant 0 : index
    %c0_79 = arith.constant 0 : index
    %111 = vector.load %arg1[%c3_77, %c0_78, %c0_79] : memref<10x16x20xf32, #tpu.memory_space<vmem>>, vector<1x16x20xf32>
    %112 = vector.shape_cast %111 : vector<1x16x20xf32> to vector<16x20xf32>
    %113 = arith.truncf %112 : vector<16x20xf32> to vector<16x20xbf16>
    %cst_80 = arith.constant dense<0.000000e+00> : vector<16x12xf32>
    %114 = tpu.matmul %113, %3, %cst_80 {dimension_numbers = #tpu.dot_dimension_numbers<[1], [0], [0], [1], [0, 0, 1, 1], [], []>} : vector<16x20xbf16>, vector<20x12xbf16>, vector<16x12xf32> -> vector<16x12xf32>
    %115 = arith.addf %110, %114 : vector<16x12xf32>
    %c4_81 = arith.constant 4 : index
    %c0_82 = arith.constant 0 : index
    %c0_83 = arith.constant 0 : index
    %116 = vector.load %arg1[%c4_81, %c0_82, %c0_83] : memref<10x16x20xf32, #tpu.memory_space<vmem>>, vector<1x16x20xf32>
    %117 = vector.shape_cast %116 : vector<1x16x20xf32> to vector<16x20xf32>
    %118 = arith.truncf %117 : vector<16x20xf32> to vector<16x20xbf16>
    %cst_84 = arith.constant dense<0.000000e+00> : vector<16x12xf32>
    %119 = tpu.matmul %118, %6, %cst_84 {dimension_numbers = #tpu.dot_dimension_numbers<[1], [0], [0], [1], [0, 0, 1, 1], [], []>} : vector<16x20xbf16>, vector<20x12xbf16>, vector<16x12xf32> -> vector<16x12xf32>
    %120 = arith.addf %115, %119 : vector<16x12xf32>
    %c5_85 = arith.constant 5 : index
    %c0_86 = arith.constant 0 : index
    %c0_87 = arith.constant 0 : index
    %121 = vector.load %arg1[%c5_85, %c0_86, %c0_87] : memref<10x16x20xf32, #tpu.memory_space<vmem>>, vector<1x16x20xf32>
    %122 = vector.shape_cast %121 : vector<1x16x20xf32> to vector<16x20xf32>
    %123 = arith.truncf %122 : vector<16x20xf32> to vector<16x20xbf16>
    %cst_88 = arith.constant dense<0.000000e+00> : vector<16x12xf32>
    %124 = tpu.matmul %123, %9, %cst_88 {dimension_numbers = #tpu.dot_dimension_numbers<[1], [0], [0], [1], [0, 0, 1, 1], [], []>} : vector<16x20xbf16>, vector<20x12xbf16>, vector<16x12xf32> -> vector<16x12xf32>
    %125 = arith.addf %120, %124 : vector<16x12xf32>
    %c6_89 = arith.constant 6 : index
    %c0_90 = arith.constant 0 : index
    %c0_91 = arith.constant 0 : index
    %126 = vector.load %arg1[%c6_89, %c0_90, %c0_91] : memref<10x16x20xf32, #tpu.memory_space<vmem>>, vector<1x16x20xf32>
    %127 = vector.shape_cast %126 : vector<1x16x20xf32> to vector<16x20xf32>
    %128 = arith.truncf %127 : vector<16x20xf32> to vector<16x20xbf16>
    %cst_92 = arith.constant dense<0.000000e+00> : vector<16x12xf32>
    %129 = tpu.matmul %128, %12, %cst_92 {dimension_numbers = #tpu.dot_dimension_numbers<[1], [0], [0], [1], [0, 0, 1, 1], [], []>} : vector<16x20xbf16>, vector<20x12xbf16>, vector<16x12xf32> -> vector<16x12xf32>
    %130 = arith.addf %125, %129 : vector<16x12xf32>
    %c7 = arith.constant 7 : index
    %c0_93 = arith.constant 0 : index
    %c0_94 = arith.constant 0 : index
    %131 = vector.load %arg1[%c7, %c0_93, %c0_94] : memref<10x16x20xf32, #tpu.memory_space<vmem>>, vector<1x16x20xf32>
    %132 = vector.shape_cast %131 : vector<1x16x20xf32> to vector<16x20xf32>
    %133 = arith.truncf %132 : vector<16x20xf32> to vector<16x20xbf16>
    %cst_95 = arith.constant dense<0.000000e+00> : vector<16x12xf32>
    %134 = tpu.matmul %133, %15, %cst_95 {dimension_numbers = #tpu.dot_dimension_numbers<[1], [0], [0], [1], [0, 0, 1, 1], [], []>} : vector<16x20xbf16>, vector<20x12xbf16>, vector<16x12xf32> -> vector<16x12xf32>
    %135 = arith.addf %130, %134 : vector<16x12xf32>
    %136 = vector.broadcast %0 : vector<1x12xf32> to vector<16x12xf32>
    %137 = arith.addf %135, %136 : vector<16x12xf32>
    %cst_96 = arith.constant 0.000000e+00 : f32
    %138 = vector.broadcast %cst_96 : f32 to vector<16x12xf32>
    %139 = arith.maximumf %137, %138 : vector<16x12xf32>
    %140 = arith.maximumf %109, %139 : vector<16x12xf32>
    %cst_97 = arith.constant 0.000000e+00 : f32
    %141 = vector.broadcast %cst_97 : f32 to vector<16x12xf32>
    %c4_98 = arith.constant 4 : index
    %c0_99 = arith.constant 0 : index
    %c0_100 = arith.constant 0 : index
    %142 = vector.load %arg1[%c4_98, %c0_99, %c0_100] : memref<10x16x20xf32, #tpu.memory_space<vmem>>, vector<1x16x20xf32>
    %143 = vector.shape_cast %142 : vector<1x16x20xf32> to vector<16x20xf32>
    %144 = arith.truncf %143 : vector<16x20xf32> to vector<16x20xbf16>
    %cst_101 = arith.constant dense<0.000000e+00> : vector<16x12xf32>
    %145 = tpu.matmul %144, %3, %cst_101 {dimension_numbers = #tpu.dot_dimension_numbers<[1], [0], [0], [1], [0, 0, 1, 1], [], []>} : vector<16x20xbf16>, vector<20x12xbf16>, vector<16x12xf32> -> vector<16x12xf32>
    %146 = arith.addf %141, %145 : vector<16x12xf32>
    %c5_102 = arith.constant 5 : index
    %c0_103 = arith.constant 0 : index
    %c0_104 = arith.constant 0 : index
    %147 = vector.load %arg1[%c5_102, %c0_103, %c0_104] : memref<10x16x20xf32, #tpu.memory_space<vmem>>, vector<1x16x20xf32>
    %148 = vector.shape_cast %147 : vector<1x16x20xf32> to vector<16x20xf32>
    %149 = arith.truncf %148 : vector<16x20xf32> to vector<16x20xbf16>
    %cst_105 = arith.constant dense<0.000000e+00> : vector<16x12xf32>
    %150 = tpu.matmul %149, %6, %cst_105 {dimension_numbers = #tpu.dot_dimension_numbers<[1], [0], [0], [1], [0, 0, 1, 1], [], []>} : vector<16x20xbf16>, vector<20x12xbf16>, vector<16x12xf32> -> vector<16x12xf32>
    %151 = arith.addf %146, %150 : vector<16x12xf32>
    %c6_106 = arith.constant 6 : index
    %c0_107 = arith.constant 0 : index
    %c0_108 = arith.constant 0 : index
    %152 = vector.load %arg1[%c6_106, %c0_107, %c0_108] : memref<10x16x20xf32, #tpu.memory_space<vmem>>, vector<1x16x20xf32>
    %153 = vector.shape_cast %152 : vector<1x16x20xf32> to vector<16x20xf32>
    %154 = arith.truncf %153 : vector<16x20xf32> to vector<16x20xbf16>
    %cst_109 = arith.constant dense<0.000000e+00> : vector<16x12xf32>
    %155 = tpu.matmul %154, %9, %cst_109 {dimension_numbers = #tpu.dot_dimension_numbers<[1], [0], [0], [1], [0, 0, 1, 1], [], []>} : vector<16x20xbf16>, vector<20x12xbf16>, vector<16x12xf32> -> vector<16x12xf32>
    %156 = arith.addf %151, %155 : vector<16x12xf32>
    %c7_110 = arith.constant 7 : index
    %c0_111 = arith.constant 0 : index
    %c0_112 = arith.constant 0 : index
    %157 = vector.load %arg1[%c7_110, %c0_111, %c0_112] : memref<10x16x20xf32, #tpu.memory_space<vmem>>, vector<1x16x20xf32>
    %158 = vector.shape_cast %157 : vector<1x16x20xf32> to vector<16x20xf32>
    %159 = arith.truncf %158 : vector<16x20xf32> to vector<16x20xbf16>
    %cst_113 = arith.constant dense<0.000000e+00> : vector<16x12xf32>
    %160 = tpu.matmul %159, %12, %cst_113 {dimension_numbers = #tpu.dot_dimension_numbers<[1], [0], [0], [1], [0, 0, 1, 1], [], []>} : vector<16x20xbf16>, vector<20x12xbf16>, vector<16x12xf32> -> vector<16x12xf32>
    %161 = arith.addf %156, %160 : vector<16x12xf32>
    %c8 = arith.constant 8 : index
    %c0_114 = arith.constant 0 : index
    %c0_115 = arith.constant 0 : index
    %162 = vector.load %arg1[%c8, %c0_114, %c0_115] : memref<10x16x20xf32, #tpu.memory_space<vmem>>, vector<1x16x20xf32>
    %163 = vector.shape_cast %162 : vector<1x16x20xf32> to vector<16x20xf32>
    %164 = arith.truncf %163 : vector<16x20xf32> to vector<16x20xbf16>
    %cst_116 = arith.constant dense<0.000000e+00> : vector<16x12xf32>
    %165 = tpu.matmul %164, %15, %cst_116 {dimension_numbers = #tpu.dot_dimension_numbers<[1], [0], [0], [1], [0, 0, 1, 1], [], []>} : vector<16x20xbf16>, vector<20x12xbf16>, vector<16x12xf32> -> vector<16x12xf32>
    %166 = arith.addf %161, %165 : vector<16x12xf32>
    %167 = vector.broadcast %0 : vector<1x12xf32> to vector<16x12xf32>
    %168 = arith.addf %166, %167 : vector<16x12xf32>
    %cst_117 = arith.constant 0.000000e+00 : f32
    %169 = vector.broadcast %cst_117 : f32 to vector<16x12xf32>
    %170 = arith.maximumf %168, %169 : vector<16x12xf32>
    %171 = arith.maximumf %140, %170 : vector<16x12xf32>
    %cst_118 = arith.constant 0.000000e+00 : f32
    %172 = vector.broadcast %cst_118 : f32 to vector<16x12xf32>
    %c5_119 = arith.constant 5 : index
    %c0_120 = arith.constant 0 : index
    %c0_121 = arith.constant 0 : index
    %173 = vector.load %arg1[%c5_119, %c0_120, %c0_121] : memref<10x16x20xf32, #tpu.memory_space<vmem>>, vector<1x16x20xf32>
    %174 = vector.shape_cast %173 : vector<1x16x20xf32> to vector<16x20xf32>
    %175 = arith.truncf %174 : vector<16x20xf32> to vector<16x20xbf16>
    %cst_122 = arith.constant dense<0.000000e+00> : vector<16x12xf32>
    %176 = tpu.matmul %175, %3, %cst_122 {dimension_numbers = #tpu.dot_dimension_numbers<[1], [0], [0], [1], [0, 0, 1, 1], [], []>} : vector<16x20xbf16>, vector<20x12xbf16>, vector<16x12xf32> -> vector<16x12xf32>
    %177 = arith.addf %172, %176 : vector<16x12xf32>
    %c6_123 = arith.constant 6 : index
    %c0_124 = arith.constant 0 : index
    %c0_125 = arith.constant 0 : index
    %178 = vector.load %arg1[%c6_123, %c0_124, %c0_125] : memref<10x16x20xf32, #tpu.memory_space<vmem>>, vector<1x16x20xf32>
    %179 = vector.shape_cast %178 : vector<1x16x20xf32> to vector<16x20xf32>
    %180 = arith.truncf %179 : vector<16x20xf32> to vector<16x20xbf16>
    %cst_126 = arith.constant dense<0.000000e+00> : vector<16x12xf32>
    %181 = tpu.matmul %180, %6, %cst_126 {dimension_numbers = #tpu.dot_dimension_numbers<[1], [0], [0], [1], [0, 0, 1, 1], [], []>} : vector<16x20xbf16>, vector<20x12xbf16>, vector<16x12xf32> -> vector<16x12xf32>
    %182 = arith.addf %177, %181 : vector<16x12xf32>
    %c7_127 = arith.constant 7 : index
    %c0_128 = arith.constant 0 : index
    %c0_129 = arith.constant 0 : index
    %183 = vector.load %arg1[%c7_127, %c0_128, %c0_129] : memref<10x16x20xf32, #tpu.memory_space<vmem>>, vector<1x16x20xf32>
    %184 = vector.shape_cast %183 : vector<1x16x20xf32> to vector<16x20xf32>
    %185 = arith.truncf %184 : vector<16x20xf32> to vector<16x20xbf16>
    %cst_130 = arith.constant dense<0.000000e+00> : vector<16x12xf32>
    %186 = tpu.matmul %185, %9, %cst_130 {dimension_numbers = #tpu.dot_dimension_numbers<[1], [0], [0], [1], [0, 0, 1, 1], [], []>} : vector<16x20xbf16>, vector<20x12xbf16>, vector<16x12xf32> -> vector<16x12xf32>
    %187 = arith.addf %182, %186 : vector<16x12xf32>
    %c8_131 = arith.constant 8 : index
    %c0_132 = arith.constant 0 : index
    %c0_133 = arith.constant 0 : index
    %188 = vector.load %arg1[%c8_131, %c0_132, %c0_133] : memref<10x16x20xf32, #tpu.memory_space<vmem>>, vector<1x16x20xf32>
    %189 = vector.shape_cast %188 : vector<1x16x20xf32> to vector<16x20xf32>
    %190 = arith.truncf %189 : vector<16x20xf32> to vector<16x20xbf16>
    %cst_134 = arith.constant dense<0.000000e+00> : vector<16x12xf32>
    %191 = tpu.matmul %190, %12, %cst_134 {dimension_numbers = #tpu.dot_dimension_numbers<[1], [0], [0], [1], [0, 0, 1, 1], [], []>} : vector<16x20xbf16>, vector<20x12xbf16>, vector<16x12xf32> -> vector<16x12xf32>
    %192 = arith.addf %187, %191 : vector<16x12xf32>
    %c9 = arith.constant 9 : index
    %c0_135 = arith.constant 0 : index
    %c0_136 = arith.constant 0 : index
    %193 = vector.load %arg1[%c9, %c0_135, %c0_136] : memref<10x16x20xf32, #tpu.memory_space<vmem>>, vector<1x16x20xf32>
    %194 = vector.shape_cast %193 : vector<1x16x20xf32> to vector<16x20xf32>
    %195 = arith.truncf %194 : vector<16x20xf32> to vector<16x20xbf16>
    %cst_137 = arith.constant dense<0.000000e+00> : vector<16x12xf32>
    %196 = tpu.matmul %195, %15, %cst_137 {dimension_numbers = #tpu.dot_dimension_numbers<[1], [0], [0], [1], [0, 0, 1, 1], [], []>} : vector<16x20xbf16>, vector<20x12xbf16>, vector<16x12xf32> -> vector<16x12xf32>
    %197 = arith.addf %192, %196 : vector<16x12xf32>
    %198 = vector.broadcast %0 : vector<1x12xf32> to vector<16x12xf32>
    %199 = arith.addf %197, %198 : vector<16x12xf32>
    %cst_138 = arith.constant 0.000000e+00 : f32
    %200 = vector.broadcast %cst_138 : f32 to vector<16x12xf32>
    %201 = arith.maximumf %199, %200 : vector<16x12xf32>
    %202 = arith.maximumf %171, %201 : vector<16x12xf32>
    %c0_139 = arith.constant 0 : index
    %c0_140 = arith.constant 0 : index
    %203 = vector.load %arg4[%c0_139, %c0_140] : memref<16x12xf32, #tpu.memory_space<vmem>>, vector<16x12xf32>
    tpu.vector_store %arg4[%c0_139, %c0_140], %202 {strides = array<i32>} : memref<16x12xf32, #tpu.memory_space<vmem>>, vector<16x12xf32>,
    return
  }
  func.func @transform_0(%arg0: i32) -> (i32, i32, i32) {
    %c0_i32 = arith.constant 0 : i32
    %c0_i32_0 = arith.constant 0 : i32
    %c0_i32_1 = arith.constant 0 : i32
    return %c0_i32, %arg0, %c0_i32_0 : i32, i32, i32
  }
  func.func @transform_1(%arg0: i32) -> (i32, i32, i32) {
    %c0_i32 = arith.constant 0 : i32
    %c0_i32_0 = arith.constant 0 : i32
    %c0_i32_1 = arith.constant 0 : i32
    %c0_i32_2 = arith.constant 0 : i32
    return %c0_i32, %c0_i32_0, %c0_i32_1 : i32, i32, i32
  }
  func.func @transform_2(%arg0: i32) -> (i32, i32) {
    %c0_i32 = arith.constant 0 : i32
    %c0_i32_0 = arith.constant 0 : i32
    %c0_i32_1 = arith.constant 0 : i32
    return %c0_i32, %c0_i32_0 : i32, i32
  }
  func.func @transform_3(%arg0: i32) -> (i32, i32) {
    %c0_i32 = arith.constant 0 : i32
    %c0_i32_0 = arith.constant 0 : i32
    return %arg0, %c0_i32 : i32, i32
  }
}

module attributes {stable_mosaic.version = 11 : i64} {
  func.func @_bigru_kernel(%arg0: i32, %arg1: memref<8x2x28xf32, #tpu.memory_space<vmem>>, %arg2: memref<28x48xf32, #tpu.memory_space<vmem>>, %arg3: memref<1x48xf32, #tpu.memory_space<vmem>>, %arg4: memref<16x48xf32, #tpu.memory_space<vmem>>, %arg5: memref<1x48xf32, #tpu.memory_space<vmem>>, %arg6: memref<28x48xf32, #tpu.memory_space<vmem>>, %arg7: memref<1x48xf32, #tpu.memory_space<vmem>>, %arg8: memref<16x48xf32, #tpu.memory_space<vmem>>, %arg9: memref<1x48xf32, #tpu.memory_space<vmem>>, %arg10: memref<8x2x16xf32, #tpu.memory_space<vmem>>, %arg11: memref<8x2x16xf32, #tpu.memory_space<vmem>>, %arg12: memref<2x16xf32, #tpu.memory_space<vmem>>, %arg13: memref<2x16xf32, #tpu.memory_space<vmem>>) attributes {dimension_semantics = [#tpu.dimension_semantics<parallel>], iteration_bounds = array<i64: 1>, scalar_prefetch = 0 : i64, scratch_operands = 2 : i64, tpu.core_type = #tpu.core_type<tc>, window_params = [{transform_indices = @transform_0, window_bounds = array<i64: 8, 2, 28>}, {pipeline_mode = #tpu.pipeline_mode<synchronous>, transform_indices = @transform_1, window_bounds = array<i64: 28, 48>}, {pipeline_mode = #tpu.pipeline_mode<synchronous>, transform_indices = @transform_2, window_bounds = array<i64: 1, 48>}, {pipeline_mode = #tpu.pipeline_mode<synchronous>, transform_indices = @transform_3, window_bounds = array<i64: 16, 48>}, {pipeline_mode = #tpu.pipeline_mode<synchronous>, transform_indices = @transform_4, window_bounds = array<i64: 1, 48>}, {pipeline_mode = #tpu.pipeline_mode<synchronous>, transform_indices = @transform_5, window_bounds = array<i64: 28, 48>}, {pipeline_mode = #tpu.pipeline_mode<synchronous>, transform_indices = @transform_6, window_bounds = array<i64: 1, 48>}, {pipeline_mode = #tpu.pipeline_mode<synchronous>, transform_indices = @transform_7, window_bounds = array<i64: 16, 48>}, {pipeline_mode = #tpu.pipeline_mode<synchronous>, transform_indices = @transform_8, window_bounds = array<i64: 1, 48>}, {transform_indices = @transform_9, window_bounds = array<i64: 8, 2, 16>}, {transform_indices = @transform_10, window_bounds = array<i64: 8, 2, 16>}]} {
    %cst = arith.constant 0.000000e+00 : f32
    %0 = vector.broadcast %cst : f32 to vector<2x16xf32>
    %c0 = arith.constant 0 : index
    %c0_0 = arith.constant 0 : index
    %1 = vector.load %arg12[%c0, %c0_0] : memref<2x16xf32, #tpu.memory_space<vmem>>, vector<2x16xf32>
    tpu.vector_store %arg12[%c0, %c0_0], %0 {strides = array<i32>} : memref<2x16xf32, #tpu.memory_space<vmem>>, vector<2x16xf32>,
    %cst_1 = arith.constant 0.000000e+00 : f32
    %2 = vector.broadcast %cst_1 : f32 to vector<2x16xf32>
    %c0_2 = arith.constant 0 : index
    %c0_3 = arith.constant 0 : index
    %3 = vector.load %arg13[%c0_2, %c0_3] : memref<2x16xf32, #tpu.memory_space<vmem>>, vector<2x16xf32>
    tpu.vector_store %arg13[%c0_2, %c0_3], %2 {strides = array<i32>} : memref<2x16xf32, #tpu.memory_space<vmem>>, vector<2x16xf32>,
    %c0_4 = arith.constant 0 : index
    %c0_5 = arith.constant 0 : index
    %4 = vector.load %arg2[%c0_4, %c0_5] : memref<28x48xf32, #tpu.memory_space<vmem>>, vector<28x48xf32>
    %5 = arith.truncf %4 : vector<28x48xf32> to vector<28x48xbf16>
    %c0_6 = arith.constant 0 : index
    %c0_7 = arith.constant 0 : index
    %6 = vector.load %arg6[%c0_6, %c0_7] : memref<28x48xf32, #tpu.memory_space<vmem>>, vector<28x48xf32>
    %7 = arith.truncf %6 : vector<28x48xf32> to vector<28x48xbf16>
    %c0_8 = arith.constant 0 : index
    %c0_9 = arith.constant 0 : index
    %8 = vector.load %arg4[%c0_8, %c0_9] : memref<16x48xf32, #tpu.memory_space<vmem>>, vector<16x48xf32>
    %c0_10 = arith.constant 0 : index
    %c0_11 = arith.constant 0 : index
    %9 = vector.load %arg8[%c0_10, %c0_11] : memref<16x48xf32, #tpu.memory_space<vmem>>, vector<16x48xf32>
    %c0_12 = arith.constant 0 : index
    %c0_13 = arith.constant 0 : index
    %10 = vector.load %arg3[%c0_12, %c0_13] : memref<1x48xf32, #tpu.memory_space<vmem>>, vector<1x48xf32>
    %c0_14 = arith.constant 0 : index
    %c0_15 = arith.constant 0 : index
    %11 = vector.load %arg7[%c0_14, %c0_15] : memref<1x48xf32, #tpu.memory_space<vmem>>, vector<1x48xf32>
    %c0_16 = arith.constant 0 : index
    %c0_17 = arith.constant 0 : index
    %12 = vector.load %arg5[%c0_16, %c0_17] : memref<1x48xf32, #tpu.memory_space<vmem>>, vector<1x48xf32>
    %c0_18 = arith.constant 0 : index
    %c0_19 = arith.constant 0 : index
    %13 = vector.load %arg9[%c0_18, %c0_19] : memref<1x48xf32, #tpu.memory_space<vmem>>, vector<1x48xf32>
    %c0_i32 = arith.constant 0 : i32
    %c8_i32 = arith.constant 8 : i32
    %14 = arith.addi %c0_i32, %c8_i32 : i32
    %c1_i32 = arith.constant 1 : i32
    scf.for %arg14 = %c0_i32 to %14 step %c1_i32  : i32 {
      %c1_i32_21 = arith.constant 1 : i32
      %15 = arith.muli %arg14, %c1_i32_21 : i32
      %c0_i32_22 = arith.constant 0 : i32
      %16 = arith.addi %c0_i32_22, %15 : i32
      %c7_i32 = arith.constant 7 : i32
      %17 = arith.subi %c7_i32, %16 : i32
      %18 = arith.index_cast %16 : i32 to index
      %c0_23 = arith.constant 0 : index
      %c0_24 = arith.constant 0 : index
      %19 = vector.load %arg1[%18, %c0_23, %c0_24] : memref<8x2x28xf32, #tpu.memory_space<vmem>>, vector<1x2x28xf32>
      %20 = vector.shape_cast %19 : vector<1x2x28xf32> to vector<2x28xf32>
      %21 = arith.truncf %20 : vector<2x28xf32> to vector<2x28xbf16>
      %cst_25 = arith.constant dense<0.000000e+00> : vector<2x48xf32>
      %22 = tpu.matmul %21, %5, %cst_25 {dimension_numbers = #tpu.dot_dimension_numbers<[1], [0], [0], [1], [0, 0, 1, 1], [], []>} : vector<2x28xbf16>, vector<28x48xbf16>, vector<2x48xf32> -> vector<2x48xf32>
      %23 = vector.broadcast %10 : vector<1x48xf32> to vector<2x48xf32>
      %24 = arith.addf %22, %23 : vector<2x48xf32>
      %25 = arith.index_cast %17 : i32 to index
      %c0_26 = arith.constant 0 : index
      %c0_27 = arith.constant 0 : index
      %26 = vector.load %arg1[%25, %c0_26, %c0_27] : memref<8x2x28xf32, #tpu.memory_space<vmem>>, vector<1x2x28xf32>
      %27 = vector.shape_cast %26 : vector<1x2x28xf32> to vector<2x28xf32>
      %28 = arith.truncf %27 : vector<2x28xf32> to vector<2x28xbf16>
      %cst_28 = arith.constant dense<0.000000e+00> : vector<2x48xf32>
      %29 = tpu.matmul %28, %7, %cst_28 {dimension_numbers = #tpu.dot_dimension_numbers<[1], [0], [0], [1], [0, 0, 1, 1], [], []>} : vector<2x28xbf16>, vector<28x48xbf16>, vector<2x48xf32> -> vector<2x48xf32>
      %30 = vector.broadcast %11 : vector<1x48xf32> to vector<2x48xf32>
      %31 = arith.addf %29, %30 : vector<2x48xf32>
      %c0_29 = arith.constant 0 : index
      %c0_30 = arith.constant 0 : index
      %32 = vector.load %arg12[%c0_29, %c0_30] : memref<2x16xf32, #tpu.memory_space<vmem>>, vector<2x16xf32>
      %cst_31 = arith.constant dense<0.000000e+00> : vector<2x48xf32>
      %33 = tpu.matmul %32, %8, %cst_31 {dimension_numbers = #tpu.dot_dimension_numbers<[1], [0], [0], [1], [0, 0, 1, 1], [], []>} : vector<2x16xf32>, vector<16x48xf32>, vector<2x48xf32> -> vector<2x48xf32>
      %34 = vector.broadcast %12 : vector<1x48xf32> to vector<2x48xf32>
      %35 = arith.addf %33, %34 : vector<2x48xf32>
      %36 = vector.extract_strided_slice %24 {offsets = [0, 0], sizes = [2, 16], strides = [1, 1]} : vector<2x48xf32> to vector<2x16xf32>
      %37 = vector.extract_strided_slice %35 {offsets = [0, 0], sizes = [2, 16], strides = [1, 1]} : vector<2x48xf32> to vector<2x16xf32>
      %38 = arith.addf %36, %37 : vector<2x16xf32>
      %39 = arith.negf %38 : vector<2x16xf32>
      %40 = math.exp %39 : vector<2x16xf32>
      %cst_32 = arith.constant 1.000000e+00 : f32
      %41 = vector.broadcast %cst_32 : f32 to vector<2x16xf32>
      %42 = arith.addf %41, %40 : vector<2x16xf32>
      %43 = arith.divf %41, %42 : vector<2x16xf32>
      %44 = vector.extract_strided_slice %24 {offsets = [0, 16], sizes = [2, 16], strides = [1, 1]} : vector<2x48xf32> to vector<2x16xf32>
      %45 = vector.extract_strided_slice %35 {offsets = [0, 16], sizes = [2, 16], strides = [1, 1]} : vector<2x48xf32> to vector<2x16xf32>
      %46 = arith.addf %44, %45 : vector<2x16xf32>
      %47 = arith.negf %46 : vector<2x16xf32>
      %48 = math.exp %47 : vector<2x16xf32>
      %cst_33 = arith.constant 1.000000e+00 : f32
      %49 = vector.broadcast %cst_33 : f32 to vector<2x16xf32>
      %50 = arith.addf %49, %48 : vector<2x16xf32>
      %51 = arith.divf %49, %50 : vector<2x16xf32>
      %52 = vector.extract_strided_slice %24 {offsets = [0, 32], sizes = [2, 16], strides = [1, 1]} : vector<2x48xf32> to vector<2x16xf32>
      %53 = vector.extract_strided_slice %35 {offsets = [0, 32], sizes = [2, 16], strides = [1, 1]} : vector<2x48xf32> to vector<2x16xf32>
      %54 = arith.mulf %43, %53 : vector<2x16xf32>
      %55 = arith.addf %52, %54 : vector<2x16xf32>
      %56 = math.tanh %55 : vector<2x16xf32>
      %cst_34 = arith.constant 1.000000e+00 : f32
      %57 = vector.broadcast %cst_34 : f32 to vector<2x16xf32>
      %58 = arith.subf %57, %51 : vector<2x16xf32>
      %59 = arith.mulf %58, %56 : vector<2x16xf32>
      %60 = arith.mulf %51, %32 : vector<2x16xf32>
      %61 = arith.addf %59, %60 : vector<2x16xf32>
      %c0_35 = arith.constant 0 : index
      %c0_36 = arith.constant 0 : index
      %62 = vector.load %arg13[%c0_35, %c0_36] : memref<2x16xf32, #tpu.memory_space<vmem>>, vector<2x16xf32>
      %cst_37 = arith.constant dense<0.000000e+00> : vector<2x48xf32>
      %63 = tpu.matmul %62, %9, %cst_37 {dimension_numbers = #tpu.dot_dimension_numbers<[1], [0], [0], [1], [0, 0, 1, 1], [], []>} : vector<2x16xf32>, vector<16x48xf32>, vector<2x48xf32> -> vector<2x48xf32>
      %64 = vector.broadcast %13 : vector<1x48xf32> to vector<2x48xf32>
      %65 = arith.addf %63, %64 : vector<2x48xf32>
      %66 = vector.extract_strided_slice %31 {offsets = [0, 0], sizes = [2, 16], strides = [1, 1]} : vector<2x48xf32> to vector<2x16xf32>
      %67 = vector.extract_strided_slice %65 {offsets = [0, 0], sizes = [2, 16], strides = [1, 1]} : vector<2x48xf32> to vector<2x16xf32>
      %68 = arith.addf %66, %67 : vector<2x16xf32>
      %69 = arith.negf %68 : vector<2x16xf32>
      %70 = math.exp %69 : vector<2x16xf32>
      %cst_38 = arith.constant 1.000000e+00 : f32
      %71 = vector.broadcast %cst_38 : f32 to vector<2x16xf32>
      %72 = arith.addf %71, %70 : vector<2x16xf32>
      %73 = arith.divf %71, %72 : vector<2x16xf32>
      %74 = vector.extract_strided_slice %31 {offsets = [0, 16], sizes = [2, 16], strides = [1, 1]} : vector<2x48xf32> to vector<2x16xf32>
      %75 = vector.extract_strided_slice %65 {offsets = [0, 16], sizes = [2, 16], strides = [1, 1]} : vector<2x48xf32> to vector<2x16xf32>
      %76 = arith.addf %74, %75 : vector<2x16xf32>
      %77 = arith.negf %76 : vector<2x16xf32>
      %78 = math.exp %77 : vector<2x16xf32>
      %cst_39 = arith.constant 1.000000e+00 : f32
      %79 = vector.broadcast %cst_39 : f32 to vector<2x16xf32>
      %80 = arith.addf %79, %78 : vector<2x16xf32>
      %81 = arith.divf %79, %80 : vector<2x16xf32>
      %82 = vector.extract_strided_slice %31 {offsets = [0, 32], sizes = [2, 16], strides = [1, 1]} : vector<2x48xf32> to vector<2x16xf32>
      %83 = vector.extract_strided_slice %65 {offsets = [0, 32], sizes = [2, 16], strides = [1, 1]} : vector<2x48xf32> to vector<2x16xf32>
      %84 = arith.mulf %73, %83 : vector<2x16xf32>
      %85 = arith.addf %82, %84 : vector<2x16xf32>
      %86 = math.tanh %85 : vector<2x16xf32>
      %cst_40 = arith.constant 1.000000e+00 : f32
      %87 = vector.broadcast %cst_40 : f32 to vector<2x16xf32>
      %88 = arith.subf %87, %81 : vector<2x16xf32>
      %89 = arith.mulf %88, %86 : vector<2x16xf32>
      %90 = arith.mulf %81, %62 : vector<2x16xf32>
      %91 = arith.addf %89, %90 : vector<2x16xf32>
      %c0_41 = arith.constant 0 : index
      %c0_42 = arith.constant 0 : index
      %92 = vector.load %arg12[%c0_41, %c0_42] : memref<2x16xf32, #tpu.memory_space<vmem>>, vector<2x16xf32>
      tpu.vector_store %arg12[%c0_41, %c0_42], %61 {strides = array<i32>} : memref<2x16xf32, #tpu.memory_space<vmem>>, vector<2x16xf32>,
      %c0_43 = arith.constant 0 : index
      %c0_44 = arith.constant 0 : index
      %93 = vector.load %arg13[%c0_43, %c0_44] : memref<2x16xf32, #tpu.memory_space<vmem>>, vector<2x16xf32>
      tpu.vector_store %arg13[%c0_43, %c0_44], %91 {strides = array<i32>} : memref<2x16xf32, #tpu.memory_space<vmem>>, vector<2x16xf32>,
      %94 = arith.index_cast %16 : i32 to index
      %c0_45 = arith.constant 0 : index
      %c0_46 = arith.constant 0 : index
      %95 = vector.load %arg10[%94, %c0_45, %c0_46] : memref<8x2x16xf32, #tpu.memory_space<vmem>>, vector<1x2x16xf32>
      %96 = vector.shape_cast %95 : vector<1x2x16xf32> to vector<2x16xf32>
      %97 = vector.shape_cast %61 : vector<2x16xf32> to vector<1x2x16xf32>
      tpu.vector_store %arg10[%94, %c0_45, %c0_46], %97 {strides = array<i32>} : memref<8x2x16xf32, #tpu.memory_space<vmem>>, vector<1x2x16xf32>,
      %98 = arith.index_cast %17 : i32 to index
      %c0_47 = arith.constant 0 : index
      %c0_48 = arith.constant 0 : index
      %99 = vector.load %arg11[%98, %c0_47, %c0_48] : memref<8x2x16xf32, #tpu.memory_space<vmem>>, vector<1x2x16xf32>
      %100 = vector.shape_cast %99 : vector<1x2x16xf32> to vector<2x16xf32>
      %101 = vector.shape_cast %91 : vector<2x16xf32> to vector<1x2x16xf32>
      tpu.vector_store %arg11[%98, %c0_47, %c0_48], %101 {strides = array<i32>} : memref<8x2x16xf32, #tpu.memory_space<vmem>>, vector<1x2x16xf32>,
    }
    %c8_i32_20 = arith.constant 8 : i32
    return
  }
  func.func @transform_0(%arg0: i32) -> (i32, i32, i32) {
    %c0_i32 = arith.constant 0 : i32
    %c0_i32_0 = arith.constant 0 : i32
    %c0_i32_1 = arith.constant 0 : i32
    return %c0_i32, %arg0, %c0_i32_0 : i32, i32, i32
  }
  func.func @transform_1(%arg0: i32) -> (i32, i32) {
    %c0_i32 = arith.constant 0 : i32
    %c0_i32_0 = arith.constant 0 : i32
    %c0_i32_1 = arith.constant 0 : i32
    return %c0_i32, %c0_i32_0 : i32, i32
  }
  func.func @transform_2(%arg0: i32) -> (i32, i32) {
    %c0_i32 = arith.constant 0 : i32
    %c0_i32_0 = arith.constant 0 : i32
    %c0_i32_1 = arith.constant 0 : i32
    return %c0_i32, %c0_i32_0 : i32, i32
  }
  func.func @transform_3(%arg0: i32) -> (i32, i32) {
    %c0_i32 = arith.constant 0 : i32
    %c0_i32_0 = arith.constant 0 : i32
    %c0_i32_1 = arith.constant 0 : i32
    return %c0_i32, %c0_i32_0 : i32, i32
  }
  func.func @transform_4(%arg0: i32) -> (i32, i32) {
    %c0_i32 = arith.constant 0 : i32
    %c0_i32_0 = arith.constant 0 : i32
    %c0_i32_1 = arith.constant 0 : i32
    return %c0_i32, %c0_i32_0 : i32, i32
  }
  func.func @transform_5(%arg0: i32) -> (i32, i32) {
    %c0_i32 = arith.constant 0 : i32
    %c0_i32_0 = arith.constant 0 : i32
    %c0_i32_1 = arith.constant 0 : i32
    return %c0_i32, %c0_i32_0 : i32, i32
  }
  func.func @transform_6(%arg0: i32) -> (i32, i32) {
    %c0_i32 = arith.constant 0 : i32
    %c0_i32_0 = arith.constant 0 : i32
    %c0_i32_1 = arith.constant 0 : i32
    return %c0_i32, %c0_i32_0 : i32, i32
  }
  func.func @transform_7(%arg0: i32) -> (i32, i32) {
    %c0_i32 = arith.constant 0 : i32
    %c0_i32_0 = arith.constant 0 : i32
    %c0_i32_1 = arith.constant 0 : i32
    return %c0_i32, %c0_i32_0 : i32, i32
  }
  func.func @transform_8(%arg0: i32) -> (i32, i32) {
    %c0_i32 = arith.constant 0 : i32
    %c0_i32_0 = arith.constant 0 : i32
    %c0_i32_1 = arith.constant 0 : i32
    return %c0_i32, %c0_i32_0 : i32, i32
  }
  func.func @transform_9(%arg0: i32) -> (i32, i32, i32) {
    %c0_i32 = arith.constant 0 : i32
    %c0_i32_0 = arith.constant 0 : i32
    %c0_i32_1 = arith.constant 0 : i32
    return %c0_i32, %arg0, %c0_i32_0 : i32, i32, i32
  }
  func.func @transform_10(%arg0: i32) -> (i32, i32, i32) {
    %c0_i32 = arith.constant 0 : i32
    %c0_i32_0 = arith.constant 0 : i32
    %c0_i32_1 = arith.constant 0 : i32
    return %c0_i32, %arg0, %c0_i32_0 : i32, i32, i32
  }
}

module attributes {stable_mosaic.version = 11 : i64} {
  func.func @kernel(%arg0: i32, %arg1: memref<1x12x32xf32, #tpu.memory_space<vmem>>, %arg2: memref<1x8x32xf32, #tpu.memory_space<vmem>>, %arg3: memref<1x12x1xf32, #tpu.memory_space<vmem>>, %arg4: memref<1x1x8xf32, #tpu.memory_space<vmem>>, %arg5: memref<1x32xf32, #tpu.memory_space<vmem>>, %arg6: memref<1x32xf32, #tpu.memory_space<vmem>>, %arg7: memref<1x32xf32, #tpu.memory_space<vmem>>, %arg8: memref<1x12x128xf32, #tpu.memory_space<vmem>>) attributes {dimension_semantics = [#tpu.dimension_semantics<parallel>], iteration_bounds = array<i64: 2>, scalar_prefetch = 0 : i64, scratch_operands = 0 : i64, tpu.core_type = #tpu.core_type<tc>, window_params = [{transform_indices = @transform_0, window_bounds = array<i64: 1, 12, 32>}, {transform_indices = @transform_1, window_bounds = array<i64: 1, 8, 32>}, {transform_indices = @transform_2, window_bounds = array<i64: 1, 12, 1>}, {transform_indices = @transform_3, window_bounds = array<i64: 1, 1, 8>}, {pipeline_mode = #tpu.pipeline_mode<synchronous>, transform_indices = @transform_4, window_bounds = array<i64: 1, 32>}, {pipeline_mode = #tpu.pipeline_mode<synchronous>, transform_indices = @transform_5, window_bounds = array<i64: 1, 32>}, {pipeline_mode = #tpu.pipeline_mode<synchronous>, transform_indices = @transform_6, window_bounds = array<i64: 1, 32>}, {transform_indices = @transform_7, window_bounds = array<i64: 1, 12, 128>}]} {
    %c0 = arith.constant 0 : index
    %c0_0 = arith.constant 0 : index
    %c0_1 = arith.constant 0 : index
    %0 = vector.load %arg1[%c0, %c0_0, %c0_1] : memref<1x12x32xf32, #tpu.memory_space<vmem>>, vector<1x12x32xf32>
    %1 = vector.shape_cast %0 : vector<1x12x32xf32> to vector<12x32xf32>
    %c0_2 = arith.constant 0 : index
    %c0_3 = arith.constant 0 : index
    %c0_4 = arith.constant 0 : index
    %2 = vector.load %arg2[%c0_2, %c0_3, %c0_4] : memref<1x8x32xf32, #tpu.memory_space<vmem>>, vector<1x8x32xf32>
    %3 = vector.shape_cast %2 : vector<1x8x32xf32> to vector<8x32xf32>
    %c0_5 = arith.constant 0 : index
    %c0_6 = arith.constant 0 : index
    %c0_7 = arith.constant 0 : index
    %4 = vector.load %arg4[%c0_5, %c0_6, %c0_7] : memref<1x1x8xf32, #tpu.memory_space<vmem>>, vector<1x1x8xf32>
    %5 = vector.shape_cast %4 : vector<1x1x8xf32> to vector<1x8xf32>
    %c0_8 = arith.constant 0 : index
    %c0_9 = arith.constant 0 : index
    %6 = vector.load %arg5[%c0_8, %c0_9] : memref<1x32xf32, #tpu.memory_space<vmem>>, vector<1x32xf32>
    %c0_10 = arith.constant 0 : index
    %c0_11 = arith.constant 0 : index
    %7 = vector.load %arg6[%c0_10, %c0_11] : memref<1x32xf32, #tpu.memory_space<vmem>>, vector<1x32xf32>
    %c0_12 = arith.constant 0 : index
    %c0_13 = arith.constant 0 : index
    %8 = vector.load %arg7[%c0_12, %c0_13] : memref<1x32xf32, #tpu.memory_space<vmem>>, vector<1x32xf32>
    %9 = vector.broadcast %6 : vector<1x32xf32> to vector<12x32xf32>
    %10 = arith.mulf %1, %9 : vector<12x32xf32>
    %cst = arith.constant dense<0.000000e+00> : vector<12xf32>
    %11 = vector.multi_reduction <add>, %10, %cst [1] : vector<12x32xf32> to vector<12xf32>
    %12 = vector.shape_cast %11 : vector<12xf32> to vector<12x1xf32>
    %cst_14 = arith.constant dense<0.000000e+00> : vector<1x8xf32>
    %13 = tpu.matmul %7, %3, %cst_14 {dimension_numbers = #tpu.dot_dimension_numbers<[1], [1], [0], [0], [0, 0, 1, 0], [], []>} : vector<1x32xf32>, vector<8x32xf32>, vector<1x8xf32> -> vector<1x8xf32>
    %14 = vector.broadcast %8 : vector<1x32xf32> to vector<12x32xf32>
    %15 = arith.mulf %1, %14 : vector<12x32xf32>
    %cst_15 = arith.constant dense<0.000000e+00> : vector<12x8xf32>
    %16 = tpu.matmul %15, %3, %cst_15 {dimension_numbers = #tpu.dot_dimension_numbers<[1], [1], [0], [0], [0, 0, 1, 0], [], []>} : vector<12x32xf32>, vector<8x32xf32>, vector<12x8xf32> -> vector<12x8xf32>
    %17 = vector.broadcast %12 : vector<12x1xf32> to vector<12x8xf32>
    %18 = vector.broadcast %13 : vector<1x8xf32> to vector<12x8xf32>
    %19 = arith.addf %17, %18 : vector<12x8xf32>
    %20 = arith.addf %19, %16 : vector<12x8xf32>
    %cst_16 = arith.constant 5.000000e-01 : f32
    %21 = vector.broadcast %cst_16 : f32 to vector<1x8xf32>
    %22 = arith.cmpf ogt, %5, %21 : vector<1x8xf32>
    %cst_17 = arith.constant -1.000000e+09 : f32
    %23 = vector.shape_cast %22 : vector<1x8xi1> to vector<1x8xi1>
    %24 = vector.broadcast %23 : vector<1x8xi1> to vector<12x8xi1>
    %25 = vector.broadcast %cst_17 : f32 to vector<12x8xf32>
    %26 = arith.select %24, %25, %20 : vector<12x8xi1>, vector<12x8xf32>
    %cst_18 = arith.constant dense<0xFF800000> : vector<12xf32>
    %27 = vector.multi_reduction <maximumf>, %26, %cst_18 [1] : vector<12x8xf32> to vector<12xf32>
    %28 = vector.shape_cast %27 : vector<12xf32> to vector<12x1xf32>
    %29 = vector.broadcast %28 : vector<12x1xf32> to vector<12x8xf32>
    %30 = arith.subf %26, %29 : vector<12x8xf32>
    %31 = math.exp %30 : vector<12x8xf32>
    %cst_19 = arith.constant dense<0.000000e+00> : vector<12xf32>
    %32 = vector.multi_reduction <add>, %31, %cst_19 [1] : vector<12x8xf32> to vector<12xf32>
    %33 = vector.shape_cast %32 : vector<12xf32> to vector<12x1xf32>
    %34 = vector.broadcast %33 : vector<12x1xf32> to vector<12x8xf32>
    %35 = arith.divf %31, %34 : vector<12x8xf32>
    %cst_20 = arith.constant dense<0.000000e+00> : vector<12x32xf32>
    %36 = tpu.matmul %35, %3, %cst_20 {dimension_numbers = #tpu.dot_dimension_numbers<[1], [0], [0], [1], [0, 0, 1, 1], [], []>} : vector<12x8xf32>, vector<8x32xf32>, vector<12x32xf32> -> vector<12x32xf32>
    %c0_21 = arith.constant 0 : index
    %c0_22 = arith.constant 0 : index
    %c0_23 = arith.constant 0 : index
    %37 = vector.load %arg8[%c0_21, %c0_22, %c0_23] : memref<1x12x128xf32, #tpu.memory_space<vmem>>, vector<1x12x32xf32>
    %38 = vector.shape_cast %37 : vector<1x12x32xf32> to vector<12x32xf32>
    %39 = vector.shape_cast %1 : vector<12x32xf32> to vector<1x12x32xf32>
    tpu.vector_store %arg8[%c0_21, %c0_22, %c0_23], %39 {strides = array<i32>} : memref<1x12x128xf32, #tpu.memory_space<vmem>>, vector<1x12x32xf32>,
    %c0_24 = arith.constant 0 : index
    %c0_25 = arith.constant 0 : index
    %c32 = arith.constant 32 : index
    %40 = vector.load %arg8[%c0_24, %c0_25, %c32] : memref<1x12x128xf32, #tpu.memory_space<vmem>>, vector<1x12x32xf32>
    %41 = vector.shape_cast %40 : vector<1x12x32xf32> to vector<12x32xf32>
    %42 = vector.shape_cast %36 : vector<12x32xf32> to vector<1x12x32xf32>
    tpu.vector_store %arg8[%c0_24, %c0_25, %c32], %42 {strides = array<i32>} : memref<1x12x128xf32, #tpu.memory_space<vmem>>, vector<1x12x32xf32>,
    %43 = arith.mulf %1, %36 : vector<12x32xf32>
    %c0_26 = arith.constant 0 : index
    %c0_27 = arith.constant 0 : index
    %c64 = arith.constant 64 : index
    %44 = vector.load %arg8[%c0_26, %c0_27, %c64] : memref<1x12x128xf32, #tpu.memory_space<vmem>>, vector<1x12x32xf32>
    %45 = vector.shape_cast %44 : vector<1x12x32xf32> to vector<12x32xf32>
    %46 = vector.shape_cast %43 : vector<12x32xf32> to vector<1x12x32xf32>
    tpu.vector_store %arg8[%c0_26, %c0_27, %c64], %46 {strides = array<i32>} : memref<1x12x128xf32, #tpu.memory_space<vmem>>, vector<1x12x32xf32>,
    %c0_28 = arith.constant 0 : index
    %c0_29 = arith.constant 0 : index
    %c0_30 = arith.constant 0 : index
    %47 = vector.load %arg3[%c0_28, %c0_29, %c0_30] : memref<1x12x1xf32, #tpu.memory_space<vmem>>, vector<1x12x1xf32>
    %48 = vector.shape_cast %47 : vector<1x12x1xf32> to vector<12x1xf32>
    %cst_31 = arith.constant 5.000000e-01 : f32
    %49 = vector.broadcast %cst_31 : f32 to vector<12x1xf32>
    %50 = arith.cmpf ogt, %48, %49 : vector<12x1xf32>
    %cst_32 = arith.constant -1.000000e+09 : f32
    %51 = vector.shape_cast %50 : vector<12x1xi1> to vector<12x1xi1>
    %52 = vector.broadcast %51 : vector<12x1xi1> to vector<12x8xi1>
    %53 = vector.broadcast %cst_32 : f32 to vector<12x8xf32>
    %54 = arith.select %52, %53, %26 : vector<12x8xi1>, vector<12x8xf32>
    %cst_33 = arith.constant dense<0xFF800000> : vector<12xf32>
    %55 = vector.multi_reduction <maximumf>, %54, %cst_33 [1] : vector<12x8xf32> to vector<12xf32>
    %56 = vector.shape_cast %55 : vector<12xf32> to vector<12x1xf32>
    %cst_34 = arith.constant 5.000000e-01 : f32
    %57 = vector.broadcast %cst_34 : f32 to vector<12x1xf32>
    %58 = arith.cmpf ogt, %48, %57 : vector<12x1xf32>
    %cst_35 = arith.constant -1.000000e+09 : f32
    %59 = vector.broadcast %cst_35 : f32 to vector<12x1xf32>
    %60 = arith.select %58, %59, %56 : vector<12x1xi1>, vector<12x1xf32>
    %cst_36 = arith.constant dense<0xFF800000> : vector<1xf32>
    %61 = vector.multi_reduction <maximumf>, %60, %cst_36 [0] : vector<12x1xf32> to vector<1xf32>
    %62 = vector.shape_cast %61 : vector<1xf32> to vector<1x1xf32>
    %63 = vector.broadcast %62 : vector<1x1xf32> to vector<12x1xf32>
    %64 = arith.subf %60, %63 : vector<12x1xf32>
    %65 = math.exp %64 : vector<12x1xf32>
    %cst_37 = arith.constant dense<0.000000e+00> : vector<1xf32>
    %66 = vector.multi_reduction <add>, %65, %cst_37 [0] : vector<12x1xf32> to vector<1xf32>
    %67 = vector.shape_cast %66 : vector<1xf32> to vector<1x1xf32>
    %68 = vector.broadcast %67 : vector<1x1xf32> to vector<12x1xf32>
    %69 = arith.divf %65, %68 : vector<12x1xf32>
    %70 = vector.broadcast %69 : vector<12x1xf32> to vector<12x32xf32>
    %71 = arith.mulf %70, %1 : vector<12x32xf32>
    %cst_38 = arith.constant dense<0.000000e+00> : vector<32xf32>
    %72 = vector.multi_reduction <add>, %71, %cst_38 [0] : vector<12x32xf32> to vector<32xf32>
    %73 = vector.shape_cast %72 : vector<32xf32> to vector<1x32xf32>
    %74 = vector.broadcast %73 : vector<1x32xf32> to vector<12x32xf32>
    %75 = arith.mulf %1, %74 : vector<12x32xf32>
    %c0_39 = arith.constant 0 : index
    %c0_40 = arith.constant 0 : index
    %c96 = arith.constant 96 : index
    %76 = vector.load %arg8[%c0_39, %c0_40, %c96] : memref<1x12x128xf32, #tpu.memory_space<vmem>>, vector<1x12x32xf32>
    %77 = vector.shape_cast %76 : vector<1x12x32xf32> to vector<12x32xf32>
    %78 = vector.shape_cast %75 : vector<12x32xf32> to vector<1x12x32xf32>
    tpu.vector_store %arg8[%c0_39, %c0_40, %c96], %78 {strides = array<i32>} : memref<1x12x128xf32, #tpu.memory_space<vmem>>, vector<1x12x32xf32>,
    return
  }
  func.func @transform_0(%arg0: i32) -> (i32, i32, i32) {
    %c0_i32 = arith.constant 0 : i32
    %c0_i32_0 = arith.constant 0 : i32
    %c0_i32_1 = arith.constant 0 : i32
    return %arg0, %c0_i32, %c0_i32_0 : i32, i32, i32
  }
  func.func @transform_1(%arg0: i32) -> (i32, i32, i32) {
    %c0_i32 = arith.constant 0 : i32
    %c0_i32_0 = arith.constant 0 : i32
    %c0_i32_1 = arith.constant 0 : i32
    return %arg0, %c0_i32, %c0_i32_0 : i32, i32, i32
  }
  func.func @transform_2(%arg0: i32) -> (i32, i32, i32) {
    %c0_i32 = arith.constant 0 : i32
    %c0_i32_0 = arith.constant 0 : i32
    %c0_i32_1 = arith.constant 0 : i32
    return %arg0, %c0_i32, %c0_i32_0 : i32, i32, i32
  }
  func.func @transform_3(%arg0: i32) -> (i32, i32, i32) {
    %c0_i32 = arith.constant 0 : i32
    %c0_i32_0 = arith.constant 0 : i32
    %c0_i32_1 = arith.constant 0 : i32
    return %arg0, %c0_i32, %c0_i32_0 : i32, i32, i32
  }
  func.func @transform_4(%arg0: i32) -> (i32, i32) {
    %c0_i32 = arith.constant 0 : i32
    %c0_i32_0 = arith.constant 0 : i32
    %c0_i32_1 = arith.constant 0 : i32
    return %c0_i32, %c0_i32_0 : i32, i32
  }
  func.func @transform_5(%arg0: i32) -> (i32, i32) {
    %c0_i32 = arith.constant 0 : i32
    %c0_i32_0 = arith.constant 0 : i32
    %c0_i32_1 = arith.constant 0 : i32
    return %c0_i32, %c0_i32_0 : i32, i32
  }
  func.func @transform_6(%arg0: i32) -> (i32, i32) {
    %c0_i32 = arith.constant 0 : i32
    %c0_i32_0 = arith.constant 0 : i32
    %c0_i32_1 = arith.constant 0 : i32
    return %c0_i32, %c0_i32_0 : i32, i32
  }
  func.func @transform_7(%arg0: i32) -> (i32, i32, i32) {
    %c0_i32 = arith.constant 0 : i32
    %c0_i32_0 = arith.constant 0 : i32
    %c0_i32_1 = arith.constant 0 : i32
    return %arg0, %c0_i32, %c0_i32_0 : i32, i32, i32
  }
}

module attributes {stable_mosaic.version = 11 : i64} {
  func.func @kernel(%arg0: i32, %arg1: i32, %arg2: i32, %arg3: memref<24x128xf32, #tpu.memory_space<vmem>>, %arg4: memref<128x32xf32, #tpu.memory_space<vmem>>, %arg5: memref<1x32xf32, #tpu.memory_space<vmem>>, %arg6: memref<24x32xf32, #tpu.memory_space<vmem>>, %arg7: memref<24x32xf32, #tpu.memory_space<vmem>>) attributes {dimension_semantics = [#tpu.dimension_semantics<parallel>, #tpu.dimension_semantics<parallel>, #tpu.dimension_semantics<arbitrary>], iteration_bounds = array<i64: 1, 1, 1>, scalar_prefetch = 0 : i64, scratch_operands = 1 : i64, tpu.core_type = #tpu.core_type<tc>, window_params = [{transform_indices = @transform_0, window_bounds = array<i64: 24, 128>}, {transform_indices = @transform_1, window_bounds = array<i64: 128, 32>}, {transform_indices = @transform_2, window_bounds = array<i64: 1, 32>}, {transform_indices = @transform_3, window_bounds = array<i64: 24, 32>}]} {
    %c0_i32 = arith.constant 0 : i32
    %0 = arith.cmpi eq, %arg2, %c0_i32 : i32
    %1 = arith.extui %0 : i1 to i32
    %c0_i32_0 = arith.constant 0 : i32
    %2 = arith.cmpi ne, %1, %c0_i32_0 : i32
    scf.if %2 {
      %cst_10 = arith.constant 0.000000e+00 : f32
      %14 = vector.broadcast %cst_10 : f32 to vector<24x32xf32>
      %c0_11 = arith.constant 0 : index
      %c0_12 = arith.constant 0 : index
      %15 = vector.load %arg7[%c0_11, %c0_12] : memref<24x32xf32, #tpu.memory_space<vmem>>, vector<24x32xf32>
      tpu.vector_store %arg7[%c0_11, %c0_12], %14 {strides = array<i32>} : memref<24x32xf32, #tpu.memory_space<vmem>>, vector<24x32xf32>,
    } else {
    }
    %c0 = arith.constant 0 : index
    %c0_1 = arith.constant 0 : index
    %3 = vector.load %arg7[%c0, %c0_1] : memref<24x32xf32, #tpu.memory_space<vmem>>, vector<24x32xf32>
    %c0_2 = arith.constant 0 : index
    %c0_3 = arith.constant 0 : index
    %4 = vector.load %arg3[%c0_2, %c0_3] : memref<24x128xf32, #tpu.memory_space<vmem>>, vector<24x128xf32>
    %5 = arith.truncf %4 : vector<24x128xf32> to vector<24x128xbf16>
    %c0_4 = arith.constant 0 : index
    %c0_5 = arith.constant 0 : index
    %6 = vector.load %arg4[%c0_4, %c0_5] : memref<128x32xf32, #tpu.memory_space<vmem>>, vector<128x32xf32>
    %7 = arith.truncf %6 : vector<128x32xf32> to vector<128x32xbf16>
    %cst = arith.constant dense<0.000000e+00> : vector<24x32xf32>
    %8 = tpu.matmul %5, %7, %cst {dimension_numbers = #tpu.dot_dimension_numbers<[1], [0], [0], [1], [0, 0, 1, 1], [], []>} : vector<24x128xbf16>, vector<128x32xbf16>, vector<24x32xf32> -> vector<24x32xf32>
    %9 = arith.addf %3, %8 : vector<24x32xf32>
    %c0_6 = arith.constant 0 : index
    %c0_7 = arith.constant 0 : index
    %10 = vector.load %arg7[%c0_6, %c0_7] : memref<24x32xf32, #tpu.memory_space<vmem>>, vector<24x32xf32>
    tpu.vector_store %arg7[%c0_6, %c0_7], %9 {strides = array<i32>} : memref<24x32xf32, #tpu.memory_space<vmem>>, vector<24x32xf32>,
    %c0_i32_8 = arith.constant 0 : i32
    %11 = arith.cmpi eq, %arg2, %c0_i32_8 : i32
    %12 = arith.extui %11 : i1 to i32
    %c0_i32_9 = arith.constant 0 : i32
    %13 = arith.cmpi ne, %12, %c0_i32_9 : i32
    scf.if %13 {
      %c0_10 = arith.constant 0 : index
      %c0_11 = arith.constant 0 : index
      %14 = vector.load %arg7[%c0_10, %c0_11] : memref<24x32xf32, #tpu.memory_space<vmem>>, vector<24x32xf32>
      %c0_12 = arith.constant 0 : index
      %c0_13 = arith.constant 0 : index
      %15 = vector.load %arg5[%c0_12, %c0_13] : memref<1x32xf32, #tpu.memory_space<vmem>>, vector<1x32xf32>
      %16 = vector.broadcast %15 : vector<1x32xf32> to vector<24x32xf32>
      %17 = arith.addf %14, %16 : vector<24x32xf32>
      %cst_14 = arith.constant 0.000000e+00 : f32
      %18 = vector.broadcast %cst_14 : f32 to vector<24x32xf32>
      %19 = arith.maximumf %17, %18 : vector<24x32xf32>
      %c0_15 = arith.constant 0 : index
      %c0_16 = arith.constant 0 : index
      %20 = vector.load %arg6[%c0_15, %c0_16] : memref<24x32xf32, #tpu.memory_space<vmem>>, vector<24x32xf32>
      tpu.vector_store %arg6[%c0_15, %c0_16], %19 {strides = array<i32>} : memref<24x32xf32, #tpu.memory_space<vmem>>, vector<24x32xf32>,
    } else {
    }
    return
  }
  func.func @transform_0(%arg0: i32, %arg1: i32, %arg2: i32) -> (i32, i32) {
    %c0_i32 = arith.constant 0 : i32
    return %arg0, %arg2 : i32, i32
  }
  func.func @transform_1(%arg0: i32, %arg1: i32, %arg2: i32) -> (i32, i32) {
    %c0_i32 = arith.constant 0 : i32
    return %arg2, %arg1 : i32, i32
  }
  func.func @transform_2(%arg0: i32, %arg1: i32, %arg2: i32) -> (i32, i32) {
    %c0_i32 = arith.constant 0 : i32
    %c0_i32_0 = arith.constant 0 : i32
    return %c0_i32, %arg1 : i32, i32
  }
  func.func @transform_3(%arg0: i32, %arg1: i32, %arg2: i32) -> (i32, i32) {
    %c0_i32 = arith.constant 0 : i32
    return %arg0, %arg1 : i32, i32
  }
}

module attributes {stable_mosaic.version = 11 : i64} {
  func.func @_bigru_kernel(%arg0: i32, %arg1: memref<12x2x32xf32, #tpu.memory_space<vmem>>, %arg2: memref<32x48xf32, #tpu.memory_space<vmem>>, %arg3: memref<1x48xf32, #tpu.memory_space<vmem>>, %arg4: memref<16x48xf32, #tpu.memory_space<vmem>>, %arg5: memref<1x48xf32, #tpu.memory_space<vmem>>, %arg6: memref<32x48xf32, #tpu.memory_space<vmem>>, %arg7: memref<1x48xf32, #tpu.memory_space<vmem>>, %arg8: memref<16x48xf32, #tpu.memory_space<vmem>>, %arg9: memref<1x48xf32, #tpu.memory_space<vmem>>, %arg10: memref<12x2x16xf32, #tpu.memory_space<vmem>>, %arg11: memref<12x2x16xf32, #tpu.memory_space<vmem>>, %arg12: memref<2x16xf32, #tpu.memory_space<vmem>>, %arg13: memref<2x16xf32, #tpu.memory_space<vmem>>) attributes {dimension_semantics = [#tpu.dimension_semantics<parallel>], iteration_bounds = array<i64: 1>, scalar_prefetch = 0 : i64, scratch_operands = 2 : i64, tpu.core_type = #tpu.core_type<tc>, window_params = [{transform_indices = @transform_0, window_bounds = array<i64: 12, 2, 32>}, {pipeline_mode = #tpu.pipeline_mode<synchronous>, transform_indices = @transform_1, window_bounds = array<i64: 32, 48>}, {pipeline_mode = #tpu.pipeline_mode<synchronous>, transform_indices = @transform_2, window_bounds = array<i64: 1, 48>}, {pipeline_mode = #tpu.pipeline_mode<synchronous>, transform_indices = @transform_3, window_bounds = array<i64: 16, 48>}, {pipeline_mode = #tpu.pipeline_mode<synchronous>, transform_indices = @transform_4, window_bounds = array<i64: 1, 48>}, {pipeline_mode = #tpu.pipeline_mode<synchronous>, transform_indices = @transform_5, window_bounds = array<i64: 32, 48>}, {pipeline_mode = #tpu.pipeline_mode<synchronous>, transform_indices = @transform_6, window_bounds = array<i64: 1, 48>}, {pipeline_mode = #tpu.pipeline_mode<synchronous>, transform_indices = @transform_7, window_bounds = array<i64: 16, 48>}, {pipeline_mode = #tpu.pipeline_mode<synchronous>, transform_indices = @transform_8, window_bounds = array<i64: 1, 48>}, {transform_indices = @transform_9, window_bounds = array<i64: 12, 2, 16>}, {transform_indices = @transform_10, window_bounds = array<i64: 12, 2, 16>}]} {
    %cst = arith.constant 0.000000e+00 : f32
    %0 = vector.broadcast %cst : f32 to vector<2x16xf32>
    %c0 = arith.constant 0 : index
    %c0_0 = arith.constant 0 : index
    %1 = vector.load %arg12[%c0, %c0_0] : memref<2x16xf32, #tpu.memory_space<vmem>>, vector<2x16xf32>
    tpu.vector_store %arg12[%c0, %c0_0], %0 {strides = array<i32>} : memref<2x16xf32, #tpu.memory_space<vmem>>, vector<2x16xf32>,
    %cst_1 = arith.constant 0.000000e+00 : f32
    %2 = vector.broadcast %cst_1 : f32 to vector<2x16xf32>
    %c0_2 = arith.constant 0 : index
    %c0_3 = arith.constant 0 : index
    %3 = vector.load %arg13[%c0_2, %c0_3] : memref<2x16xf32, #tpu.memory_space<vmem>>, vector<2x16xf32>
    tpu.vector_store %arg13[%c0_2, %c0_3], %2 {strides = array<i32>} : memref<2x16xf32, #tpu.memory_space<vmem>>, vector<2x16xf32>,
    %c0_4 = arith.constant 0 : index
    %c0_5 = arith.constant 0 : index
    %4 = vector.load %arg2[%c0_4, %c0_5] : memref<32x48xf32, #tpu.memory_space<vmem>>, vector<32x48xf32>
    %5 = arith.truncf %4 : vector<32x48xf32> to vector<32x48xbf16>
    %c0_6 = arith.constant 0 : index
    %c0_7 = arith.constant 0 : index
    %6 = vector.load %arg6[%c0_6, %c0_7] : memref<32x48xf32, #tpu.memory_space<vmem>>, vector<32x48xf32>
    %7 = arith.truncf %6 : vector<32x48xf32> to vector<32x48xbf16>
    %c0_8 = arith.constant 0 : index
    %c0_9 = arith.constant 0 : index
    %8 = vector.load %arg4[%c0_8, %c0_9] : memref<16x48xf32, #tpu.memory_space<vmem>>, vector<16x48xf32>
    %c0_10 = arith.constant 0 : index
    %c0_11 = arith.constant 0 : index
    %9 = vector.load %arg8[%c0_10, %c0_11] : memref<16x48xf32, #tpu.memory_space<vmem>>, vector<16x48xf32>
    %c0_12 = arith.constant 0 : index
    %c0_13 = arith.constant 0 : index
    %10 = vector.load %arg3[%c0_12, %c0_13] : memref<1x48xf32, #tpu.memory_space<vmem>>, vector<1x48xf32>
    %c0_14 = arith.constant 0 : index
    %c0_15 = arith.constant 0 : index
    %11 = vector.load %arg7[%c0_14, %c0_15] : memref<1x48xf32, #tpu.memory_space<vmem>>, vector<1x48xf32>
    %c0_16 = arith.constant 0 : index
    %c0_17 = arith.constant 0 : index
    %12 = vector.load %arg5[%c0_16, %c0_17] : memref<1x48xf32, #tpu.memory_space<vmem>>, vector<1x48xf32>
    %c0_18 = arith.constant 0 : index
    %c0_19 = arith.constant 0 : index
    %13 = vector.load %arg9[%c0_18, %c0_19] : memref<1x48xf32, #tpu.memory_space<vmem>>, vector<1x48xf32>
    %c0_i32 = arith.constant 0 : i32
    %c12_i32 = arith.constant 12 : i32
    %14 = arith.addi %c0_i32, %c12_i32 : i32
    %c1_i32 = arith.constant 1 : i32
    scf.for %arg14 = %c0_i32 to %14 step %c1_i32  : i32 {
      %c1_i32_21 = arith.constant 1 : i32
      %15 = arith.muli %arg14, %c1_i32_21 : i32
      %c0_i32_22 = arith.constant 0 : i32
      %16 = arith.addi %c0_i32_22, %15 : i32
      %c11_i32 = arith.constant 11 : i32
      %17 = arith.subi %c11_i32, %16 : i32
      %18 = arith.index_cast %16 : i32 to index
      %c0_23 = arith.constant 0 : index
      %c0_24 = arith.constant 0 : index
      %19 = vector.load %arg1[%18, %c0_23, %c0_24] : memref<12x2x32xf32, #tpu.memory_space<vmem>>, vector<1x2x32xf32>
      %20 = vector.shape_cast %19 : vector<1x2x32xf32> to vector<2x32xf32>
      %21 = arith.truncf %20 : vector<2x32xf32> to vector<2x32xbf16>
      %cst_25 = arith.constant dense<0.000000e+00> : vector<2x48xf32>
      %22 = tpu.matmul %21, %5, %cst_25 {dimension_numbers = #tpu.dot_dimension_numbers<[1], [0], [0], [1], [0, 0, 1, 1], [], []>} : vector<2x32xbf16>, vector<32x48xbf16>, vector<2x48xf32> -> vector<2x48xf32>
      %23 = vector.broadcast %10 : vector<1x48xf32> to vector<2x48xf32>
      %24 = arith.addf %22, %23 : vector<2x48xf32>
      %25 = arith.index_cast %17 : i32 to index
      %c0_26 = arith.constant 0 : index
      %c0_27 = arith.constant 0 : index
      %26 = vector.load %arg1[%25, %c0_26, %c0_27] : memref<12x2x32xf32, #tpu.memory_space<vmem>>, vector<1x2x32xf32>
      %27 = vector.shape_cast %26 : vector<1x2x32xf32> to vector<2x32xf32>
      %28 = arith.truncf %27 : vector<2x32xf32> to vector<2x32xbf16>
      %cst_28 = arith.constant dense<0.000000e+00> : vector<2x48xf32>
      %29 = tpu.matmul %28, %7, %cst_28 {dimension_numbers = #tpu.dot_dimension_numbers<[1], [0], [0], [1], [0, 0, 1, 1], [], []>} : vector<2x32xbf16>, vector<32x48xbf16>, vector<2x48xf32> -> vector<2x48xf32>
      %30 = vector.broadcast %11 : vector<1x48xf32> to vector<2x48xf32>
      %31 = arith.addf %29, %30 : vector<2x48xf32>
      %c0_29 = arith.constant 0 : index
      %c0_30 = arith.constant 0 : index
      %32 = vector.load %arg12[%c0_29, %c0_30] : memref<2x16xf32, #tpu.memory_space<vmem>>, vector<2x16xf32>
      %cst_31 = arith.constant dense<0.000000e+00> : vector<2x48xf32>
      %33 = tpu.matmul %32, %8, %cst_31 {dimension_numbers = #tpu.dot_dimension_numbers<[1], [0], [0], [1], [0, 0, 1, 1], [], []>} : vector<2x16xf32>, vector<16x48xf32>, vector<2x48xf32> -> vector<2x48xf32>
      %34 = vector.broadcast %12 : vector<1x48xf32> to vector<2x48xf32>
      %35 = arith.addf %33, %34 : vector<2x48xf32>
      %36 = vector.extract_strided_slice %24 {offsets = [0, 0], sizes = [2, 16], strides = [1, 1]} : vector<2x48xf32> to vector<2x16xf32>
      %37 = vector.extract_strided_slice %35 {offsets = [0, 0], sizes = [2, 16], strides = [1, 1]} : vector<2x48xf32> to vector<2x16xf32>
      %38 = arith.addf %36, %37 : vector<2x16xf32>
      %39 = arith.negf %38 : vector<2x16xf32>
      %40 = math.exp %39 : vector<2x16xf32>
      %cst_32 = arith.constant 1.000000e+00 : f32
      %41 = vector.broadcast %cst_32 : f32 to vector<2x16xf32>
      %42 = arith.addf %41, %40 : vector<2x16xf32>
      %43 = arith.divf %41, %42 : vector<2x16xf32>
      %44 = vector.extract_strided_slice %24 {offsets = [0, 16], sizes = [2, 16], strides = [1, 1]} : vector<2x48xf32> to vector<2x16xf32>
      %45 = vector.extract_strided_slice %35 {offsets = [0, 16], sizes = [2, 16], strides = [1, 1]} : vector<2x48xf32> to vector<2x16xf32>
      %46 = arith.addf %44, %45 : vector<2x16xf32>
      %47 = arith.negf %46 : vector<2x16xf32>
      %48 = math.exp %47 : vector<2x16xf32>
      %cst_33 = arith.constant 1.000000e+00 : f32
      %49 = vector.broadcast %cst_33 : f32 to vector<2x16xf32>
      %50 = arith.addf %49, %48 : vector<2x16xf32>
      %51 = arith.divf %49, %50 : vector<2x16xf32>
      %52 = vector.extract_strided_slice %24 {offsets = [0, 32], sizes = [2, 16], strides = [1, 1]} : vector<2x48xf32> to vector<2x16xf32>
      %53 = vector.extract_strided_slice %35 {offsets = [0, 32], sizes = [2, 16], strides = [1, 1]} : vector<2x48xf32> to vector<2x16xf32>
      %54 = arith.mulf %43, %53 : vector<2x16xf32>
      %55 = arith.addf %52, %54 : vector<2x16xf32>
      %56 = math.tanh %55 : vector<2x16xf32>
      %cst_34 = arith.constant 1.000000e+00 : f32
      %57 = vector.broadcast %cst_34 : f32 to vector<2x16xf32>
      %58 = arith.subf %57, %51 : vector<2x16xf32>
      %59 = arith.mulf %58, %56 : vector<2x16xf32>
      %60 = arith.mulf %51, %32 : vector<2x16xf32>
      %61 = arith.addf %59, %60 : vector<2x16xf32>
      %c0_35 = arith.constant 0 : index
      %c0_36 = arith.constant 0 : index
      %62 = vector.load %arg13[%c0_35, %c0_36] : memref<2x16xf32, #tpu.memory_space<vmem>>, vector<2x16xf32>
      %cst_37 = arith.constant dense<0.000000e+00> : vector<2x48xf32>
      %63 = tpu.matmul %62, %9, %cst_37 {dimension_numbers = #tpu.dot_dimension_numbers<[1], [0], [0], [1], [0, 0, 1, 1], [], []>} : vector<2x16xf32>, vector<16x48xf32>, vector<2x48xf32> -> vector<2x48xf32>
      %64 = vector.broadcast %13 : vector<1x48xf32> to vector<2x48xf32>
      %65 = arith.addf %63, %64 : vector<2x48xf32>
      %66 = vector.extract_strided_slice %31 {offsets = [0, 0], sizes = [2, 16], strides = [1, 1]} : vector<2x48xf32> to vector<2x16xf32>
      %67 = vector.extract_strided_slice %65 {offsets = [0, 0], sizes = [2, 16], strides = [1, 1]} : vector<2x48xf32> to vector<2x16xf32>
      %68 = arith.addf %66, %67 : vector<2x16xf32>
      %69 = arith.negf %68 : vector<2x16xf32>
      %70 = math.exp %69 : vector<2x16xf32>
      %cst_38 = arith.constant 1.000000e+00 : f32
      %71 = vector.broadcast %cst_38 : f32 to vector<2x16xf32>
      %72 = arith.addf %71, %70 : vector<2x16xf32>
      %73 = arith.divf %71, %72 : vector<2x16xf32>
      %74 = vector.extract_strided_slice %31 {offsets = [0, 16], sizes = [2, 16], strides = [1, 1]} : vector<2x48xf32> to vector<2x16xf32>
      %75 = vector.extract_strided_slice %65 {offsets = [0, 16], sizes = [2, 16], strides = [1, 1]} : vector<2x48xf32> to vector<2x16xf32>
      %76 = arith.addf %74, %75 : vector<2x16xf32>
      %77 = arith.negf %76 : vector<2x16xf32>
      %78 = math.exp %77 : vector<2x16xf32>
      %cst_39 = arith.constant 1.000000e+00 : f32
      %79 = vector.broadcast %cst_39 : f32 to vector<2x16xf32>
      %80 = arith.addf %79, %78 : vector<2x16xf32>
      %81 = arith.divf %79, %80 : vector<2x16xf32>
      %82 = vector.extract_strided_slice %31 {offsets = [0, 32], sizes = [2, 16], strides = [1, 1]} : vector<2x48xf32> to vector<2x16xf32>
      %83 = vector.extract_strided_slice %65 {offsets = [0, 32], sizes = [2, 16], strides = [1, 1]} : vector<2x48xf32> to vector<2x16xf32>
      %84 = arith.mulf %73, %83 : vector<2x16xf32>
      %85 = arith.addf %82, %84 : vector<2x16xf32>
      %86 = math.tanh %85 : vector<2x16xf32>
      %cst_40 = arith.constant 1.000000e+00 : f32
      %87 = vector.broadcast %cst_40 : f32 to vector<2x16xf32>
      %88 = arith.subf %87, %81 : vector<2x16xf32>
      %89 = arith.mulf %88, %86 : vector<2x16xf32>
      %90 = arith.mulf %81, %62 : vector<2x16xf32>
      %91 = arith.addf %89, %90 : vector<2x16xf32>
      %c0_41 = arith.constant 0 : index
      %c0_42 = arith.constant 0 : index
      %92 = vector.load %arg12[%c0_41, %c0_42] : memref<2x16xf32, #tpu.memory_space<vmem>>, vector<2x16xf32>
      tpu.vector_store %arg12[%c0_41, %c0_42], %61 {strides = array<i32>} : memref<2x16xf32, #tpu.memory_space<vmem>>, vector<2x16xf32>,
      %c0_43 = arith.constant 0 : index
      %c0_44 = arith.constant 0 : index
      %93 = vector.load %arg13[%c0_43, %c0_44] : memref<2x16xf32, #tpu.memory_space<vmem>>, vector<2x16xf32>
      tpu.vector_store %arg13[%c0_43, %c0_44], %91 {strides = array<i32>} : memref<2x16xf32, #tpu.memory_space<vmem>>, vector<2x16xf32>,
      %94 = arith.index_cast %16 : i32 to index
      %c0_45 = arith.constant 0 : index
      %c0_46 = arith.constant 0 : index
      %95 = vector.load %arg10[%94, %c0_45, %c0_46] : memref<12x2x16xf32, #tpu.memory_space<vmem>>, vector<1x2x16xf32>
      %96 = vector.shape_cast %95 : vector<1x2x16xf32> to vector<2x16xf32>
      %97 = vector.shape_cast %61 : vector<2x16xf32> to vector<1x2x16xf32>
      tpu.vector_store %arg10[%94, %c0_45, %c0_46], %97 {strides = array<i32>} : memref<12x2x16xf32, #tpu.memory_space<vmem>>, vector<1x2x16xf32>,
      %98 = arith.index_cast %17 : i32 to index
      %c0_47 = arith.constant 0 : index
      %c0_48 = arith.constant 0 : index
      %99 = vector.load %arg11[%98, %c0_47, %c0_48] : memref<12x2x16xf32, #tpu.memory_space<vmem>>, vector<1x2x16xf32>
      %100 = vector.shape_cast %99 : vector<1x2x16xf32> to vector<2x16xf32>
      %101 = vector.shape_cast %91 : vector<2x16xf32> to vector<1x2x16xf32>
      tpu.vector_store %arg11[%98, %c0_47, %c0_48], %101 {strides = array<i32>} : memref<12x2x16xf32, #tpu.memory_space<vmem>>, vector<1x2x16xf32>,
    }
    %c12_i32_20 = arith.constant 12 : i32
    return
  }
  func.func @transform_0(%arg0: i32) -> (i32, i32, i32) {
    %c0_i32 = arith.constant 0 : i32
    %c0_i32_0 = arith.constant 0 : i32
    %c0_i32_1 = arith.constant 0 : i32
    return %c0_i32, %arg0, %c0_i32_0 : i32, i32, i32
  }
  func.func @transform_1(%arg0: i32) -> (i32, i32) {
    %c0_i32 = arith.constant 0 : i32
    %c0_i32_0 = arith.constant 0 : i32
    %c0_i32_1 = arith.constant 0 : i32
    return %c0_i32, %c0_i32_0 : i32, i32
  }
  func.func @transform_2(%arg0: i32) -> (i32, i32) {
    %c0_i32 = arith.constant 0 : i32
    %c0_i32_0 = arith.constant 0 : i32
    %c0_i32_1 = arith.constant 0 : i32
    return %c0_i32, %c0_i32_0 : i32, i32
  }
  func.func @transform_3(%arg0: i32) -> (i32, i32) {
    %c0_i32 = arith.constant 0 : i32
    %c0_i32_0 = arith.constant 0 : i32
    %c0_i32_1 = arith.constant 0 : i32
    return %c0_i32, %c0_i32_0 : i32, i32
  }
  func.func @transform_4(%arg0: i32) -> (i32, i32) {
    %c0_i32 = arith.constant 0 : i32
    %c0_i32_0 = arith.constant 0 : i32
    %c0_i32_1 = arith.constant 0 : i32
    return %c0_i32, %c0_i32_0 : i32, i32
  }
  func.func @transform_5(%arg0: i32) -> (i32, i32) {
    %c0_i32 = arith.constant 0 : i32
    %c0_i32_0 = arith.constant 0 : i32
    %c0_i32_1 = arith.constant 0 : i32
    return %c0_i32, %c0_i32_0 : i32, i32
  }
  func.func @transform_6(%arg0: i32) -> (i32, i32) {
    %c0_i32 = arith.constant 0 : i32
    %c0_i32_0 = arith.constant 0 : i32
    %c0_i32_1 = arith.constant 0 : i32
    return %c0_i32, %c0_i32_0 : i32, i32
  }
  func.func @transform_7(%arg0: i32) -> (i32, i32) {
    %c0_i32 = arith.constant 0 : i32
    %c0_i32_0 = arith.constant 0 : i32
    %c0_i32_1 = arith.constant 0 : i32
    return %c0_i32, %c0_i32_0 : i32, i32
  }
  func.func @transform_8(%arg0: i32) -> (i32, i32) {
    %c0_i32 = arith.constant 0 : i32
    %c0_i32_0 = arith.constant 0 : i32
    %c0_i32_1 = arith.constant 0 : i32
    return %c0_i32, %c0_i32_0 : i32, i32
  }
  func.func @transform_9(%arg0: i32) -> (i32, i32, i32) {
    %c0_i32 = arith.constant 0 : i32
    %c0_i32_0 = arith.constant 0 : i32
    %c0_i32_1 = arith.constant 0 : i32
    return %c0_i32, %arg0, %c0_i32_0 : i32, i32, i32
  }
  func.func @transform_10(%arg0: i32) -> (i32, i32, i32) {
    %c0_i32 = arith.constant 0 : i32
    %c0_i32_0 = arith.constant 0 : i32
    %c0_i32_1 = arith.constant 0 : i32
    return %c0_i32, %arg0, %c0_i32_0 : i32, i32, i32
  }
}

module attributes {stable_mosaic.version = 11 : i64} {
  func.func @kernel(%arg0: i32, %arg1: memref<1x12x32xf32, #tpu.memory_space<vmem>>, %arg2: memref<1x12x32xf32, #tpu.memory_space<vmem>>, %arg3: memref<1x12x1xf32, #tpu.memory_space<vmem>>, %arg4: memref<1x1x12xf32, #tpu.memory_space<vmem>>, %arg5: memref<1x32xf32, #tpu.memory_space<vmem>>, %arg6: memref<1x32xf32, #tpu.memory_space<vmem>>, %arg7: memref<1x32xf32, #tpu.memory_space<vmem>>, %arg8: memref<1x12x96xf32, #tpu.memory_space<vmem>>) attributes {dimension_semantics = [#tpu.dimension_semantics<parallel>], iteration_bounds = array<i64: 2>, scalar_prefetch = 0 : i64, scratch_operands = 0 : i64, tpu.core_type = #tpu.core_type<tc>, window_params = [{transform_indices = @transform_0, window_bounds = array<i64: 1, 12, 32>}, {transform_indices = @transform_1, window_bounds = array<i64: 1, 12, 32>}, {transform_indices = @transform_2, window_bounds = array<i64: 1, 12, 1>}, {transform_indices = @transform_3, window_bounds = array<i64: 1, 1, 12>}, {pipeline_mode = #tpu.pipeline_mode<synchronous>, transform_indices = @transform_4, window_bounds = array<i64: 1, 32>}, {pipeline_mode = #tpu.pipeline_mode<synchronous>, transform_indices = @transform_5, window_bounds = array<i64: 1, 32>}, {pipeline_mode = #tpu.pipeline_mode<synchronous>, transform_indices = @transform_6, window_bounds = array<i64: 1, 32>}, {transform_indices = @transform_7, window_bounds = array<i64: 1, 12, 96>}]} {
    %c0 = arith.constant 0 : index
    %c0_0 = arith.constant 0 : index
    %c0_1 = arith.constant 0 : index
    %0 = vector.load %arg1[%c0, %c0_0, %c0_1] : memref<1x12x32xf32, #tpu.memory_space<vmem>>, vector<1x12x32xf32>
    %1 = vector.shape_cast %0 : vector<1x12x32xf32> to vector<12x32xf32>
    %c0_2 = arith.constant 0 : index
    %c0_3 = arith.constant 0 : index
    %c0_4 = arith.constant 0 : index
    %2 = vector.load %arg2[%c0_2, %c0_3, %c0_4] : memref<1x12x32xf32, #tpu.memory_space<vmem>>, vector<1x12x32xf32>
    %3 = vector.shape_cast %2 : vector<1x12x32xf32> to vector<12x32xf32>
    %c0_5 = arith.constant 0 : index
    %c0_6 = arith.constant 0 : index
    %c0_7 = arith.constant 0 : index
    %4 = vector.load %arg4[%c0_5, %c0_6, %c0_7] : memref<1x1x12xf32, #tpu.memory_space<vmem>>, vector<1x1x12xf32>
    %5 = vector.shape_cast %4 : vector<1x1x12xf32> to vector<1x12xf32>
    %c0_8 = arith.constant 0 : index
    %c0_9 = arith.constant 0 : index
    %6 = vector.load %arg5[%c0_8, %c0_9] : memref<1x32xf32, #tpu.memory_space<vmem>>, vector<1x32xf32>
    %c0_10 = arith.constant 0 : index
    %c0_11 = arith.constant 0 : index
    %7 = vector.load %arg6[%c0_10, %c0_11] : memref<1x32xf32, #tpu.memory_space<vmem>>, vector<1x32xf32>
    %c0_12 = arith.constant 0 : index
    %c0_13 = arith.constant 0 : index
    %8 = vector.load %arg7[%c0_12, %c0_13] : memref<1x32xf32, #tpu.memory_space<vmem>>, vector<1x32xf32>
    %9 = vector.broadcast %6 : vector<1x32xf32> to vector<12x32xf32>
    %10 = arith.mulf %1, %9 : vector<12x32xf32>
    %cst = arith.constant dense<0.000000e+00> : vector<12xf32>
    %11 = vector.multi_reduction <add>, %10, %cst [1] : vector<12x32xf32> to vector<12xf32>
    %12 = vector.shape_cast %11 : vector<12xf32> to vector<12x1xf32>
    %cst_14 = arith.constant dense<0.000000e+00> : vector<1x12xf32>
    %13 = tpu.matmul %7, %3, %cst_14 {dimension_numbers = #tpu.dot_dimension_numbers<[1], [1], [0], [0], [0, 0, 1, 0], [], []>} : vector<1x32xf32>, vector<12x32xf32>, vector<1x12xf32> -> vector<1x12xf32>
    %14 = vector.broadcast %8 : vector<1x32xf32> to vector<12x32xf32>
    %15 = arith.mulf %1, %14 : vector<12x32xf32>
    %cst_15 = arith.constant dense<0.000000e+00> : vector<12x12xf32>
    %16 = tpu.matmul %15, %3, %cst_15 {dimension_numbers = #tpu.dot_dimension_numbers<[1], [1], [0], [0], [0, 0, 1, 0], [], []>} : vector<12x32xf32>, vector<12x32xf32>, vector<12x12xf32> -> vector<12x12xf32>
    %17 = vector.broadcast %12 : vector<12x1xf32> to vector<12x12xf32>
    %18 = vector.broadcast %13 : vector<1x12xf32> to vector<12x12xf32>
    %19 = arith.addf %17, %18 : vector<12x12xf32>
    %20 = arith.addf %19, %16 : vector<12x12xf32>
    %cst_16 = arith.constant 5.000000e-01 : f32
    %21 = vector.broadcast %cst_16 : f32 to vector<1x12xf32>
    %22 = arith.cmpf ogt, %5, %21 : vector<1x12xf32>
    %cst_17 = arith.constant -1.000000e+09 : f32
    %23 = vector.shape_cast %22 : vector<1x12xi1> to vector<1x12xi1>
    %24 = vector.broadcast %23 : vector<1x12xi1> to vector<12x12xi1>
    %25 = vector.broadcast %cst_17 : f32 to vector<12x12xf32>
    %26 = arith.select %24, %25, %20 : vector<12x12xi1>, vector<12x12xf32>
    %cst_18 = arith.constant dense<0xFF800000> : vector<12xf32>
    %27 = vector.multi_reduction <maximumf>, %26, %cst_18 [1] : vector<12x12xf32> to vector<12xf32>
    %28 = vector.shape_cast %27 : vector<12xf32> to vector<12x1xf32>
    %29 = vector.broadcast %28 : vector<12x1xf32> to vector<12x12xf32>
    %30 = arith.subf %26, %29 : vector<12x12xf32>
    %31 = math.exp %30 : vector<12x12xf32>
    %cst_19 = arith.constant dense<0.000000e+00> : vector<12xf32>
    %32 = vector.multi_reduction <add>, %31, %cst_19 [1] : vector<12x12xf32> to vector<12xf32>
    %33 = vector.shape_cast %32 : vector<12xf32> to vector<12x1xf32>
    %34 = vector.broadcast %33 : vector<12x1xf32> to vector<12x12xf32>
    %35 = arith.divf %31, %34 : vector<12x12xf32>
    %cst_20 = arith.constant dense<0.000000e+00> : vector<12x32xf32>
    %36 = tpu.matmul %35, %3, %cst_20 {dimension_numbers = #tpu.dot_dimension_numbers<[1], [0], [0], [1], [0, 0, 1, 1], [], []>} : vector<12x12xf32>, vector<12x32xf32>, vector<12x32xf32> -> vector<12x32xf32>
    %c0_21 = arith.constant 0 : index
    %c0_22 = arith.constant 0 : index
    %c0_23 = arith.constant 0 : index
    %37 = vector.load %arg8[%c0_21, %c0_22, %c0_23] : memref<1x12x96xf32, #tpu.memory_space<vmem>>, vector<1x12x32xf32>
    %38 = vector.shape_cast %37 : vector<1x12x32xf32> to vector<12x32xf32>
    %39 = vector.shape_cast %1 : vector<12x32xf32> to vector<1x12x32xf32>
    tpu.vector_store %arg8[%c0_21, %c0_22, %c0_23], %39 {strides = array<i32>} : memref<1x12x96xf32, #tpu.memory_space<vmem>>, vector<1x12x32xf32>,
    %c0_24 = arith.constant 0 : index
    %c0_25 = arith.constant 0 : index
    %c32 = arith.constant 32 : index
    %40 = vector.load %arg8[%c0_24, %c0_25, %c32] : memref<1x12x96xf32, #tpu.memory_space<vmem>>, vector<1x12x32xf32>
    %41 = vector.shape_cast %40 : vector<1x12x32xf32> to vector<12x32xf32>
    %42 = vector.shape_cast %36 : vector<12x32xf32> to vector<1x12x32xf32>
    tpu.vector_store %arg8[%c0_24, %c0_25, %c32], %42 {strides = array<i32>} : memref<1x12x96xf32, #tpu.memory_space<vmem>>, vector<1x12x32xf32>,
    %43 = arith.mulf %1, %36 : vector<12x32xf32>
    %c0_26 = arith.constant 0 : index
    %c0_27 = arith.constant 0 : index
    %c64 = arith.constant 64 : index
    %44 = vector.load %arg8[%c0_26, %c0_27, %c64] : memref<1x12x96xf32, #tpu.memory_space<vmem>>, vector<1x12x32xf32>
    %45 = vector.shape_cast %44 : vector<1x12x32xf32> to vector<12x32xf32>
    %46 = vector.shape_cast %43 : vector<12x32xf32> to vector<1x12x32xf32>
    tpu.vector_store %arg8[%c0_26, %c0_27, %c64], %46 {strides = array<i32>} : memref<1x12x96xf32, #tpu.memory_space<vmem>>, vector<1x12x32xf32>,
    return
  }
  func.func @transform_0(%arg0: i32) -> (i32, i32, i32) {
    %c0_i32 = arith.constant 0 : i32
    %c0_i32_0 = arith.constant 0 : i32
    %c0_i32_1 = arith.constant 0 : i32
    return %arg0, %c0_i32, %c0_i32_0 : i32, i32, i32
  }
  func.func @transform_1(%arg0: i32) -> (i32, i32, i32) {
    %c0_i32 = arith.constant 0 : i32
    %c0_i32_0 = arith.constant 0 : i32
    %c0_i32_1 = arith.constant 0 : i32
    return %arg0, %c0_i32, %c0_i32_0 : i32, i32, i32
  }
  func.func @transform_2(%arg0: i32) -> (i32, i32, i32) {
    %c0_i32 = arith.constant 0 : i32
    %c0_i32_0 = arith.constant 0 : i32
    %c0_i32_1 = arith.constant 0 : i32
    return %arg0, %c0_i32, %c0_i32_0 : i32, i32, i32
  }
  func.func @transform_3(%arg0: i32) -> (i32, i32, i32) {
    %c0_i32 = arith.constant 0 : i32
    %c0_i32_0 = arith.constant 0 : i32
    %c0_i32_1 = arith.constant 0 : i32
    return %arg0, %c0_i32, %c0_i32_0 : i32, i32, i32
  }
  func.func @transform_4(%arg0: i32) -> (i32, i32) {
    %c0_i32 = arith.constant 0 : i32
    %c0_i32_0 = arith.constant 0 : i32
    %c0_i32_1 = arith.constant 0 : i32
    return %c0_i32, %c0_i32_0 : i32, i32
  }
  func.func @transform_5(%arg0: i32) -> (i32, i32) {
    %c0_i32 = arith.constant 0 : i32
    %c0_i32_0 = arith.constant 0 : i32
    %c0_i32_1 = arith.constant 0 : i32
    return %c0_i32, %c0_i32_0 : i32, i32
  }
  func.func @transform_6(%arg0: i32) -> (i32, i32) {
    %c0_i32 = arith.constant 0 : i32
    %c0_i32_0 = arith.constant 0 : i32
    %c0_i32_1 = arith.constant 0 : i32
    return %c0_i32, %c0_i32_0 : i32, i32
  }
  func.func @transform_7(%arg0: i32) -> (i32, i32, i32) {
    %c0_i32 = arith.constant 0 : i32
    %c0_i32_0 = arith.constant 0 : i32
    %c0_i32_1 = arith.constant 0 : i32
    return %arg0, %c0_i32, %c0_i32_0 : i32, i32, i32
  }
}

module attributes {stable_mosaic.version = 11 : i64} {
  func.func @kernel(%arg0: i32, %arg1: i32, %arg2: i32, %arg3: memref<24x96xf32, #tpu.memory_space<vmem>>, %arg4: memref<96x32xf32, #tpu.memory_space<vmem>>, %arg5: memref<1x32xf32, #tpu.memory_space<vmem>>, %arg6: memref<24x32xf32, #tpu.memory_space<vmem>>, %arg7: memref<24x32xf32, #tpu.memory_space<vmem>>) attributes {dimension_semantics = [#tpu.dimension_semantics<parallel>, #tpu.dimension_semantics<parallel>, #tpu.dimension_semantics<arbitrary>], iteration_bounds = array<i64: 1, 1, 1>, scalar_prefetch = 0 : i64, scratch_operands = 1 : i64, tpu.core_type = #tpu.core_type<tc>, window_params = [{transform_indices = @transform_0, window_bounds = array<i64: 24, 96>}, {transform_indices = @transform_1, window_bounds = array<i64: 96, 32>}, {transform_indices = @transform_2, window_bounds = array<i64: 1, 32>}, {transform_indices = @transform_3, window_bounds = array<i64: 24, 32>}]} {
    %c0_i32 = arith.constant 0 : i32
    %0 = arith.cmpi eq, %arg2, %c0_i32 : i32
    %1 = arith.extui %0 : i1 to i32
    %c0_i32_0 = arith.constant 0 : i32
    %2 = arith.cmpi ne, %1, %c0_i32_0 : i32
    scf.if %2 {
      %cst_10 = arith.constant 0.000000e+00 : f32
      %14 = vector.broadcast %cst_10 : f32 to vector<24x32xf32>
      %c0_11 = arith.constant 0 : index
      %c0_12 = arith.constant 0 : index
      %15 = vector.load %arg7[%c0_11, %c0_12] : memref<24x32xf32, #tpu.memory_space<vmem>>, vector<24x32xf32>
      tpu.vector_store %arg7[%c0_11, %c0_12], %14 {strides = array<i32>} : memref<24x32xf32, #tpu.memory_space<vmem>>, vector<24x32xf32>,
    } else {
    }
    %c0 = arith.constant 0 : index
    %c0_1 = arith.constant 0 : index
    %3 = vector.load %arg7[%c0, %c0_1] : memref<24x32xf32, #tpu.memory_space<vmem>>, vector<24x32xf32>
    %c0_2 = arith.constant 0 : index
    %c0_3 = arith.constant 0 : index
    %4 = vector.load %arg3[%c0_2, %c0_3] : memref<24x96xf32, #tpu.memory_space<vmem>>, vector<24x96xf32>
    %5 = arith.truncf %4 : vector<24x96xf32> to vector<24x96xbf16>
    %c0_4 = arith.constant 0 : index
    %c0_5 = arith.constant 0 : index
    %6 = vector.load %arg4[%c0_4, %c0_5] : memref<96x32xf32, #tpu.memory_space<vmem>>, vector<96x32xf32>
    %7 = arith.truncf %6 : vector<96x32xf32> to vector<96x32xbf16>
    %cst = arith.constant dense<0.000000e+00> : vector<24x32xf32>
    %8 = tpu.matmul %5, %7, %cst {dimension_numbers = #tpu.dot_dimension_numbers<[1], [0], [0], [1], [0, 0, 1, 1], [], []>} : vector<24x96xbf16>, vector<96x32xbf16>, vector<24x32xf32> -> vector<24x32xf32>
    %9 = arith.addf %3, %8 : vector<24x32xf32>
    %c0_6 = arith.constant 0 : index
    %c0_7 = arith.constant 0 : index
    %10 = vector.load %arg7[%c0_6, %c0_7] : memref<24x32xf32, #tpu.memory_space<vmem>>, vector<24x32xf32>
    tpu.vector_store %arg7[%c0_6, %c0_7], %9 {strides = array<i32>} : memref<24x32xf32, #tpu.memory_space<vmem>>, vector<24x32xf32>,
    %c0_i32_8 = arith.constant 0 : i32
    %11 = arith.cmpi eq, %arg2, %c0_i32_8 : i32
    %12 = arith.extui %11 : i1 to i32
    %c0_i32_9 = arith.constant 0 : i32
    %13 = arith.cmpi ne, %12, %c0_i32_9 : i32
    scf.if %13 {
      %c0_10 = arith.constant 0 : index
      %c0_11 = arith.constant 0 : index
      %14 = vector.load %arg7[%c0_10, %c0_11] : memref<24x32xf32, #tpu.memory_space<vmem>>, vector<24x32xf32>
      %c0_12 = arith.constant 0 : index
      %c0_13 = arith.constant 0 : index
      %15 = vector.load %arg5[%c0_12, %c0_13] : memref<1x32xf32, #tpu.memory_space<vmem>>, vector<1x32xf32>
      %16 = vector.broadcast %15 : vector<1x32xf32> to vector<24x32xf32>
      %17 = arith.addf %14, %16 : vector<24x32xf32>
      %cst_14 = arith.constant 0.000000e+00 : f32
      %18 = vector.broadcast %cst_14 : f32 to vector<24x32xf32>
      %19 = arith.maximumf %17, %18 : vector<24x32xf32>
      %c0_15 = arith.constant 0 : index
      %c0_16 = arith.constant 0 : index
      %20 = vector.load %arg6[%c0_15, %c0_16] : memref<24x32xf32, #tpu.memory_space<vmem>>, vector<24x32xf32>
      tpu.vector_store %arg6[%c0_15, %c0_16], %19 {strides = array<i32>} : memref<24x32xf32, #tpu.memory_space<vmem>>, vector<24x32xf32>,
    } else {
    }
    return
  }
  func.func @transform_0(%arg0: i32, %arg1: i32, %arg2: i32) -> (i32, i32) {
    %c0_i32 = arith.constant 0 : i32
    return %arg0, %arg2 : i32, i32
  }
  func.func @transform_1(%arg0: i32, %arg1: i32, %arg2: i32) -> (i32, i32) {
    %c0_i32 = arith.constant 0 : i32
    return %arg2, %arg1 : i32, i32
  }
  func.func @transform_2(%arg0: i32, %arg1: i32, %arg2: i32) -> (i32, i32) {
    %c0_i32 = arith.constant 0 : i32
    %c0_i32_0 = arith.constant 0 : i32
    return %c0_i32, %arg1 : i32, i32
  }
  func.func @transform_3(%arg0: i32, %arg1: i32, %arg2: i32) -> (i32, i32) {
    %c0_i32 = arith.constant 0 : i32
    return %arg0, %arg1 : i32, i32
  }
}

module attributes {stable_mosaic.version = 11 : i64} {
  func.func @_decoder_head_kernel(%arg0: i32, %arg1: memref<1x12x32xf32, #tpu.memory_space<vmem>>, %arg2: memref<1x12x32xf32, #tpu.memory_space<vmem>>, %arg3: memref<1x12x32xf32, #tpu.memory_space<vmem>>, %arg4: memref<1x12x1xf32, #tpu.memory_space<vmem>>, %arg5: memref<1x32xf32, #tpu.memory_space<vmem>>, %arg6: memref<1x1xf32, #tpu.memory_space<vmem>>, %arg7: memref<1x32xf32, #tpu.memory_space<vmem>>, %arg8: memref<1x1xf32, #tpu.memory_space<vmem>>, %arg9: memref<1x64xf32, #tpu.memory_space<vmem>>, %arg10: memref<1x1xf32, #tpu.memory_space<vmem>>, %arg11: memref<1x12x1xf32, #tpu.memory_space<vmem>>, %arg12: memref<1x12x1xf32, #tpu.memory_space<vmem>>, %arg13: memref<1x1x1xf32, #tpu.memory_space<vmem>>) attributes {dimension_semantics = [#tpu.dimension_semantics<parallel>], iteration_bounds = array<i64: 2>, scalar_prefetch = 0 : i64, scratch_operands = 0 : i64, tpu.core_type = #tpu.core_type<tc>, window_params = [{transform_indices = @transform_0, window_bounds = array<i64: 1, 12, 32>}, {transform_indices = @transform_1, window_bounds = array<i64: 1, 12, 32>}, {transform_indices = @transform_2, window_bounds = array<i64: 1, 12, 32>}, {transform_indices = @transform_3, window_bounds = array<i64: 1, 12, 1>}, {pipeline_mode = #tpu.pipeline_mode<synchronous>, transform_indices = @transform_4, window_bounds = array<i64: 1, 32>}, {pipeline_mode = #tpu.pipeline_mode<synchronous>, transform_indices = @transform_5, window_bounds = array<i64: 1, 1>}, {pipeline_mode = #tpu.pipeline_mode<synchronous>, transform_indices = @transform_6, window_bounds = array<i64: 1, 32>}, {pipeline_mode = #tpu.pipeline_mode<synchronous>, transform_indices = @transform_7, window_bounds = array<i64: 1, 1>}, {pipeline_mode = #tpu.pipeline_mode<synchronous>, transform_indices = @transform_8, window_bounds = array<i64: 1, 64>}, {pipeline_mode = #tpu.pipeline_mode<synchronous>, transform_indices = @transform_9, window_bounds = array<i64: 1, 1>}, {transform_indices = @transform_10, window_bounds = array<i64: 1, 12, 1>}, {transform_indices = @transform_11, window_bounds = array<i64: 1, 12, 1>}, {transform_indices = @transform_12, window_bounds = array<i64: 1, 1, 1>}]} {
    %c0 = arith.constant 0 : index
    %c0_0 = arith.constant 0 : index
    %c0_1 = arith.constant 0 : index
    %0 = vector.load %arg1[%c0, %c0_0, %c0_1] : memref<1x12x32xf32, #tpu.memory_space<vmem>>, vector<1x12x32xf32>
    %1 = vector.shape_cast %0 : vector<1x12x32xf32> to vector<12x32xf32>
    %c0_2 = arith.constant 0 : index
    %c0_3 = arith.constant 0 : index
    %c0_4 = arith.constant 0 : index
    %2 = vector.load %arg2[%c0_2, %c0_3, %c0_4] : memref<1x12x32xf32, #tpu.memory_space<vmem>>, vector<1x12x32xf32>
    %3 = vector.shape_cast %2 : vector<1x12x32xf32> to vector<12x32xf32>
    %c0_5 = arith.constant 0 : index
    %c0_6 = arith.constant 0 : index
    %c0_7 = arith.constant 0 : index
    %4 = vector.load %arg3[%c0_5, %c0_6, %c0_7] : memref<1x12x32xf32, #tpu.memory_space<vmem>>, vector<1x12x32xf32>
    %5 = vector.shape_cast %4 : vector<1x12x32xf32> to vector<12x32xf32>
    %c0_8 = arith.constant 0 : index
    %c0_9 = arith.constant 0 : index
    %c0_10 = arith.constant 0 : index
    %6 = vector.load %arg4[%c0_8, %c0_9, %c0_10] : memref<1x12x1xf32, #tpu.memory_space<vmem>>, vector<1x12x1xf32>
    %7 = vector.shape_cast %6 : vector<1x12x1xf32> to vector<12x1xf32>
    %c0_11 = arith.constant 0 : index
    %c0_12 = arith.constant 0 : index
    %8 = vector.load %arg5[%c0_11, %c0_12] : memref<1x32xf32, #tpu.memory_space<vmem>>, vector<1x32xf32>
    %9 = vector.broadcast %8 : vector<1x32xf32> to vector<12x32xf32>
    %10 = arith.mulf %1, %9 : vector<12x32xf32>
    %cst = arith.constant dense<0.000000e+00> : vector<12xf32>
    %11 = vector.multi_reduction <add>, %10, %cst [1] : vector<12x32xf32> to vector<12xf32>
    %12 = vector.shape_cast %11 : vector<12xf32> to vector<12x1xf32>
    %c0_13 = arith.constant 0 : index
    %c0_14 = arith.constant 0 : index
    %13 = vector.load %arg6[%c0_13, %c0_14] : memref<1x1xf32, #tpu.memory_space<vmem>>, vector<1x1xf32>
    %14 = vector.broadcast %13 : vector<1x1xf32> to vector<12x1xf32>
    %15 = arith.addf %12, %14 : vector<12x1xf32>
    %c0_15 = arith.constant 0 : index
    %c0_16 = arith.constant 0 : index
    %16 = vector.load %arg7[%c0_15, %c0_16] : memref<1x32xf32, #tpu.memory_space<vmem>>, vector<1x32xf32>
    %17 = vector.broadcast %16 : vector<1x32xf32> to vector<12x32xf32>
    %18 = arith.mulf %3, %17 : vector<12x32xf32>
    %cst_17 = arith.constant dense<0.000000e+00> : vector<12xf32>
    %19 = vector.multi_reduction <add>, %18, %cst_17 [1] : vector<12x32xf32> to vector<12xf32>
    %20 = vector.shape_cast %19 : vector<12xf32> to vector<12x1xf32>
    %c0_18 = arith.constant 0 : index
    %c0_19 = arith.constant 0 : index
    %21 = vector.load %arg8[%c0_18, %c0_19] : memref<1x1xf32, #tpu.memory_space<vmem>>, vector<1x1xf32>
    %22 = vector.broadcast %21 : vector<1x1xf32> to vector<12x1xf32>
    %23 = arith.addf %20, %22 : vector<12x1xf32>
    %cst_20 = arith.constant 5.000000e-01 : f32
    %24 = vector.broadcast %cst_20 : f32 to vector<12x1xf32>
    %25 = arith.cmpf ogt, %7, %24 : vector<12x1xf32>
    %cst_21 = arith.constant -1.000000e+09 : f32
    %26 = vector.broadcast %cst_21 : f32 to vector<12x1xf32>
    %27 = arith.select %25, %26, %15 : vector<12x1xi1>, vector<12x1xf32>
    %cst_22 = arith.constant 5.000000e-01 : f32
    %28 = vector.broadcast %cst_22 : f32 to vector<12x1xf32>
    %29 = arith.cmpf ogt, %7, %28 : vector<12x1xf32>
    %cst_23 = arith.constant -1.000000e+09 : f32
    %30 = vector.broadcast %cst_23 : f32 to vector<12x1xf32>
    %31 = arith.select %29, %30, %23 : vector<12x1xi1>, vector<12x1xf32>
    %cst_24 = arith.constant dense<0xFF800000> : vector<1xf32>
    %32 = vector.multi_reduction <maximumf>, %27, %cst_24 [0] : vector<12x1xf32> to vector<1xf32>
    %33 = vector.shape_cast %32 : vector<1xf32> to vector<1x1xf32>
    %34 = vector.broadcast %33 : vector<1x1xf32> to vector<12x1xf32>
    %35 = arith.subf %27, %34 : vector<12x1xf32>
    %36 = math.exp %35 : vector<12x1xf32>
    %cst_25 = arith.constant dense<0.000000e+00> : vector<1xf32>
    %37 = vector.multi_reduction <add>, %36, %cst_25 [0] : vector<12x1xf32> to vector<1xf32>
    %38 = vector.shape_cast %37 : vector<1xf32> to vector<1x1xf32>
    %39 = vector.broadcast %38 : vector<1x1xf32> to vector<12x1xf32>
    %40 = arith.divf %36, %39 : vector<12x1xf32>
    %cst_26 = arith.constant dense<0xFF800000> : vector<1xf32>
    %41 = vector.multi_reduction <maximumf>, %31, %cst_26 [0] : vector<12x1xf32> to vector<1xf32>
    %42 = vector.shape_cast %41 : vector<1xf32> to vector<1x1xf32>
    %43 = vector.broadcast %42 : vector<1x1xf32> to vector<12x1xf32>
    %44 = arith.subf %31, %43 : vector<12x1xf32>
    %45 = math.exp %44 : vector<12x1xf32>
    %cst_27 = arith.constant dense<0.000000e+00> : vector<1xf32>
    %46 = vector.multi_reduction <add>, %45, %cst_27 [0] : vector<12x1xf32> to vector<1xf32>
    %47 = vector.shape_cast %46 : vector<1xf32> to vector<1x1xf32>
    %48 = vector.broadcast %47 : vector<1x1xf32> to vector<12x1xf32>
    %49 = arith.divf %45, %48 : vector<12x1xf32>
    %50 = vector.broadcast %40 : vector<12x1xf32> to vector<12x32xf32>
    %51 = arith.mulf %50, %5 : vector<12x32xf32>
    %cst_28 = arith.constant dense<0.000000e+00> : vector<32xf32>
    %52 = vector.multi_reduction <add>, %51, %cst_28 [0] : vector<12x32xf32> to vector<32xf32>
    %53 = vector.shape_cast %52 : vector<32xf32> to vector<1x32xf32>
    %54 = vector.broadcast %49 : vector<12x1xf32> to vector<12x32xf32>
    %55 = arith.mulf %54, %5 : vector<12x32xf32>
    %cst_29 = arith.constant dense<0.000000e+00> : vector<32xf32>
    %56 = vector.multi_reduction <add>, %55, %cst_29 [0] : vector<12x32xf32> to vector<32xf32>
    %57 = vector.shape_cast %56 : vector<32xf32> to vector<1x32xf32>
    %c0_30 = arith.constant 0 : index
    %c0_31 = arith.constant 0 : index
    %58 = vector.load %arg9[%c0_30, %c0_31] : memref<1x64xf32, #tpu.memory_space<vmem>>, vector<1x64xf32>
    %59 = vector.extract_strided_slice %58 {offsets = [0, 0], sizes = [1, 32], strides = [1, 1]} : vector<1x64xf32> to vector<1x32xf32>
    %60 = arith.mulf %53, %59 : vector<1x32xf32>
    %cst_32 = arith.constant dense<0.000000e+00> : vector<1xf32>
    %61 = vector.multi_reduction <add>, %60, %cst_32 [1] : vector<1x32xf32> to vector<1xf32>
    %62 = vector.shape_cast %61 : vector<1xf32> to vector<1x1xf32>
    %63 = vector.extract_strided_slice %58 {offsets = [0, 32], sizes = [1, 32], strides = [1, 1]} : vector<1x64xf32> to vector<1x32xf32>
    %64 = arith.mulf %57, %63 : vector<1x32xf32>
    %cst_33 = arith.constant dense<0.000000e+00> : vector<1xf32>
    %65 = vector.multi_reduction <add>, %64, %cst_33 [1] : vector<1x32xf32> to vector<1xf32>
    %66 = vector.shape_cast %65 : vector<1xf32> to vector<1x1xf32>
    %67 = arith.addf %62, %66 : vector<1x1xf32>
    %c0_34 = arith.constant 0 : index
    %c0_35 = arith.constant 0 : index
    %68 = vector.load %arg10[%c0_34, %c0_35] : memref<1x1xf32, #tpu.memory_space<vmem>>, vector<1x1xf32>
    %69 = arith.addf %67, %68 : vector<1x1xf32>
    %c0_36 = arith.constant 0 : index
    %c0_37 = arith.constant 0 : index
    %c0_38 = arith.constant 0 : index
    %70 = vector.load %arg11[%c0_36, %c0_37, %c0_38] : memref<1x12x1xf32, #tpu.memory_space<vmem>>, vector<1x12x1xf32>
    %71 = vector.shape_cast %70 : vector<1x12x1xf32> to vector<12x1xf32>
    %72 = vector.shape_cast %27 : vector<12x1xf32> to vector<1x12x1xf32>
    tpu.vector_store %arg11[%c0_36, %c0_37, %c0_38], %72 {strides = array<i32>} : memref<1x12x1xf32, #tpu.memory_space<vmem>>, vector<1x12x1xf32>,
    %c0_39 = arith.constant 0 : index
    %c0_40 = arith.constant 0 : index
    %c0_41 = arith.constant 0 : index
    %73 = vector.load %arg12[%c0_39, %c0_40, %c0_41] : memref<1x12x1xf32, #tpu.memory_space<vmem>>, vector<1x12x1xf32>
    %74 = vector.shape_cast %73 : vector<1x12x1xf32> to vector<12x1xf32>
    %75 = vector.shape_cast %31 : vector<12x1xf32> to vector<1x12x1xf32>
    tpu.vector_store %arg12[%c0_39, %c0_40, %c0_41], %75 {strides = array<i32>} : memref<1x12x1xf32, #tpu.memory_space<vmem>>, vector<1x12x1xf32>,
    %c0_42 = arith.constant 0 : index
    %c0_43 = arith.constant 0 : index
    %c0_44 = arith.constant 0 : index
    %76 = vector.load %arg13[%c0_42, %c0_43, %c0_44] : memref<1x1x1xf32, #tpu.memory_space<vmem>>, vector<1x1x1xf32>
    %77 = vector.shape_cast %76 : vector<1x1x1xf32> to vector<1x1xf32>
    %78 = vector.shape_cast %69 : vector<1x1xf32> to vector<1x1x1xf32>
    tpu.vector_store %arg13[%c0_42, %c0_43, %c0_44], %78 {strides = array<i32>} : memref<1x1x1xf32, #tpu.memory_space<vmem>>, vector<1x1x1xf32>,
    return
  }
  func.func @transform_0(%arg0: i32) -> (i32, i32, i32) {
    %c0_i32 = arith.constant 0 : i32
    %c0_i32_0 = arith.constant 0 : i32
    %c0_i32_1 = arith.constant 0 : i32
    return %arg0, %c0_i32, %c0_i32_0 : i32, i32, i32
  }
  func.func @transform_1(%arg0: i32) -> (i32, i32, i32) {
    %c0_i32 = arith.constant 0 : i32
    %c0_i32_0 = arith.constant 0 : i32
    %c0_i32_1 = arith.constant 0 : i32
    return %arg0, %c0_i32, %c0_i32_0 : i32, i32, i32
  }
  func.func @transform_2(%arg0: i32) -> (i32, i32, i32) {
    %c0_i32 = arith.constant 0 : i32
    %c0_i32_0 = arith.constant 0 : i32
    %c0_i32_1 = arith.constant 0 : i32
    return %arg0, %c0_i32, %c0_i32_0 : i32, i32, i32
  }
  func.func @transform_3(%arg0: i32) -> (i32, i32, i32) {
    %c0_i32 = arith.constant 0 : i32
    %c0_i32_0 = arith.constant 0 : i32
    %c0_i32_1 = arith.constant 0 : i32
    return %arg0, %c0_i32, %c0_i32_0 : i32, i32, i32
  }
  func.func @transform_4(%arg0: i32) -> (i32, i32) {
    %c0_i32 = arith.constant 0 : i32
    %c0_i32_0 = arith.constant 0 : i32
    %c0_i32_1 = arith.constant 0 : i32
    return %c0_i32, %c0_i32_0 : i32, i32
  }
  func.func @transform_5(%arg0: i32) -> (i32, i32) {
    %c0_i32 = arith.constant 0 : i32
    %c0_i32_0 = arith.constant 0 : i32
    %c0_i32_1 = arith.constant 0 : i32
    return %c0_i32, %c0_i32_0 : i32, i32
  }
  func.func @transform_6(%arg0: i32) -> (i32, i32) {
    %c0_i32 = arith.constant 0 : i32
    %c0_i32_0 = arith.constant 0 : i32
    %c0_i32_1 = arith.constant 0 : i32
    return %c0_i32, %c0_i32_0 : i32, i32
  }
  func.func @transform_7(%arg0: i32) -> (i32, i32) {
    %c0_i32 = arith.constant 0 : i32
    %c0_i32_0 = arith.constant 0 : i32
    %c0_i32_1 = arith.constant 0 : i32
    return %c0_i32, %c0_i32_0 : i32, i32
  }
  func.func @transform_8(%arg0: i32) -> (i32, i32) {
    %c0_i32 = arith.constant 0 : i32
    %c0_i32_0 = arith.constant 0 : i32
    %c0_i32_1 = arith.constant 0 : i32
    return %c0_i32, %c0_i32_0 : i32, i32
  }
  func.func @transform_9(%arg0: i32) -> (i32, i32) {
    %c0_i32 = arith.constant 0 : i32
    %c0_i32_0 = arith.constant 0 : i32
    %c0_i32_1 = arith.constant 0 : i32
    return %c0_i32, %c0_i32_0 : i32, i32
  }
  func.func @transform_10(%arg0: i32) -> (i32, i32, i32) {
    %c0_i32 = arith.constant 0 : i32
    %c0_i32_0 = arith.constant 0 : i32
    %c0_i32_1 = arith.constant 0 : i32
    return %arg0, %c0_i32, %c0_i32_0 : i32, i32, i32
  }
  func.func @transform_11(%arg0: i32) -> (i32, i32, i32) {
    %c0_i32 = arith.constant 0 : i32
    %c0_i32_0 = arith.constant 0 : i32
    %c0_i32_1 = arith.constant 0 : i32
    return %arg0, %c0_i32, %c0_i32_0 : i32, i32, i32
  }
  func.func @transform_12(%arg0: i32) -> (i32, i32, i32) {
    %c0_i32 = arith.constant 0 : i32
    %c0_i32_0 = arith.constant 0 : i32
    %c0_i32_1 = arith.constant 0 : i32
    return %arg0, %c0_i32, %c0_i32_0 : i32, i32, i32
  }
}

</mosaic_0001>

<llo_original>
// kernel: docqa_forward.13
$region0: #{docqa_forward.13}
  #allocation0 [shape = 'u32[]', space=smem, size = 0x4, offset = 0x4, fixed_abs, tag = 'smem constant byte address 0x4 - core index']
  #allocation1 [shape = 'u32[72,128]{1,0:T(1,128)}', space=vmem, size = 0x9000, scoped, tag = 'internal scratch']
  #allocation2 [shape = 'f32[2,16]{1,0:T(2,128)}', space=vmem, size = 0x400, scoped, tag = 'scratch operand']
  #allocation3 [shape = 'f32[2,16]{1,0:T(2,128)}', space=vmem, size = 0x400, scoped, tag = 'scratch operand']
  %s0 = inlined_call_operand.vmem [shape: f32[12,2,28], index: 0, kind: input, shape index: {}]
  %s1 = inlined_call_operand.vmem [shape: f32[28,48], index: 1, kind: input, shape index: {}]
  %s2 = inlined_call_operand.vmem [shape: f32[1,48], index: 2, kind: input, shape index: {}]
  %s3 = inlined_call_operand.vmem [shape: f32[16,48], index: 3, kind: input, shape index: {}]
  %s4 = inlined_call_operand.vmem [shape: f32[1,48], index: 4, kind: input, shape index: {}]
  %s5 = inlined_call_operand.vmem [shape: f32[28,48], index: 5, kind: input, shape index: {}]
  %s6 = inlined_call_operand.vmem [shape: f32[1,48], index: 6, kind: input, shape index: {}]
  %s7 = inlined_call_operand.vmem [shape: f32[16,48], index: 7, kind: input, shape index: {}]
  %s8 = inlined_call_operand.vmem [shape: f32[1,48], index: 8, kind: input, shape index: {}]
  %s9 = inlined_call_operand.vmem [shape: f32[12,2,16], index: 9, kind: output, shape index: {0}]
  %s10 = inlined_call_operand.vmem [shape: f32[12,2,16], index: 10, kind: output, shape index: {1}]
  %11 = xla_tuple %s9, %s10
  %s12 = sld [smem:[#allocation0]]
  $region61: #{docqa_forward.13} parent=0
    _
  %s14 = ssub.s32 1, %s12
  %s15 = scalar_select 0, %s14, %s12
  // Predicated region
  $region2: #{docqa_forward.13} parent=0 // pred_check
    _
  $region3: #{docqa_forward.13} parent=0 // pred_check_branch
    %17 = sbr.rel (0) target = $region5
  $region4: #{docqa_forward.13} parent=0 // pred_region
    _
  $region5: #{docqa_forward.13} parent=0 // pred_fallthru
    _
  // Predicated region
  $region6: #{docqa_forward.13} parent=0 // pred_check
    _
  $region7: #{docqa_forward.13} parent=0 // pred_check_branch
    %19 = sbr.rel (0) target = $region9
  $region8: #{docqa_forward.13} parent=0 // pred_region
    _
  $region9: #{docqa_forward.13} parent=0 // pred_fallthru
    _
  // Predicated region
  $region10: #{docqa_forward.13} parent=0 // pred_check
    _
  $region11: #{docqa_forward.13} parent=0 // pred_check_branch
    %21 = sbr.rel (0) target = $region13
  $region12: #{docqa_forward.13} parent=0 // pred_region
    _
  $region13: #{docqa_forward.13} parent=0 // pred_fallthru
    _
  // Predicated region
  $region14: #{docqa_forward.13} parent=0 // pred_check
    _
  $region15: #{docqa_forward.13} parent=0 // pred_check_branch
    %23 = sbr.rel (0) target = $region17
  $region16: #{docqa_forward.13} parent=0 // pred_region
    _
  $region17: #{docqa_forward.13} parent=0 // pred_fallthru
    _
  // Predicated region
  $region18: #{docqa_forward.13} parent=0 // pred_check
    _
  $region19: #{docqa_forward.13} parent=0 // pred_check_branch
    %25 = sbr.rel (0) target = $region21
  $region20: #{docqa_forward.13} parent=0 // pred_region
    _
  $region21: #{docqa_forward.13} parent=0 // pred_fallthru
    _
  // Predicated region
  $region22: #{docqa_forward.13} parent=0 // pred_check
    _
  $region23: #{docqa_forward.13} parent=0 // pred_check_branch
    %27 = sbr.rel (0) target = $region25
  $region24: #{docqa_forward.13} parent=0 // pred_region
    _
  $region25: #{docqa_forward.13} parent=0 // pred_fallthru
    _
  // Predicated region
  $region26: #{docqa_forward.13} parent=0 // pred_check
    _
  $region27: #{docqa_forward.13} parent=0 // pred_check_branch
    %29 = sbr.rel (0) target = $region29
  $region28: #{docqa_forward.13} parent=0 // pred_region
    _
  $region29: #{docqa_forward.13} parent=0 // pred_fallthru
    _
  // Predicated region
  $region30: #{docqa_forward.13} parent=0 // pred_check
    _
  $region31: #{docqa_forward.13} parent=0 // pred_check_branch
    %31 = sbr.rel (0) target = $region33
  $region32: #{docqa_forward.13} parent=0 // pred_region
    _
  $region33: #{docqa_forward.13} parent=0 // pred_fallthru
    _
  // Predicated region
  $region34: #{docqa_forward.13} parent=0 // pred_check
    _
  $region35: #{docqa_forward.13} parent=0 // pred_check_branch
    %33 = sbr.rel (0) target = $region37
  $region36: #{docqa_forward.13} parent=0 // pred_region
    _
  $region37: #{docqa_forward.13} parent=0 // pred_fallthru
    _
  %vm35 = vcmask 123904
  %36 = vst.msk [vmem:[#allocation2] sm:$0x3] %vm35, 0.0
  %37 = vst.msk [vmem:[#allocation3] sm:$0x3] %vm35, 0.0
  %v38 = vld [vmem:[%s1] sm:$0xff]
  %v39 = vld [vmem:[%s1 + $0x8] sm:$0xff]
  %v40 = vld [vmem:[%s1 + $0x10] sm:$0xff]
  %v41 = vld [vmem:[%s1 + $0x18] sm:$0xf]
  %v42 = vpack.c.bf16 %v39, %v38
  %v43 = vpack.c.bf16 %v41, %v40
  %v44 = vld [vmem:[%s5] sm:$0xff]
  %v45 = vld [vmem:[%s5 + $0x8] sm:$0xff]
  %v46 = vld [vmem:[%s5 + $0x10] sm:$0xff]
  %v47 = vld [vmem:[%s5 + $0x18] sm:$0xf]
  %v48 = vpack.c.bf16 %v45, %v44
  %v49 = vpack.c.bf16 %v47, %v46
  %v50 = vld [vmem:[%s3] sm:$0xff]
  %v51 = vld [vmem:[%s3 + $0x8] sm:$0xff]
  %v52 = vld [vmem:[%s7] sm:$0xff]
  %v53 = vld [vmem:[%s7 + $0x8] sm:$0xff]
  %v54 = vld [vmem:[%s2] sm:$0x1]
  %v55 = vld [vmem:[%s6] sm:$0x1]
  %v56 = vld [vmem:[%s4] sm:$0x1]
  %v57 = vld [vmem:[%s8] sm:$0x1]
  loop: start=0, step=1, limit=12
  $region38: #{docqa_forward.13} parent=0 // loop_pre_header
    _
  $region39: #{docqa_forward.13} parent=0 // loop_header
    %s59 = sphi 0, %s63
    %p60 = scmp.ge.s32.totalorder %s59, 12
  $region40: #{docqa_forward.13} parent=0 // loop_header_branch
    %62 = sbr.rel (%p60) target = $region44
  $region41: #{docqa_forward.13} parent=0 // loop_body
    %s64 = ssub.s32 11, %s59
    %s65 = smul.u32 %s59, 2
    %s66 = scalar_lea.vmem %s0, %s65
    %v67 = vld [vmem:[%s66] sm:$0x3]
    %v68 = vpack.c.bf16 %v67, %v67
    %v70 = vperm.slane %v54, 0
    %vm72 = vcmask 228352
    %v74 = vsel %vm72, %v68, 0
    %vm76 = vcmask 1045504
    %v78 = vsel %vm76, %v43, 0
    %80 = vmatpush.bf16.msra.mxu0 0
    %81 = vmatpush.bf16.msra.mxu0 0
    %82 = vmatpush.bf16.msra.mxu0 0
    %83 = vmatpush.bf16.msra.mxu0 0
    %84 = vmatpush.bf16.msra.mxu0 0
    %85 = vmatpush.bf16.msra.mxu0 0
    %86 = vmatpush.bf16.msra.mxu0 %v78
    %87 = vmatpush.bf16.msra.mxu0 %v42
    %88 = vmatmul.bf16.gmra.mxu0 %v74
    %v89 = vpop.f32.mrf.mxu0
    %v90 = vadd.f32 %v70, %v89
    %v91 = vpop.f32.mrf.mxu0
    %92 = vdwg.mxu0
    %s93 = smul.u32 %s64, 2
    %s94 = scalar_lea.vmem %s0, %s93
    %v95 = vld [vmem:[%s94] sm:$0x3]
    %v96 = vpack.c.bf16 %v95, %v95
    %v98 = vperm.slane %v55, 0
    %v101 = vsel %vm72, %v96, 0
    %v104 = vsel %vm76, %v49, 0
    %106 = vmatpush.bf16.msra.mxu0 0
    %107 = vmatpush.bf16.msra.mxu0 0
    %108 = vmatpush.bf16.msra.mxu0 0
    %109 = vmatpush.bf16.msra.mxu0 0
    %110 = vmatpush.bf16.msra.mxu0 0
    %111 = vmatpush.bf16.msra.mxu0 0
    %112 = vmatpush.bf16.msra.mxu0 %v104
    %113 = vmatpush.bf16.msra.mxu0 %v48
    %114 = vmatmul.bf16.gmra.mxu0 %v101
    %v115 = vpop.f32.mrf.mxu0
    %v116 = vadd.f32 %v98, %v115
    %v117 = vpop.f32.mrf.mxu0
    %118 = vdwg.mxu0
    %v119 = vld [vmem:[#allocation2] sm:$0x3]
    %v121 = vperm.slane %v56, 0
    %vm123 = vcmask 130048
    %v125 = vsel %vm123, %v119, 0
    %127 = vmatpush.msra.mxu0 0.0
    %128 = vmatpush.msra.mxu0 0.0
    %129 = vmatpush.msra.mxu0 0.0
    %130 = vmatpush.msra.mxu0 0.0
    %131 = vmatpush.msra.mxu0 0.0
    %132 = vmatpush.msra.mxu0 0.0
    %133 = vmatpush.msra.mxu0 0.0
    %134 = vmatpush.msra.mxu0 0.0
    %135 = vmatpush.msra.mxu0 0.0
    %136 = vmatpush.msra.mxu0 0.0
    %137 = vmatpush.msra.mxu0 0.0
    %138 = vmatpush.msra.mxu0 0.0
    %139 = vmatpush.msra.mxu0 0.0
    %140 = vmatpush.msra.mxu0 0.0
    %141 = vmatpush.msra.mxu0 %v51
    %142 = vmatpush.msra.mxu0 %v50
    %143 = vmatmul.f32.gmra.mxu0 %v125
    %v144 = vpop.f32.mrf.mxu0
    %v145 = vadd.f32 %v121, %v144
    %146 = vdwg.mxu0
    %v147 = vadd.f32 %v90, %v145
    %v148 = vxor.u32 %v147, 2147483648
    %v149 = vmul.f32 %v148, 1.442695
    %v150 = vpow.pop %v149
    %v151 = vadd.f32 %v150, 1.0
    %v152 = vrcp.pop %v151
    %v153 = vmul.f32 %v151, %v152
    %v154 = vsub.f32 1.0, %v153
    %v155 = vmul.f32 %v152, %v154
    %v156 = vadd.f32 %v152, %v155
    %vm157 = vweird.f32 %v151
    %vm158 = vweird.f32 %v152
    %vm159 = vmor %vm157, %vm158
    %v160 = vsel %vm159, %v152, %v156
    %v161 = vand.u32 2147483647, %v151
    %vm162 = vcmp.eq.f32.partialorder %v161, 8.507059e+37
    %v163 = vand.u32 %v151, 2147483648
    %v164 = vor.u32 1.1754944e-38, %v163
    %v165 = vsel %vm162, %v164, %v160
    %v166 = vmul.f32 1.0, %v165
    %168 = vrot.lane.b32.xlu0 %v145, 96
    %v169 = vpop.permute.xlu0 %168
    %v171 = vmul.f32 %v166, %v169
    %173 = vrot.lane.b32.xlu0 %v171, 32
    %v174 = vpop.permute.xlu0 %173
    %v176 = vadd.f32 %v90, %v174
    %v177 = vtanh.pop %v176
    %v178 = vsub.f32 1.0, %v166
    %180 = vrot.lane.b32.xlu0 %v177, 112
    %v181 = vpop.permute.xlu0 %180
    %v183 = vmul.f32 %v178, %v181
    %184 = vrot.lane.b32.xlu0 %v119, 16
    %v185 = vpop.permute.xlu0 %184
    %v187 = vmul.f32 %v166, %v185
    %v188 = vadd.f32 %v183, %v187
    %v189 = vld [vmem:[#allocation3] sm:$0x3]
    %v191 = vperm.slane %v57, 0
    %v194 = vsel %vm123, %v189, 0
    %196 = vmatpush.msra.mxu0 0.0
    %197 = vmatpush.msra.mxu0 0.0
    %198 = vmatpush.msra.mxu0 0.0
    %199 = vmatpush.msra.mxu0 0.0
    %200 = vmatpush.msra.mxu0 0.0
    %201 = vmatpush.msra.mxu0 0.0
    %202 = vmatpush.msra.mxu0 0.0
    %203 = vmatpush.msra.mxu0 0.0
    %204 = vmatpush.msra.mxu0 0.0
    %205 = vmatpush.msra.mxu0 0.0
    %206 = vmatpush.msra.mxu0 0.0
    %207 = vmatpush.msra.mxu0 0.0
    %208 = vmatpush.msra.mxu0 0.0
    %209 = vmatpush.msra.mxu0 0.0
    %210 = vmatpush.msra.mxu0 %v53
    %211 = vmatpush.msra.mxu0 %v52
    %212 = vmatmul.f32.gmra.mxu0 %v194
    %v213 = vpop.f32.mrf.mxu0
    %v214 = vadd.f32 %v191, %v213
    %215 = vdwg.mxu0
    %v216 = vadd.f32 %v116, %v214
    %v217 = vxor.u32 %v216, 2147483648
    %v218 = vmul.f32 %v217, 1.442695
    %v219 = vpow.pop %v218
    %v220 = vadd.f32 %v219, 1.0
    %v221 = vrcp.pop %v220
    %v222 = vmul.f32 %v220, %v221
    %v223 = vsub.f32 1.0, %v222
    %v224 = vmul.f32 %v221, %v223
    %v225 = vadd.f32 %v221, %v224
    %vm226 = vweird.f32 %v220
    %vm227 = vweird.f32 %v221
    %vm228 = vmor %vm226, %vm227
    %v229 = vsel %vm228, %v221, %v225
    %v230 = vand.u32 2147483647, %v220
    %vm231 = vcmp.eq.f32.partialorder %v230, 8.507059e+37
    %v232 = vand.u32 %v220, 2147483648
    %v233 = vor.u32 1.1754944e-38, %v232
    %v234 = vsel %vm231, %v233, %v229
    %v235 = vmul.f32 1.0, %v234
    %237 = vrot.lane.b32.xlu0 %v214, 96
    %v238 = vpop.permute.xlu0 %237
    %v240 = vmul.f32 %v235, %v238
    %242 = vrot.lane.b32.xlu0 %v240, 32
    %v243 = vpop.permute.xlu0 %242
    %v245 = vadd.f32 %v116, %v243
    %v246 = vtanh.pop %v245
    %v247 = vsub.f32 1.0, %v235
    %249 = vrot.lane.b32.xlu0 %v246, 112
    %v250 = vpop.permute.xlu0 %249
    %v252 = vmul.f32 %v247, %v250
    %253 = vrot.lane.b32.xlu0 %v189, 16
    %v254 = vpop.permute.xlu0 %253
    %v256 = vmul.f32 %v235, %v254
    %v257 = vadd.f32 %v252, %v256
    %259 = vrot.lane.b32.xlu0 %v188, 112
    %v260 = vpop.permute.xlu0 %259
    %262 = vst.msk [vmem:[#allocation2] sm:$0x3] %vm35, %v260
    %264 = vrot.lane.b32.xlu0 %v257, 112
    %v265 = vpop.permute.xlu0 %264
    %267 = vst.msk [vmem:[#allocation3] sm:$0x3] %vm35, %v265
    %s268 = scalar_lea.vmem %s9, %s65
    %269 = vst.msk [vmem:[%s268] sm:$0x3] %vm35, %v260
    %s270 = scalar_lea.vmem %s10, %s93
    %271 = vst.msk [vmem:[%s270] sm:$0x3] %vm35, %v265
  $region42: #{docqa_forward.13} parent=0 // loop_footer
    %s63 = sadd.s32 1, %s59
  $region43: #{docqa_forward.13} parent=0 // loop_footer_branch
    %58 = sbr.rel target = $region39
  $region44: #{docqa_forward.13} parent=0 // loop_exit
    _
  // Predicated region
  $region45: #{docqa_forward.13} parent=0 // pred_check
    _
  $region46: #{docqa_forward.13} parent=0 // pred_check_branch
    %273 = sbr.rel (0) target = $region48
  $region47: #{docqa_forward.13} parent=0 // pred_region
    _
  $region48: #{docqa_forward.13} parent=0 // pred_fallthru
    _
  // Predicated region
  $region49: #{docqa_forward.13} parent=0 // pred_check
    _
  $region50: #{docqa_forward.13} parent=0 // pred_check_branch
    %275 = sbr.rel (0) target = $region52
  $region51: #{docqa_forward.13} parent=0 // pred_region
    _
  $region52: #{docqa_forward.13} parent=0 // pred_fallthru
    _
  // Predicated region
  $region53: #{docqa_forward.13} parent=0 // pred_check
    _
  $region54: #{docqa_forward.13} parent=0 // pred_check_branch
    %277 = sbr.rel (0) target = $region56
  $region55: #{docqa_forward.13} parent=0 // pred_region
    _
  $region56: #{docqa_forward.13} parent=0 // pred_fallthru
    _
  // Predicated region
  $region57: #{docqa_forward.13} parent=0 // pred_check
    _
  $region58: #{docqa_forward.13} parent=0 // pred_check_branch
    %279 = sbr.rel (0) target = $region60
  $region59: #{docqa_forward.13} parent=0 // pred_region
    _
  $region60: #{docqa_forward.13} parent=0 // pred_fallthru
    _

// kernel: docqa_forward.12
$region0: #{docqa_forward.12}
  #allocation0 [shape = 'u32[]', space=smem, size = 0x4, offset = 0x4, fixed_abs, tag = 'smem constant byte address 0x4 - core index']
  #allocation1 [shape = 'u32[72,128]{1,0:T(1,128)}', space=vmem, size = 0x9000, scoped, tag = 'internal scratch']
  %s0 = inlined_call_operand.vmem [shape: f32[10,24,20], index: 0, kind: input, shape index: {}]
  %s1 = inlined_call_operand.vmem [shape: f32[5,20,12], index: 1, kind: input, shape index: {}]
  %s2 = inlined_call_operand.vmem [shape: f32[1,12], index: 2, kind: input, shape index: {}]
  %s3 = inlined_call_operand.vmem [shape: f32[24,12], index: 3, kind: output, shape index: {}]
  %s4 = sld [smem:[#allocation0]]
  $region22: #{docqa_forward.12} parent=0
    _
  %s6 = ssub.s32 1, %s4
  %s7 = scalar_select 0, %s6, %s4
  // Predicated region
  $region2: #{docqa_forward.12} parent=0 // pred_check
    _
  $region3: #{docqa_forward.12} parent=0 // pred_check_branch
    %9 = sbr.rel (0) target = $region5
  $region4: #{docqa_forward.12} parent=0 // pred_region
    _
  $region5: #{docqa_forward.12} parent=0 // pred_fallthru
    _
  // Predicated region
  $region6: #{docqa_forward.12} parent=0 // pred_check
    _
  $region7: #{docqa_forward.12} parent=0 // pred_check_branch
    %11 = sbr.rel (0) target = $region9
  $region8: #{docqa_forward.12} parent=0 // pred_region
    _
  $region9: #{docqa_forward.12} parent=0 // pred_fallthru
    _
  // Predicated region
  $region10: #{docqa_forward.12} parent=0 // pred_check
    _
  $region11: #{docqa_forward.12} parent=0 // pred_check_branch
    %13 = sbr.rel (0) target = $region13
  $region12: #{docqa_forward.12} parent=0 // pred_region
    _
  $region13: #{docqa_forward.12} parent=0 // pred_fallthru
    _
  %v15 = vld [vmem:[%s2] sm:$0x1]
  %v16 = vld [vmem:[%s1] sm:$0xff]
  %v17 = vld [vmem:[%s1 + $0x8] sm:$0xff]
  %v18 = vld [vmem:[%s1 + $0x10] sm:$0xf]
  %v19 = vpack.c.bf16 %v17, %v16
  %v20 = vpack.c.bf16 %v18, %v18
  %s21 = scalar_lea.vmem %s1, 24
  %v22 = vld [vmem:[%s21] sm:$0xff]
  %v23 = vld [vmem:[%s21 + $0x8] sm:$0xff]
  %v24 = vld [vmem:[%s21 + $0x10] sm:$0xf]
  %v25 = vpack.c.bf16 %v23, %v22
  %v26 = vpack.c.bf16 %v24, %v24
  %s27 = scalar_lea.vmem %s1, 48
  %v28 = vld [vmem:[%s27] sm:$0xff]
  %v29 = vld [vmem:[%s27 + $0x8] sm:$0xff]
  %v30 = vld [vmem:[%s27 + $0x10] sm:$0xf]
  %v31 = vpack.c.bf16 %v29, %v28
  %v32 = vpack.c.bf16 %v30, %v30
  %s33 = scalar_lea.vmem %s1, 72
  %v34 = vld [vmem:[%s33] sm:$0xff]
  %v35 = vld [vmem:[%s33 + $0x8] sm:$0xff]
  %v36 = vld [vmem:[%s33 + $0x10] sm:$0xf]
  %v37 = vpack.c.bf16 %v35, %v34
  %v38 = vpack.c.bf16 %v36, %v36
  %s39 = scalar_lea.vmem %s1, 96
  %v40 = vld [vmem:[%s39] sm:$0xff]
  %v41 = vld [vmem:[%s39 + $0x8] sm:$0xff]
  %v42 = vld [vmem:[%s39 + $0x10] sm:$0xf]
  %v43 = vpack.c.bf16 %v41, %v40
  %v44 = vpack.c.bf16 %v42, %v42
  %v45 = vld [vmem:[%s0] sm:$0xff]
  %v46 = vld [vmem:[%s0 + $0x8] sm:$0xff]
  %v47 = vld [vmem:[%s0 + $0x10] sm:$0xff]
  %v48 = vpack.c.bf16 %v46, %v45
  %v49 = vpack.c.bf16 %v47, %v47
  %s50 = scalar_lea.vmem %s0, 24
  %v51 = vld [vmem:[%s50] sm:$0xff]
  %v52 = vld [vmem:[%s50 + $0x8] sm:$0xff]
  %v53 = vld [vmem:[%s50 + $0x10] sm:$0xff]
  %v54 = vpack.c.bf16 %v52, %v51
  %v55 = vpack.c.bf16 %v53, %v53
  %vm56 = vcmask 162816
  %v58 = vsel %vm56, %v54, 0
  %v61 = vsel %vm56, %v55, 0
  %vm63 = vcmask 1041408
  %v65 = vsel %vm63, %v26, 0
  %67 = vmatpush.bf16.msra.mxu0 0
  %68 = vmatpush.bf16.msra.mxu0 0
  %69 = vmatpush.bf16.msra.mxu0 0
  %70 = vmatpush.bf16.msra.mxu0 0
  %71 = vmatpush.bf16.msra.mxu0 0
  %72 = vmatpush.bf16.msra.mxu0 0
  %73 = vmatpush.bf16.msra.mxu0 %v65
  %74 = vmatpush.bf16.msra.mxu0 %v25
  %75 = vmatmul.bf16.gmra.mxu0 %v58
  %v76 = vpop.f32.mrf.mxu0
  %v77 = vadd.f32 0.0, %v76
  %v78 = vpop.f32.mrf.mxu0
  %v79 = vadd.f32 0.0, %v78
  %80 = vmatmul.bf16.gmra.mxu0 %v61
  %v81 = vpop.f32.mrf.mxu0
  %v82 = vadd.f32 0.0, %v81
  %v83 = vpop.f32.mrf.mxu0
  %84 = vdwg.mxu0
  %v86 = vsel %vm56, %v48, 0
  %v89 = vsel %vm56, %v49, 0
  %v92 = vsel %vm63, %v20, 0
  %94 = vmatpush.bf16.msra.mxu0 0
  %95 = vmatpush.bf16.msra.mxu0 0
  %96 = vmatpush.bf16.msra.mxu0 0
  %97 = vmatpush.bf16.msra.mxu0 0
  %98 = vmatpush.bf16.msra.mxu0 0
  %99 = vmatpush.bf16.msra.mxu0 0
  %100 = vmatpush.bf16.msra.mxu0 %v92
  %101 = vmatpush.bf16.msra.mxu0 %v19
  %102 = vmatmul.bf16.gmra.mxu0 %v86
  %v103 = vpop.f32.mrf.mxu0
  %v104 = vadd.f32 %v77, %v103
  %v105 = vpop.f32.mrf.mxu0
  %v106 = vadd.f32 %v79, %v105
  %107 = vmatmul.bf16.gmra.mxu0 %v89
  %v108 = vpop.f32.mrf.mxu0
  %v109 = vadd.f32 %v82, %v108
  %v110 = vpop.f32.mrf.mxu0
  %111 = vdwg.mxu0
  %s112 = scalar_lea.vmem %s0, 48
  %v113 = vld [vmem:[%s112] sm:$0xff]
  %v114 = vld [vmem:[%s112 + $0x8] sm:$0xff]
  %v115 = vld [vmem:[%s112 + $0x10] sm:$0xff]
  %v116 = vpack.c.bf16 %v114, %v113
  %v117 = vpack.c.bf16 %v115, %v115
  %v119 = vsel %vm56, %v116, 0
  %v122 = vsel %vm56, %v117, 0
  %v125 = vsel %vm63, %v32, 0
  %127 = vmatpush.bf16.msra.mxu0 0
  %128 = vmatpush.bf16.msra.mxu0 0
  %129 = vmatpush.bf16.msra.mxu0 0
  %130 = vmatpush.bf16.msra.mxu0 0
  %131 = vmatpush.bf16.msra.mxu0 0
  %132 = vmatpush.bf16.msra.mxu0 0
  %133 = vmatpush.bf16.msra.mxu0 %v125
  %134 = vmatpush.bf16.msra.mxu0 %v31
  %135 = vmatmul.bf16.gmra.mxu0 %v119
  %v136 = vpop.f32.mrf.mxu0
  %v137 = vadd.f32 0.0, %v136
  %v138 = vpop.f32.mrf.mxu0
  %v139 = vadd.f32 0.0, %v138
  %140 = vmatmul.bf16.gmra.mxu0 %v122
  %v141 = vpop.f32.mrf.mxu0
  %v142 = vadd.f32 0.0, %v141
  %v143 = vpop.f32.mrf.mxu0
  %144 = vdwg.mxu0
  %v145 = vadd.f32 %v104, %v137
  %v146 = vadd.f32 %v106, %v139
  %v147 = vadd.f32 %v109, %v142
  %s148 = scalar_lea.vmem %s0, 72
  %v149 = vld [vmem:[%s148] sm:$0xff]
  %v150 = vld [vmem:[%s148 + $0x8] sm:$0xff]
  %v151 = vld [vmem:[%s148 + $0x10] sm:$0xff]
  %v152 = vpack.c.bf16 %v150, %v149
  %v153 = vpack.c.bf16 %v151, %v151
  %v155 = vsel %vm56, %v152, 0
  %v158 = vsel %vm56, %v153, 0
  %v161 = vsel %vm63, %v38, 0
  %163 = vmatpush.bf16.msra.mxu0 0
  %164 = vmatpush.bf16.msra.mxu0 0
  %165 = vmatpush.bf16.msra.mxu0 0
  %166 = vmatpush.bf16.msra.mxu0 0
  %167 = vmatpush.bf16.msra.mxu0 0
  %168 = vmatpush.bf16.msra.mxu0 0
  %169 = vmatpush.bf16.msra.mxu0 %v161
  %170 = vmatpush.bf16.msra.mxu0 %v37
  %171 = vmatmul.bf16.gmra.mxu0 %v155
  %v172 = vpop.f32.mrf.mxu0
  %v173 = vadd.f32 0.0, %v172
  %v174 = vpop.f32.mrf.mxu0
  %v175 = vadd.f32 0.0, %v174
  %176 = vmatmul.bf16.gmra.mxu0 %v158
  %v177 = vpop.f32.mrf.mxu0
  %v178 = vadd.f32 0.0, %v177
  %v179 = vpop.f32.mrf.mxu0
  %180 = vdwg.mxu0
  %v181 = vadd.f32 %v145, %v173
  %v182 = vadd.f32 %v146, %v175
  %v183 = vadd.f32 %v147, %v178
  %s184 = scalar_lea.vmem %s0, 96
  %v185 = vld [vmem:[%s184] sm:$0xff]
  %v186 = vld [vmem:[%s184 + $0x8] sm:$0xff]
  %v187 = vld [vmem:[%s184 + $0x10] sm:$0xff]
  %v188 = vpack.c.bf16 %v186, %v185
  %v189 = vpack.c.bf16 %v187, %v187
  %v191 = vsel %vm56, %v188, 0
  %v194 = vsel %vm56, %v189, 0
  %v197 = vsel %vm63, %v44, 0
  %199 = vmatpush.bf16.msra.mxu0 0
  %200 = vmatpush.bf16.msra.mxu0 0
  %201 = vmatpush.bf16.msra.mxu0 0
  %202 = vmatpush.bf16.msra.mxu0 0
  %203 = vmatpush.bf16.msra.mxu0 0
  %204 = vmatpush.bf16.msra.mxu0 0
  %205 = vmatpush.bf16.msra.mxu0 %v197
  %206 = vmatpush.bf16.msra.mxu0 %v43
  %207 = vmatmul.bf16.gmra.mxu0 %v191
  %v208 = vpop.f32.mrf.mxu0
  %v209 = vadd.f32 0.0, %v208
  %v210 = vpop.f32.mrf.mxu0
  %v211 = vadd.f32 0.0, %v210
  %212 = vmatmul.bf16.gmra.mxu0 %v194
  %v213 = vpop.f32.mrf.mxu0
  %v214 = vadd.f32 0.0, %v213
  %v215 = vpop.f32.mrf.mxu0
  %216 = vdwg.mxu0
  %v217 = vadd.f32 %v181, %v209
  %v218 = vadd.f32 %v182, %v211
  %v219 = vadd.f32 %v183, %v214
  %v221 = vperm.slane %v15, 0
  %v223 = vadd.f32 %v217, %v221
  %v224 = vadd.f32 %v218, %v221
  %v225 = vadd.f32 %v219, %v221
  %v226 = vmax.f32 %v223, 0.0
  %v227 = vmax.f32 %v224, 0.0
  %v228 = vmax.f32 %v225, 0.0
  %v229 = vmax.f32 %v226, 0.0
  %v230 = vmax.f32 %v227, 0.0
  %v231 = vmax.f32 %v228, 0.0
  %232 = vmatpush.bf16.msra.mxu0 0
  %233 = vmatpush.bf16.msra.mxu0 0
  %234 = vmatpush.bf16.msra.mxu0 0
  %235 = vmatpush.bf16.msra.mxu0 0
  %236 = vmatpush.bf16.msra.mxu0 0
  %237 = vmatpush.bf16.msra.mxu0 0
  %238 = vmatpush.bf16.msra.mxu0 %v65
  %239 = vmatpush.bf16.msra.mxu0 %v25
  %240 = vmatmul.bf16.gmra.mxu0 %v119
  %v241 = vpop.f32.mrf.mxu0
  %v242 = vadd.f32 0.0, %v241
  %v243 = vpop.f32.mrf.mxu0
  %v244 = vadd.f32 0.0, %v243
  %245 = vmatmul.bf16.gmra.mxu0 %v122
  %v246 = vpop.f32.mrf.mxu0
  %v247 = vadd.f32 0.0, %v246
  %v248 = vpop.f32.mrf.mxu0
  %249 = vdwg.mxu0
  %250 = vmatpush.bf16.msra.mxu0 0
  %251 = vmatpush.bf16.msra.mxu0 0
  %252 = vmatpush.bf16.msra.mxu0 0
  %253 = vmatpush.bf16.msra.mxu0 0
  %254 = vmatpush.bf16.msra.mxu0 0
  %255 = vmatpush.bf16.msra.mxu0 0
  %256 = vmatpush.bf16.msra.mxu0 %v92
  %257 = vmatpush.bf16.msra.mxu0 %v19
  %258 = vmatmul.bf16.gmra.mxu0 %v58
  %v259 = vpop.f32.mrf.mxu0
  %v260 = vadd.f32 %v242, %v259
  %v261 = vpop.f32.mrf.mxu0
  %v262 = vadd.f32 %v244, %v261
  %263 = vmatmul.bf16.gmra.mxu0 %v61
  %v264 = vpop.f32.mrf.mxu0
  %v265 = vadd.f32 %v247, %v264
  %v266 = vpop.f32.mrf.mxu0
  %267 = vdwg.mxu0
  %268 = vmatpush.bf16.msra.mxu0 0
  %269 = vmatpush.bf16.msra.mxu0 0
  %270 = vmatpush.bf16.msra.mxu0 0
  %271 = vmatpush.bf16.msra.mxu0 0
  %272 = vmatpush.bf16.msra.mxu0 0
  %273 = vmatpush.bf16.msra.mxu0 0
  %274 = vmatpush.bf16.msra.mxu0 %v125
  %275 = vmatpush.bf16.msra.mxu0 %v31
  %276 = vmatmul.bf16.gmra.mxu0 %v155
  %v277 = vpop.f32.mrf.mxu0
  %v278 = vadd.f32 0.0, %v277
  %v279 = vpop.f32.mrf.mxu0
  %v280 = vadd.f32 0.0, %v279
  %281 = vmatmul.bf16.gmra.mxu0 %v158
  %v282 = vpop.f32.mrf.mxu0
  %v283 = vadd.f32 0.0, %v282
  %v284 = vpop.f32.mrf.mxu0
  %285 = vdwg.mxu0
  %v286 = vadd.f32 %v260, %v278
  %v287 = vadd.f32 %v262, %v280
  %v288 = vadd.f32 %v265, %v283
  %289 = vmatpush.bf16.msra.mxu0 0
  %290 = vmatpush.bf16.msra.mxu0 0
  %291 = vmatpush.bf16.msra.mxu0 0
  %292 = vmatpush.bf16.msra.mxu0 0
  %293 = vmatpush.bf16.msra.mxu0 0
  %294 = vmatpush.bf16.msra.mxu0 0
  %295 = vmatpush.bf16.msra.mxu0 %v161
  %296 = vmatpush.bf16.msra.mxu0 %v37
  %297 = vmatmul.bf16.gmra.mxu0 %v191
  %v298 = vpop.f32.mrf.mxu0
  %v299 = vadd.f32 0.0, %v298
  %v300 = vpop.f32.mrf.mxu0
  %v301 = vadd.f32 0.0, %v300
  %302 = vmatmul.bf16.gmra.mxu0 %v194
  %v303 = vpop.f32.mrf.mxu0
  %v304 = vadd.f32 0.0, %v303
  %v305 = vpop.f32.mrf.mxu0
  %306 = vdwg.mxu0
  %v307 = vadd.f32 %v286, %v299
  %v308 = vadd.f32 %v287, %v301
  %v309 = vadd.f32 %v288, %v304
  %s310 = scalar_lea.vmem %s0, 120
  %v311 = vld [vmem:[%s310] sm:$0xff]
  %v312 = vld [vmem:[%s310 + $0x8] sm:$0xff]
  %v313 = vld [vmem:[%s310 + $0x10] sm:$0xff]
  %v314 = vpack.c.bf16 %v312, %v311
  %v315 = vpack.c.bf16 %v313, %v313
  %v317 = vsel %vm56, %v314, 0
  %v320 = vsel %vm56, %v315, 0
  %322 = vmatpush.bf16.msra.mxu0 0
  %323 = vmatpush.bf16.msra.mxu0 0
  %324 = vmatpush.bf16.msra.mxu0 0
  %325 = vmatpush.bf16.msra.mxu0 0
  %326 = vmatpush.bf16.msra.mxu0 0
  %327 = vmatpush.bf16.msra.mxu0 0
  %328 = vmatpush.bf16.msra.mxu0 %v197
  %329 = vmatpush.bf16.msra.mxu0 %v43
  %330 = vmatmul.bf16.gmra.mxu0 %v317
  %v331 = vpop.f32.mrf.mxu0
  %v332 = vadd.f32 0.0, %v331
  %v333 = vpop.f32.mrf.mxu0
  %v334 = vadd.f32 0.0, %v333
  %335 = vmatmul.bf16.gmra.mxu0 %v320
  %v336 = vpop.f32.mrf.mxu0
  %v337 = vadd.f32 0.0, %v336
  %v338 = vpop.f32.mrf.mxu0
  %339 = vdwg.mxu0
  %v340 = vadd.f32 %v307, %v332
  %v341 = vadd.f32 %v308, %v334
  %v342 = vadd.f32 %v309, %v337
  %v343 = vadd.f32 %v340, %v221
  %v344 = vadd.f32 %v341, %v221
  %v345 = vadd.f32 %v342, %v221
  %v346 = vmax.f32 %v343, 0.0
  %v347 = vmax.f32 %v344, 0.0
  %v348 = vmax.f32 %v345, 0.0
  %v349 = vmax.f32 %v229, %v346
  %v350 = vmax.f32 %v230, %v347
  %v351 = vmax.f32 %v231, %v348
  %352 = vmatpush.bf16.msra.mxu0 0
  %353 = vmatpush.bf16.msra.mxu0 0
  %354 = vmatpush.bf16.msra.mxu0 0
  %355 = vmatpush.bf16.msra.mxu0 0
  %356 = vmatpush.bf16.msra.mxu0 0
  %357 = vmatpush.bf16.msra.mxu0 0
  %358 = vmatpush.bf16.msra.mxu0 %v65
  %359 = vmatpush.bf16.msra.mxu0 %v25
  %360 = vmatmul.bf16.gmra.mxu0 %v155
  %v361 = vpop.f32.mrf.mxu0
  %v362 = vadd.f32 0.0, %v361
  %v363 = vpop.f32.mrf.mxu0
  %v364 = vadd.f32 0.0, %v363
  %365 = vmatmul.bf16.gmra.mxu0 %v158
  %v366 = vpop.f32.mrf.mxu0
  %v367 = vadd.f32 0.0, %v366
  %v368 = vpop.f32.mrf.mxu0
  %369 = vdwg.mxu0
  %370 = vmatpush.bf16.msra.mxu0 0
  %371 = vmatpush.bf16.msra.mxu0 0
  %372 = vmatpush.bf16.msra.mxu0 0
  %373 = vmatpush.bf16.msra.mxu0 0
  %374 = vmatpush.bf16.msra.mxu0 0
  %375 = vmatpush.bf16.msra.mxu0 0
  %376 = vmatpush.bf16.msra.mxu0 %v92
  %377 = vmatpush.bf16.msra.mxu0 %v19
  %378 = vmatmul.bf16.gmra.mxu0 %v119
  %v379 = vpop.f32.mrf.mxu0
  %v380 = vadd.f32 %v362, %v379
  %v381 = vpop.f32.mrf.mxu0
  %v382 = vadd.f32 %v364, %v381
  %383 = vmatmul.bf16.gmra.mxu0 %v122
  %v384 = vpop.f32.mrf.mxu0
  %v385 = vadd.f32 %v367, %v384
  %v386 = vpop.f32.mrf.mxu0
  %387 = vdwg.mxu0
  %388 = vmatpush.bf16.msra.mxu0 0
  %389 = vmatpush.bf16.msra.mxu0 0
  %390 = vmatpush.bf16.msra.mxu0 0
  %391 = vmatpush.bf16.msra.mxu0 0
  %392 = vmatpush.bf16.msra.mxu0 0
  %393 = vmatpush.bf16.msra.mxu0 0
  %394 = vmatpush.bf16.msra.mxu0 %v125
  %395 = vmatpush.bf16.msra.mxu0 %v31
  %396 = vmatmul.bf16.gmra.mxu0 %v191
  %v397 = vpop.f32.mrf.mxu0
  %v398 = vadd.f32 0.0, %v397
  %v399 = vpop.f32.mrf.mxu0
  %v400 = vadd.f32 0.0, %v399
  %401 = vmatmul.bf16.gmra.mxu0 %v194
  %v402 = vpop.f32.mrf.mxu0
  %v403 = vadd.f32 0.0, %v402
  %v404 = vpop.f32.mrf.mxu0
  %405 = vdwg.mxu0
  %v406 = vadd.f32 %v380, %v398
  %v407 = vadd.f32 %v382, %v400
  %v408 = vadd.f32 %v385, %v403
  %409 = vmatpush.bf16.msra.mxu0 0
  %410 = vmatpush.bf16.msra.mxu0 0
  %411 = vmatpush.bf16.msra.mxu0 0
  %412 = vmatpush.bf16.msra.mxu0 0
  %413 = vmatpush.bf16.msra.mxu0 0
  %414 = vmatpush.bf16.msra.mxu0 0
  %415 = vmatpush.bf16.msra.mxu0 %v161
  %416 = vmatpush.bf16.msra.mxu0 %v37
  %417 = vmatmul.bf16.gmra.mxu0 %v317
  %v418 = vpop.f32.mrf.mxu0
  %v419 = vadd.f32 0.0, %v418
  %v420 = vpop.f32.mrf.mxu0
  %v421 = vadd.f32 0.0, %v420
  %422 = vmatmul.bf16.gmra.mxu0 %v320
  %v423 = vpop.f32.mrf.mxu0
  %v424 = vadd.f32 0.0, %v423
  %v425 = vpop.f32.mrf.mxu0
  %426 = vdwg.mxu0
  %v427 = vadd.f32 %v406, %v419
  %v428 = vadd.f32 %v407, %v421
  %v429 = vadd.f32 %v408, %v424
  %s430 = scalar_lea.vmem %s0, 144
  %v431 = vld [vmem:[%s430] sm:$0xff]
  %v432 = vld [vmem:[%s430 + $0x8] sm:$0xff]
  %v433 = vld [vmem:[%s430 + $0x10] sm:$0xff]
  %v434 = vpack.c.bf16 %v432, %v431
  %v435 = vpack.c.bf16 %v433, %v433
  %v437 = vsel %vm56, %v434, 0
  %v440 = vsel %vm56, %v435, 0
  %442 = vmatpush.bf16.msra.mxu0 0
  %443 = vmatpush.bf16.msra.mxu0 0
  %444 = vmatpush.bf16.msra.mxu0 0
  %445 = vmatpush.bf16.msra.mxu0 0
  %446 = vmatpush.bf16.msra.mxu0 0
  %447 = vmatpush.bf16.msra.mxu0 0
  %448 = vmatpush.bf16.msra.mxu0 %v197
  %449 = vmatpush.bf16.msra.mxu0 %v43
  %450 = vmatmul.bf16.gmra.mxu0 %v437
  %v451 = vpop.f32.mrf.mxu0
  %v452 = vadd.f32 0.0, %v451
  %v453 = vpop.f32.mrf.mxu0
  %v454 = vadd.f32 0.0, %v453
  %455 = vmatmul.bf16.gmra.mxu0 %v440
  %v456 = vpop.f32.mrf.mxu0
  %v457 = vadd.f32 0.0, %v456
  %v458 = vpop.f32.mrf.mxu0
  %459 = vdwg.mxu0
  %v460 = vadd.f32 %v427, %v452
  %v461 = vadd.f32 %v428, %v454
  %v462 = vadd.f32 %v429, %v457
  %v463 = vadd.f32 %v460, %v221
  %v464 = vadd.f32 %v461, %v221
  %v465 = vadd.f32 %v462, %v221
  %v466 = vmax.f32 %v463, 0.0
  %v467 = vmax.f32 %v464, 0.0
  %v468 = vmax.f32 %v465, 0.0
  %v469 = vmax.f32 %v349, %v466
  %v470 = vmax.f32 %v350, %v467
  %v471 = vmax.f32 %v351, %v468
  %472 = vmatpush.bf16.msra.mxu0 0
  %473 = vmatpush.bf16.msra.mxu0 0
  %474 = vmatpush.bf16.msra.mxu0 0
  %475 = vmatpush.bf16.msra.mxu0 0
  %476 = vmatpush.bf16.msra.mxu0 0
  %477 = vmatpush.bf16.msra.mxu0 0
  %478 = vmatpush.bf16.msra.mxu0 %v65
  %479 = vmatpush.bf16.msra.mxu0 %v25
  %480 = vmatmul.bf16.gmra.mxu0 %v191
  %v481 = vpop.f32.mrf.mxu0
  %v482 = vadd.f32 0.0, %v481
  %v483 = vpop.f32.mrf.mxu0
  %v484 = vadd.f32 0.0, %v483
  %485 = vmatmul.bf16.gmra.mxu0 %v194
  %v486 = vpop.f32.mrf.mxu0
  %v487 = vadd.f32 0.0, %v486
  %v488 = vpop.f32.mrf.mxu0
  %489 = vdwg.mxu0
  %490 = vmatpush.bf16.msra.mxu0 0
  %491 = vmatpush.bf16.msra.mxu0 0
  %492 = vmatpush.bf16.msra.mxu0 0
  %493 = vmatpush.bf16.msra.mxu0 0
  %494 = vmatpush.bf16.msra.mxu0 0
  %495 = vmatpush.bf16.msra.mxu0 0
  %496 = vmatpush.bf16.msra.mxu0 %v92
  %497 = vmatpush.bf16.msra.mxu0 %v19
  %498 = vmatmul.bf16.gmra.mxu0 %v155
  %v499 = vpop.f32.mrf.mxu0
  %v500 = vadd.f32 %v482, %v499
  %v501 = vpop.f32.mrf.mxu0
  %v502 = vadd.f32 %v484, %v501
  %503 = vmatmul.bf16.gmra.mxu0 %v158
  %v504 = vpop.f32.mrf.mxu0
  %v505 = vadd.f32 %v487, %v504
  %v506 = vpop.f32.mrf.mxu0
  %507 = vdwg.mxu0
  %508 = vmatpush.bf16.msra.mxu0 0
  %509 = vmatpush.bf16.msra.mxu0 0
  %510 = vmatpush.bf16.msra.mxu0 0
  %511 = vmatpush.bf16.msra.mxu0 0
  %512 = vmatpush.bf16.msra.mxu0 0
  %513 = vmatpush.bf16.msra.mxu0 0
  %514 = vmatpush.bf16.msra.mxu0 %v125
  %515 = vmatpush.bf16.msra.mxu0 %v31
  %516 = vmatmul.bf16.gmra.mxu0 %v317
  %v517 = vpop.f32.mrf.mxu0
  %v518 = vadd.f32 0.0, %v517
  %v519 = vpop.f32.mrf.mxu0
  %v520 = vadd.f32 0.0, %v519
  %521 = vmatmul.bf16.gmra.mxu0 %v320
  %v522 = vpop.f32.mrf.mxu0
  %v523 = vadd.f32 0.0, %v522
  %v524 = vpop.f32.mrf.mxu0
  %525 = vdwg.mxu0
  %v526 = vadd.f32 %v500, %v518
  %v527 = vadd.f32 %v502, %v520
  %v528 = vadd.f32 %v505, %v523
  %529 = vmatpush.bf16.msra.mxu0 0
  %530 = vmatpush.bf16.msra.mxu0 0
  %531 = vmatpush.bf16.msra.mxu0 0
  %532 = vmatpush.bf16.msra.mxu0 0
  %533 = vmatpush.bf16.msra.mxu0 0
  %534 = vmatpush.bf16.msra.mxu0 0
  %535 = vmatpush.bf16.msra.mxu0 %v161
  %536 = vmatpush.bf16.msra.mxu0 %v37
  %537 = vmatmul.bf16.gmra.mxu0 %v437
  %v538 = vpop.f32.mrf.mxu0
  %v539 = vadd.f32 0.0, %v538
  %v540 = vpop.f32.mrf.mxu0
  %v541 = vadd.f32 0.0, %v540
  %542 = vmatmul.bf16.gmra.mxu0 %v440
  %v543 = vpop.f32.mrf.mxu0
  %v544 = vadd.f32 0.0, %v543
  %v545 = vpop.f32.mrf.mxu0
  %546 = vdwg.mxu0
  %v547 = vadd.f32 %v526, %v539
  %v548 = vadd.f32 %v527, %v541
  %v549 = vadd.f32 %v528, %v544
  %s550 = scalar_lea.vmem %s0, 168
  %v551 = vld [vmem:[%s550] sm:$0xff]
  %v552 = vld [vmem:[%s550 + $0x8] sm:$0xff]
  %v553 = vld [vmem:[%s550 + $0x10] sm:$0xff]
  %v554 = vpack.c.bf16 %v552, %v551
  %v555 = vpack.c.bf16 %v553, %v553
  %v557 = vsel %vm56, %v554, 0
  %v560 = vsel %vm56, %v555, 0
  %562 = vmatpush.bf16.msra.mxu0 0
  %563 = vmatpush.bf16.msra.mxu0 0
  %564 = vmatpush.bf16.msra.mxu0 0
  %565 = vmatpush.bf16.msra.mxu0 0
  %566 = vmatpush.bf16.msra.mxu0 0
  %567 = vmatpush.bf16.msra.mxu0 0
  %568 = vmatpush.bf16.msra.mxu0 %v197
  %569 = vmatpush.bf16.msra.mxu0 %v43
  %570 = vmatmul.bf16.gmra.mxu0 %v557
  %v571 = vpop.f32.mrf.mxu0
  %v572 = vadd.f32 0.0, %v571
  %v573 = vpop.f32.mrf.mxu0
  %v574 = vadd.f32 0.0, %v573
  %575 = vmatmul.bf16.gmra.mxu0 %v560
  %v576 = vpop.f32.mrf.mxu0
  %v577 = vadd.f32 0.0, %v576
  %v578 = vpop.f32.mrf.mxu0
  %579 = vdwg.mxu0
  %v580 = vadd.f32 %v547, %v572
  %v581 = vadd.f32 %v548, %v574
  %v582 = vadd.f32 %v549, %v577
  %v583 = vadd.f32 %v580, %v221
  %v584 = vadd.f32 %v581, %v221
  %v585 = vadd.f32 %v582, %v221
  %v586 = vmax.f32 %v583, 0.0
  %v587 = vmax.f32 %v584, 0.0
  %v588 = vmax.f32 %v585, 0.0
  %v589 = vmax.f32 %v469, %v586
  %v590 = vmax.f32 %v470, %v587
  %v591 = vmax.f32 %v471, %v588
  %592 = vmatpush.bf16.msra.mxu0 0
  %593 = vmatpush.bf16.msra.mxu0 0
  %594 = vmatpush.bf16.msra.mxu0 0
  %595 = vmatpush.bf16.msra.mxu0 0
  %596 = vmatpush.bf16.msra.mxu0 0
  %597 = vmatpush.bf16.msra.mxu0 0
  %598 = vmatpush.bf16.msra.mxu0 %v65
  %599 = vmatpush.bf16.msra.mxu0 %v25
  %600 = vmatmul.bf16.gmra.mxu0 %v317
  %v601 = vpop.f32.mrf.mxu0
  %v602 = vadd.f32 0.0, %v601
  %v603 = vpop.f32.mrf.mxu0
  %v604 = vadd.f32 0.0, %v603
  %605 = vmatmul.bf16.gmra.mxu0 %v320
  %v606 = vpop.f32.mrf.mxu0
  %v607 = vadd.f32 0.0, %v606
  %v608 = vpop.f32.mrf.mxu0
  %609 = vdwg.mxu0
  %610 = vmatpush.bf16.msra.mxu0 0
  %611 = vmatpush.bf16.msra.mxu0 0
  %612 = vmatpush.bf16.msra.mxu0 0
  %613 = vmatpush.bf16.msra.mxu0 0
  %614 = vmatpush.bf16.msra.mxu0 0
  %615 = vmatpush.bf16.msra.mxu0 0
  %616 = vmatpush.bf16.msra.mxu0 %v92
  %617 = vmatpush.bf16.msra.mxu0 %v19
  %618 = vmatmul.bf16.gmra.mxu0 %v191
  %v619 = vpop.f32.mrf.mxu0
  %v620 = vadd.f32 %v602, %v619
  %v621 = vpop.f32.mrf.mxu0
  %v622 = vadd.f32 %v604, %v621
  %623 = vmatmul.bf16.gmra.mxu0 %v194
  %v624 = vpop.f32.mrf.mxu0
  %v625 = vadd.f32 %v607, %v624
  %v626 = vpop.f32.mrf.mxu0
  %627 = vdwg.mxu0
  %628 = vmatpush.bf16.msra.mxu0 0
  %629 = vmatpush.bf16.msra.mxu0 0
  %630 = vmatpush.bf16.msra.mxu0 0
  %631 = vmatpush.bf16.msra.mxu0 0
  %632 = vmatpush.bf16.msra.mxu0 0
  %633 = vmatpush.bf16.msra.mxu0 0
  %634 = vmatpush.bf16.msra.mxu0 %v125
  %635 = vmatpush.bf16.msra.mxu0 %v31
  %636 = vmatmul.bf16.gmra.mxu0 %v437
  %v637 = vpop.f32.mrf.mxu0
  %v638 = vadd.f32 0.0, %v637
  %v639 = vpop.f32.mrf.mxu0
  %v640 = vadd.f32 0.0, %v639
  %641 = vmatmul.bf16.gmra.mxu0 %v440
  %v642 = vpop.f32.mrf.mxu0
  %v643 = vadd.f32 0.0, %v642
  %v644 = vpop.f32.mrf.mxu0
  %645 = vdwg.mxu0
  %v646 = vadd.f32 %v620, %v638
  %v647 = vadd.f32 %v622, %v640
  %v648 = vadd.f32 %v625, %v643
  %649 = vmatpush.bf16.msra.mxu0 0
  %650 = vmatpush.bf16.msra.mxu0 0
  %651 = vmatpush.bf16.msra.mxu0 0
  %652 = vmatpush.bf16.msra.mxu0 0
  %653 = vmatpush.bf16.msra.mxu0 0
  %654 = vmatpush.bf16.msra.mxu0 0
  %655 = vmatpush.bf16.msra.mxu0 %v161
  %656 = vmatpush.bf16.msra.mxu0 %v37
  %657 = vmatmul.bf16.gmra.mxu0 %v557
  %v658 = vpop.f32.mrf.mxu0
  %v659 = vadd.f32 0.0, %v658
  %v660 = vpop.f32.mrf.mxu0
  %v661 = vadd.f32 0.0, %v660
  %662 = vmatmul.bf16.gmra.mxu0 %v560
  %v663 = vpop.f32.mrf.mxu0
  %v664 = vadd.f32 0.0, %v663
  %v665 = vpop.f32.mrf.mxu0
  %666 = vdwg.mxu0
  %v667 = vadd.f32 %v646, %v659
  %v668 = vadd.f32 %v647, %v661
  %v669 = vadd.f32 %v648, %v664
  %s670 = scalar_lea.vmem %s0, 192
  %v671 = vld [vmem:[%s670] sm:$0xff]
  %v672 = vld [vmem:[%s670 + $0x8] sm:$0xff]
  %v673 = vld [vmem:[%s670 + $0x10] sm:$0xff]
  %v674 = vpack.c.bf16 %v672, %v671
  %v675 = vpack.c.bf16 %v673, %v673
  %v677 = vsel %vm56, %v674, 0
  %v680 = vsel %vm56, %v675, 0
  %682 = vmatpush.bf16.msra.mxu0 0
  %683 = vmatpush.bf16.msra.mxu0 0
  %684 = vmatpush.bf16.msra.mxu0 0
  %685 = vmatpush.bf16.msra.mxu0 0
  %686 = vmatpush.bf16.msra.mxu0 0
  %687 = vmatpush.bf16.msra.mxu0 0
  %688 = vmatpush.bf16.msra.mxu0 %v197
  %689 = vmatpush.bf16.msra.mxu0 %v43
  %690 = vmatmul.bf16.gmra.mxu0 %v677
  %v691 = vpop.f32.mrf.mxu0
  %v692 = vadd.f32 0.0, %v691
  %v693 = vpop.f32.mrf.mxu0
  %v694 = vadd.f32 0.0, %v693
  %695 = vmatmul.bf16.gmra.mxu0 %v680
  %v696 = vpop.f32.mrf.mxu0
  %v697 = vadd.f32 0.0, %v696
  %v698 = vpop.f32.mrf.mxu0
  %699 = vdwg.mxu0
  %v700 = vadd.f32 %v667, %v692
  %v701 = vadd.f32 %v668, %v694
  %v702 = vadd.f32 %v669, %v697
  %v703 = vadd.f32 %v700, %v221
  %v704 = vadd.f32 %v701, %v221
  %v705 = vadd.f32 %v702, %v221
  %v706 = vmax.f32 %v703, 0.0
  %v707 = vmax.f32 %v704, 0.0
  %v708 = vmax.f32 %v705, 0.0
  %v709 = vmax.f32 %v589, %v706
  %v710 = vmax.f32 %v590, %v707
  %v711 = vmax.f32 %v591, %v708
  %712 = vmatpush.bf16.msra.mxu0 0
  %713 = vmatpush.bf16.msra.mxu0 0
  %714 = vmatpush.bf16.msra.mxu0 0
  %715 = vmatpush.bf16.msra.mxu0 0
  %716 = vmatpush.bf16.msra.mxu0 0
  %717 = vmatpush.bf16.msra.mxu0 0
  %718 = vmatpush.bf16.msra.mxu0 %v65
  %719 = vmatpush.bf16.msra.mxu0 %v25
  %720 = vmatmul.bf16.gmra.mxu0 %v437
  %v721 = vpop.f32.mrf.mxu0
  %v722 = vadd.f32 0.0, %v721
  %v723 = vpop.f32.mrf.mxu0
  %v724 = vadd.f32 0.0, %v723
  %725 = vmatmul.bf16.gmra.mxu0 %v440
  %v726 = vpop.f32.mrf.mxu0
  %v727 = vadd.f32 0.0, %v726
  %v728 = vpop.f32.mrf.mxu0
  %729 = vdwg.mxu0
  %730 = vmatpush.bf16.msra.mxu0 0
  %731 = vmatpush.bf16.msra.mxu0 0
  %732 = vmatpush.bf16.msra.mxu0 0
  %733 = vmatpush.bf16.msra.mxu0 0
  %734 = vmatpush.bf16.msra.mxu0 0
  %735 = vmatpush.bf16.msra.mxu0 0
  %736 = vmatpush.bf16.msra.mxu0 %v92
  %737 = vmatpush.bf16.msra.mxu0 %v19
  %738 = vmatmul.bf16.gmra.mxu0 %v317
  %v739 = vpop.f32.mrf.mxu0
  %v740 = vadd.f32 %v722, %v739
  %v741 = vpop.f32.mrf.mxu0
  %v742 = vadd.f32 %v724, %v741
  %743 = vmatmul.bf16.gmra.mxu0 %v320
  %v744 = vpop.f32.mrf.mxu0
  %v745 = vadd.f32 %v727, %v744
  %v746 = vpop.f32.mrf.mxu0
  %747 = vdwg.mxu0
  %748 = vmatpush.bf16.msra.mxu0 0
  %749 = vmatpush.bf16.msra.mxu0 0
  %750 = vmatpush.bf16.msra.mxu0 0
  %751 = vmatpush.bf16.msra.mxu0 0
  %752 = vmatpush.bf16.msra.mxu0 0
  %753 = vmatpush.bf16.msra.mxu0 0
  %754 = vmatpush.bf16.msra.mxu0 %v125
  %755 = vmatpush.bf16.msra.mxu0 %v31
  %756 = vmatmul.bf16.gmra.mxu0 %v557
  %v757 = vpop.f32.mrf.mxu0
  %v758 = vadd.f32 0.0, %v757
  %v759 = vpop.f32.mrf.mxu0
  %v760 = vadd.f32 0.0, %v759
  %761 = vmatmul.bf16.gmra.mxu0 %v560
  %v762 = vpop.f32.mrf.mxu0
  %v763 = vadd.f32 0.0, %v762
  %v764 = vpop.f32.mrf.mxu0
  %765 = vdwg.mxu0
  %v766 = vadd.f32 %v740, %v758
  %v767 = vadd.f32 %v742, %v760
  %v768 = vadd.f32 %v745, %v763
  %769 = vmatpush.bf16.msra.mxu0 0
  %770 = vmatpush.bf16.msra.mxu0 0
  %771 = vmatpush.bf16.msra.mxu0 0
  %772 = vmatpush.bf16.msra.mxu0 0
  %773 = vmatpush.bf16.msra.mxu0 0
  %774 = vmatpush.bf16.msra.mxu0 0
  %775 = vmatpush.bf16.msra.mxu0 %v161
  %776 = vmatpush.bf16.msra.mxu0 %v37
  %777 = vmatmul.bf16.gmra.mxu0 %v677
  %v778 = vpop.f32.mrf.mxu0
  %v779 = vadd.f32 0.0, %v778
  %v780 = vpop.f32.mrf.mxu0
  %v781 = vadd.f32 0.0, %v780
  %782 = vmatmul.bf16.gmra.mxu0 %v680
  %v783 = vpop.f32.mrf.mxu0
  %v784 = vadd.f32 0.0, %v783
  %v785 = vpop.f32.mrf.mxu0
  %786 = vdwg.mxu0
  %v787 = vadd.f32 %v766, %v779
  %v788 = vadd.f32 %v767, %v781
  %v789 = vadd.f32 %v768, %v784
  %s790 = scalar_lea.vmem %s0, 216
  %v791 = vld [vmem:[%s790] sm:$0xff]
  %v792 = vld [vmem:[%s790 + $0x8] sm:$0xff]
  %v793 = vld [vmem:[%s790 + $0x10] sm:$0xff]
  %v794 = vpack.c.bf16 %v792, %v791
  %v795 = vpack.c.bf16 %v793, %v793
  %v797 = vsel %vm56, %v794, 0
  %v800 = vsel %vm56, %v795, 0
  %802 = vmatpush.bf16.msra.mxu0 0
  %803 = vmatpush.bf16.msra.mxu0 0
  %804 = vmatpush.bf16.msra.mxu0 0
  %805 = vmatpush.bf16.msra.mxu0 0
  %806 = vmatpush.bf16.msra.mxu0 0
  %807 = vmatpush.bf16.msra.mxu0 0
  %808 = vmatpush.bf16.msra.mxu0 %v197
  %809 = vmatpush.bf16.msra.mxu0 %v43
  %810 = vmatmul.bf16.gmra.mxu0 %v797
  %v811 = vpop.f32.mrf.mxu0
  %v812 = vadd.f32 0.0, %v811
  %v813 = vpop.f32.mrf.mxu0
  %v814 = vadd.f32 0.0, %v813
  %815 = vmatmul.bf16.gmra.mxu0 %v800
  %v816 = vpop.f32.mrf.mxu0
  %v817 = vadd.f32 0.0, %v816
  %v818 = vpop.f32.mrf.mxu0
  %819 = vdwg.mxu0
  %v820 = vadd.f32 %v787, %v812
  %v821 = vadd.f32 %v788, %v814
  %v822 = vadd.f32 %v789, %v817
  %v823 = vadd.f32 %v820, %v221
  %v824 = vadd.f32 %v821, %v221
  %v825 = vadd.f32 %v822, %v221
  %v826 = vmax.f32 %v823, 0.0
  %v827 = vmax.f32 %v824, 0.0
  %v828 = vmax.f32 %v825, 0.0
  %v829 = vmax.f32 %v709, %v826
  %v830 = vmax.f32 %v710, %v827
  %v831 = vmax.f32 %v711, %v828
  %vm832 = vcmask 97280
  %833 = vst.msk [vmem:[%s3] sm:$0xff] %vm832, %v829
  %834 = vst.msk [vmem:[%s3 + $0x8] sm:$0xff] %vm832, %v830
  %835 = vst.msk [vmem:[%s3 + $0x10] sm:$0xff] %vm832, %v831
  // Predicated region
  $region14: #{docqa_forward.12} parent=0 // pred_check
    _
  $region15: #{docqa_forward.12} parent=0 // pred_check_branch
    %837 = sbr.rel (0) target = $region17
  $region16: #{docqa_forward.12} parent=0 // pred_region
    _
  $region17: #{docqa_forward.12} parent=0 // pred_fallthru
    _
  // Predicated region
  $region18: #{docqa_forward.12} parent=0 // pred_check
    _
  $region19: #{docqa_forward.12} parent=0 // pred_check_branch
    %839 = sbr.rel (0) target = $region21
  $region20: #{docqa_forward.12} parent=0 // pred_region
    _
  $region21: #{docqa_forward.12} parent=0 // pred_fallthru
    _

// kernel: docqa_forward.15
$region0: #{docqa_forward.15}
  #allocation0 [shape = 'u32[]', space=smem, size = 0x4, offset = 0x4, fixed_abs, tag = 'smem constant byte address 0x4 - core index']
  #allocation1 [shape = 'u32[72,128]{1,0:T(1,128)}', space=vmem, size = 0x9000, scoped, tag = 'internal scratch']
  #allocation2 [shape = 'f32[2,16]{1,0:T(2,128)}', space=vmem, size = 0x400, scoped, tag = 'scratch operand']
  #allocation3 [shape = 'f32[2,16]{1,0:T(2,128)}', space=vmem, size = 0x400, scoped, tag = 'scratch operand']
  %s0 = inlined_call_operand.vmem [shape: f32[8,2,28], index: 0, kind: input, shape index: {}]
  %s1 = inlined_call_operand.vmem [shape: f32[28,48], index: 1, kind: input, shape index: {}]
  %s2 = inlined_call_operand.vmem [shape: f32[1,48], index: 2, kind: input, shape index: {}]
  %s3 = inlined_call_operand.vmem [shape: f32[16,48], index: 3, kind: input, shape index: {}]
  %s4 = inlined_call_operand.vmem [shape: f32[1,48], index: 4, kind: input, shape index: {}]
  %s5 = inlined_call_operand.vmem [shape: f32[28,48], index: 5, kind: input, shape index: {}]
  %s6 = inlined_call_operand.vmem [shape: f32[1,48], index: 6, kind: input, shape index: {}]
  %s7 = inlined_call_operand.vmem [shape: f32[16,48], index: 7, kind: input, shape index: {}]
  %s8 = inlined_call_operand.vmem [shape: f32[1,48], index: 8, kind: input, shape index: {}]
  %s9 = inlined_call_operand.vmem [shape: f32[8,2,16], index: 9, kind: output, shape index: {0}]
  %s10 = inlined_call_operand.vmem [shape: f32[8,2,16], index: 10, kind: output, shape index: {1}]
  %11 = xla_tuple %s9, %s10
  %s12 = sld [smem:[#allocation0]]
  $region61: #{docqa_forward.15} parent=0
    _
  %s14 = ssub.s32 1, %s12
  %s15 = scalar_select 0, %s14, %s12
  // Predicated region
  $region2: #{docqa_forward.15} parent=0 // pred_check
    _
  $region3: #{docqa_forward.15} parent=0 // pred_check_branch
    %17 = sbr.rel (0) target = $region5
  $region4: #{docqa_forward.15} parent=0 // pred_region
    _
  $region5: #{docqa_forward.15} parent=0 // pred_fallthru
    _
  // Predicated region
  $region6: #{docqa_forward.15} parent=0 // pred_check
    _
  $region7: #{docqa_forward.15} parent=0 // pred_check_branch
    %19 = sbr.rel (0) target = $region9
  $region8: #{docqa_forward.15} parent=0 // pred_region
    _
  $region9: #{docqa_forward.15} parent=0 // pred_fallthru
    _
  // Predicated region
  $region10: #{docqa_forward.15} parent=0 // pred_check
    _
  $region11: #{docqa_forward.15} parent=0 // pred_check_branch
    %21 = sbr.rel (0) target = $region13
  $region12: #{docqa_forward.15} parent=0 // pred_region
    _
  $region13: #{docqa_forward.15} parent=0 // pred_fallthru
    _
  // Predicated region
  $region14: #{docqa_forward.15} parent=0 // pred_check
    _
  $region15: #{docqa_forward.15} parent=0 // pred_check_branch
    %23 = sbr.rel (0) target = $region17
  $region16: #{docqa_forward.15} parent=0 // pred_region
    _
  $region17: #{docqa_forward.15} parent=0 // pred_fallthru
    _
  // Predicated region
  $region18: #{docqa_forward.15} parent=0 // pred_check
    _
  $region19: #{docqa_forward.15} parent=0 // pred_check_branch
    %25 = sbr.rel (0) target = $region21
  $region20: #{docqa_forward.15} parent=0 // pred_region
    _
  $region21: #{docqa_forward.15} parent=0 // pred_fallthru
    _
  // Predicated region
  $region22: #{docqa_forward.15} parent=0 // pred_check
    _
  $region23: #{docqa_forward.15} parent=0 // pred_check_branch
    %27 = sbr.rel (0) target = $region25
  $region24: #{docqa_forward.15} parent=0 // pred_region
    _
  $region25: #{docqa_forward.15} parent=0 // pred_fallthru
    _
  // Predicated region
  $region26: #{docqa_forward.15} parent=0 // pred_check
    _
  $region27: #{docqa_forward.15} parent=0 // pred_check_branch
    %29 = sbr.rel (0) target = $region29
  $region28: #{docqa_forward.15} parent=0 // pred_region
    _
  $region29: #{docqa_forward.15} parent=0 // pred_fallthru
    _
  // Predicated region
  $region30: #{docqa_forward.15} parent=0 // pred_check
    _
  $region31: #{docqa_forward.15} parent=0 // pred_check_branch
    %31 = sbr.rel (0) target = $region33
  $region32: #{docqa_forward.15} parent=0 // pred_region
    _
  $region33: #{docqa_forward.15} parent=0 // pred_fallthru
    _
  // Predicated region
  $region34: #{docqa_forward.15} parent=0 // pred_check
    _
  $region35: #{docqa_forward.15} parent=0 // pred_check_branch
    %33 = sbr.rel (0) target = $region37
  $region36: #{docqa_forward.15} parent=0 // pred_region
    _
  $region37: #{docqa_forward.15} parent=0 // pred_fallthru
    _
  %vm35 = vcmask 123904
  %36 = vst.msk [vmem:[#allocation2] sm:$0x3] %vm35, 0.0
  %37 = vst.msk [vmem:[#allocation3] sm:$0x3] %vm35, 0.0
  %v38 = vld [vmem:[%s1] sm:$0xff]
  %v39 = vld [vmem:[%s1 + $0x8] sm:$0xff]
  %v40 = vld [vmem:[%s1 + $0x10] sm:$0xff]
  %v41 = vld [vmem:[%s1 + $0x18] sm:$0xf]
  %v42 = vpack.c.bf16 %v39, %v38
  %v43 = vpack.c.bf16 %v41, %v40
  %v44 = vld [vmem:[%s5] sm:$0xff]
  %v45 = vld [vmem:[%s5 + $0x8] sm:$0xff]
  %v46 = vld [vmem:[%s5 + $0x10] sm:$0xff]
  %v47 = vld [vmem:[%s5 + $0x18] sm:$0xf]
  %v48 = vpack.c.bf16 %v45, %v44
  %v49 = vpack.c.bf16 %v47, %v46
  %v50 = vld [vmem:[%s3] sm:$0xff]
  %v51 = vld [vmem:[%s3 + $0x8] sm:$0xff]
  %v52 = vld [vmem:[%s7] sm:$0xff]
  %v53 = vld [vmem:[%s7 + $0x8] sm:$0xff]
  %v54 = vld [vmem:[%s2] sm:$0x1]
  %v55 = vld [vmem:[%s6] sm:$0x1]
  %v56 = vld [vmem:[%s4] sm:$0x1]
  %v57 = vld [vmem:[%s8] sm:$0x1]
  loop: start=0, step=1, limit=8
  $region38: #{docqa_forward.15} parent=0 // loop_pre_header
    _
  $region39: #{docqa_forward.15} parent=0 // loop_header
    %s59 = sphi 0, %s63
    %p60 = scmp.ge.s32.totalorder %s59, 8
  $region40: #{docqa_forward.15} parent=0 // loop_header_branch
    %62 = sbr.rel (%p60) target = $region44
  $region41: #{docqa_forward.15} parent=0 // loop_body
    %s64 = ssub.s32 7, %s59
    %s65 = smul.u32 %s59, 2
    %s66 = scalar_lea.vmem %s0, %s65
    %v67 = vld [vmem:[%s66] sm:$0x3]
    %v68 = vpack.c.bf16 %v67, %v67
    %v70 = vperm.slane %v54, 0
    %vm72 = vcmask 228352
    %v74 = vsel %vm72, %v68, 0
    %vm76 = vcmask 1045504
    %v78 = vsel %vm76, %v43, 0
    %80 = vmatpush.bf16.msra.mxu0 0
    %81 = vmatpush.bf16.msra.mxu0 0
    %82 = vmatpush.bf16.msra.mxu0 0
    %83 = vmatpush.bf16.msra.mxu0 0
    %84 = vmatpush.bf16.msra.mxu0 0
    %85 = vmatpush.bf16.msra.mxu0 0
    %86 = vmatpush.bf16.msra.mxu0 %v78
    %87 = vmatpush.bf16.msra.mxu0 %v42
    %88 = vmatmul.bf16.gmra.mxu0 %v74
    %v89 = vpop.f32.mrf.mxu0
    %v90 = vadd.f32 %v70, %v89
    %v91 = vpop.f32.mrf.mxu0
    %92 = vdwg.mxu0
    %s93 = smul.u32 %s64, 2
    %s94 = scalar_lea.vmem %s0, %s93
    %v95 = vld [vmem:[%s94] sm:$0x3]
    %v96 = vpack.c.bf16 %v95, %v95
    %v98 = vperm.slane %v55, 0
    %v101 = vsel %vm72, %v96, 0
    %v104 = vsel %vm76, %v49, 0
    %106 = vmatpush.bf16.msra.mxu0 0
    %107 = vmatpush.bf16.msra.mxu0 0
    %108 = vmatpush.bf16.msra.mxu0 0
    %109 = vmatpush.bf16.msra.mxu0 0
    %110 = vmatpush.bf16.msra.mxu0 0
    %111 = vmatpush.bf16.msra.mxu0 0
    %112 = vmatpush.bf16.msra.mxu0 %v104
    %113 = vmatpush.bf16.msra.mxu0 %v48
    %114 = vmatmul.bf16.gmra.mxu0 %v101
    %v115 = vpop.f32.mrf.mxu0
    %v116 = vadd.f32 %v98, %v115
    %v117 = vpop.f32.mrf.mxu0
    %118 = vdwg.mxu0
    %v119 = vld [vmem:[#allocation2] sm:$0x3]
    %v121 = vperm.slane %v56, 0
    %vm123 = vcmask 130048
    %v125 = vsel %vm123, %v119, 0
    %127 = vmatpush.msra.mxu0 0.0
    %128 = vmatpush.msra.mxu0 0.0
    %129 = vmatpush.msra.mxu0 0.0
    %130 = vmatpush.msra.mxu0 0.0
    %131 = vmatpush.msra.mxu0 0.0
    %132 = vmatpush.msra.mxu0 0.0
    %133 = vmatpush.msra.mxu0 0.0
    %134 = vmatpush.msra.mxu0 0.0
    %135 = vmatpush.msra.mxu0 0.0
    %136 = vmatpush.msra.mxu0 0.0
    %137 = vmatpush.msra.mxu0 0.0
    %138 = vmatpush.msra.mxu0 0.0
    %139 = vmatpush.msra.mxu0 0.0
    %140 = vmatpush.msra.mxu0 0.0
    %141 = vmatpush.msra.mxu0 %v51
    %142 = vmatpush.msra.mxu0 %v50
    %143 = vmatmul.f32.gmra.mxu0 %v125
    %v144 = vpop.f32.mrf.mxu0
    %v145 = vadd.f32 %v121, %v144
    %146 = vdwg.mxu0
    %v147 = vadd.f32 %v90, %v145
    %v148 = vxor.u32 %v147, 2147483648
    %v149 = vmul.f32 %v148, 1.442695
    %v150 = vpow.pop %v149
    %v151 = vadd.f32 %v150, 1.0
    %v152 = vrcp.pop %v151
    %v153 = vmul.f32 %v151, %v152
    %v154 = vsub.f32 1.0, %v153
    %v155 = vmul.f32 %v152, %v154
    %v156 = vadd.f32 %v152, %v155
    %vm157 = vweird.f32 %v151
    %vm158 = vweird.f32 %v152
    %vm159 = vmor %vm157, %vm158
    %v160 = vsel %vm159, %v152, %v156
    %v161 = vand.u32 2147483647, %v151
    %vm162 = vcmp.eq.f32.partialorder %v161, 8.507059e+37
    %v163 = vand.u32 %v151, 2147483648
    %v164 = vor.u32 1.1754944e-38, %v163
    %v165 = vsel %vm162, %v164, %v160
    %v166 = vmul.f32 1.0, %v165
    %168 = vrot.lane.b32.xlu0 %v145, 96
    %v169 = vpop.permute.xlu0 %168
    %v171 = vmul.f32 %v166, %v169
    %173 = vrot.lane.b32.xlu0 %v171, 32
    %v174 = vpop.permute.xlu0 %173
    %v176 = vadd.f32 %v90, %v174
    %v177 = vtanh.pop %v176
    %v178 = vsub.f32 1.0, %v166
    %180 = vrot.lane.b32.xlu0 %v177, 112
    %v181 = vpop.permute.xlu0 %180
    %v183 = vmul.f32 %v178, %v181
    %184 = vrot.lane.b32.xlu0 %v119, 16
    %v185 = vpop.permute.xlu0 %184
    %v187 = vmul.f32 %v166, %v185
    %v188 = vadd.f32 %v183, %v187
    %v189 = vld [vmem:[#allocation3] sm:$0x3]
    %v191 = vperm.slane %v57, 0
    %v194 = vsel %vm123, %v189, 0
    %196 = vmatpush.msra.mxu0 0.0
    %197 = vmatpush.msra.mxu0 0.0
    %198 = vmatpush.msra.mxu0 0.0
    %199 = vmatpush.msra.mxu0 0.0
    %200 = vmatpush.msra.mxu0 0.0
    %201 = vmatpush.msra.mxu0 0.0
    %202 = vmatpush.msra.mxu0 0.0
    %203 = vmatpush.msra.mxu0 0.0
    %204 = vmatpush.msra.mxu0 0.0
    %205 = vmatpush.msra.mxu0 0.0
    %206 = vmatpush.msra.mxu0 0.0
    %207 = vmatpush.msra.mxu0 0.0
    %208 = vmatpush.msra.mxu0 0.0
    %209 = vmatpush.msra.mxu0 0.0
    %210 = vmatpush.msra.mxu0 %v53
    %211 = vmatpush.msra.mxu0 %v52
    %212 = vmatmul.f32.gmra.mxu0 %v194
    %v213 = vpop.f32.mrf.mxu0
    %v214 = vadd.f32 %v191, %v213
    %215 = vdwg.mxu0
    %v216 = vadd.f32 %v116, %v214
    %v217 = vxor.u32 %v216, 2147483648
    %v218 = vmul.f32 %v217, 1.442695
    %v219 = vpow.pop %v218
    %v220 = vadd.f32 %v219, 1.0
    %v221 = vrcp.pop %v220
    %v222 = vmul.f32 %v220, %v221
    %v223 = vsub.f32 1.0, %v222
    %v224 = vmul.f32 %v221, %v223
    %v225 = vadd.f32 %v221, %v224
    %vm226 = vweird.f32 %v220
    %vm227 = vweird.f32 %v221
    %vm228 = vmor %vm226, %vm227
    %v229 = vsel %vm228, %v221, %v225
    %v230 = vand.u32 2147483647, %v220
    %vm231 = vcmp.eq.f32.partialorder %v230, 8.507059e+37
    %v232 = vand.u32 %v220, 2147483648
    %v233 = vor.u32 1.1754944e-38, %v232
    %v234 = vsel %vm231, %v233, %v229
    %v235 = vmul.f32 1.0, %v234
    %237 = vrot.lane.b32.xlu0 %v214, 96
    %v238 = vpop.permute.xlu0 %237
    %v240 = vmul.f32 %v235, %v238
    %242 = vrot.lane.b32.xlu0 %v240, 32
    %v243 = vpop.permute.xlu0 %242
    %v245 = vadd.f32 %v116, %v243
    %v246 = vtanh.pop %v245
    %v247 = vsub.f32 1.0, %v235
    %249 = vrot.lane.b32.xlu0 %v246, 112
    %v250 = vpop.permute.xlu0 %249
    %v252 = vmul.f32 %v247, %v250
    %253 = vrot.lane.b32.xlu0 %v189, 16
    %v254 = vpop.permute.xlu0 %253
    %v256 = vmul.f32 %v235, %v254
    %v257 = vadd.f32 %v252, %v256
    %259 = vrot.lane.b32.xlu0 %v188, 112
    %v260 = vpop.permute.xlu0 %259
    %262 = vst.msk [vmem:[#allocation2] sm:$0x3] %vm35, %v260
    %264 = vrot.lane.b32.xlu0 %v257, 112
    %v265 = vpop.permute.xlu0 %264
    %267 = vst.msk [vmem:[#allocation3] sm:$0x3] %vm35, %v265
    %s268 = scalar_lea.vmem %s9, %s65
    %269 = vst.msk [vmem:[%s268] sm:$0x3] %vm35, %v260
    %s270 = scalar_lea.vmem %s10, %s93
    %271 = vst.msk [vmem:[%s270] sm:$0x3] %vm35, %v265
  $region42: #{docqa_forward.15} parent=0 // loop_footer
    %s63 = sadd.s32 1, %s59
  $region43: #{docqa_forward.15} parent=0 // loop_footer_branch
    %58 = sbr.rel target = $region39
  $region44: #{docqa_forward.15} parent=0 // loop_exit
    _
  // Predicated region
  $region45: #{docqa_forward.15} parent=0 // pred_check
    _
  $region46: #{docqa_forward.15} parent=0 // pred_check_branch
    %273 = sbr.rel (0) target = $region48
  $region47: #{docqa_forward.15} parent=0 // pred_region
    _
  $region48: #{docqa_forward.15} parent=0 // pred_fallthru
    _
  // Predicated region
  $region49: #{docqa_forward.15} parent=0 // pred_check
    _
  $region50: #{docqa_forward.15} parent=0 // pred_check_branch
    %275 = sbr.rel (0) target = $region52
  $region51: #{docqa_forward.15} parent=0 // pred_region
    _
  $region52: #{docqa_forward.15} parent=0 // pred_fallthru
    _
  // Predicated region
  $region53: #{docqa_forward.15} parent=0 // pred_check
    _
  $region54: #{docqa_forward.15} parent=0 // pred_check_branch
    %277 = sbr.rel (0) target = $region56
  $region55: #{docqa_forward.15} parent=0 // pred_region
    _
  $region56: #{docqa_forward.15} parent=0 // pred_fallthru
    _
  // Predicated region
  $region57: #{docqa_forward.15} parent=0 // pred_check
    _
  $region58: #{docqa_forward.15} parent=0 // pred_check_branch
    %279 = sbr.rel (0) target = $region60
  $region59: #{docqa_forward.15} parent=0 // pred_region
    _
  $region60: #{docqa_forward.15} parent=0 // pred_fallthru
    _

// kernel: docqa_forward.14
$region0: #{docqa_forward.14}
  #allocation0 [shape = 'u32[]', space=smem, size = 0x4, offset = 0x4, fixed_abs, tag = 'smem constant byte address 0x4 - core index']
  #allocation1 [shape = 'u32[72,128]{1,0:T(1,128)}', space=vmem, size = 0x9000, scoped, tag = 'internal scratch']
  %s0 = inlined_call_operand.vmem [shape: f32[10,16,20], index: 0, kind: input, shape index: {}]
  %s1 = inlined_call_operand.vmem [shape: f32[5,20,12], index: 1, kind: input, shape index: {}]
  %s2 = inlined_call_operand.vmem [shape: f32[1,12], index: 2, kind: input, shape index: {}]
  %s3 = inlined_call_operand.vmem [shape: f32[16,12], index: 3, kind: output, shape index: {}]
  %s4 = sld [smem:[#allocation0]]
  $region22: #{docqa_forward.14} parent=0
    _
  %s6 = ssub.s32 1, %s4
  %s7 = scalar_select 0, %s6, %s4
  // Predicated region
  $region2: #{docqa_forward.14} parent=0 // pred_check
    _
  $region3: #{docqa_forward.14} parent=0 // pred_check_branch
    %9 = sbr.rel (0) target = $region5
  $region4: #{docqa_forward.14} parent=0 // pred_region
    _
  $region5: #{docqa_forward.14} parent=0 // pred_fallthru
    _
  // Predicated region
  $region6: #{docqa_forward.14} parent=0 // pred_check
    _
  $region7: #{docqa_forward.14} parent=0 // pred_check_branch
    %11 = sbr.rel (0) target = $region9
  $region8: #{docqa_forward.14} parent=0 // pred_region
    _
  $region9: #{docqa_forward.14} parent=0 // pred_fallthru
    _
  // Predicated region
  $region10: #{docqa_forward.14} parent=0 // pred_check
    _
  $region11: #{docqa_forward.14} parent=0 // pred_check_branch
    %13 = sbr.rel (0) target = $region13
  $region12: #{docqa_forward.14} parent=0 // pred_region
    _
  $region13: #{docqa_forward.14} parent=0 // pred_fallthru
    _
  %v15 = vld [vmem:[%s2] sm:$0x1]
  %v16 = vld [vmem:[%s1] sm:$0xff]
  %v17 = vld [vmem:[%s1 + $0x8] sm:$0xff]
  %v18 = vld [vmem:[%s1 + $0x10] sm:$0xf]
  %v19 = vpack.c.bf16 %v17, %v16
  %v20 = vpack.c.bf16 %v18, %v18
  %s21 = scalar_lea.vmem %s1, 24
  %v22 = vld [vmem:[%s21] sm:$0xff]
  %v23 = vld [vmem:[%s21 + $0x8] sm:$0xff]
  %v24 = vld [vmem:[%s21 + $0x10] sm:$0xf]
  %v25 = vpack.c.bf16 %v23, %v22
  %v26 = vpack.c.bf16 %v24, %v24
  %s27 = scalar_lea.vmem %s1, 48
  %v28 = vld [vmem:[%s27] sm:$0xff]
  %v29 = vld [vmem:[%s27 + $0x8] sm:$0xff]
  %v30 = vld [vmem:[%s27 + $0x10] sm:$0xf]
  %v31 = vpack.c.bf16 %v29, %v28
  %v32 = vpack.c.bf16 %v30, %v30
  %s33 = scalar_lea.vmem %s1, 72
  %v34 = vld [vmem:[%s33] sm:$0xff]
  %v35 = vld [vmem:[%s33 + $0x8] sm:$0xff]
  %v36 = vld [vmem:[%s33 + $0x10] sm:$0xf]
  %v37 = vpack.c.bf16 %v35, %v34
  %v38 = vpack.c.bf16 %v36, %v36
  %s39 = scalar_lea.vmem %s1, 96
  %v40 = vld [vmem:[%s39] sm:$0xff]
  %v41 = vld [vmem:[%s39 + $0x8] sm:$0xff]
  %v42 = vld [vmem:[%s39 + $0x10] sm:$0xf]
  %v43 = vpack.c.bf16 %v41, %v40
  %v44 = vpack.c.bf16 %v42, %v42
  %v45 = vld [vmem:[%s0] sm:$0xff]
  %v46 = vld [vmem:[%s0 + $0x8] sm:$0xff]
  %v47 = vpack.c.bf16 %v46, %v45
  %s48 = scalar_lea.vmem %s0, 16
  %v49 = vld [vmem:[%s48] sm:$0xff]
  %v50 = vld [vmem:[%s48 + $0x8] sm:$0xff]
  %v51 = vpack.c.bf16 %v50, %v49
  %vm52 = vcmask 162816
  %v54 = vsel %vm52, %v51, 0
  %vm56 = vcmask 1041408
  %v58 = vsel %vm56, %v26, 0
  %60 = vmatpush.bf16.msra.mxu0 0
  %61 = vmatpush.bf16.msra.mxu0 0
  %62 = vmatpush.bf16.msra.mxu0 0
  %63 = vmatpush.bf16.msra.mxu0 0
  %64 = vmatpush.bf16.msra.mxu0 0
  %65 = vmatpush.bf16.msra.mxu0 0
  %66 = vmatpush.bf16.msra.mxu0 %v58
  %67 = vmatpush.bf16.msra.mxu0 %v25
  %68 = vmatmul.bf16.gmra.mxu0 %v54
  %v69 = vpop.f32.mrf.mxu0
  %v70 = vadd.f32 0.0, %v69
  %v71 = vpop.f32.mrf.mxu0
  %v72 = vadd.f32 0.0, %v71
  %73 = vdwg.mxu0
  %v75 = vsel %vm52, %v47, 0
  %v78 = vsel %vm56, %v20, 0
  %80 = vmatpush.bf16.msra.mxu0 0
  %81 = vmatpush.bf16.msra.mxu0 0
  %82 = vmatpush.bf16.msra.mxu0 0
  %83 = vmatpush.bf16.msra.mxu0 0
  %84 = vmatpush.bf16.msra.mxu0 0
  %85 = vmatpush.bf16.msra.mxu0 0
  %86 = vmatpush.bf16.msra.mxu0 %v78
  %87 = vmatpush.bf16.msra.mxu0 %v19
  %88 = vmatmul.bf16.gmra.mxu0 %v75
  %v89 = vpop.f32.mrf.mxu0
  %v90 = vadd.f32 %v70, %v89
  %v91 = vpop.f32.mrf.mxu0
  %v92 = vadd.f32 %v72, %v91
  %93 = vdwg.mxu0
  %s94 = scalar_lea.vmem %s0, 32
  %v95 = vld [vmem:[%s94] sm:$0xff]
  %v96 = vld [vmem:[%s94 + $0x8] sm:$0xff]
  %v97 = vpack.c.bf16 %v96, %v95
  %v99 = vsel %vm52, %v97, 0
  %v102 = vsel %vm56, %v32, 0
  %104 = vmatpush.bf16.msra.mxu0 0
  %105 = vmatpush.bf16.msra.mxu0 0
  %106 = vmatpush.bf16.msra.mxu0 0
  %107 = vmatpush.bf16.msra.mxu0 0
  %108 = vmatpush.bf16.msra.mxu0 0
  %109 = vmatpush.bf16.msra.mxu0 0
  %110 = vmatpush.bf16.msra.mxu0 %v102
  %111 = vmatpush.bf16.msra.mxu0 %v31
  %112 = vmatmul.bf16.gmra.mxu0 %v99
  %v113 = vpop.f32.mrf.mxu0
  %v114 = vadd.f32 0.0, %v113
  %v115 = vpop.f32.mrf.mxu0
  %v116 = vadd.f32 0.0, %v115
  %117 = vdwg.mxu0
  %v118 = vadd.f32 %v90, %v114
  %v119 = vadd.f32 %v92, %v116
  %s120 = scalar_lea.vmem %s0, 48
  %v121 = vld [vmem:[%s120] sm:$0xff]
  %v122 = vld [vmem:[%s120 + $0x8] sm:$0xff]
  %v123 = vpack.c.bf16 %v122, %v121
  %v125 = vsel %vm52, %v123, 0
  %v128 = vsel %vm56, %v38, 0
  %130 = vmatpush.bf16.msra.mxu0 0
  %131 = vmatpush.bf16.msra.mxu0 0
  %132 = vmatpush.bf16.msra.mxu0 0
  %133 = vmatpush.bf16.msra.mxu0 0
  %134 = vmatpush.bf16.msra.mxu0 0
  %135 = vmatpush.bf16.msra.mxu0 0
  %136 = vmatpush.bf16.msra.mxu0 %v128
  %137 = vmatpush.bf16.msra.mxu0 %v37
  %138 = vmatmul.bf16.gmra.mxu0 %v125
  %v139 = vpop.f32.mrf.mxu0
  %v140 = vadd.f32 0.0, %v139
  %v141 = vpop.f32.mrf.mxu0
  %v142 = vadd.f32 0.0, %v141
  %143 = vdwg.mxu0
  %v144 = vadd.f32 %v118, %v140
  %v145 = vadd.f32 %v119, %v142
  %s146 = scalar_lea.vmem %s0, 64
  %v147 = vld [vmem:[%s146] sm:$0xff]
  %v148 = vld [vmem:[%s146 + $0x8] sm:$0xff]
  %v149 = vpack.c.bf16 %v148, %v147
  %v151 = vsel %vm52, %v149, 0
  %v154 = vsel %vm56, %v44, 0
  %156 = vmatpush.bf16.msra.mxu0 0
  %157 = vmatpush.bf16.msra.mxu0 0
  %158 = vmatpush.bf16.msra.mxu0 0
  %159 = vmatpush.bf16.msra.mxu0 0
  %160 = vmatpush.bf16.msra.mxu0 0
  %161 = vmatpush.bf16.msra.mxu0 0
  %162 = vmatpush.bf16.msra.mxu0 %v154
  %163 = vmatpush.bf16.msra.mxu0 %v43
  %164 = vmatmul.bf16.gmra.mxu0 %v151
  %v165 = vpop.f32.mrf.mxu0
  %v166 = vadd.f32 0.0, %v165
  %v167 = vpop.f32.mrf.mxu0
  %v168 = vadd.f32 0.0, %v167
  %169 = vdwg.mxu0
  %v170 = vadd.f32 %v144, %v166
  %v171 = vadd.f32 %v145, %v168
  %v173 = vperm.slane %v15, 0
  %v175 = vadd.f32 %v170, %v173
  %v176 = vadd.f32 %v171, %v173
  %v177 = vmax.f32 %v175, 0.0
  %v178 = vmax.f32 %v176, 0.0
  %v179 = vmax.f32 %v177, 0.0
  %v180 = vmax.f32 %v178, 0.0
  %181 = vmatpush.bf16.msra.mxu0 0
  %182 = vmatpush.bf16.msra.mxu0 0
  %183 = vmatpush.bf16.msra.mxu0 0
  %184 = vmatpush.bf16.msra.mxu0 0
  %185 = vmatpush.bf16.msra.mxu0 0
  %186 = vmatpush.bf16.msra.mxu0 0
  %187 = vmatpush.bf16.msra.mxu0 %v58
  %188 = vmatpush.bf16.msra.mxu0 %v25
  %189 = vmatmul.bf16.gmra.mxu0 %v99
  %v190 = vpop.f32.mrf.mxu0
  %v191 = vadd.f32 0.0, %v190
  %v192 = vpop.f32.mrf.mxu0
  %v193 = vadd.f32 0.0, %v192
  %194 = vdwg.mxu0
  %195 = vmatpush.bf16.msra.mxu0 0
  %196 = vmatpush.bf16.msra.mxu0 0
  %197 = vmatpush.bf16.msra.mxu0 0
  %198 = vmatpush.bf16.msra.mxu0 0
  %199 = vmatpush.bf16.msra.mxu0 0
  %200 = vmatpush.bf16.msra.mxu0 0
  %201 = vmatpush.bf16.msra.mxu0 %v78
  %202 = vmatpush.bf16.msra.mxu0 %v19
  %203 = vmatmul.bf16.gmra.mxu0 %v54
  %v204 = vpop.f32.mrf.mxu0
  %v205 = vadd.f32 %v191, %v204
  %v206 = vpop.f32.mrf.mxu0
  %v207 = vadd.f32 %v193, %v206
  %208 = vdwg.mxu0
  %209 = vmatpush.bf16.msra.mxu0 0
  %210 = vmatpush.bf16.msra.mxu0 0
  %211 = vmatpush.bf16.msra.mxu0 0
  %212 = vmatpush.bf16.msra.mxu0 0
  %213 = vmatpush.bf16.msra.mxu0 0
  %214 = vmatpush.bf16.msra.mxu0 0
  %215 = vmatpush.bf16.msra.mxu0 %v102
  %216 = vmatpush.bf16.msra.mxu0 %v31
  %217 = vmatmul.bf16.gmra.mxu0 %v125
  %v218 = vpop.f32.mrf.mxu0
  %v219 = vadd.f32 0.0, %v218
  %v220 = vpop.f32.mrf.mxu0
  %v221 = vadd.f32 0.0, %v220
  %222 = vdwg.mxu0
  %v223 = vadd.f32 %v205, %v219
  %v224 = vadd.f32 %v207, %v221
  %225 = vmatpush.bf16.msra.mxu0 0
  %226 = vmatpush.bf16.msra.mxu0 0
  %227 = vmatpush.bf16.msra.mxu0 0
  %228 = vmatpush.bf16.msra.mxu0 0
  %229 = vmatpush.bf16.msra.mxu0 0
  %230 = vmatpush.bf16.msra.mxu0 0
  %231 = vmatpush.bf16.msra.mxu0 %v128
  %232 = vmatpush.bf16.msra.mxu0 %v37
  %233 = vmatmul.bf16.gmra.mxu0 %v151
  %v234 = vpop.f32.mrf.mxu0
  %v235 = vadd.f32 0.0, %v234
  %v236 = vpop.f32.mrf.mxu0
  %v237 = vadd.f32 0.0, %v236
  %238 = vdwg.mxu0
  %v239 = vadd.f32 %v223, %v235
  %v240 = vadd.f32 %v224, %v237
  %s241 = scalar_lea.vmem %s0, 80
  %v242 = vld [vmem:[%s241] sm:$0xff]
  %v243 = vld [vmem:[%s241 + $0x8] sm:$0xff]
  %v244 = vpack.c.bf16 %v243, %v242
  %v246 = vsel %vm52, %v244, 0
  %248 = vmatpush.bf16.msra.mxu0 0
  %249 = vmatpush.bf16.msra.mxu0 0
  %250 = vmatpush.bf16.msra.mxu0 0
  %251 = vmatpush.bf16.msra.mxu0 0
  %252 = vmatpush.bf16.msra.mxu0 0
  %253 = vmatpush.bf16.msra.mxu0 0
  %254 = vmatpush.bf16.msra.mxu0 %v154
  %255 = vmatpush.bf16.msra.mxu0 %v43
  %256 = vmatmul.bf16.gmra.mxu0 %v246
  %v257 = vpop.f32.mrf.mxu0
  %v258 = vadd.f32 0.0, %v257
  %v259 = vpop.f32.mrf.mxu0
  %v260 = vadd.f32 0.0, %v259
  %261 = vdwg.mxu0
  %v262 = vadd.f32 %v239, %v258
  %v263 = vadd.f32 %v240, %v260
  %v264 = vadd.f32 %v262, %v173
  %v265 = vadd.f32 %v263, %v173
  %v266 = vmax.f32 %v264, 0.0
  %v267 = vmax.f32 %v265, 0.0
  %v268 = vmax.f32 %v179, %v266
  %v269 = vmax.f32 %v180, %v267
  %270 = vmatpush.bf16.msra.mxu0 0
  %271 = vmatpush.bf16.msra.mxu0 0
  %272 = vmatpush.bf16.msra.mxu0 0
  %273 = vmatpush.bf16.msra.mxu0 0
  %274 = vmatpush.bf16.msra.mxu0 0
  %275 = vmatpush.bf16.msra.mxu0 0
  %276 = vmatpush.bf16.msra.mxu0 %v58
  %277 = vmatpush.bf16.msra.mxu0 %v25
  %278 = vmatmul.bf16.gmra.mxu0 %v125
  %v279 = vpop.f32.mrf.mxu0
  %v280 = vadd.f32 0.0, %v279
  %v281 = vpop.f32.mrf.mxu0
  %v282 = vadd.f32 0.0, %v281
  %283 = vdwg.mxu0
  %284 = vmatpush.bf16.msra.mxu0 0
  %285 = vmatpush.bf16.msra.mxu0 0
  %286 = vmatpush.bf16.msra.mxu0 0
  %287 = vmatpush.bf16.msra.mxu0 0
  %288 = vmatpush.bf16.msra.mxu0 0
  %289 = vmatpush.bf16.msra.mxu0 0
  %290 = vmatpush.bf16.msra.mxu0 %v78
  %291 = vmatpush.bf16.msra.mxu0 %v19
  %292 = vmatmul.bf16.gmra.mxu0 %v99
  %v293 = vpop.f32.mrf.mxu0
  %v294 = vadd.f32 %v280, %v293
  %v295 = vpop.f32.mrf.mxu0
  %v296 = vadd.f32 %v282, %v295
  %297 = vdwg.mxu0
  %298 = vmatpush.bf16.msra.mxu0 0
  %299 = vmatpush.bf16.msra.mxu0 0
  %300 = vmatpush.bf16.msra.mxu0 0
  %301 = vmatpush.bf16.msra.mxu0 0
  %302 = vmatpush.bf16.msra.mxu0 0
  %303 = vmatpush.bf16.msra.mxu0 0
  %304 = vmatpush.bf16.msra.mxu0 %v102
  %305 = vmatpush.bf16.msra.mxu0 %v31
  %306 = vmatmul.bf16.gmra.mxu0 %v151
  %v307 = vpop.f32.mrf.mxu0
  %v308 = vadd.f32 0.0, %v307
  %v309 = vpop.f32.mrf.mxu0
  %v310 = vadd.f32 0.0, %v309
  %311 = vdwg.mxu0
  %v312 = vadd.f32 %v294, %v308
  %v313 = vadd.f32 %v296, %v310
  %314 = vmatpush.bf16.msra.mxu0 0
  %315 = vmatpush.bf16.msra.mxu0 0
  %316 = vmatpush.bf16.msra.mxu0 0
  %317 = vmatpush.bf16.msra.mxu0 0
  %318 = vmatpush.bf16.msra.mxu0 0
  %319 = vmatpush.bf16.msra.mxu0 0
  %320 = vmatpush.bf16.msra.mxu0 %v128
  %321 = vmatpush.bf16.msra.mxu0 %v37
  %322 = vmatmul.bf16.gmra.mxu0 %v246
  %v323 = vpop.f32.mrf.mxu0
  %v324 = vadd.f32 0.0, %v323
  %v325 = vpop.f32.mrf.mxu0
  %v326 = vadd.f32 0.0, %v325
  %327 = vdwg.mxu0
  %v328 = vadd.f32 %v312, %v324
  %v329 = vadd.f32 %v313, %v326
  %s330 = scalar_lea.vmem %s0, 96
  %v331 = vld [vmem:[%s330] sm:$0xff]
  %v332 = vld [vmem:[%s330 + $0x8] sm:$0xff]
  %v333 = vpack.c.bf16 %v332, %v331
  %v335 = vsel %vm52, %v333, 0
  %337 = vmatpush.bf16.msra.mxu0 0
  %338 = vmatpush.bf16.msra.mxu0 0
  %339 = vmatpush.bf16.msra.mxu0 0
  %340 = vmatpush.bf16.msra.mxu0 0
  %341 = vmatpush.bf16.msra.mxu0 0
  %342 = vmatpush.bf16.msra.mxu0 0
  %343 = vmatpush.bf16.msra.mxu0 %v154
  %344 = vmatpush.bf16.msra.mxu0 %v43
  %345 = vmatmul.bf16.gmra.mxu0 %v335
  %v346 = vpop.f32.mrf.mxu0
  %v347 = vadd.f32 0.0, %v346
  %v348 = vpop.f32.mrf.mxu0
  %v349 = vadd.f32 0.0, %v348
  %350 = vdwg.mxu0
  %v351 = vadd.f32 %v328, %v347
  %v352 = vadd.f32 %v329, %v349
  %v353 = vadd.f32 %v351, %v173
  %v354 = vadd.f32 %v352, %v173
  %v355 = vmax.f32 %v353, 0.0
  %v356 = vmax.f32 %v354, 0.0
  %v357 = vmax.f32 %v268, %v355
  %v358 = vmax.f32 %v269, %v356
  %359 = vmatpush.bf16.msra.mxu0 0
  %360 = vmatpush.bf16.msra.mxu0 0
  %361 = vmatpush.bf16.msra.mxu0 0
  %362 = vmatpush.bf16.msra.mxu0 0
  %363 = vmatpush.bf16.msra.mxu0 0
  %364 = vmatpush.bf16.msra.mxu0 0
  %365 = vmatpush.bf16.msra.mxu0 %v58
  %366 = vmatpush.bf16.msra.mxu0 %v25
  %367 = vmatmul.bf16.gmra.mxu0 %v151
  %v368 = vpop.f32.mrf.mxu0
  %v369 = vadd.f32 0.0, %v368
  %v370 = vpop.f32.mrf.mxu0
  %v371 = vadd.f32 0.0, %v370
  %372 = vdwg.mxu0
  %373 = vmatpush.bf16.msra.mxu0 0
  %374 = vmatpush.bf16.msra.mxu0 0
  %375 = vmatpush.bf16.msra.mxu0 0
  %376 = vmatpush.bf16.msra.mxu0 0
  %377 = vmatpush.bf16.msra.mxu0 0
  %378 = vmatpush.bf16.msra.mxu0 0
  %379 = vmatpush.bf16.msra.mxu0 %v78
  %380 = vmatpush.bf16.msra.mxu0 %v19
  %381 = vmatmul.bf16.gmra.mxu0 %v125
  %v382 = vpop.f32.mrf.mxu0
  %v383 = vadd.f32 %v369, %v382
  %v384 = vpop.f32.mrf.mxu0
  %v385 = vadd.f32 %v371, %v384
  %386 = vdwg.mxu0
  %387 = vmatpush.bf16.msra.mxu0 0
  %388 = vmatpush.bf16.msra.mxu0 0
  %389 = vmatpush.bf16.msra.mxu0 0
  %390 = vmatpush.bf16.msra.mxu0 0
  %391 = vmatpush.bf16.msra.mxu0 0
  %392 = vmatpush.bf16.msra.mxu0 0
  %393 = vmatpush.bf16.msra.mxu0 %v102
  %394 = vmatpush.bf16.msra.mxu0 %v31
  %395 = vmatmul.bf16.gmra.mxu0 %v246
  %v396 = vpop.f32.mrf.mxu0
  %v397 = vadd.f32 0.0, %v396
  %v398 = vpop.f32.mrf.mxu0
  %v399 = vadd.f32 0.0, %v398
  %400 = vdwg.mxu0
  %v401 = vadd.f32 %v383, %v397
  %v402 = vadd.f32 %v385, %v399
  %403 = vmatpush.bf16.msra.mxu0 0
  %404 = vmatpush.bf16.msra.mxu0 0
  %405 = vmatpush.bf16.msra.mxu0 0
  %406 = vmatpush.bf16.msra.mxu0 0
  %407 = vmatpush.bf16.msra.mxu0 0
  %408 = vmatpush.bf16.msra.mxu0 0
  %409 = vmatpush.bf16.msra.mxu0 %v128
  %410 = vmatpush.bf16.msra.mxu0 %v37
  %411 = vmatmul.bf16.gmra.mxu0 %v335
  %v412 = vpop.f32.mrf.mxu0
  %v413 = vadd.f32 0.0, %v412
  %v414 = vpop.f32.mrf.mxu0
  %v415 = vadd.f32 0.0, %v414
  %416 = vdwg.mxu0
  %v417 = vadd.f32 %v401, %v413
  %v418 = vadd.f32 %v402, %v415
  %s419 = scalar_lea.vmem %s0, 112
  %v420 = vld [vmem:[%s419] sm:$0xff]
  %v421 = vld [vmem:[%s419 + $0x8] sm:$0xff]
  %v422 = vpack.c.bf16 %v421, %v420
  %v424 = vsel %vm52, %v422, 0
  %426 = vmatpush.bf16.msra.mxu0 0
  %427 = vmatpush.bf16.msra.mxu0 0
  %428 = vmatpush.bf16.msra.mxu0 0
  %429 = vmatpush.bf16.msra.mxu0 0
  %430 = vmatpush.bf16.msra.mxu0 0
  %431 = vmatpush.bf16.msra.mxu0 0
  %432 = vmatpush.bf16.msra.mxu0 %v154
  %433 = vmatpush.bf16.msra.mxu0 %v43
  %434 = vmatmul.bf16.gmra.mxu0 %v424
  %v435 = vpop.f32.mrf.mxu0
  %v436 = vadd.f32 0.0, %v435
  %v437 = vpop.f32.mrf.mxu0
  %v438 = vadd.f32 0.0, %v437
  %439 = vdwg.mxu0
  %v440 = vadd.f32 %v417, %v436
  %v441 = vadd.f32 %v418, %v438
  %v442 = vadd.f32 %v440, %v173
  %v443 = vadd.f32 %v441, %v173
  %v444 = vmax.f32 %v442, 0.0
  %v445 = vmax.f32 %v443, 0.0
  %v446 = vmax.f32 %v357, %v444
  %v447 = vmax.f32 %v358, %v445
  %448 = vmatpush.bf16.msra.mxu0 0
  %449 = vmatpush.bf16.msra.mxu0 0
  %450 = vmatpush.bf16.msra.mxu0 0
  %451 = vmatpush.bf16.msra.mxu0 0
  %452 = vmatpush.bf16.msra.mxu0 0
  %453 = vmatpush.bf16.msra.mxu0 0
  %454 = vmatpush.bf16.msra.mxu0 %v58
  %455 = vmatpush.bf16.msra.mxu0 %v25
  %456 = vmatmul.bf16.gmra.mxu0 %v246
  %v457 = vpop.f32.mrf.mxu0
  %v458 = vadd.f32 0.0, %v457
  %v459 = vpop.f32.mrf.mxu0
  %v460 = vadd.f32 0.0, %v459
  %461 = vdwg.mxu0
  %462 = vmatpush.bf16.msra.mxu0 0
  %463 = vmatpush.bf16.msra.mxu0 0
  %464 = vmatpush.bf16.msra.mxu0 0
  %465 = vmatpush.bf16.msra.mxu0 0
  %466 = vmatpush.bf16.msra.mxu0 0
  %467 = vmatpush.bf16.msra.mxu0 0
  %468 = vmatpush.bf16.msra.mxu0 %v78
  %469 = vmatpush.bf16.msra.mxu0 %v19
  %470 = vmatmul.bf16.gmra.mxu0 %v151
  %v471 = vpop.f32.mrf.mxu0
  %v472 = vadd.f32 %v458, %v471
  %v473 = vpop.f32.mrf.mxu0
  %v474 = vadd.f32 %v460, %v473
  %475 = vdwg.mxu0
  %476 = vmatpush.bf16.msra.mxu0 0
  %477 = vmatpush.bf16.msra.mxu0 0
  %478 = vmatpush.bf16.msra.mxu0 0
  %479 = vmatpush.bf16.msra.mxu0 0
  %480 = vmatpush.bf16.msra.mxu0 0
  %481 = vmatpush.bf16.msra.mxu0 0
  %482 = vmatpush.bf16.msra.mxu0 %v102
  %483 = vmatpush.bf16.msra.mxu0 %v31
  %484 = vmatmul.bf16.gmra.mxu0 %v335
  %v485 = vpop.f32.mrf.mxu0
  %v486 = vadd.f32 0.0, %v485
  %v487 = vpop.f32.mrf.mxu0
  %v488 = vadd.f32 0.0, %v487
  %489 = vdwg.mxu0
  %v490 = vadd.f32 %v472, %v486
  %v491 = vadd.f32 %v474, %v488
  %492 = vmatpush.bf16.msra.mxu0 0
  %493 = vmatpush.bf16.msra.mxu0 0
  %494 = vmatpush.bf16.msra.mxu0 0
  %495 = vmatpush.bf16.msra.mxu0 0
  %496 = vmatpush.bf16.msra.mxu0 0
  %497 = vmatpush.bf16.msra.mxu0 0
  %498 = vmatpush.bf16.msra.mxu0 %v128
  %499 = vmatpush.bf16.msra.mxu0 %v37
  %500 = vmatmul.bf16.gmra.mxu0 %v424
  %v501 = vpop.f32.mrf.mxu0
  %v502 = vadd.f32 0.0, %v501
  %v503 = vpop.f32.mrf.mxu0
  %v504 = vadd.f32 0.0, %v503
  %505 = vdwg.mxu0
  %v506 = vadd.f32 %v490, %v502
  %v507 = vadd.f32 %v491, %v504
  %s508 = scalar_lea.vmem %s0, 128
  %v509 = vld [vmem:[%s508] sm:$0xff]
  %v510 = vld [vmem:[%s508 + $0x8] sm:$0xff]
  %v511 = vpack.c.bf16 %v510, %v509
  %v513 = vsel %vm52, %v511, 0
  %515 = vmatpush.bf16.msra.mxu0 0
  %516 = vmatpush.bf16.msra.mxu0 0
  %517 = vmatpush.bf16.msra.mxu0 0
  %518 = vmatpush.bf16.msra.mxu0 0
  %519 = vmatpush.bf16.msra.mxu0 0
  %520 = vmatpush.bf16.msra.mxu0 0
  %521 = vmatpush.bf16.msra.mxu0 %v154
  %522 = vmatpush.bf16.msra.mxu0 %v43
  %523 = vmatmul.bf16.gmra.mxu0 %v513
  %v524 = vpop.f32.mrf.mxu0
  %v525 = vadd.f32 0.0, %v524
  %v526 = vpop.f32.mrf.mxu0
  %v527 = vadd.f32 0.0, %v526
  %528 = vdwg.mxu0
  %v529 = vadd.f32 %v506, %v525
  %v530 = vadd.f32 %v507, %v527
  %v531 = vadd.f32 %v529, %v173
  %v532 = vadd.f32 %v530, %v173
  %v533 = vmax.f32 %v531, 0.0
  %v534 = vmax.f32 %v532, 0.0
  %v535 = vmax.f32 %v446, %v533
  %v536 = vmax.f32 %v447, %v534
  %537 = vmatpush.bf16.msra.mxu0 0
  %538 = vmatpush.bf16.msra.mxu0 0
  %539 = vmatpush.bf16.msra.mxu0 0
  %540 = vmatpush.bf16.msra.mxu0 0
  %541 = vmatpush.bf16.msra.mxu0 0
  %542 = vmatpush.bf16.msra.mxu0 0
  %543 = vmatpush.bf16.msra.mxu0 %v58
  %544 = vmatpush.bf16.msra.mxu0 %v25
  %545 = vmatmul.bf16.gmra.mxu0 %v335
  %v546 = vpop.f32.mrf.mxu0
  %v547 = vadd.f32 0.0, %v546
  %v548 = vpop.f32.mrf.mxu0
  %v549 = vadd.f32 0.0, %v548
  %550 = vdwg.mxu0
  %551 = vmatpush.bf16.msra.mxu0 0
  %552 = vmatpush.bf16.msra.mxu0 0
  %553 = vmatpush.bf16.msra.mxu0 0
  %554 = vmatpush.bf16.msra.mxu0 0
  %555 = vmatpush.bf16.msra.mxu0 0
  %556 = vmatpush.bf16.msra.mxu0 0
  %557 = vmatpush.bf16.msra.mxu0 %v78
  %558 = vmatpush.bf16.msra.mxu0 %v19
  %559 = vmatmul.bf16.gmra.mxu0 %v246
  %v560 = vpop.f32.mrf.mxu0
  %v561 = vadd.f32 %v547, %v560
  %v562 = vpop.f32.mrf.mxu0
  %v563 = vadd.f32 %v549, %v562
  %564 = vdwg.mxu0
  %565 = vmatpush.bf16.msra.mxu0 0
  %566 = vmatpush.bf16.msra.mxu0 0
  %567 = vmatpush.bf16.msra.mxu0 0
  %568 = vmatpush.bf16.msra.mxu0 0
  %569 = vmatpush.bf16.msra.mxu0 0
  %570 = vmatpush.bf16.msra.mxu0 0
  %571 = vmatpush.bf16.msra.mxu0 %v102
  %572 = vmatpush.bf16.msra.mxu0 %v31
  %573 = vmatmul.bf16.gmra.mxu0 %v424
  %v574 = vpop.f32.mrf.mxu0
  %v575 = vadd.f32 0.0, %v574
  %v576 = vpop.f32.mrf.mxu0
  %v577 = vadd.f32 0.0, %v576
  %578 = vdwg.mxu0
  %v579 = vadd.f32 %v561, %v575
  %v580 = vadd.f32 %v563, %v577
  %581 = vmatpush.bf16.msra.mxu0 0
  %582 = vmatpush.bf16.msra.mxu0 0
  %583 = vmatpush.bf16.msra.mxu0 0
  %584 = vmatpush.bf16.msra.mxu0 0
  %585 = vmatpush.bf16.msra.mxu0 0
  %586 = vmatpush.bf16.msra.mxu0 0
  %587 = vmatpush.bf16.msra.mxu0 %v128
  %588 = vmatpush.bf16.msra.mxu0 %v37
  %589 = vmatmul.bf16.gmra.mxu0 %v513
  %v590 = vpop.f32.mrf.mxu0
  %v591 = vadd.f32 0.0, %v590
  %v592 = vpop.f32.mrf.mxu0
  %v593 = vadd.f32 0.0, %v592
  %594 = vdwg.mxu0
  %v595 = vadd.f32 %v579, %v591
  %v596 = vadd.f32 %v580, %v593
  %s597 = scalar_lea.vmem %s0, 144
  %v598 = vld [vmem:[%s597] sm:$0xff]
  %v599 = vld [vmem:[%s597 + $0x8] sm:$0xff]
  %v600 = vpack.c.bf16 %v599, %v598
  %v602 = vsel %vm52, %v600, 0
  %604 = vmatpush.bf16.msra.mxu0 0
  %605 = vmatpush.bf16.msra.mxu0 0
  %606 = vmatpush.bf16.msra.mxu0 0
  %607 = vmatpush.bf16.msra.mxu0 0
  %608 = vmatpush.bf16.msra.mxu0 0
  %609 = vmatpush.bf16.msra.mxu0 0
  %610 = vmatpush.bf16.msra.mxu0 %v154
  %611 = vmatpush.bf16.msra.mxu0 %v43
  %612 = vmatmul.bf16.gmra.mxu0 %v602
  %v613 = vpop.f32.mrf.mxu0
  %v614 = vadd.f32 0.0, %v613
  %v615 = vpop.f32.mrf.mxu0
  %v616 = vadd.f32 0.0, %v615
  %617 = vdwg.mxu0
  %v618 = vadd.f32 %v595, %v614
  %v619 = vadd.f32 %v596, %v616
  %v620 = vadd.f32 %v618, %v173
  %v621 = vadd.f32 %v619, %v173
  %v622 = vmax.f32 %v620, 0.0
  %v623 = vmax.f32 %v621, 0.0
  %v624 = vmax.f32 %v535, %v622
  %v625 = vmax.f32 %v536, %v623
  %vm626 = vcmask 97280
  %627 = vst.msk [vmem:[%s3] sm:$0xff] %vm626, %v624
  %628 = vst.msk [vmem:[%s3 + $0x8] sm:$0xff] %vm626, %v625
  // Predicated region
  $region14: #{docqa_forward.14} parent=0 // pred_check
    _
  $region15: #{docqa_forward.14} parent=0 // pred_check_branch
    %630 = sbr.rel (0) target = $region17
  $region16: #{docqa_forward.14} parent=0 // pred_region
    _
  $region17: #{docqa_forward.14} parent=0 // pred_fallthru
    _
  // Predicated region
  $region18: #{docqa_forward.14} parent=0 // pred_check
    _
  $region19: #{docqa_forward.14} parent=0 // pred_check_branch
    %632 = sbr.rel (0) target = $region21
  $region20: #{docqa_forward.14} parent=0 // pred_region
    _
  $region21: #{docqa_forward.14} parent=0 // pred_fallthru
    _

// kernel: docqa_forward.16
$region0: #{docqa_forward.16}
  #allocation0 [shape = 'u32[]', space=smem, size = 0x4, offset = 0x4, fixed_abs, tag = 'smem constant byte address 0x4 - core index']
  #allocation1 [shape = 'u32[72,128]{1,0:T(1,128)}', space=vmem, size = 0x9000, scoped, tag = 'internal scratch']
  %s0 = inlined_call_operand.vmem [shape: f32[2,12,32], index: 0, kind: input, shape index: {}]
  %s1 = inlined_call_operand.vmem [shape: f32[2,8,32], index: 1, kind: input, shape index: {}]
  %s2 = inlined_call_operand.vmem [shape: f32[2,12,1], index: 2, kind: input, shape index: {}]
  %s3 = inlined_call_operand.vmem [shape: f32[2,1,8], index: 3, kind: input, shape index: {}]
  %s4 = inlined_call_operand.vmem [shape: f32[1,32], index: 4, kind: input, shape index: {}]
  %s5 = inlined_call_operand.vmem [shape: f32[1,32], index: 5, kind: input, shape index: {}]
  %s6 = inlined_call_operand.vmem [shape: f32[1,32], index: 6, kind: input, shape index: {}]
  %s7 = inlined_call_operand.vmem [shape: f32[2,12,128], index: 7, kind: output, shape index: {}]
  %s8 = sld [smem:[#allocation0]]
  $region61: #{docqa_forward.16} parent=0
    _
  %s10 = ssub.s32 1, %s8
  %s11 = scalar_select 0, %s10, %s8
  loop: start=0, step=1, limit=4
  $region2: #{docqa_forward.16} parent=0 // loop_pre_header
    _
  $region3: #{docqa_forward.16} parent=0 // loop_header
    %s13 = sphi 0, %s17
    %p14 = scmp.ge.s32.totalorder %s13, 4
    %s23 = sphi 0, %s25
    %s26 = sphi 0, %s23
    %s27 = sphi 0, %s26
    %s43 = sphi 0, %s27
    %s49 = sphi 0, %s51
    %s52 = sphi 0, %s49
    %s53 = sphi 0, %s52
    %s69 = sphi 0, %s53
    %s75 = sphi 0, %s77
    %s78 = sphi 0, %s75
    %s79 = sphi 0, %s78
    %s95 = sphi 0, %s79
    %s101 = sphi 0, %s103
    %s104 = sphi 0, %s101
    %s105 = sphi 0, %s104
    %s121 = sphi 0, %s105
    %s125 = sphi 0, %s125
    %s127 = sphi 0, %s125
    %s128 = sphi 0, %s127
    %s142 = sphi 0, %s128
    %s146 = sphi 0, %s146
    %s148 = sphi 0, %s146
    %s149 = sphi 0, %s148
    %s163 = sphi 0, %s149
    %s167 = sphi 0, %s167
    %s169 = sphi 0, %s167
    %s170 = sphi 0, %s169
    %s184 = sphi 0, %s170
    %s190 = sphi 0, %s192
    %s193 = sphi 0, %s190
    %s194 = sphi 0, %s193
    %s210 = sphi 0, %s194
  $region4: #{docqa_forward.16} parent=0 // loop_header_branch
    %16 = sbr.rel (%p14) target = $region8
  $region5: #{docqa_forward.16} parent=0 // loop_body
    %s18 = ssub.s32 %s13, 1
    %s19 = ssub.s32 %s13, 2
    %s20 = sadd.s32 %s13, 1
    %s21 = ssub.s32 %s13, %s20
    %p22 = scmp.eq.s32.totalorder %s21, 0
    %s24 = sadd.s32 %s23, 1
    %s25 = scalar_select %p22, %s23, %s24
    %p28 = pneg %p22
    %p29 = scmp.eq.s32.totalorder %s13, 1
    %p30 = por %p28, %p29
    %p31 = scmp.ne.s32.totalorder %s23, %s26
    %p32 = scmp.eq.s32.totalorder %s13, 0
    %p33 = por %p31, %p32
    %p34 = scmp.ne.s32.totalorder %s23, %s26
    %p35 = scmp.eq.s32.totalorder %s18, 1
    %p36 = por %p34, %p35
    %p37 = scmp.ne.s32.totalorder %s26, %s27
    %p38 = scmp.eq.s32.totalorder %s18, 0
    %p39 = por %p37, %p38
    %p40 = scmp.ne.s32.totalorder %s26, %s27
    %p41 = scmp.eq.s32.totalorder %s19, 1
    %p42 = por %p40, %p41
    %p44 = scmp.ne.s32.totalorder %s27, %s43
    %p45 = scmp.eq.s32.totalorder %s19, 0
    %p46 = por %p44, %p45
    %s47 = ssub.s32 %s13, %s20
    %p48 = scmp.eq.s32.totalorder %s47, 0
    %s50 = sadd.s32 %s49, 1
    %s51 = scalar_select %p48, %s49, %s50
    %p54 = pneg %p48
    %p55 = scmp.eq.s32.totalorder %s13, 1
    %p56 = por %p54, %p55
    %p57 = scmp.ne.s32.totalorder %s49, %s52
    %p58 = scmp.eq.s32.totalorder %s13, 0
    %p59 = por %p57, %p58
    %p60 = scmp.ne.s32.totalorder %s49, %s52
    %p61 = scmp.eq.s32.totalorder %s18, 1
    %p62 = por %p60, %p61
    %p63 = scmp.ne.s32.totalorder %s52, %s53
    %p64 = scmp.eq.s32.totalorder %s18, 0
    %p65 = por %p63, %p64
    %p66 = scmp.ne.s32.totalorder %s52, %s53
    %p67 = scmp.eq.s32.totalorder %s19, 1
    %p68 = por %p66, %p67
    %p70 = scmp.ne.s32.totalorder %s53, %s69
    %p71 = scmp.eq.s32.totalorder %s19, 0
    %p72 = por %p70, %p71
    %s73 = ssub.s32 %s13, %s20
    %p74 = scmp.eq.s32.totalorder %s73, 0
    %s76 = sadd.s32 %s75, 1
    %s77 = scalar_select %p74, %s75, %s76
    %p80 = pneg %p74
    %p81 = scmp.eq.s32.totalorder %s13, 1
    %p82 = por %p80, %p81
    %p83 = scmp.ne.s32.totalorder %s75, %s78
    %p84 = scmp.eq.s32.totalorder %s13, 0
    %p85 = por %p83, %p84
    %p86 = scmp.ne.s32.totalorder %s75, %s78
    %p87 = scmp.eq.s32.totalorder %s18, 1
    %p88 = por %p86, %p87
    %p89 = scmp.ne.s32.totalorder %s78, %s79
    %p90 = scmp.eq.s32.totalorder %s18, 0
    %p91 = por %p89, %p90
    %p92 = scmp.ne.s32.totalorder %s78, %s79
    %p93 = scmp.eq.s32.totalorder %s19, 1
    %p94 = por %p92, %p93
    %p96 = scmp.ne.s32.totalorder %s79, %s95
    %p97 = scmp.eq.s32.totalorder %s19, 0
    %p98 = por %p96, %p97
    %s99 = ssub.s32 %s13, %s20
    %p100 = scmp.eq.s32.totalorder %s99, 0
    %s102 = sadd.s32 %s101, 1
    %s103 = scalar_select %p100, %s101, %s102
    %p106 = pneg %p100
    %p107 = scmp.eq.s32.totalorder %s13, 1
    %p108 = por %p106, %p107
    %p109 = scmp.ne.s32.totalorder %s101, %s104
    %p110 = scmp.eq.s32.totalorder %s13, 0
    %p111 = por %p109, %p110
    %p112 = scmp.ne.s32.totalorder %s101, %s104
    %p113 = scmp.eq.s32.totalorder %s18, 1
    %p114 = por %p112, %p113
    %p115 = scmp.ne.s32.totalorder %s104, %s105
    %p116 = scmp.eq.s32.totalorder %s18, 0
    %p117 = por %p115, %p116
    %p118 = scmp.ne.s32.totalorder %s104, %s105
    %p119 = scmp.eq.s32.totalorder %s19, 1
    %p120 = por %p118, %p119
    %p122 = scmp.ne.s32.totalorder %s105, %s121
    %p123 = scmp.eq.s32.totalorder %s19, 0
    %p124 = por %p122, %p123
    %s126 = sadd.s32 %s125, 1
    %p129 = scmp.eq.s32.totalorder %s13, 1
    %p130 = scmp.ne.s32.totalorder %s125, %s127
    %p131 = scmp.eq.s32.totalorder %s13, 0
    %p132 = por %p130, %p131
    %p133 = scmp.ne.s32.totalorder %s125, %s127
    %p134 = scmp.eq.s32.totalorder %s18, 1
    %p135 = por %p133, %p134
    %p136 = scmp.ne.s32.totalorder %s127, %s128
    %p137 = scmp.eq.s32.totalorder %s18, 0
    %p138 = por %p136, %p137
    %p139 = scmp.ne.s32.totalorder %s127, %s128
    %p140 = scmp.eq.s32.totalorder %s19, 1
    %p141 = por %p139, %p140
    %p143 = scmp.ne.s32.totalorder %s128, %s142
    %p144 = scmp.eq.s32.totalorder %s19, 0
    %p145 = por %p143, %p144
    %s147 = sadd.s32 %s146, 1
    %p150 = scmp.eq.s32.totalorder %s13, 1
    %p151 = scmp.ne.s32.totalorder %s146, %s148
    %p152 = scmp.eq.s32.totalorder %s13, 0
    %p153 = por %p151, %p152
    %p154 = scmp.ne.s32.totalorder %s146, %s148
    %p155 = scmp.eq.s32.totalorder %s18, 1
    %p156 = por %p154, %p155
    %p157 = scmp.ne.s32.totalorder %s148, %s149
    %p158 = scmp.eq.s32.totalorder %s18, 0
    %p159 = por %p157, %p158
    %p160 = scmp.ne.s32.totalorder %s148, %s149
    %p161 = scmp.eq.s32.totalorder %s19, 1
    %p162 = por %p160, %p161
    %p164 = scmp.ne.s32.totalorder %s149, %s163
    %p165 = scmp.eq.s32.totalorder %s19, 0
    %p166 = por %p164, %p165
    %s168 = sadd.s32 %s167, 1
    %p171 = scmp.eq.s32.totalorder %s13, 1
    %p172 = scmp.ne.s32.totalorder %s167, %s169
    %p173 = scmp.eq.s32.totalorder %s13, 0
    %p174 = por %p172, %p173
    %p175 = scmp.ne.s32.totalorder %s167, %s169
    %p176 = scmp.eq.s32.totalorder %s18, 1
    %p177 = por %p175, %p176
    %p178 = scmp.ne.s32.totalorder %s169, %s170
    %p179 = scmp.eq.s32.totalorder %s18, 0
    %p180 = por %p178, %p179
    %p181 = scmp.ne.s32.totalorder %s169, %s170
    %p182 = scmp.eq.s32.totalorder %s19, 1
    %p183 = por %p181, %p182
    %p185 = scmp.ne.s32.totalorder %s170, %s184
    %p186 = scmp.eq.s32.totalorder %s19, 0
    %p187 = por %p185, %p186
    %s188 = ssub.s32 %s13, %s20
    %p189 = scmp.eq.s32.totalorder %s188, 0
    %s191 = sadd.s32 %s190, 1
    %s192 = scalar_select %p189, %s190, %s191
    %p195 = pneg %p189
    %p196 = scmp.eq.s32.totalorder %s13, 1
    %p197 = por %p195, %p196
    %p198 = scmp.ne.s32.totalorder %s190, %s193
    %p199 = scmp.eq.s32.totalorder %s13, 0
    %p200 = por %p198, %p199
    %p201 = scmp.ne.s32.totalorder %s190, %s193
    %p202 = scmp.eq.s32.totalorder %s18, 1
    %p203 = por %p201, %p202
    %p204 = scmp.ne.s32.totalorder %s193, %s194
    %p205 = scmp.eq.s32.totalorder %s18, 0
    %p206 = por %p204, %p205
    %p207 = scmp.ne.s32.totalorder %s193, %s194
    %p208 = scmp.eq.s32.totalorder %s19, 1
    %p209 = por %p207, %p208
    %p211 = scmp.ne.s32.totalorder %s194, %s210
    %p212 = scmp.eq.s32.totalorder %s19, 0
    %p213 = por %p211, %p212
    %p214 = scmp.le.s32.totalorder 1, %s13
    %p215 = scmp.lt.s32.totalorder %s13, 3
    %p216 = pnand %p214, %p215
    %p217 = pneg %p216
    // Predicated region
    $region9: #{docqa_forward.16} parent=5 // pred_check
      _
    $region10: #{docqa_forward.16} parent=5 // pred_check_branch
      %219 = sbr.rel (%p216) target = $region12
    $region11: #{docqa_forward.16} parent=5 // pred_region
      %s220 = ssub.s32 %s13, 1
      // Predicated region
      $region13: #{docqa_forward.16} parent=11 // pred_check
        %p221 = pneg %p138
      $region14: #{docqa_forward.16} parent=11 // pred_check_branch
        %223 = sbr.rel (%p221) target = $region16
      $region15: #{docqa_forward.16} parent=11 // pred_region
        _
      $region16: #{docqa_forward.16} parent=11 // pred_fallthru
        _
      // Predicated region
      $region17: #{docqa_forward.16} parent=11 // pred_check
        %p224 = pneg %p159
      $region18: #{docqa_forward.16} parent=11 // pred_check_branch
        %226 = sbr.rel (%p224) target = $region20
      $region19: #{docqa_forward.16} parent=11 // pred_region
        _
      $region20: #{docqa_forward.16} parent=11 // pred_fallthru
        _
      // Predicated region
      $region21: #{docqa_forward.16} parent=11 // pred_check
        %p227 = pneg %p180
      $region22: #{docqa_forward.16} parent=11 // pred_check_branch
        %229 = sbr.rel (%p227) target = $region24
      $region23: #{docqa_forward.16} parent=11 // pred_region
        _
      $region24: #{docqa_forward.16} parent=11 // pred_fallthru
        _
    $region12: #{docqa_forward.16} parent=5 // pred_fallthru
      _
    %p230 = scmp.lt.s32.totalorder %s13, 2
    // Predicated region
    $region25: #{docqa_forward.16} parent=5 // pred_check
      %p231 = pneg %p230
    $region26: #{docqa_forward.16} parent=5 // pred_check_branch
      %233 = sbr.rel (%p231) target = $region28
    $region27: #{docqa_forward.16} parent=5 // pred_region
      // Predicated region
      $region29: #{docqa_forward.16} parent=27 // pred_check
        %p234 = pneg %p33
      $region30: #{docqa_forward.16} parent=27 // pred_check_branch
        %236 = sbr.rel (%p234) target = $region32
      $region31: #{docqa_forward.16} parent=27 // pred_region
        %p237 = scmp.lt.s32.totalorder %s13, 1
        %s238 = scalar_select %p237, %s13, 1
        %s239 = smul.addr %s238, 2
        %s240 = smul.addr %s239, 8
        %s241 = scalar_lea.vmem %s0, %s240
      $region32: #{docqa_forward.16} parent=27 // pred_fallthru
        _
      // Predicated region
      $region33: #{docqa_forward.16} parent=27 // pred_check
        %p242 = pneg %p59
      $region34: #{docqa_forward.16} parent=27 // pred_check_branch
        %244 = sbr.rel (%p242) target = $region36
      $region35: #{docqa_forward.16} parent=27 // pred_region
        %p245 = scmp.lt.s32.totalorder %s13, 1
        %s246 = scalar_select %p245, %s13, 1
        %s247 = smul.addr %s246, 8
        %s248 = scalar_lea.vmem %s1, %s247
      $region36: #{docqa_forward.16} parent=27 // pred_fallthru
        _
      // Predicated region
      $region37: #{docqa_forward.16} parent=27 // pred_check
        %p249 = pneg %p85
      $region38: #{docqa_forward.16} parent=27 // pred_check_branch
        %251 = sbr.rel (%p249) target = $region40
      $region39: #{docqa_forward.16} parent=27 // pred_region
        %p252 = scmp.lt.s32.totalorder %s13, 1
        %s253 = scalar_select %p252, %s13, 1
        %s254 = smul.addr %s253, 2
        %s255 = smul.addr %s254, 8
        %s256 = scalar_lea.vmem %s2, %s255
      $region40: #{docqa_forward.16} parent=27 // pred_fallthru
        _
      // Predicated region
      $region41: #{docqa_forward.16} parent=27 // pred_check
        %p257 = pneg %p111
      $region42: #{docqa_forward.16} parent=27 // pred_check_branch
        %259 = sbr.rel (%p257) target = $region44
      $region43: #{docqa_forward.16} parent=27 // pred_region
        %p260 = scmp.lt.s32.totalorder %s13, 1
        %s261 = scalar_select %p260, %s13, 1
        %s262 = scalar_lea.vmem %s3, %s261
      $region44: #{docqa_forward.16} parent=27 // pred_fallthru
        _
    $region28: #{docqa_forward.16} parent=5 // pred_fallthru
      _
    %p263 = scmp.le.s32.totalorder 1, %s13
    %p264 = scmp.lt.s32.totalorder %s13, 3
    %p265 = pnand %p263, %p264
    %p266 = pneg %p265
    // Predicated region
    $region45: #{docqa_forward.16} parent=5 // pred_check
      _
    $region46: #{docqa_forward.16} parent=5 // pred_check_branch
      %268 = sbr.rel (%p265) target = $region48
    $region47: #{docqa_forward.16} parent=5 // pred_region
      %s269 = ssub.s32 %s13, 1
      %p270 = scmp.lt.s32.totalorder %s18, 1
      %s271 = scalar_select %p270, %s18, 1
      %s272 = smul.addr %s271, 2
      %s273 = smul.addr %s272, 8
      %s274 = scalar_lea.vmem %s0, %s273
      %p275 = pneg %p39
      %p276 = pneg %p36
      %p277 = scmp.lt.s32.totalorder %s18, 1
      %s278 = scalar_select %p277, %s18, 1
      %s279 = smul.addr %s278, 8
      %s280 = scalar_lea.vmem %s1, %s279
      %p281 = pneg %p65
      %p282 = pneg %p62
      %p283 = scmp.lt.s32.totalorder %s18, 1
      %s284 = scalar_select %p283, %s18, 1
      %s285 = smul.addr %s284, 2
      %s286 = smul.addr %s285, 8
      %s287 = scalar_lea.vmem %s2, %s286
      %p288 = pneg %p91
      %p289 = pneg %p88
      %p290 = scmp.lt.s32.totalorder %s18, 1
      %s291 = scalar_select %p290, %s18, 1
      %s292 = scalar_lea.vmem %s3, %s291
      %p293 = pneg %p117
      %p294 = pneg %p114
      %p295 = pneg %p138
      %p296 = pneg %p135
      %p297 = pneg %p159
      %p298 = pneg %p156
      %p299 = pneg %p180
      %p300 = pneg %p177
      %p301 = pneg %p206
      %p302 = pneg %p203
      %p303 = scmp.lt.s32.totalorder %s18, 1
      %s304 = scalar_select %p303, %s18, 1
      %s305 = smul.addr %s304, 2
      %s306 = smul.addr %s305, 8
      %s307 = scalar_lea.vmem %s7, %s306
      %p308 = scmp.lt.s32.totalorder %s18, 1
      %s309 = scalar_select %p308, %s18, 1
      %s310 = smul.addr %s309, 2
      %s311 = smul.addr %s310, 8
      %s312 = scalar_lea.vmem %s0, %s311
      %p313 = scmp.lt.s32.totalorder %s18, 1
      %s314 = scalar_select %p313, %s18, 1
      %s315 = smul.addr %s314, 8
      %s316 = scalar_lea.vmem %s1, %s315
      %p317 = scmp.lt.s32.totalorder %s18, 1
      %s318 = scalar_select %p317, %s18, 1
      %s319 = smul.addr %s318, 2
      %s320 = smul.addr %s319, 8
      %s321 = scalar_lea.vmem %s2, %s320
      %p322 = scmp.lt.s32.totalorder %s18, 1
      %s323 = scalar_select %p322, %s18, 1
      %s324 = scalar_lea.vmem %s3, %s323
      %p325 = scmp.lt.s32.totalorder %s18, 1
      %s326 = scalar_select %p325, %s18, 1
      %s327 = smul.addr %s326, 2
      %s328 = smul.addr %s327, 8
      %s329 = scalar_lea.vmem %s7, %s328
      %v330 = vld [vmem:[%s312] sm:$0xff]
      %v331 = vld [vmem:[%s312 + $0x8] sm:$0xf]
      %v332 = vld [vmem:[%s316] sm:$0xff]
      %v333 = vld [vmem:[%s324] sm:$0x1]
      %v334 = vld [vmem:[%s4] sm:$0x1]
      %v335 = vld [vmem:[%s5] sm:$0x1]
      %v336 = vld [vmem:[%s6] sm:$0x1]
      %v338 = vperm.slane %v334, 0
      %v340 = vmul.f32 %v330, %v338
      %v341 = vmul.f32 %v331, %v338
      %vm342 = vcmask 261120
      %v343 = vsel %vm342, %v340, 0.0
      %344 = vadd.xlane.f32.xlu0 %v343
      %v345 = vpop.xlane.xlu0 %344
      %vm346 = vcmask 257024
      %v347 = vsel %vm346, %v341, 0.0
      %348 = vadd.xlane.f32.xlu0 %v347
      %v349 = vpop.xlane.xlu0 %348
      %v351 = vsel %vm342, %v335, 0
      %v354 = vsel %vm342, %v332, 0
      %356 = vmatpush.xpose.msra.mxu0 0.0
      %357 = vmatpush.xpose.msra.mxu0 0.0
      %358 = vmatpush.xpose.msra.mxu0 0.0
      %359 = vmatpush.xpose.msra.mxu0 0.0
      %360 = vmatpush.xpose.msra.mxu0 0.0
      %361 = vmatpush.xpose.msra.mxu0 0.0
      %362 = vmatpush.xpose.msra.mxu0 0.0
      %363 = vmatpush.xpose.msra.mxu0 0.0
      %364 = vmatpush.xpose.msra.mxu0 0.0
      %365 = vmatpush.xpose.msra.mxu0 0.0
      %366 = vmatpush.xpose.msra.mxu0 0.0
      %367 = vmatpush.xpose.msra.mxu0 0.0
      %368 = vmatpush.xpose.msra.mxu0 0.0
      %369 = vmatpush.xpose.msra.mxu0 0.0
      %370 = vmatpush.xpose.msra.mxu0 0.0
      %371 = vmatpush.xpose.msra.mxu0 %v354
      %372 = vmatmul.f32.gmra.mxu0 %v351
      %v373 = vpop.f32.mrf.mxu0
      %v374 = vadd.f32 0.0, %v373
      %375 = vdwg.mxu0
      %v377 = vperm.slane %v336, 0
      %v379 = vmul.f32 %v330, %v377
      %v380 = vmul.f32 %v331, %v377
      %v382 = vsel %vm342, %v379, 0
      %v385 = vsel %vm342, %v380, 0
      %387 = vmatpush.xpose.msra.mxu0 0.0
      %388 = vmatpush.xpose.msra.mxu0 0.0
      %389 = vmatpush.xpose.msra.mxu0 0.0
      %390 = vmatpush.xpose.msra.mxu0 0.0
      %391 = vmatpush.xpose.msra.mxu0 0.0
      %392 = vmatpush.xpose.msra.mxu0 0.0
      %393 = vmatpush.xpose.msra.mxu0 0.0
      %394 = vmatpush.xpose.msra.mxu0 0.0
      %395 = vmatpush.xpose.msra.mxu0 0.0
      %396 = vmatpush.xpose.msra.mxu0 0.0
      %397 = vmatpush.xpose.msra.mxu0 0.0
      %398 = vmatpush.xpose.msra.mxu0 0.0
      %399 = vmatpush.xpose.msra.mxu0 0.0
      %400 = vmatpush.xpose.msra.mxu0 0.0
      %401 = vmatpush.xpose.msra.mxu0 0.0
      %402 = vmatpush.xpose.msra.mxu0 %v354
      %403 = vmatmul.f32.gmra.mxu0 %v382
      %v404 = vpop.f32.mrf.mxu0
      %v405 = vadd.f32 0.0, %v404
      %406 = vmatmul.f32.gmra.mxu0 %v385
      %v407 = vpop.f32.mrf.mxu0
      %v408 = vadd.f32 0.0, %v407
      %409 = vdwg.mxu0
      %v410 = vperm.slane %v374, 0
      %v411 = vadd.f32 %v345, %v410
      %v412 = vadd.f32 %v349, %v410
      %v413 = vadd.f32 %v411, %v405
      %v414 = vadd.f32 %v412, %v408
      %vm415 = vcmp.gt.f32.partialorder %v333, 0.5
      %v416 = vsel %vm415, 1, 0
      %v417 = vperm.slane %v416, 0
      %vm418 = vcmp.eq.s32.totalorder %v417, 1
      %v419 = vsel %vm418, -1e+09, %v413
      %v420 = vsel %vm418, -1e+09, %v414
      %vm421 = vcmask 64512
      %v422 = vsel %vm421, %v419, -inf
      %423 = vmax.xlane.f32.xlu0 %v422
      %v424 = vpop.xlane.xlu0 %423
      %vm425 = vcmask 60416
      %v426 = vsel %vm425, %v420, -inf
      %427 = vmax.xlane.f32.xlu0 %v426
      %v428 = vpop.xlane.xlu0 %427
      %v429 = vsub.f32 %v419, %v424
      %v430 = vsub.f32 %v420, %v428
      %v431 = vmul.f32 %v429, 1.442695
      %v432 = vpow.pop %v431
      %v433 = vmul.f32 %v430, 1.442695
      %v434 = vpow.pop %v433
      %v435 = vsel %vm421, %v432, 0.0
      %436 = vadd.xlane.f32.xlu0 %v435
      %v437 = vpop.xlane.xlu0 %436
      %v438 = vsel %vm425, %v434, 0.0
      %439 = vadd.xlane.f32.xlu0 %v438
      %v440 = vpop.xlane.xlu0 %439
      %v441 = vrcp.pop %v437
      %v442 = vmul.f32 %v437, %v441
      %v443 = vsub.f32 1.0, %v442
      %v444 = vmul.f32 %v441, %v443
      %v445 = vadd.f32 %v441, %v444
      %vm446 = vweird.f32 %v437
      %vm447 = vweird.f32 %v441
      %vm448 = vmor %vm446, %vm447
      %v449 = vsel %vm448, %v441, %v445
      %v450 = vand.u32 2147483647, %v437
      %vm451 = vcmp.eq.f32.partialorder %v450, 8.507059e+37
      %v452 = vand.u32 %v437, 2147483648
      %v453 = vor.u32 1.1754944e-38, %v452
      %v454 = vsel %vm451, %v453, %v449
      %v455 = vmul.f32 %v432, %v454
      %v456 = vrcp.pop %v440
      %v457 = vmul.f32 %v440, %v456
      %v458 = vsub.f32 1.0, %v457
      %v459 = vmul.f32 %v456, %v458
      %v460 = vadd.f32 %v456, %v459
      %vm461 = vweird.f32 %v440
      %vm462 = vweird.f32 %v456
      %vm463 = vmor %vm461, %vm462
      %v464 = vsel %vm463, %v456, %v460
      %v465 = vand.u32 2147483647, %v440
      %vm466 = vcmp.eq.f32.partialorder %v465, 8.507059e+37
      %v467 = vand.u32 %v440, 2147483648
      %v468 = vor.u32 1.1754944e-38, %v467
      %v469 = vsel %vm466, %v468, %v464
      %v470 = vmul.f32 %v434, %v469
      %v472 = vsel %vm421, %v455, 0
      %v475 = vsel %vm421, %v470, 0
      %477 = vmatpush.msra.mxu0 0.0
      %478 = vmatpush.msra.mxu0 0.0
      %479 = vmatpush.msra.mxu0 0.0
      %480 = vmatpush.msra.mxu0 0.0
      %481 = vmatpush.msra.mxu0 0.0
      %482 = vmatpush.msra.mxu0 0.0
      %483 = vmatpush.msra.mxu0 0.0
      %484 = vmatpush.msra.mxu0 0.0
      %485 = vmatpush.msra.mxu0 0.0
      %486 = vmatpush.msra.mxu0 0.0
      %487 = vmatpush.msra.mxu0 0.0
      %488 = vmatpush.msra.mxu0 0.0
      %489 = vmatpush.msra.mxu0 0.0
      %490 = vmatpush.msra.mxu0 0.0
      %491 = vmatpush.msra.mxu0 0.0
      %492 = vmatpush.msra.mxu0 %v332
      %493 = vmatmul.f32.gmra.mxu0 %v472
      %v494 = vpop.f32.mrf.mxu0
      %v495 = vadd.f32 0.0, %v494
      %496 = vmatmul.f32.gmra.mxu0 %v475
      %v497 = vpop.f32.mrf.mxu0
      %v498 = vadd.f32 0.0, %v497
      %499 = vdwg.mxu0
      %500 = vst.msk [vmem:[%s329] sm:$0xff] %vm342, %v330
      %501 = vst.msk [vmem:[%s329 + $0x8] sm:$0xf] %vm346, %v331
      %504 = vrot.lane.b32.xlu0 %v495, 32
      %v505 = vpop.permute.xlu0 %504
      %506 = vrot.lane.b32.xlu0 %v498, 32
      %v507 = vpop.permute.xlu0 %506
      %vm510 = vcmask 523520
      %511 = vst.msk [vmem:[%s329] sm:$0xff] %vm510, %v505
      %vm512 = vcmask 519424
      %513 = vst.msk [vmem:[%s329 + $0x8] sm:$0xf] %vm512, %v507
      %v514 = vmul.f32 %v330, %v495
      %v515 = vmul.f32 %v331, %v498
      %518 = vrot.lane.b32.xlu0 %v514, 64
      %v519 = vpop.permute.xlu0 %518
      %520 = vrot.lane.b32.xlu0 %v515, 64
      %v521 = vpop.permute.xlu0 %520
      %vm524 = vcmask 785920
      %525 = vst.msk [vmem:[%s329] sm:$0xff] %vm524, %v519
      %vm526 = vcmask 781824
      %527 = vst.msk [vmem:[%s329 + $0x8] sm:$0xf] %vm526, %v521
      %v528 = vld [vmem:[%s321] sm:$0xff]
      %v529 = vld [vmem:[%s321 + $0x8] sm:$0xf]
      %vm530 = vcmp.gt.f32.partialorder %v528, 0.5
      %vm531 = vcmp.gt.f32.partialorder %v529, 0.5
      %v532 = vsel %vm530, 1, 0
      %v533 = vsel %vm531, 1, 0
      %534 = vset.pattern.permute.xlu0 0
      %535 = vperm.xlu0 %534, %v532
      %v536 = vpop.permute.xlu0 %535
      %537 = vset.pattern.permute.xlu0 0
      %538 = vperm.xlu0 %537, %v533
      %v539 = vpop.permute.xlu0 %538
      %vm540 = vcmp.eq.s32.totalorder %v536, 1
      %vm541 = vcmp.eq.s32.totalorder %v539, 1
      %v542 = vsel %vm540, -1e+09, %v419
      %v543 = vsel %vm541, -1e+09, %v420
      %v544 = vsel %vm421, %v542, -inf
      %545 = vmax.xlane.f32.xlu0 %v544
      %v546 = vpop.xlane.xlu0 %545
      %v547 = vsel %vm425, %v543, -inf
      %548 = vmax.xlane.f32.xlu0 %v547
      %v549 = vpop.xlane.xlu0 %548
      %v550 = vsel %vm530, -1e+09, %v546
      %v551 = vsel %vm531, -1e+09, %v549
      %vm552 = vcmask 7168
      %v553 = vsel %vm552, %v550, -inf
      %vm554 = vcmask 3072
      %v555 = vsel %vm554, %v551, -inf
      %v556 = vmax.f32 %v553, %v555
      %v557 = vrot.slane %v556, 4
      %v558 = vmax.f32 %v556, %v557
      %v559 = vrot.slane %v558, 2
      %v560 = vmax.f32 %v558, %v559
      %v561 = vrot.slane %v560, 1
      %v562 = vmax.f32 %v560, %v561
      %v563 = vsub.f32 %v550, %v562
      %v564 = vsub.f32 %v551, %v562
      %v565 = vmul.f32 %v563, 1.442695
      %v566 = vpow.pop %v565
      %v567 = vmul.f32 %v564, 1.442695
      %v568 = vpow.pop %v567
      %v569 = vsel %vm552, %v566, 0.0
      %v570 = vsel %vm554, %v568, 0.0
      %v571 = vadd.f32 %v569, %v570
      %v572 = vrot.slane %v571, 4
      %v573 = vadd.f32 %v571, %v572
      %v574 = vrot.slane %v573, 2
      %v575 = vadd.f32 %v573, %v574
      %v576 = vrot.slane %v575, 1
      %v577 = vadd.f32 %v575, %v576
      %v578 = vrcp.pop %v577
      %v579 = vmul.f32 %v577, %v578
      %v580 = vsub.f32 1.0, %v579
      %v581 = vmul.f32 %v578, %v580
      %v582 = vadd.f32 %v578, %v581
      %vm583 = vweird.f32 %v577
      %vm584 = vweird.f32 %v578
      %vm585 = vmor %vm583, %vm584
      %v586 = vsel %vm585, %v578, %v582
      %v587 = vand.u32 2147483647, %v577
      %vm588 = vcmp.eq.f32.partialorder %v587, 8.507059e+37
      %v589 = vand.u32 %v577, 2147483648
      %v590 = vor.u32 1.1754944e-38, %v589
      %v591 = vsel %vm588, %v590, %v586
      %v592 = vmul.f32 %v566, %v591
      %v593 = vmul.f32 %v568, %v591
      %595 = vset.pattern.permute.xlu0 0
      %596 = vperm.xlu0 %595, %v592
      %v597 = vpop.permute.xlu0 %596
      %600 = vset.pattern.permute.xlu0 0
      %601 = vperm.xlu0 %600, %v593
      %v602 = vpop.permute.xlu0 %601
      %v604 = vmul.f32 %v597, %v330
      %v605 = vmul.f32 %v602, %v331
      %v606 = vsel %vm342, %v604, 0.0
      %v607 = vsel %vm346, %v605, 0.0
      %v608 = vadd.f32 %v606, %v607
      %v609 = vrot.slane %v608, 4
      %v610 = vadd.f32 %v608, %v609
      %v611 = vrot.slane %v610, 2
      %v612 = vadd.f32 %v610, %v611
      %v613 = vrot.slane %v612, 1
      %v614 = vadd.f32 %v612, %v613
      %v615 = vmul.f32 %v330, %v614
      %v616 = vmul.f32 %v331, %v614
      %619 = vrot.lane.b32.xlu0 %v615, 96
      %v620 = vpop.permute.xlu0 %619
      %621 = vrot.lane.b32.xlu0 %v616, 96
      %v622 = vpop.permute.xlu0 %621
      %vm625 = vcmask 1048320
      %626 = vst.msk [vmem:[%s329] sm:$0xff] %vm625, %v620
      %vm627 = vcmask 1044224
      %628 = vst.msk [vmem:[%s329 + $0x8] sm:$0xf] %vm627, %v622
      %p629 = scmp.lt.s32.totalorder %s18, 1
      %s630 = scalar_select %p629, %s18, 1
      %s631 = smul.addr %s630, 2
      %s632 = smul.addr %s631, 8
      %s633 = scalar_lea.vmem %s7, %s632
      // Predicated region
      $region49: #{docqa_forward.16} parent=47 // pred_check
        %p634 = pneg %p203
      $region50: #{docqa_forward.16} parent=47 // pred_check_branch
        %636 = sbr.rel (%p634) target = $region52
      $region51: #{docqa_forward.16} parent=47 // pred_region
        _
      $region52: #{docqa_forward.16} parent=47 // pred_fallthru
        _
    $region48: #{docqa_forward.16} parent=5 // pred_fallthru
      _
    %p637 = scmp.le.s32.totalorder 2, %s13
    // Predicated region
    $region53: #{docqa_forward.16} parent=5 // pred_check
      %p638 = pneg %p637
    $region54: #{docqa_forward.16} parent=5 // pred_check_branch
      %640 = sbr.rel (%p638) target = $region56
    $region55: #{docqa_forward.16} parent=5 // pred_region
      %s641 = ssub.s32 %s13, 2
      // Predicated region
      $region57: #{docqa_forward.16} parent=55 // pred_check
        %p642 = pneg %p209
      $region58: #{docqa_forward.16} parent=55 // pred_check_branch
        %644 = sbr.rel (%p642) target = $region60
      $region59: #{docqa_forward.16} parent=55 // pred_region
        %p645 = scmp.lt.s32.totalorder %s19, 1
        %s646 = scalar_select %p645, %s19, 1
        %s647 = smul.addr %s646, 2
        %s648 = smul.addr %s647, 8
        %s649 = scalar_lea.vmem %s7, %s648
      $region60: #{docqa_forward.16} parent=55 // pred_fallthru
        _
    $region56: #{docqa_forward.16} parent=5 // pred_fallthru
      _
  $region6: #{docqa_forward.16} parent=0 // loop_footer
    %s17 = sadd.s32 1, %s13
  $region7: #{docqa_forward.16} parent=0 // loop_footer_branch
    %12 = sbr.rel target = $region3
  $region8: #{docqa_forward.16} parent=0 // loop_exit
    _

// kernel: docqa_forward.17
$region0: #{docqa_forward.17}
  #allocation0 [shape = 'u32[]', space=smem, size = 0x4, offset = 0x4, fixed_abs, tag = 'smem constant byte address 0x4 - core index']
  #allocation1 [shape = 'u32[72,128]{1,0:T(1,128)}', space=vmem, size = 0x9000, scoped, tag = 'internal scratch']
  #allocation2 [shape = 'f32[24,32]{1,0:T(8,128)}', space=vmem, size = 0x3000, scoped, tag = 'scratch operand']
  %s0 = inlined_call_operand.vmem [shape: f32[24,128], index: 0, kind: input, shape index: {}]
  %s1 = inlined_call_operand.vmem [shape: f32[128,32], index: 1, kind: input, shape index: {}]
  %s2 = inlined_call_operand.vmem [shape: f32[1,32], index: 2, kind: input, shape index: {}]
  %s3 = inlined_call_operand.vmem [shape: f32[24,32], index: 3, kind: output, shape index: {}]
  %s4 = sld [smem:[#allocation0]]
  $region30: #{docqa_forward.17} parent=0
    _
  %s6 = ssub.s32 1, %s4
  %s7 = scalar_select 0, %s6, %s4
  // Predicated region
  $region2: #{docqa_forward.17} parent=0 // pred_check
    _
  $region3: #{docqa_forward.17} parent=0 // pred_check_branch
    %9 = sbr.rel (0) target = $region5
  $region4: #{docqa_forward.17} parent=0 // pred_region
    _
  $region5: #{docqa_forward.17} parent=0 // pred_fallthru
    _
  // Predicated region
  $region6: #{docqa_forward.17} parent=0 // pred_check
    _
  $region7: #{docqa_forward.17} parent=0 // pred_check_branch
    %11 = sbr.rel (0) target = $region9
  $region8: #{docqa_forward.17} parent=0 // pred_region
    _
  $region9: #{docqa_forward.17} parent=0 // pred_fallthru
    _
  // Predicated region
  $region10: #{docqa_forward.17} parent=0 // pred_check
    _
  $region11: #{docqa_forward.17} parent=0 // pred_check_branch
    %13 = sbr.rel (0) target = $region13
  $region12: #{docqa_forward.17} parent=0 // pred_region
    _
  $region13: #{docqa_forward.17} parent=0 // pred_fallthru
    _
  %p14 = scmp.eq.s32.totalorder 0, 0
  // Predicated region
  $region14: #{docqa_forward.17} parent=0 // pred_check
    %p15 = pneg %p14
  $region15: #{docqa_forward.17} parent=0 // pred_check_branch
    %17 = sbr.rel (%p15) target = $region17
  $region16: #{docqa_forward.17} parent=0 // pred_region
    %vm18 = vcmask 261120
    %19 = vst.msk [vmem:[#allocation2] sm:$0xff] %vm18, 0.0
    %20 = vst.msk [vmem:[#allocation2 + $0x8] sm:$0xff] %vm18, 0.0
    %21 = vst.msk [vmem:[#allocation2 + $0x10] sm:$0xff] %vm18, 0.0
  $region17: #{docqa_forward.17} parent=0 // pred_fallthru
    _
  %v22 = vld [vmem:[#allocation2] sm:$0xff]
  %v23 = vld [vmem:[#allocation2 + $0x8] sm:$0xff]
  %v24 = vld [vmem:[#allocation2 + $0x10] sm:$0xff]
  %v25 = vld [vmem:[%s0] sm:$0xff]
  %v26 = vld [vmem:[%s0 + $0x8] sm:$0xff]
  %v27 = vld [vmem:[%s0 + $0x10] sm:$0xff]
  %v28 = vpack.c.bf16 %v26, %v25
  %v29 = vpack.c.bf16 %v27, %v27
  %v30 = vld [vmem:[%s1] sm:$0xff]
  %v31 = vld [vmem:[%s1 + $0x8] sm:$0xff]
  %v32 = vld [vmem:[%s1 + $0x10] sm:$0xff]
  %v33 = vld [vmem:[%s1 + $0x18] sm:$0xff]
  %v34 = vld [vmem:[%s1 + $0x20] sm:$0xff]
  %v35 = vld [vmem:[%s1 + $0x28] sm:$0xff]
  %v36 = vld [vmem:[%s1 + $0x30] sm:$0xff]
  %v37 = vld [vmem:[%s1 + $0x38] sm:$0xff]
  %v38 = vld [vmem:[%s1 + $0x40] sm:$0xff]
  %v39 = vld [vmem:[%s1 + $0x48] sm:$0xff]
  %v40 = vld [vmem:[%s1 + $0x50] sm:$0xff]
  %v41 = vld [vmem:[%s1 + $0x58] sm:$0xff]
  %v42 = vld [vmem:[%s1 + $0x60] sm:$0xff]
  %v43 = vld [vmem:[%s1 + $0x68] sm:$0xff]
  %v44 = vld [vmem:[%s1 + $0x70] sm:$0xff]
  %v45 = vld [vmem:[%s1 + $0x78] sm:$0xff]
  %v46 = vpack.c.bf16 %v31, %v30
  %v47 = vpack.c.bf16 %v33, %v32
  %v48 = vpack.c.bf16 %v35, %v34
  %v49 = vpack.c.bf16 %v37, %v36
  %v50 = vpack.c.bf16 %v39, %v38
  %v51 = vpack.c.bf16 %v41, %v40
  %v52 = vpack.c.bf16 %v43, %v42
  %v53 = vpack.c.bf16 %v45, %v44
  %54 = vmatpush.bf16.msra.mxu0 %v53
  %55 = vmatpush.bf16.msra.mxu0 %v52
  %56 = vmatpush.bf16.msra.mxu0 %v51
  %57 = vmatpush.bf16.msra.mxu0 %v50
  %58 = vmatpush.bf16.msra.mxu0 %v49
  %59 = vmatpush.bf16.msra.mxu0 %v48
  %60 = vmatpush.bf16.msra.mxu0 %v47
  %61 = vmatpush.bf16.msra.mxu0 %v46
  %62 = vmatmul.bf16.gmra.mxu0 %v28
  %v63 = vpop.f32.mrf.mxu0
  %v64 = vadd.f32 0.0, %v63
  %v65 = vpop.f32.mrf.mxu0
  %v66 = vadd.f32 0.0, %v65
  %67 = vmatmul.bf16.gmra.mxu0 %v29
  %v68 = vpop.f32.mrf.mxu0
  %v69 = vadd.f32 0.0, %v68
  %v70 = vpop.f32.mrf.mxu0
  %71 = vdwg.mxu0
  %v72 = vadd.f32 %v22, %v64
  %v73 = vadd.f32 %v23, %v66
  %v74 = vadd.f32 %v24, %v69
  %vm75 = vcmask 261120
  %76 = vst.msk [vmem:[#allocation2] sm:$0xff] %vm75, %v72
  %77 = vst.msk [vmem:[#allocation2 + $0x8] sm:$0xff] %vm75, %v73
  %78 = vst.msk [vmem:[#allocation2 + $0x10] sm:$0xff] %vm75, %v74
  // Predicated region
  $region18: #{docqa_forward.17} parent=0 // pred_check
    %p79 = pneg %p14
  $region19: #{docqa_forward.17} parent=0 // pred_check_branch
    %81 = sbr.rel (%p79) target = $region21
  $region20: #{docqa_forward.17} parent=0 // pred_region
    %v82 = vld [vmem:[#allocation2] sm:$0xff]
    %v83 = vld [vmem:[#allocation2 + $0x8] sm:$0xff]
    %v84 = vld [vmem:[#allocation2 + $0x10] sm:$0xff]
    %v85 = vld [vmem:[%s2] sm:$0x1]
    %v87 = vperm.slane %v85, 0
    %v89 = vadd.f32 %v82, %v87
    %v90 = vadd.f32 %v83, %v87
    %v91 = vadd.f32 %v84, %v87
    %v92 = vmax.f32 %v89, 0.0
    %v93 = vmax.f32 %v90, 0.0
    %v94 = vmax.f32 %v91, 0.0
    %95 = vst.msk [vmem:[%s3] sm:$0xff] %vm75, %v92
    %96 = vst.msk [vmem:[%s3 + $0x8] sm:$0xff] %vm75, %v93
    %97 = vst.msk [vmem:[%s3 + $0x10] sm:$0xff] %vm75, %v94
  $region21: #{docqa_forward.17} parent=0 // pred_fallthru
    _
  // Predicated region
  $region22: #{docqa_forward.17} parent=0 // pred_check
    _
  $region23: #{docqa_forward.17} parent=0 // pred_check_branch
    %99 = sbr.rel (0) target = $region25
  $region24: #{docqa_forward.17} parent=0 // pred_region
    _
  $region25: #{docqa_forward.17} parent=0 // pred_fallthru
    _
  // Predicated region
  $region26: #{docqa_forward.17} parent=0 // pred_check
    _
  $region27: #{docqa_forward.17} parent=0 // pred_check_branch
    %101 = sbr.rel (0) target = $region29
  $region28: #{docqa_forward.17} parent=0 // pred_region
    _
  $region29: #{docqa_forward.17} parent=0 // pred_fallthru
    _

// kernel: docqa_forward.19
$region0: #{docqa_forward.19}
  #allocation0 [shape = 'u32[]', space=smem, size = 0x4, offset = 0x4, fixed_abs, tag = 'smem constant byte address 0x4 - core index']
  #allocation1 [shape = 'u32[72,128]{1,0:T(1,128)}', space=vmem, size = 0x9000, scoped, tag = 'internal scratch']
  %s0 = inlined_call_operand.vmem [shape: f32[2,12,32], index: 0, kind: input, shape index: {}, may-alias: {0,1}]
  %s1 = inlined_call_operand.vmem [shape: f32[2,12,32], index: 1, kind: input, shape index: {}, may-alias: {0,1}]
  %s2 = inlined_call_operand.vmem [shape: f32[2,12,1], index: 2, kind: input, shape index: {}]
  %s3 = inlined_call_operand.vmem [shape: f32[2,1,12], index: 3, kind: input, shape index: {}]
  %s4 = inlined_call_operand.vmem [shape: f32[1,32], index: 4, kind: input, shape index: {}]
  %s5 = inlined_call_operand.vmem [shape: f32[1,32], index: 5, kind: input, shape index: {}]
  %s6 = inlined_call_operand.vmem [shape: f32[1,32], index: 6, kind: input, shape index: {}]
  %s7 = inlined_call_operand.vmem [shape: f32[2,12,96], index: 7, kind: output, shape index: {}]
  %s8 = sld [smem:[#allocation0]]
  $region61: #{docqa_forward.19} parent=0
    _
  %s10 = ssub.s32 1, %s8
  %s11 = scalar_select 0, %s10, %s8
  loop: start=0, step=1, limit=4
  $region2: #{docqa_forward.19} parent=0 // loop_pre_header
    _
  $region3: #{docqa_forward.19} parent=0 // loop_header
    %s13 = sphi 0, %s17
    %p14 = scmp.ge.s32.totalorder %s13, 4
    %s23 = sphi 0, %s25
    %s26 = sphi 0, %s23
    %s27 = sphi 0, %s26
    %s43 = sphi 0, %s27
    %s49 = sphi 0, %s51
    %s52 = sphi 0, %s49
    %s53 = sphi 0, %s52
    %s69 = sphi 0, %s53
    %s75 = sphi 0, %s77
    %s78 = sphi 0, %s75
    %s79 = sphi 0, %s78
    %s95 = sphi 0, %s79
    %s101 = sphi 0, %s103
    %s104 = sphi 0, %s101
    %s105 = sphi 0, %s104
    %s121 = sphi 0, %s105
    %s125 = sphi 0, %s125
    %s127 = sphi 0, %s125
    %s128 = sphi 0, %s127
    %s142 = sphi 0, %s128
    %s146 = sphi 0, %s146
    %s148 = sphi 0, %s146
    %s149 = sphi 0, %s148
    %s163 = sphi 0, %s149
    %s167 = sphi 0, %s167
    %s169 = sphi 0, %s167
    %s170 = sphi 0, %s169
    %s184 = sphi 0, %s170
    %s190 = sphi 0, %s192
    %s193 = sphi 0, %s190
    %s194 = sphi 0, %s193
    %s210 = sphi 0, %s194
  $region4: #{docqa_forward.19} parent=0 // loop_header_branch
    %16 = sbr.rel (%p14) target = $region8
  $region5: #{docqa_forward.19} parent=0 // loop_body
    %s18 = ssub.s32 %s13, 1
    %s19 = ssub.s32 %s13, 2
    %s20 = sadd.s32 %s13, 1
    %s21 = ssub.s32 %s13, %s20
    %p22 = scmp.eq.s32.totalorder %s21, 0
    %s24 = sadd.s32 %s23, 1
    %s25 = scalar_select %p22, %s23, %s24
    %p28 = pneg %p22
    %p29 = scmp.eq.s32.totalorder %s13, 1
    %p30 = por %p28, %p29
    %p31 = scmp.ne.s32.totalorder %s23, %s26
    %p32 = scmp.eq.s32.totalorder %s13, 0
    %p33 = por %p31, %p32
    %p34 = scmp.ne.s32.totalorder %s23, %s26
    %p35 = scmp.eq.s32.totalorder %s18, 1
    %p36 = por %p34, %p35
    %p37 = scmp.ne.s32.totalorder %s26, %s27
    %p38 = scmp.eq.s32.totalorder %s18, 0
    %p39 = por %p37, %p38
    %p40 = scmp.ne.s32.totalorder %s26, %s27
    %p41 = scmp.eq.s32.totalorder %s19, 1
    %p42 = por %p40, %p41
    %p44 = scmp.ne.s32.totalorder %s27, %s43
    %p45 = scmp.eq.s32.totalorder %s19, 0
    %p46 = por %p44, %p45
    %s47 = ssub.s32 %s13, %s20
    %p48 = scmp.eq.s32.totalorder %s47, 0
    %s50 = sadd.s32 %s49, 1
    %s51 = scalar_select %p48, %s49, %s50
    %p54 = pneg %p48
    %p55 = scmp.eq.s32.totalorder %s13, 1
    %p56 = por %p54, %p55
    %p57 = scmp.ne.s32.totalorder %s49, %s52
    %p58 = scmp.eq.s32.totalorder %s13, 0
    %p59 = por %p57, %p58
    %p60 = scmp.ne.s32.totalorder %s49, %s52
    %p61 = scmp.eq.s32.totalorder %s18, 1
    %p62 = por %p60, %p61
    %p63 = scmp.ne.s32.totalorder %s52, %s53
    %p64 = scmp.eq.s32.totalorder %s18, 0
    %p65 = por %p63, %p64
    %p66 = scmp.ne.s32.totalorder %s52, %s53
    %p67 = scmp.eq.s32.totalorder %s19, 1
    %p68 = por %p66, %p67
    %p70 = scmp.ne.s32.totalorder %s53, %s69
    %p71 = scmp.eq.s32.totalorder %s19, 0
    %p72 = por %p70, %p71
    %s73 = ssub.s32 %s13, %s20
    %p74 = scmp.eq.s32.totalorder %s73, 0
    %s76 = sadd.s32 %s75, 1
    %s77 = scalar_select %p74, %s75, %s76
    %p80 = pneg %p74
    %p81 = scmp.eq.s32.totalorder %s13, 1
    %p82 = por %p80, %p81
    %p83 = scmp.ne.s32.totalorder %s75, %s78
    %p84 = scmp.eq.s32.totalorder %s13, 0
    %p85 = por %p83, %p84
    %p86 = scmp.ne.s32.totalorder %s75, %s78
    %p87 = scmp.eq.s32.totalorder %s18, 1
    %p88 = por %p86, %p87
    %p89 = scmp.ne.s32.totalorder %s78, %s79
    %p90 = scmp.eq.s32.totalorder %s18, 0
    %p91 = por %p89, %p90
    %p92 = scmp.ne.s32.totalorder %s78, %s79
    %p93 = scmp.eq.s32.totalorder %s19, 1
    %p94 = por %p92, %p93
    %p96 = scmp.ne.s32.totalorder %s79, %s95
    %p97 = scmp.eq.s32.totalorder %s19, 0
    %p98 = por %p96, %p97
    %s99 = ssub.s32 %s13, %s20
    %p100 = scmp.eq.s32.totalorder %s99, 0
    %s102 = sadd.s32 %s101, 1
    %s103 = scalar_select %p100, %s101, %s102
    %p106 = pneg %p100
    %p107 = scmp.eq.s32.totalorder %s13, 1
    %p108 = por %p106, %p107
    %p109 = scmp.ne.s32.totalorder %s101, %s104
    %p110 = scmp.eq.s32.totalorder %s13, 0
    %p111 = por %p109, %p110
    %p112 = scmp.ne.s32.totalorder %s101, %s104
    %p113 = scmp.eq.s32.totalorder %s18, 1
    %p114 = por %p112, %p113
    %p115 = scmp.ne.s32.totalorder %s104, %s105
    %p116 = scmp.eq.s32.totalorder %s18, 0
    %p117 = por %p115, %p116
    %p118 = scmp.ne.s32.totalorder %s104, %s105
    %p119 = scmp.eq.s32.totalorder %s19, 1
    %p120 = por %p118, %p119
    %p122 = scmp.ne.s32.totalorder %s105, %s121
    %p123 = scmp.eq.s32.totalorder %s19, 0
    %p124 = por %p122, %p123
    %s126 = sadd.s32 %s125, 1
    %p129 = scmp.eq.s32.totalorder %s13, 1
    %p130 = scmp.ne.s32.totalorder %s125, %s127
    %p131 = scmp.eq.s32.totalorder %s13, 0
    %p132 = por %p130, %p131
    %p133 = scmp.ne.s32.totalorder %s125, %s127
    %p134 = scmp.eq.s32.totalorder %s18, 1
    %p135 = por %p133, %p134
    %p136 = scmp.ne.s32.totalorder %s127, %s128
    %p137 = scmp.eq.s32.totalorder %s18, 0
    %p138 = por %p136, %p137
    %p139 = scmp.ne.s32.totalorder %s127, %s128
    %p140 = scmp.eq.s32.totalorder %s19, 1
    %p141 = por %p139, %p140
    %p143 = scmp.ne.s32.totalorder %s128, %s142
    %p144 = scmp.eq.s32.totalorder %s19, 0
    %p145 = por %p143, %p144
    %s147 = sadd.s32 %s146, 1
    %p150 = scmp.eq.s32.totalorder %s13, 1
    %p151 = scmp.ne.s32.totalorder %s146, %s148
    %p152 = scmp.eq.s32.totalorder %s13, 0
    %p153 = por %p151, %p152
    %p154 = scmp.ne.s32.totalorder %s146, %s148
    %p155 = scmp.eq.s32.totalorder %s18, 1
    %p156 = por %p154, %p155
    %p157 = scmp.ne.s32.totalorder %s148, %s149
    %p158 = scmp.eq.s32.totalorder %s18, 0
    %p159 = por %p157, %p158
    %p160 = scmp.ne.s32.totalorder %s148, %s149
    %p161 = scmp.eq.s32.totalorder %s19, 1
    %p162 = por %p160, %p161
    %p164 = scmp.ne.s32.totalorder %s149, %s163
    %p165 = scmp.eq.s32.totalorder %s19, 0
    %p166 = por %p164, %p165
    %s168 = sadd.s32 %s167, 1
    %p171 = scmp.eq.s32.totalorder %s13, 1
    %p172 = scmp.ne.s32.totalorder %s167, %s169
    %p173 = scmp.eq.s32.totalorder %s13, 0
    %p174 = por %p172, %p173
    %p175 = scmp.ne.s32.totalorder %s167, %s169
    %p176 = scmp.eq.s32.totalorder %s18, 1
    %p177 = por %p175, %p176
    %p178 = scmp.ne.s32.totalorder %s169, %s170
    %p179 = scmp.eq.s32.totalorder %s18, 0
    %p180 = por %p178, %p179
    %p181 = scmp.ne.s32.totalorder %s169, %s170
    %p182 = scmp.eq.s32.totalorder %s19, 1
    %p183 = por %p181, %p182
    %p185 = scmp.ne.s32.totalorder %s170, %s184
    %p186 = scmp.eq.s32.totalorder %s19, 0
    %p187 = por %p185, %p186
    %s188 = ssub.s32 %s13, %s20
    %p189 = scmp.eq.s32.totalorder %s188, 0
    %s191 = sadd.s32 %s190, 1
    %s192 = scalar_select %p189, %s190, %s191
    %p195 = pneg %p189
    %p196 = scmp.eq.s32.totalorder %s13, 1
    %p197 = por %p195, %p196
    %p198 = scmp.ne.s32.totalorder %s190, %s193
    %p199 = scmp.eq.s32.totalorder %s13, 0
    %p200 = por %p198, %p199
    %p201 = scmp.ne.s32.totalorder %s190, %s193
    %p202 = scmp.eq.s32.totalorder %s18, 1
    %p203 = por %p201, %p202
    %p204 = scmp.ne.s32.totalorder %s193, %s194
    %p205 = scmp.eq.s32.totalorder %s18, 0
    %p206 = por %p204, %p205
    %p207 = scmp.ne.s32.totalorder %s193, %s194
    %p208 = scmp.eq.s32.totalorder %s19, 1
    %p209 = por %p207, %p208
    %p211 = scmp.ne.s32.totalorder %s194, %s210
    %p212 = scmp.eq.s32.totalorder %s19, 0
    %p213 = por %p211, %p212
    %p214 = scmp.le.s32.totalorder 1, %s13
    %p215 = scmp.lt.s32.totalorder %s13, 3
    %p216 = pnand %p214, %p215
    %p217 = pneg %p216
    // Predicated region
    $region9: #{docqa_forward.19} parent=5 // pred_check
      _
    $region10: #{docqa_forward.19} parent=5 // pred_check_branch
      %219 = sbr.rel (%p216) target = $region12
    $region11: #{docqa_forward.19} parent=5 // pred_region
      %s220 = ssub.s32 %s13, 1
      // Predicated region
      $region13: #{docqa_forward.19} parent=11 // pred_check
        %p221 = pneg %p138
      $region14: #{docqa_forward.19} parent=11 // pred_check_branch
        %223 = sbr.rel (%p221) target = $region16
      $region15: #{docqa_forward.19} parent=11 // pred_region
        _
      $region16: #{docqa_forward.19} parent=11 // pred_fallthru
        _
      // Predicated region
      $region17: #{docqa_forward.19} parent=11 // pred_check
        %p224 = pneg %p159
      $region18: #{docqa_forward.19} parent=11 // pred_check_branch
        %226 = sbr.rel (%p224) target = $region20
      $region19: #{docqa_forward.19} parent=11 // pred_region
        _
      $region20: #{docqa_forward.19} parent=11 // pred_fallthru
        _
      // Predicated region
      $region21: #{docqa_forward.19} parent=11 // pred_check
        %p227 = pneg %p180
      $region22: #{docqa_forward.19} parent=11 // pred_check_branch
        %229 = sbr.rel (%p227) target = $region24
      $region23: #{docqa_forward.19} parent=11 // pred_region
        _
      $region24: #{docqa_forward.19} parent=11 // pred_fallthru
        _
    $region12: #{docqa_forward.19} parent=5 // pred_fallthru
      _
    %p230 = scmp.lt.s32.totalorder %s13, 2
    // Predicated region
    $region25: #{docqa_forward.19} parent=5 // pred_check
      %p231 = pneg %p230
    $region26: #{docqa_forward.19} parent=5 // pred_check_branch
      %233 = sbr.rel (%p231) target = $region28
    $region27: #{docqa_forward.19} parent=5 // pred_region
      // Predicated region
      $region29: #{docqa_forward.19} parent=27 // pred_check
        %p234 = pneg %p33
      $region30: #{docqa_forward.19} parent=27 // pred_check_branch
        %236 = sbr.rel (%p234) target = $region32
      $region31: #{docqa_forward.19} parent=27 // pred_region
        %p237 = scmp.lt.s32.totalorder %s13, 1
        %s238 = scalar_select %p237, %s13, 1
        %s239 = smul.addr %s238, 2
        %s240 = smul.addr %s239, 8
        %s241 = scalar_lea.vmem %s0, %s240
      $region32: #{docqa_forward.19} parent=27 // pred_fallthru
        _
      // Predicated region
      $region33: #{docqa_forward.19} parent=27 // pred_check
        %p242 = pneg %p59
      $region34: #{docqa_forward.19} parent=27 // pred_check_branch
        %244 = sbr.rel (%p242) target = $region36
      $region35: #{docqa_forward.19} parent=27 // pred_region
        %p245 = scmp.lt.s32.totalorder %s13, 1
        %s246 = scalar_select %p245, %s13, 1
        %s247 = smul.addr %s246, 2
        %s248 = smul.addr %s247, 8
        %s249 = scalar_lea.vmem %s1, %s248
      $region36: #{docqa_forward.19} parent=27 // pred_fallthru
        _
      // Predicated region
      $region37: #{docqa_forward.19} parent=27 // pred_check
        %p250 = pneg %p85
      $region38: #{docqa_forward.19} parent=27 // pred_check_branch
        %252 = sbr.rel (%p250) target = $region40
      $region39: #{docqa_forward.19} parent=27 // pred_region
        %p253 = scmp.lt.s32.totalorder %s13, 1
        %s254 = scalar_select %p253, %s13, 1
        %s255 = smul.addr %s254, 2
        %s256 = smul.addr %s255, 8
        %s257 = scalar_lea.vmem %s2, %s256
      $region40: #{docqa_forward.19} parent=27 // pred_fallthru
        _
      // Predicated region
      $region41: #{docqa_forward.19} parent=27 // pred_check
        %p258 = pneg %p111
      $region42: #{docqa_forward.19} parent=27 // pred_check_branch
        %260 = sbr.rel (%p258) target = $region44
      $region43: #{docqa_forward.19} parent=27 // pred_region
        %p261 = scmp.lt.s32.totalorder %s13, 1
        %s262 = scalar_select %p261, %s13, 1
        %s263 = scalar_lea.vmem %s3, %s262
      $region44: #{docqa_forward.19} parent=27 // pred_fallthru
        _
    $region28: #{docqa_forward.19} parent=5 // pred_fallthru
      _
    %p264 = scmp.le.s32.totalorder 1, %s13
    %p265 = scmp.lt.s32.totalorder %s13, 3
    %p266 = pnand %p264, %p265
    %p267 = pneg %p266
    // Predicated region
    $region45: #{docqa_forward.19} parent=5 // pred_check
      _
    $region46: #{docqa_forward.19} parent=5 // pred_check_branch
      %269 = sbr.rel (%p266) target = $region48
    $region47: #{docqa_forward.19} parent=5 // pred_region
      %s270 = ssub.s32 %s13, 1
      %p271 = scmp.lt.s32.totalorder %s18, 1
      %s272 = scalar_select %p271, %s18, 1
      %s273 = smul.addr %s272, 2
      %s274 = smul.addr %s273, 8
      %s275 = scalar_lea.vmem %s0, %s274
      %p276 = pneg %p39
      %p277 = pneg %p36
      %p278 = scmp.lt.s32.totalorder %s18, 1
      %s279 = scalar_select %p278, %s18, 1
      %s280 = smul.addr %s279, 2
      %s281 = smul.addr %s280, 8
      %s282 = scalar_lea.vmem %s1, %s281
      %p283 = pneg %p65
      %p284 = pneg %p62
      %p285 = scmp.lt.s32.totalorder %s18, 1
      %s286 = scalar_select %p285, %s18, 1
      %s287 = smul.addr %s286, 2
      %s288 = smul.addr %s287, 8
      %s289 = scalar_lea.vmem %s2, %s288
      %p290 = pneg %p91
      %p291 = pneg %p88
      %p292 = scmp.lt.s32.totalorder %s18, 1
      %s293 = scalar_select %p292, %s18, 1
      %s294 = scalar_lea.vmem %s3, %s293
      %p295 = pneg %p117
      %p296 = pneg %p114
      %p297 = pneg %p138
      %p298 = pneg %p135
      %p299 = pneg %p159
      %p300 = pneg %p156
      %p301 = pneg %p180
      %p302 = pneg %p177
      %p303 = pneg %p206
      %p304 = pneg %p203
      %p305 = scmp.lt.s32.totalorder %s18, 1
      %s306 = scalar_select %p305, %s18, 1
      %s307 = smul.addr %s306, 2
      %s308 = smul.addr %s307, 8
      %s309 = scalar_lea.vmem %s7, %s308
      %p310 = scmp.lt.s32.totalorder %s18, 1
      %s311 = scalar_select %p310, %s18, 1
      %s312 = smul.addr %s311, 2
      %s313 = smul.addr %s312, 8
      %s314 = scalar_lea.vmem %s0, %s313
      %p315 = scmp.lt.s32.totalorder %s18, 1
      %s316 = scalar_select %p315, %s18, 1
      %s317 = smul.addr %s316, 2
      %s318 = smul.addr %s317, 8
      %s319 = scalar_lea.vmem %s1, %s318
      %p320 = scmp.lt.s32.totalorder %s18, 1
      %s321 = scalar_select %p320, %s18, 1
      %s322 = smul.addr %s321, 2
      %s323 = smul.addr %s322, 8
      %s324 = scalar_lea.vmem %s2, %s323
      %p325 = scmp.lt.s32.totalorder %s18, 1
      %s326 = scalar_select %p325, %s18, 1
      %s327 = scalar_lea.vmem %s3, %s326
      %p328 = scmp.lt.s32.totalorder %s18, 1
      %s329 = scalar_select %p328, %s18, 1
      %s330 = smul.addr %s329, 2
      %s331 = smul.addr %s330, 8
      %s332 = scalar_lea.vmem %s7, %s331
      %v333 = vld [vmem:[%s314] sm:$0xff]
      %v334 = vld [vmem:[%s314 + $0x8] sm:$0xf]
      %v335 = vld [vmem:[%s319] sm:$0xff]
      %v336 = vld [vmem:[%s319 + $0x8] sm:$0xf]
      %v337 = vld [vmem:[%s327] sm:$0x1]
      %v338 = vld [vmem:[%s4] sm:$0x1]
      %v339 = vld [vmem:[%s5] sm:$0x1]
      %v340 = vld [vmem:[%s6] sm:$0x1]
      %v342 = vperm.slane %v338, 0
      %v344 = vmul.f32 %v333, %v342
      %v345 = vmul.f32 %v334, %v342
      %vm346 = vcmask 261120
      %v347 = vsel %vm346, %v344, 0.0
      %348 = vadd.xlane.f32.xlu0 %v347
      %v349 = vpop.xlane.xlu0 %348
      %vm350 = vcmask 257024
      %v351 = vsel %vm350, %v345, 0.0
      %352 = vadd.xlane.f32.xlu0 %v351
      %v353 = vpop.xlane.xlu0 %352
      %v355 = vsel %vm346, %v339, 0
      %v358 = vsel %vm346, %v335, 0
      %v361 = vsel %vm346, %v336, 0
      %363 = vmatpush.xpose.msra.mxu0 0.0
      %364 = vmatpush.xpose.msra.mxu0 0.0
      %365 = vmatpush.xpose.msra.mxu0 0.0
      %366 = vmatpush.xpose.msra.mxu0 0.0
      %367 = vmatpush.xpose.msra.mxu0 0.0
      %368 = vmatpush.xpose.msra.mxu0 0.0
      %369 = vmatpush.xpose.msra.mxu0 0.0
      %370 = vmatpush.xpose.msra.mxu0 0.0
      %371 = vmatpush.xpose.msra.mxu0 0.0
      %372 = vmatpush.xpose.msra.mxu0 0.0
      %373 = vmatpush.xpose.msra.mxu0 0.0
      %374 = vmatpush.xpose.msra.mxu0 0.0
      %375 = vmatpush.xpose.msra.mxu0 0.0
      %376 = vmatpush.xpose.msra.mxu0 0.0
      %377 = vmatpush.xpose.msra.mxu0 %v361
      %378 = vmatpush.xpose.msra.mxu0 %v358
      %379 = vmatmul.f32.gmra.mxu0 %v355
      %v380 = vpop.f32.mrf.mxu0
      %v381 = vadd.f32 0.0, %v380
      %382 = vdwg.mxu0
      %v384 = vperm.slane %v340, 0
      %v386 = vmul.f32 %v333, %v384
      %v387 = vmul.f32 %v334, %v384
      %v389 = vsel %vm346, %v386, 0
      %v392 = vsel %vm346, %v387, 0
      %394 = vmatpush.xpose.msra.mxu0 0.0
      %395 = vmatpush.xpose.msra.mxu0 0.0
      %396 = vmatpush.xpose.msra.mxu0 0.0
      %397 = vmatpush.xpose.msra.mxu0 0.0
      %398 = vmatpush.xpose.msra.mxu0 0.0
      %399 = vmatpush.xpose.msra.mxu0 0.0
      %400 = vmatpush.xpose.msra.mxu0 0.0
      %401 = vmatpush.xpose.msra.mxu0 0.0
      %402 = vmatpush.xpose.msra.mxu0 0.0
      %403 = vmatpush.xpose.msra.mxu0 0.0
      %404 = vmatpush.xpose.msra.mxu0 0.0
      %405 = vmatpush.xpose.msra.mxu0 0.0
      %406 = vmatpush.xpose.msra.mxu0 0.0
      %407 = vmatpush.xpose.msra.mxu0 0.0
      %408 = vmatpush.xpose.msra.mxu0 %v361
      %409 = vmatpush.xpose.msra.mxu0 %v358
      %410 = vmatmul.f32.gmra.mxu0 %v389
      %v411 = vpop.f32.mrf.mxu0
      %v412 = vadd.f32 0.0, %v411
      %413 = vmatmul.f32.gmra.mxu0 %v392
      %v414 = vpop.f32.mrf.mxu0
      %v415 = vadd.f32 0.0, %v414
      %416 = vdwg.mxu0
      %v417 = vperm.slane %v381, 0
      %v418 = vadd.f32 %v349, %v417
      %v419 = vadd.f32 %v353, %v417
      %v420 = vadd.f32 %v418, %v412
      %v421 = vadd.f32 %v419, %v415
      %vm422 = vcmp.gt.f32.partialorder %v337, 0.5
      %v423 = vsel %vm422, 1, 0
      %v424 = vperm.slane %v423, 0
      %vm425 = vcmp.eq.s32.totalorder %v424, 1
      %v426 = vsel %vm425, -1e+09, %v420
      %v427 = vsel %vm425, -1e+09, %v421
      %vm428 = vcmask 97280
      %v429 = vsel %vm428, %v426, -inf
      %430 = vmax.xlane.f32.xlu0 %v429
      %v431 = vpop.xlane.xlu0 %430
      %vm432 = vcmask 93184
      %v433 = vsel %vm432, %v427, -inf
      %434 = vmax.xlane.f32.xlu0 %v433
      %v435 = vpop.xlane.xlu0 %434
      %v436 = vsub.f32 %v426, %v431
      %v437 = vsub.f32 %v427, %v435
      %v438 = vmul.f32 %v436, 1.442695
      %v439 = vpow.pop %v438
      %v440 = vmul.f32 %v437, 1.442695
      %v441 = vpow.pop %v440
      %v442 = vsel %vm428, %v439, 0.0
      %443 = vadd.xlane.f32.xlu0 %v442
      %v444 = vpop.xlane.xlu0 %443
      %v445 = vsel %vm432, %v441, 0.0
      %446 = vadd.xlane.f32.xlu0 %v445
      %v447 = vpop.xlane.xlu0 %446
      %v448 = vrcp.pop %v444
      %v449 = vmul.f32 %v444, %v448
      %v450 = vsub.f32 1.0, %v449
      %v451 = vmul.f32 %v448, %v450
      %v452 = vadd.f32 %v448, %v451
      %vm453 = vweird.f32 %v444
      %vm454 = vweird.f32 %v448
      %vm455 = vmor %vm453, %vm454
      %v456 = vsel %vm455, %v448, %v452
      %v457 = vand.u32 2147483647, %v444
      %vm458 = vcmp.eq.f32.partialorder %v457, 8.507059e+37
      %v459 = vand.u32 %v444, 2147483648
      %v460 = vor.u32 1.1754944e-38, %v459
      %v461 = vsel %vm458, %v460, %v456
      %v462 = vmul.f32 %v439, %v461
      %v463 = vrcp.pop %v447
      %v464 = vmul.f32 %v447, %v463
      %v465 = vsub.f32 1.0, %v464
      %v466 = vmul.f32 %v463, %v465
      %v467 = vadd.f32 %v463, %v466
      %vm468 = vweird.f32 %v447
      %vm469 = vweird.f32 %v463
      %vm470 = vmor %vm468, %vm469
      %v471 = vsel %vm470, %v463, %v467
      %v472 = vand.u32 2147483647, %v447
      %vm473 = vcmp.eq.f32.partialorder %v472, 8.507059e+37
      %v474 = vand.u32 %v447, 2147483648
      %v475 = vor.u32 1.1754944e-38, %v474
      %v476 = vsel %vm473, %v475, %v471
      %v477 = vmul.f32 %v441, %v476
      %v479 = vsel %vm428, %v462, 0
      %v482 = vsel %vm428, %v477, 0
      %vm484 = vcmask 1043456
      %v485 = vsel %vm484, %v336, 0
      %487 = vmatpush.msra.mxu0 0.0
      %488 = vmatpush.msra.mxu0 0.0
      %489 = vmatpush.msra.mxu0 0.0
      %490 = vmatpush.msra.mxu0 0.0
      %491 = vmatpush.msra.mxu0 0.0
      %492 = vmatpush.msra.mxu0 0.0
      %493 = vmatpush.msra.mxu0 0.0
      %494 = vmatpush.msra.mxu0 0.0
      %495 = vmatpush.msra.mxu0 0.0
      %496 = vmatpush.msra.mxu0 0.0
      %497 = vmatpush.msra.mxu0 0.0
      %498 = vmatpush.msra.mxu0 0.0
      %499 = vmatpush.msra.mxu0 0.0
      %500 = vmatpush.msra.mxu0 0.0
      %501 = vmatpush.msra.mxu0 %v485
      %502 = vmatpush.msra.mxu0 %v335
      %503 = vmatmul.f32.gmra.mxu0 %v479
      %v504 = vpop.f32.mrf.mxu0
      %v505 = vadd.f32 0.0, %v504
      %506 = vmatmul.f32.gmra.mxu0 %v482
      %v507 = vpop.f32.mrf.mxu0
      %v508 = vadd.f32 0.0, %v507
      %509 = vdwg.mxu0
      %510 = vst.msk [vmem:[%s332] sm:$0xff] %vm346, %v333
      %511 = vst.msk [vmem:[%s332 + $0x8] sm:$0xf] %vm350, %v334
      %514 = vrot.lane.b32.xlu0 %v505, 32
      %v515 = vpop.permute.xlu0 %514
      %516 = vrot.lane.b32.xlu0 %v508, 32
      %v517 = vpop.permute.xlu0 %516
      %vm520 = vcmask 523520
      %521 = vst.msk [vmem:[%s332] sm:$0xff] %vm520, %v515
      %vm522 = vcmask 519424
      %523 = vst.msk [vmem:[%s332 + $0x8] sm:$0xf] %vm522, %v517
      %v524 = vmul.f32 %v333, %v505
      %v525 = vmul.f32 %v334, %v508
      %528 = vrot.lane.b32.xlu0 %v524, 64
      %v529 = vpop.permute.xlu0 %528
      %530 = vrot.lane.b32.xlu0 %v525, 64
      %v531 = vpop.permute.xlu0 %530
      %vm534 = vcmask 785920
      %535 = vst.msk [vmem:[%s332] sm:$0xff] %vm534, %v529
      %vm536 = vcmask 781824
      %537 = vst.msk [vmem:[%s332 + $0x8] sm:$0xf] %vm536, %v531
      %p538 = scmp.lt.s32.totalorder %s18, 1
      %s539 = scalar_select %p538, %s18, 1
      %s540 = smul.addr %s539, 2
      %s541 = smul.addr %s540, 8
      %s542 = scalar_lea.vmem %s7, %s541
      // Predicated region
      $region49: #{docqa_forward.19} parent=47 // pred_check
        %p543 = pneg %p203
      $region50: #{docqa_forward.19} parent=47 // pred_check_branch
        %545 = sbr.rel (%p543) target = $region52
      $region51: #{docqa_forward.19} parent=47 // pred_region
        _
      $region52: #{docqa_forward.19} parent=47 // pred_fallthru
        _
    $region48: #{docqa_forward.19} parent=5 // pred_fallthru
      _
    %p546 = scmp.le.s32.totalorder 2, %s13
    // Predicated region
    $region53: #{docqa_forward.19} parent=5 // pred_check
      %p547 = pneg %p546
    $region54: #{docqa_forward.19} parent=5 // pred_check_branch
      %549 = sbr.rel (%p547) target = $region56
    $region55: #{docqa_forward.19} parent=5 // pred_region
      %s550 = ssub.s32 %s13, 2
      // Predicated region
      $region57: #{docqa_forward.19} parent=55 // pred_check
        %p551 = pneg %p209
      $region58: #{docqa_forward.19} parent=55 // pred_check_branch
        %553 = sbr.rel (%p551) target = $region60
      $region59: #{docqa_forward.19} parent=55 // pred_region
        %p554 = scmp.lt.s32.totalorder %s19, 1
        %s555 = scalar_select %p554, %s19, 1
        %s556 = smul.addr %s555, 2
        %s557 = smul.addr %s556, 8
        %s558 = scalar_lea.vmem %s7, %s557
      $region60: #{docqa_forward.19} parent=55 // pred_fallthru
        _
    $region56: #{docqa_forward.19} parent=5 // pred_fallthru
      _
  $region6: #{docqa_forward.19} parent=0 // loop_footer
    %s17 = sadd.s32 1, %s13
  $region7: #{docqa_forward.19} parent=0 // loop_footer_branch
    %12 = sbr.rel target = $region3
  $region8: #{docqa_forward.19} parent=0 // loop_exit
    _

// kernel: docqa_forward.18
$region0: #{docqa_forward.18}
  #allocation0 [shape = 'u32[]', space=smem, size = 0x4, offset = 0x4, fixed_abs, tag = 'smem constant byte address 0x4 - core index']
  #allocation1 [shape = 'u32[72,128]{1,0:T(1,128)}', space=vmem, size = 0x9000, scoped, tag = 'internal scratch']
  #allocation2 [shape = 'f32[2,16]{1,0:T(2,128)}', space=vmem, size = 0x400, scoped, tag = 'scratch operand']
  #allocation3 [shape = 'f32[2,16]{1,0:T(2,128)}', space=vmem, size = 0x400, scoped, tag = 'scratch operand']
  %s0 = inlined_call_operand.vmem [shape: f32[12,2,32], index: 0, kind: input, shape index: {}]
  %s1 = inlined_call_operand.vmem [shape: f32[32,48], index: 1, kind: input, shape index: {}]
  %s2 = inlined_call_operand.vmem [shape: f32[1,48], index: 2, kind: input, shape index: {}]
  %s3 = inlined_call_operand.vmem [shape: f32[16,48], index: 3, kind: input, shape index: {}]
  %s4 = inlined_call_operand.vmem [shape: f32[1,48], index: 4, kind: input, shape index: {}]
  %s5 = inlined_call_operand.vmem [shape: f32[32,48], index: 5, kind: input, shape index: {}]
  %s6 = inlined_call_operand.vmem [shape: f32[1,48], index: 6, kind: input, shape index: {}]
  %s7 = inlined_call_operand.vmem [shape: f32[16,48], index: 7, kind: input, shape index: {}]
  %s8 = inlined_call_operand.vmem [shape: f32[1,48], index: 8, kind: input, shape index: {}]
  %s9 = inlined_call_operand.vmem [shape: f32[12,2,16], index: 9, kind: output, shape index: {0}]
  %s10 = inlined_call_operand.vmem [shape: f32[12,2,16], index: 10, kind: output, shape index: {1}]
  %11 = xla_tuple %s9, %s10
  %s12 = sld [smem:[#allocation0]]
  $region61: #{docqa_forward.18} parent=0
    _
  %s14 = ssub.s32 1, %s12
  %s15 = scalar_select 0, %s14, %s12
  // Predicated region
  $region2: #{docqa_forward.18} parent=0 // pred_check
    _
  $region3: #{docqa_forward.18} parent=0 // pred_check_branch
    %17 = sbr.rel (0) target = $region5
  $region4: #{docqa_forward.18} parent=0 // pred_region
    _
  $region5: #{docqa_forward.18} parent=0 // pred_fallthru
    _
  // Predicated region
  $region6: #{docqa_forward.18} parent=0 // pred_check
    _
  $region7: #{docqa_forward.18} parent=0 // pred_check_branch
    %19 = sbr.rel (0) target = $region9
  $region8: #{docqa_forward.18} parent=0 // pred_region
    _
  $region9: #{docqa_forward.18} parent=0 // pred_fallthru
    _
  // Predicated region
  $region10: #{docqa_forward.18} parent=0 // pred_check
    _
  $region11: #{docqa_forward.18} parent=0 // pred_check_branch
    %21 = sbr.rel (0) target = $region13
  $region12: #{docqa_forward.18} parent=0 // pred_region
    _
  $region13: #{docqa_forward.18} parent=0 // pred_fallthru
    _
  // Predicated region
  $region14: #{docqa_forward.18} parent=0 // pred_check
    _
  $region15: #{docqa_forward.18} parent=0 // pred_check_branch
    %23 = sbr.rel (0) target = $region17
  $region16: #{docqa_forward.18} parent=0 // pred_region
    _
  $region17: #{docqa_forward.18} parent=0 // pred_fallthru
    _
  // Predicated region
  $region18: #{docqa_forward.18} parent=0 // pred_check
    _
  $region19: #{docqa_forward.18} parent=0 // pred_check_branch
    %25 = sbr.rel (0) target = $region21
  $region20: #{docqa_forward.18} parent=0 // pred_region
    _
  $region21: #{docqa_forward.18} parent=0 // pred_fallthru
    _
  // Predicated region
  $region22: #{docqa_forward.18} parent=0 // pred_check
    _
  $region23: #{docqa_forward.18} parent=0 // pred_check_branch
    %27 = sbr.rel (0) target = $region25
  $region24: #{docqa_forward.18} parent=0 // pred_region
    _
  $region25: #{docqa_forward.18} parent=0 // pred_fallthru
    _
  // Predicated region
  $region26: #{docqa_forward.18} parent=0 // pred_check
    _
  $region27: #{docqa_forward.18} parent=0 // pred_check_branch
    %29 = sbr.rel (0) target = $region29
  $region28: #{docqa_forward.18} parent=0 // pred_region
    _
  $region29: #{docqa_forward.18} parent=0 // pred_fallthru
    _
  // Predicated region
  $region30: #{docqa_forward.18} parent=0 // pred_check
    _
  $region31: #{docqa_forward.18} parent=0 // pred_check_branch
    %31 = sbr.rel (0) target = $region33
  $region32: #{docqa_forward.18} parent=0 // pred_region
    _
  $region33: #{docqa_forward.18} parent=0 // pred_fallthru
    _
  // Predicated region
  $region34: #{docqa_forward.18} parent=0 // pred_check
    _
  $region35: #{docqa_forward.18} parent=0 // pred_check_branch
    %33 = sbr.rel (0) target = $region37
  $region36: #{docqa_forward.18} parent=0 // pred_region
    _
  $region37: #{docqa_forward.18} parent=0 // pred_fallthru
    _
  %vm35 = vcmask 123904
  %36 = vst.msk [vmem:[#allocation2] sm:$0x3] %vm35, 0.0
  %37 = vst.msk [vmem:[#allocation3] sm:$0x3] %vm35, 0.0
  %v38 = vld [vmem:[%s1] sm:$0xff]
  %v39 = vld [vmem:[%s1 + $0x8] sm:$0xff]
  %v40 = vld [vmem:[%s1 + $0x10] sm:$0xff]
  %v41 = vld [vmem:[%s1 + $0x18] sm:$0xff]
  %v42 = vpack.c.bf16 %v39, %v38
  %v43 = vpack.c.bf16 %v41, %v40
  %v44 = vld [vmem:[%s5] sm:$0xff]
  %v45 = vld [vmem:[%s5 + $0x8] sm:$0xff]
  %v46 = vld [vmem:[%s5 + $0x10] sm:$0xff]
  %v47 = vld [vmem:[%s5 + $0x18] sm:$0xff]
  %v48 = vpack.c.bf16 %v45, %v44
  %v49 = vpack.c.bf16 %v47, %v46
  %v50 = vld [vmem:[%s3] sm:$0xff]
  %v51 = vld [vmem:[%s3 + $0x8] sm:$0xff]
  %v52 = vld [vmem:[%s7] sm:$0xff]
  %v53 = vld [vmem:[%s7 + $0x8] sm:$0xff]
  %v54 = vld [vmem:[%s2] sm:$0x1]
  %v55 = vld [vmem:[%s6] sm:$0x1]
  %v56 = vld [vmem:[%s4] sm:$0x1]
  %v57 = vld [vmem:[%s8] sm:$0x1]
  loop: start=0, step=1, limit=12
  $region38: #{docqa_forward.18} parent=0 // loop_pre_header
    _
  $region39: #{docqa_forward.18} parent=0 // loop_header
    %s59 = sphi 0, %s63
    %p60 = scmp.ge.s32.totalorder %s59, 12
  $region40: #{docqa_forward.18} parent=0 // loop_header_branch
    %62 = sbr.rel (%p60) target = $region44
  $region41: #{docqa_forward.18} parent=0 // loop_body
    %s64 = ssub.s32 11, %s59
    %s65 = smul.u32 %s59, 2
    %s66 = scalar_lea.vmem %s0, %s65
    %v67 = vld [vmem:[%s66] sm:$0x3]
    %v68 = vpack.c.bf16 %v67, %v67
    %v70 = vperm.slane %v54, 0
    %vm72 = vcmask 261120
    %v74 = vsel %vm72, %v68, 0
    %76 = vmatpush.bf16.msra.mxu0 0
    %77 = vmatpush.bf16.msra.mxu0 0
    %78 = vmatpush.bf16.msra.mxu0 0
    %79 = vmatpush.bf16.msra.mxu0 0
    %80 = vmatpush.bf16.msra.mxu0 0
    %81 = vmatpush.bf16.msra.mxu0 0
    %82 = vmatpush.bf16.msra.mxu0 %v43
    %83 = vmatpush.bf16.msra.mxu0 %v42
    %84 = vmatmul.bf16.gmra.mxu0 %v74
    %v85 = vpop.f32.mrf.mxu0
    %v86 = vadd.f32 %v70, %v85
    %v87 = vpop.f32.mrf.mxu0
    %88 = vdwg.mxu0
    %s89 = smul.u32 %s64, 2
    %s90 = scalar_lea.vmem %s0, %s89
    %v91 = vld [vmem:[%s90] sm:$0x3]
    %v92 = vpack.c.bf16 %v91, %v91
    %v94 = vperm.slane %v55, 0
    %v97 = vsel %vm72, %v92, 0
    %99 = vmatpush.bf16.msra.mxu0 0
    %100 = vmatpush.bf16.msra.mxu0 0
    %101 = vmatpush.bf16.msra.mxu0 0
    %102 = vmatpush.bf16.msra.mxu0 0
    %103 = vmatpush.bf16.msra.mxu0 0
    %104 = vmatpush.bf16.msra.mxu0 0
    %105 = vmatpush.bf16.msra.mxu0 %v49
    %106 = vmatpush.bf16.msra.mxu0 %v48
    %107 = vmatmul.bf16.gmra.mxu0 %v97
    %v108 = vpop.f32.mrf.mxu0
    %v109 = vadd.f32 %v94, %v108
    %v110 = vpop.f32.mrf.mxu0
    %111 = vdwg.mxu0
    %v112 = vld [vmem:[#allocation2] sm:$0x3]
    %v114 = vperm.slane %v56, 0
    %vm116 = vcmask 130048
    %v118 = vsel %vm116, %v112, 0
    %120 = vmatpush.msra.mxu0 0.0
    %121 = vmatpush.msra.mxu0 0.0
    %122 = vmatpush.msra.mxu0 0.0
    %123 = vmatpush.msra.mxu0 0.0
    %124 = vmatpush.msra.mxu0 0.0
    %125 = vmatpush.msra.mxu0 0.0
    %126 = vmatpush.msra.mxu0 0.0
    %127 = vmatpush.msra.mxu0 0.0
    %128 = vmatpush.msra.mxu0 0.0
    %129 = vmatpush.msra.mxu0 0.0
    %130 = vmatpush.msra.mxu0 0.0
    %131 = vmatpush.msra.mxu0 0.0
    %132 = vmatpush.msra.mxu0 0.0
    %133 = vmatpush.msra.mxu0 0.0
    %134 = vmatpush.msra.mxu0 %v51
    %135 = vmatpush.msra.mxu0 %v50
    %136 = vmatmul.f32.gmra.mxu0 %v118
    %v137 = vpop.f32.mrf.mxu0
    %v138 = vadd.f32 %v114, %v137
    %139 = vdwg.mxu0
    %v140 = vadd.f32 %v86, %v138
    %v141 = vxor.u32 %v140, 2147483648
    %v142 = vmul.f32 %v141, 1.442695
    %v143 = vpow.pop %v142
    %v144 = vadd.f32 %v143, 1.0
    %v145 = vrcp.pop %v144
    %v146 = vmul.f32 %v144, %v145
    %v147 = vsub.f32 1.0, %v146
    %v148 = vmul.f32 %v145, %v147
    %v149 = vadd.f32 %v145, %v148
    %vm150 = vweird.f32 %v144
    %vm151 = vweird.f32 %v145
    %vm152 = vmor %vm150, %vm151
    %v153 = vsel %vm152, %v145, %v149
    %v154 = vand.u32 2147483647, %v144
    %vm155 = vcmp.eq.f32.partialorder %v154, 8.507059e+37
    %v156 = vand.u32 %v144, 2147483648
    %v157 = vor.u32 1.1754944e-38, %v156
    %v158 = vsel %vm155, %v157, %v153
    %v159 = vmul.f32 1.0, %v158
    %161 = vrot.lane.b32.xlu0 %v138, 96
    %v162 = vpop.permute.xlu0 %161
    %v164 = vmul.f32 %v159, %v162
    %166 = vrot.lane.b32.xlu0 %v164, 32
    %v167 = vpop.permute.xlu0 %166
    %v169 = vadd.f32 %v86, %v167
    %v170 = vtanh.pop %v169
    %v171 = vsub.f32 1.0, %v159
    %173 = vrot.lane.b32.xlu0 %v170, 112
    %v174 = vpop.permute.xlu0 %173
    %v176 = vmul.f32 %v171, %v174
    %177 = vrot.lane.b32.xlu0 %v112, 16
    %v178 = vpop.permute.xlu0 %177
    %v180 = vmul.f32 %v159, %v178
    %v181 = vadd.f32 %v176, %v180
    %v182 = vld [vmem:[#allocation3] sm:$0x3]
    %v184 = vperm.slane %v57, 0
    %v187 = vsel %vm116, %v182, 0
    %189 = vmatpush.msra.mxu0 0.0
    %190 = vmatpush.msra.mxu0 0.0
    %191 = vmatpush.msra.mxu0 0.0
    %192 = vmatpush.msra.mxu0 0.0
    %193 = vmatpush.msra.mxu0 0.0
    %194 = vmatpush.msra.mxu0 0.0
    %195 = vmatpush.msra.mxu0 0.0
    %196 = vmatpush.msra.mxu0 0.0
    %197 = vmatpush.msra.mxu0 0.0
    %198 = vmatpush.msra.mxu0 0.0
    %199 = vmatpush.msra.mxu0 0.0
    %200 = vmatpush.msra.mxu0 0.0
    %201 = vmatpush.msra.mxu0 0.0
    %202 = vmatpush.msra.mxu0 0.0
    %203 = vmatpush.msra.mxu0 %v53
    %204 = vmatpush.msra.mxu0 %v52
    %205 = vmatmul.f32.gmra.mxu0 %v187
    %v206 = vpop.f32.mrf.mxu0
    %v207 = vadd.f32 %v184, %v206
    %208 = vdwg.mxu0
    %v209 = vadd.f32 %v109, %v207
    %v210 = vxor.u32 %v209, 2147483648
    %v211 = vmul.f32 %v210, 1.442695
    %v212 = vpow.pop %v211
    %v213 = vadd.f32 %v212, 1.0
    %v214 = vrcp.pop %v213
    %v215 = vmul.f32 %v213, %v214
    %v216 = vsub.f32 1.0, %v215
    %v217 = vmul.f32 %v214, %v216
    %v218 = vadd.f32 %v214, %v217
    %vm219 = vweird.f32 %v213
    %vm220 = vweird.f32 %v214
    %vm221 = vmor %vm219, %vm220
    %v222 = vsel %vm221, %v214, %v218
    %v223 = vand.u32 2147483647, %v213
    %vm224 = vcmp.eq.f32.partialorder %v223, 8.507059e+37
    %v225 = vand.u32 %v213, 2147483648
    %v226 = vor.u32 1.1754944e-38, %v225
    %v227 = vsel %vm224, %v226, %v222
    %v228 = vmul.f32 1.0, %v227
    %230 = vrot.lane.b32.xlu0 %v207, 96
    %v231 = vpop.permute.xlu0 %230
    %v233 = vmul.f32 %v228, %v231
    %235 = vrot.lane.b32.xlu0 %v233, 32
    %v236 = vpop.permute.xlu0 %235
    %v238 = vadd.f32 %v109, %v236
    %v239 = vtanh.pop %v238
    %v240 = vsub.f32 1.0, %v228
    %242 = vrot.lane.b32.xlu0 %v239, 112
    %v243 = vpop.permute.xlu0 %242
    %v245 = vmul.f32 %v240, %v243
    %246 = vrot.lane.b32.xlu0 %v182, 16
    %v247 = vpop.permute.xlu0 %246
    %v249 = vmul.f32 %v228, %v247
    %v250 = vadd.f32 %v245, %v249
    %252 = vrot.lane.b32.xlu0 %v181, 112
    %v253 = vpop.permute.xlu0 %252
    %255 = vst.msk [vmem:[#allocation2] sm:$0x3] %vm35, %v253
    %257 = vrot.lane.b32.xlu0 %v250, 112
    %v258 = vpop.permute.xlu0 %257
    %260 = vst.msk [vmem:[#allocation3] sm:$0x3] %vm35, %v258
    %s261 = scalar_lea.vmem %s9, %s65
    %262 = vst.msk [vmem:[%s261] sm:$0x3] %vm35, %v253
    %s263 = scalar_lea.vmem %s10, %s89
    %264 = vst.msk [vmem:[%s263] sm:$0x3] %vm35, %v258
  $region42: #{docqa_forward.18} parent=0 // loop_footer
    %s63 = sadd.s32 1, %s59
  $region43: #{docqa_forward.18} parent=0 // loop_footer_branch
    %58 = sbr.rel target = $region39
  $region44: #{docqa_forward.18} parent=0 // loop_exit
    _
  // Predicated region
  $region45: #{docqa_forward.18} parent=0 // pred_check
    _
  $region46: #{docqa_forward.18} parent=0 // pred_check_branch
    %266 = sbr.rel (0) target = $region48
  $region47: #{docqa_forward.18} parent=0 // pred_region
    _
  $region48: #{docqa_forward.18} parent=0 // pred_fallthru
    _
  // Predicated region
  $region49: #{docqa_forward.18} parent=0 // pred_check
    _
  $region50: #{docqa_forward.18} parent=0 // pred_check_branch
    %268 = sbr.rel (0) target = $region52
  $region51: #{docqa_forward.18} parent=0 // pred_region
    _
  $region52: #{docqa_forward.18} parent=0 // pred_fallthru
    _
  // Predicated region
  $region53: #{docqa_forward.18} parent=0 // pred_check
    _
  $region54: #{docqa_forward.18} parent=0 // pred_check_branch
    %270 = sbr.rel (0) target = $region56
  $region55: #{docqa_forward.18} parent=0 // pred_region
    _
  $region56: #{docqa_forward.18} parent=0 // pred_fallthru
    _
  // Predicated region
  $region57: #{docqa_forward.18} parent=0 // pred_check
    _
  $region58: #{docqa_forward.18} parent=0 // pred_check_branch
    %272 = sbr.rel (0) target = $region60
  $region59: #{docqa_forward.18} parent=0 // pred_region
    _
  $region60: #{docqa_forward.18} parent=0 // pred_fallthru
    _

// kernel: docqa_forward.20
$region0: #{docqa_forward.20}
  #allocation0 [shape = 'u32[]', space=smem, size = 0x4, offset = 0x4, fixed_abs, tag = 'smem constant byte address 0x4 - core index']
  #allocation1 [shape = 'u32[72,128]{1,0:T(1,128)}', space=vmem, size = 0x9000, scoped, tag = 'internal scratch']
  #allocation2 [shape = 'f32[24,32]{1,0:T(8,128)}', space=vmem, size = 0x3000, scoped, tag = 'scratch operand']
  %s0 = inlined_call_operand.vmem [shape: f32[24,96], index: 0, kind: input, shape index: {}]
  %s1 = inlined_call_operand.vmem [shape: f32[96,32], index: 1, kind: input, shape index: {}]
  %s2 = inlined_call_operand.vmem [shape: f32[1,32], index: 2, kind: input, shape index: {}]
  %s3 = inlined_call_operand.vmem [shape: f32[24,32], index: 3, kind: output, shape index: {}]
  %s4 = sld [smem:[#allocation0]]
  $region30: #{docqa_forward.20} parent=0
    _
  %s6 = ssub.s32 1, %s4
  %s7 = scalar_select 0, %s6, %s4
  // Predicated region
  $region2: #{docqa_forward.20} parent=0 // pred_check
    _
  $region3: #{docqa_forward.20} parent=0 // pred_check_branch
    %9 = sbr.rel (0) target = $region5
  $region4: #{docqa_forward.20} parent=0 // pred_region
    _
  $region5: #{docqa_forward.20} parent=0 // pred_fallthru
    _
  // Predicated region
  $region6: #{docqa_forward.20} parent=0 // pred_check
    _
  $region7: #{docqa_forward.20} parent=0 // pred_check_branch
    %11 = sbr.rel (0) target = $region9
  $region8: #{docqa_forward.20} parent=0 // pred_region
    _
  $region9: #{docqa_forward.20} parent=0 // pred_fallthru
    _
  // Predicated region
  $region10: #{docqa_forward.20} parent=0 // pred_check
    _
  $region11: #{docqa_forward.20} parent=0 // pred_check_branch
    %13 = sbr.rel (0) target = $region13
  $region12: #{docqa_forward.20} parent=0 // pred_region
    _
  $region13: #{docqa_forward.20} parent=0 // pred_fallthru
    _
  %p15 = scmp.eq.s32.totalorder 0, 0
  // Predicated region
  $region14: #{docqa_forward.20} parent=0 // pred_check
    %p16 = pneg %p15
  $region15: #{docqa_forward.20} parent=0 // pred_check_branch
    %18 = sbr.rel (%p16) target = $region17
  $region16: #{docqa_forward.20} parent=0 // pred_region
    %vm19 = vcmask 261120
    %20 = vst.msk [vmem:[#allocation2] sm:$0xff] %vm19, 0.0
    %21 = vst.msk [vmem:[#allocation2 + $0x8] sm:$0xff] %vm19, 0.0
    %22 = vst.msk [vmem:[#allocation2 + $0x10] sm:$0xff] %vm19, 0.0
  $region17: #{docqa_forward.20} parent=0 // pred_fallthru
    _
  %v23 = vld [vmem:[#allocation2] sm:$0xff]
  %v24 = vld [vmem:[#allocation2 + $0x8] sm:$0xff]
  %v25 = vld [vmem:[#allocation2 + $0x10] sm:$0xff]
  %v26 = vld [vmem:[%s0] sm:$0xff]
  %v27 = vld [vmem:[%s0 + $0x8] sm:$0xff]
  %v28 = vld [vmem:[%s0 + $0x10] sm:$0xff]
  %v29 = vpack.c.bf16 %v27, %v26
  %v30 = vpack.c.bf16 %v28, %v28
  %v31 = vld [vmem:[%s1] sm:$0xff]
  %v32 = vld [vmem:[%s1 + $0x8] sm:$0xff]
  %v33 = vld [vmem:[%s1 + $0x10] sm:$0xff]
  %v34 = vld [vmem:[%s1 + $0x18] sm:$0xff]
  %v35 = vld [vmem:[%s1 + $0x20] sm:$0xff]
  %v36 = vld [vmem:[%s1 + $0x28] sm:$0xff]
  %v37 = vld [vmem:[%s1 + $0x30] sm:$0xff]
  %v38 = vld [vmem:[%s1 + $0x38] sm:$0xff]
  %v39 = vld [vmem:[%s1 + $0x40] sm:$0xff]
  %v40 = vld [vmem:[%s1 + $0x48] sm:$0xff]
  %v41 = vld [vmem:[%s1 + $0x50] sm:$0xff]
  %v42 = vld [vmem:[%s1 + $0x58] sm:$0xff]
  %v43 = vpack.c.bf16 %v32, %v31
  %v44 = vpack.c.bf16 %v34, %v33
  %v45 = vpack.c.bf16 %v36, %v35
  %v46 = vpack.c.bf16 %v38, %v37
  %v47 = vpack.c.bf16 %v40, %v39
  %v48 = vpack.c.bf16 %v42, %v41
  %vm49 = vcmask 785408
  %v51 = vsel %vm49, %v29, 0
  %v54 = vsel %vm49, %v30, 0
  %56 = vmatpush.bf16.msra.mxu0 0
  %57 = vmatpush.bf16.msra.mxu0 0
  %58 = vmatpush.bf16.msra.mxu0 %v48
  %59 = vmatpush.bf16.msra.mxu0 %v47
  %60 = vmatpush.bf16.msra.mxu0 %v46
  %61 = vmatpush.bf16.msra.mxu0 %v45
  %62 = vmatpush.bf16.msra.mxu0 %v44
  %63 = vmatpush.bf16.msra.mxu0 %v43
  %64 = vmatmul.bf16.gmra.mxu0 %v51
  %v65 = vpop.f32.mrf.mxu0
  %v66 = vadd.f32 0.0, %v65
  %v67 = vpop.f32.mrf.mxu0
  %v68 = vadd.f32 0.0, %v67
  %69 = vmatmul.bf16.gmra.mxu0 %v54
  %v70 = vpop.f32.mrf.mxu0
  %v71 = vadd.f32 0.0, %v70
  %v72 = vpop.f32.mrf.mxu0
  %73 = vdwg.mxu0
  %v74 = vadd.f32 %v23, %v66
  %v75 = vadd.f32 %v24, %v68
  %v76 = vadd.f32 %v25, %v71
  %vm77 = vcmask 261120
  %78 = vst.msk [vmem:[#allocation2] sm:$0xff] %vm77, %v74
  %79 = vst.msk [vmem:[#allocation2 + $0x8] sm:$0xff] %vm77, %v75
  %80 = vst.msk [vmem:[#allocation2 + $0x10] sm:$0xff] %vm77, %v76
  // Predicated region
  $region18: #{docqa_forward.20} parent=0 // pred_check
    %p81 = pneg %p15
  $region19: #{docqa_forward.20} parent=0 // pred_check_branch
    %83 = sbr.rel (%p81) target = $region21
  $region20: #{docqa_forward.20} parent=0 // pred_region
    %v84 = vld [vmem:[#allocation2] sm:$0xff]
    %v85 = vld [vmem:[#allocation2 + $0x8] sm:$0xff]
    %v86 = vld [vmem:[#allocation2 + $0x10] sm:$0xff]
    %v87 = vld [vmem:[%s2] sm:$0x1]
    %v89 = vperm.slane %v87, 0
    %v91 = vadd.f32 %v84, %v89
    %v92 = vadd.f32 %v85, %v89
    %v93 = vadd.f32 %v86, %v89
    %v94 = vmax.f32 %v91, 0.0
    %v95 = vmax.f32 %v92, 0.0
    %v96 = vmax.f32 %v93, 0.0
    %97 = vst.msk [vmem:[%s3] sm:$0xff] %vm77, %v94
    %98 = vst.msk [vmem:[%s3 + $0x8] sm:$0xff] %vm77, %v95
    %99 = vst.msk [vmem:[%s3 + $0x10] sm:$0xff] %vm77, %v96
  $region21: #{docqa_forward.20} parent=0 // pred_fallthru
    _
  // Predicated region
  $region22: #{docqa_forward.20} parent=0 // pred_check
    _
  $region23: #{docqa_forward.20} parent=0 // pred_check_branch
    %101 = sbr.rel (0) target = $region25
  $region24: #{docqa_forward.20} parent=0 // pred_region
    _
  $region25: #{docqa_forward.20} parent=0 // pred_fallthru
    _
  // Predicated region
  $region26: #{docqa_forward.20} parent=0 // pred_check
    _
  $region27: #{docqa_forward.20} parent=0 // pred_check_branch
    %103 = sbr.rel (0) target = $region29
  $region28: #{docqa_forward.20} parent=0 // pred_region
    _
  $region29: #{docqa_forward.20} parent=0 // pred_fallthru
    _

// kernel: docqa_forward.23
$region0: #{docqa_forward.23}
  #allocation0 [shape = 'u32[]', space=smem, size = 0x4, offset = 0x4, fixed_abs, tag = 'smem constant byte address 0x4 - core index']
  #allocation1 [shape = 'u32[72,128]{1,0:T(1,128)}', space=vmem, size = 0x9000, scoped, tag = 'internal scratch']
  #allocation2 [shape = 'f32[1,1]{1,0:T(1,128)S(1)}', space=vmem, size = 0x200, scoped, tag = 'scoped memory for docqa_forward.23']
  #allocation3 [shape = 'f32[1,1]{1,0:T(1,128)S(1)}', space=vmem, size = 0x200, scoped, tag = 'scoped memory for docqa_forward.23']
  #allocation4 [shape = 'f32[1,1]{1,0:T(1,128)S(1)}', space=vmem, size = 0x200, scoped, tag = 'scoped memory for docqa_forward.23']
  %s0 = inlined_call_operand.vmem [shape: f32[2,12,32], index: 0, kind: input, shape index: {}]
  %s1 = inlined_call_operand.vmem [shape: f32[2,12,32], index: 1, kind: input, shape index: {}]
  %s2 = inlined_call_operand.vmem [shape: f32[2,12,32], index: 2, kind: input, shape index: {}]
  %s3 = inlined_call_operand.vmem [shape: f32[2,12,1], index: 3, kind: input, shape index: {}]
  %s4 = inlined_call_operand.vmem [shape: f32[1,32], index: 4, kind: input, shape index: {}]
  %s5 = inlined_call_operand.<no memory space> [shape: f32[1,1], index: 5, kind: input, shape index: {}]
  %s6 = inlined_call_operand.vmem [shape: f32[1,32], index: 6, kind: input, shape index: {}]
  %s7 = inlined_call_operand.<no memory space> [shape: f32[1,1], index: 7, kind: input, shape index: {}]
  %s8 = inlined_call_operand.vmem [shape: f32[1,64], index: 8, kind: input, shape index: {}]
  %s9 = inlined_call_operand.<no memory space> [shape: f32[1,1], index: 9, kind: input, shape index: {}]
  %s10 = inlined_call_operand.vmem [shape: f32[2,12,1], index: 10, kind: output, shape index: {0}]
  %s11 = inlined_call_operand.vmem [shape: f32[2,12,1], index: 11, kind: output, shape index: {1}]
  %s12 = inlined_call_operand.vmem [shape: f32[2,1,1], index: 12, kind: output, shape index: {2}]
  %13 = xla_tuple %s10, %s11, %s12
  %s14 = sld [smem:[#allocation0]]
  $region89: #{docqa_forward.23} parent=0
    _
  %s16 = ssub.s32 1, %s14
  %s17 = scalar_select 0, %s16, %s14
  %v18 = vstv %s5
  %19 = vst [vmem:[#allocation2] sm:$0x1] %v18
  %v20 = vstv %s7
  %21 = vst [vmem:[#allocation3] sm:$0x1] %v20
  %v22 = vstv %s9
  %23 = vst [vmem:[#allocation4] sm:$0x1] %v22
  loop: start=0, step=1, limit=4
  $region2: #{docqa_forward.23} parent=0 // loop_pre_header
    _
  $region3: #{docqa_forward.23} parent=0 // loop_header
    %s25 = sphi 0, %s29
    %p26 = scmp.ge.s32.totalorder %s25, 4
    %s35 = sphi 0, %s37
    %s38 = sphi 0, %s35
    %s39 = sphi 0, %s38
    %s55 = sphi 0, %s39
    %s61 = sphi 0, %s63
    %s64 = sphi 0, %s61
    %s65 = sphi 0, %s64
    %s81 = sphi 0, %s65
    %s87 = sphi 0, %s89
    %s90 = sphi 0, %s87
    %s91 = sphi 0, %s90
    %s107 = sphi 0, %s91
    %s113 = sphi 0, %s115
    %s116 = sphi 0, %s113
    %s117 = sphi 0, %s116
    %s133 = sphi 0, %s117
    %s137 = sphi 0, %s137
    %s139 = sphi 0, %s137
    %s140 = sphi 0, %s139
    %s154 = sphi 0, %s140
    %s158 = sphi 0, %s158
    %s160 = sphi 0, %s158
    %s161 = sphi 0, %s160
    %s175 = sphi 0, %s161
    %s179 = sphi 0, %s179
    %s181 = sphi 0, %s179
    %s182 = sphi 0, %s181
    %s196 = sphi 0, %s182
    %s200 = sphi 0, %s200
    %s202 = sphi 0, %s200
    %s203 = sphi 0, %s202
    %s217 = sphi 0, %s203
    %s221 = sphi 0, %s221
    %s223 = sphi 0, %s221
    %s224 = sphi 0, %s223
    %s238 = sphi 0, %s224
    %s242 = sphi 0, %s242
    %s244 = sphi 0, %s242
    %s245 = sphi 0, %s244
    %s259 = sphi 0, %s245
    %s265 = sphi 0, %s267
    %s268 = sphi 0, %s265
    %s269 = sphi 0, %s268
    %s285 = sphi 0, %s269
    %s291 = sphi 0, %s293
    %s294 = sphi 0, %s291
    %s295 = sphi 0, %s294
    %s311 = sphi 0, %s295
    %s317 = sphi 0, %s319
    %s320 = sphi 0, %s317
    %s321 = sphi 0, %s320
    %s337 = sphi 0, %s321
  $region4: #{docqa_forward.23} parent=0 // loop_header_branch
    %28 = sbr.rel (%p26) target = $region8
  $region5: #{docqa_forward.23} parent=0 // loop_body
    %s30 = ssub.s32 %s25, 1
    %s31 = ssub.s32 %s25, 2
    %s32 = sadd.s32 %s25, 1
    %s33 = ssub.s32 %s25, %s32
    %p34 = scmp.eq.s32.totalorder %s33, 0
    %s36 = sadd.s32 %s35, 1
    %s37 = scalar_select %p34, %s35, %s36
    %p40 = pneg %p34
    %p41 = scmp.eq.s32.totalorder %s25, 1
    %p42 = por %p40, %p41
    %p43 = scmp.ne.s32.totalorder %s35, %s38
    %p44 = scmp.eq.s32.totalorder %s25, 0
    %p45 = por %p43, %p44
    %p46 = scmp.ne.s32.totalorder %s35, %s38
    %p47 = scmp.eq.s32.totalorder %s30, 1
    %p48 = por %p46, %p47
    %p49 = scmp.ne.s32.totalorder %s38, %s39
    %p50 = scmp.eq.s32.totalorder %s30, 0
    %p51 = por %p49, %p50
    %p52 = scmp.ne.s32.totalorder %s38, %s39
    %p53 = scmp.eq.s32.totalorder %s31, 1
    %p54 = por %p52, %p53
    %p56 = scmp.ne.s32.totalorder %s39, %s55
    %p57 = scmp.eq.s32.totalorder %s31, 0
    %p58 = por %p56, %p57
    %s59 = ssub.s32 %s25, %s32
    %p60 = scmp.eq.s32.totalorder %s59, 0
    %s62 = sadd.s32 %s61, 1
    %s63 = scalar_select %p60, %s61, %s62
    %p66 = pneg %p60
    %p67 = scmp.eq.s32.totalorder %s25, 1
    %p68 = por %p66, %p67
    %p69 = scmp.ne.s32.totalorder %s61, %s64
    %p70 = scmp.eq.s32.totalorder %s25, 0
    %p71 = por %p69, %p70
    %p72 = scmp.ne.s32.totalorder %s61, %s64
    %p73 = scmp.eq.s32.totalorder %s30, 1
    %p74 = por %p72, %p73
    %p75 = scmp.ne.s32.totalorder %s64, %s65
    %p76 = scmp.eq.s32.totalorder %s30, 0
    %p77 = por %p75, %p76
    %p78 = scmp.ne.s32.totalorder %s64, %s65
    %p79 = scmp.eq.s32.totalorder %s31, 1
    %p80 = por %p78, %p79
    %p82 = scmp.ne.s32.totalorder %s65, %s81
    %p83 = scmp.eq.s32.totalorder %s31, 0
    %p84 = por %p82, %p83
    %s85 = ssub.s32 %s25, %s32
    %p86 = scmp.eq.s32.totalorder %s85, 0
    %s88 = sadd.s32 %s87, 1
    %s89 = scalar_select %p86, %s87, %s88
    %p92 = pneg %p86
    %p93 = scmp.eq.s32.totalorder %s25, 1
    %p94 = por %p92, %p93
    %p95 = scmp.ne.s32.totalorder %s87, %s90
    %p96 = scmp.eq.s32.totalorder %s25, 0
    %p97 = por %p95, %p96
    %p98 = scmp.ne.s32.totalorder %s87, %s90
    %p99 = scmp.eq.s32.totalorder %s30, 1
    %p100 = por %p98, %p99
    %p101 = scmp.ne.s32.totalorder %s90, %s91
    %p102 = scmp.eq.s32.totalorder %s30, 0
    %p103 = por %p101, %p102
    %p104 = scmp.ne.s32.totalorder %s90, %s91
    %p105 = scmp.eq.s32.totalorder %s31, 1
    %p106 = por %p104, %p105
    %p108 = scmp.ne.s32.totalorder %s91, %s107
    %p109 = scmp.eq.s32.totalorder %s31, 0
    %p110 = por %p108, %p109
    %s111 = ssub.s32 %s25, %s32
    %p112 = scmp.eq.s32.totalorder %s111, 0
    %s114 = sadd.s32 %s113, 1
    %s115 = scalar_select %p112, %s113, %s114
    %p118 = pneg %p112
    %p119 = scmp.eq.s32.totalorder %s25, 1
    %p120 = por %p118, %p119
    %p121 = scmp.ne.s32.totalorder %s113, %s116
    %p122 = scmp.eq.s32.totalorder %s25, 0
    %p123 = por %p121, %p122
    %p124 = scmp.ne.s32.totalorder %s113, %s116
    %p125 = scmp.eq.s32.totalorder %s30, 1
    %p126 = por %p124, %p125
    %p127 = scmp.ne.s32.totalorder %s116, %s117
    %p128 = scmp.eq.s32.totalorder %s30, 0
    %p129 = por %p127, %p128
    %p130 = scmp.ne.s32.totalorder %s116, %s117
    %p131 = scmp.eq.s32.totalorder %s31, 1
    %p132 = por %p130, %p131
    %p134 = scmp.ne.s32.totalorder %s117, %s133
    %p135 = scmp.eq.s32.totalorder %s31, 0
    %p136 = por %p134, %p135
    %s138 = sadd.s32 %s137, 1
    %p141 = scmp.eq.s32.totalorder %s25, 1
    %p142 = scmp.ne.s32.totalorder %s137, %s139
    %p143 = scmp.eq.s32.totalorder %s25, 0
    %p144 = por %p142, %p143
    %p145 = scmp.ne.s32.totalorder %s137, %s139
    %p146 = scmp.eq.s32.totalorder %s30, 1
    %p147 = por %p145, %p146
    %p148 = scmp.ne.s32.totalorder %s139, %s140
    %p149 = scmp.eq.s32.totalorder %s30, 0
    %p150 = por %p148, %p149
    %p151 = scmp.ne.s32.totalorder %s139, %s140
    %p152 = scmp.eq.s32.totalorder %s31, 1
    %p153 = por %p151, %p152
    %p155 = scmp.ne.s32.totalorder %s140, %s154
    %p156 = scmp.eq.s32.totalorder %s31, 0
    %p157 = por %p155, %p156
    %s159 = sadd.s32 %s158, 1
    %p162 = scmp.eq.s32.totalorder %s25, 1
    %p163 = scmp.ne.s32.totalorder %s158, %s160
    %p164 = scmp.eq.s32.totalorder %s25, 0
    %p165 = por %p163, %p164
    %p166 = scmp.ne.s32.totalorder %s158, %s160
    %p167 = scmp.eq.s32.totalorder %s30, 1
    %p168 = por %p166, %p167
    %p169 = scmp.ne.s32.totalorder %s160, %s161
    %p170 = scmp.eq.s32.totalorder %s30, 0
    %p171 = por %p169, %p170
    %p172 = scmp.ne.s32.totalorder %s160, %s161
    %p173 = scmp.eq.s32.totalorder %s31, 1
    %p174 = por %p172, %p173
    %p176 = scmp.ne.s32.totalorder %s161, %s175
    %p177 = scmp.eq.s32.totalorder %s31, 0
    %p178 = por %p176, %p177
    %s180 = sadd.s32 %s179, 1
    %p183 = scmp.eq.s32.totalorder %s25, 1
    %p184 = scmp.ne.s32.totalorder %s179, %s181
    %p185 = scmp.eq.s32.totalorder %s25, 0
    %p186 = por %p184, %p185
    %p187 = scmp.ne.s32.totalorder %s179, %s181
    %p188 = scmp.eq.s32.totalorder %s30, 1
    %p189 = por %p187, %p188
    %p190 = scmp.ne.s32.totalorder %s181, %s182
    %p191 = scmp.eq.s32.totalorder %s30, 0
    %p192 = por %p190, %p191
    %p193 = scmp.ne.s32.totalorder %s181, %s182
    %p194 = scmp.eq.s32.totalorder %s31, 1
    %p195 = por %p193, %p194
    %p197 = scmp.ne.s32.totalorder %s182, %s196
    %p198 = scmp.eq.s32.totalorder %s31, 0
    %p199 = por %p197, %p198
    %s201 = sadd.s32 %s200, 1
    %p204 = scmp.eq.s32.totalorder %s25, 1
    %p205 = scmp.ne.s32.totalorder %s200, %s202
    %p206 = scmp.eq.s32.totalorder %s25, 0
    %p207 = por %p205, %p206
    %p208 = scmp.ne.s32.totalorder %s200, %s202
    %p209 = scmp.eq.s32.totalorder %s30, 1
    %p210 = por %p208, %p209
    %p211 = scmp.ne.s32.totalorder %s202, %s203
    %p212 = scmp.eq.s32.totalorder %s30, 0
    %p213 = por %p211, %p212
    %p214 = scmp.ne.s32.totalorder %s202, %s203
    %p215 = scmp.eq.s32.totalorder %s31, 1
    %p216 = por %p214, %p215
    %p218 = scmp.ne.s32.totalorder %s203, %s217
    %p219 = scmp.eq.s32.totalorder %s31, 0
    %p220 = por %p218, %p219
    %s222 = sadd.s32 %s221, 1
    %p225 = scmp.eq.s32.totalorder %s25, 1
    %p226 = scmp.ne.s32.totalorder %s221, %s223
    %p227 = scmp.eq.s32.totalorder %s25, 0
    %p228 = por %p226, %p227
    %p229 = scmp.ne.s32.totalorder %s221, %s223
    %p230 = scmp.eq.s32.totalorder %s30, 1
    %p231 = por %p229, %p230
    %p232 = scmp.ne.s32.totalorder %s223, %s224
    %p233 = scmp.eq.s32.totalorder %s30, 0
    %p234 = por %p232, %p233
    %p235 = scmp.ne.s32.totalorder %s223, %s224
    %p236 = scmp.eq.s32.totalorder %s31, 1
    %p237 = por %p235, %p236
    %p239 = scmp.ne.s32.totalorder %s224, %s238
    %p240 = scmp.eq.s32.totalorder %s31, 0
    %p241 = por %p239, %p240
    %s243 = sadd.s32 %s242, 1
    %p246 = scmp.eq.s32.totalorder %s25, 1
    %p247 = scmp.ne.s32.totalorder %s242, %s244
    %p248 = scmp.eq.s32.totalorder %s25, 0
    %p249 = por %p247, %p248
    %p250 = scmp.ne.s32.totalorder %s242, %s244
    %p251 = scmp.eq.s32.totalorder %s30, 1
    %p252 = por %p250, %p251
    %p253 = scmp.ne.s32.totalorder %s244, %s245
    %p254 = scmp.eq.s32.totalorder %s30, 0
    %p255 = por %p253, %p254
    %p256 = scmp.ne.s32.totalorder %s244, %s245
    %p257 = scmp.eq.s32.totalorder %s31, 1
    %p258 = por %p256, %p257
    %p260 = scmp.ne.s32.totalorder %s245, %s259
    %p261 = scmp.eq.s32.totalorder %s31, 0
    %p262 = por %p260, %p261
    %s263 = ssub.s32 %s25, %s32
    %p264 = scmp.eq.s32.totalorder %s263, 0
    %s266 = sadd.s32 %s265, 1
    %s267 = scalar_select %p264, %s265, %s266
    %p270 = pneg %p264
    %p271 = scmp.eq.s32.totalorder %s25, 1
    %p272 = por %p270, %p271
    %p273 = scmp.ne.s32.totalorder %s265, %s268
    %p274 = scmp.eq.s32.totalorder %s25, 0
    %p275 = por %p273, %p274
    %p276 = scmp.ne.s32.totalorder %s265, %s268
    %p277 = scmp.eq.s32.totalorder %s30, 1
    %p278 = por %p276, %p277
    %p279 = scmp.ne.s32.totalorder %s268, %s269
    %p280 = scmp.eq.s32.totalorder %s30, 0
    %p281 = por %p279, %p280
    %p282 = scmp.ne.s32.totalorder %s268, %s269
    %p283 = scmp.eq.s32.totalorder %s31, 1
    %p284 = por %p282, %p283
    %p286 = scmp.ne.s32.totalorder %s269, %s285
    %p287 = scmp.eq.s32.totalorder %s31, 0
    %p288 = por %p286, %p287
    %s289 = ssub.s32 %s25, %s32
    %p290 = scmp.eq.s32.totalorder %s289, 0
    %s292 = sadd.s32 %s291, 1
    %s293 = scalar_select %p290, %s291, %s292
    %p296 = pneg %p290
    %p297 = scmp.eq.s32.totalorder %s25, 1
    %p298 = por %p296, %p297
    %p299 = scmp.ne.s32.totalorder %s291, %s294
    %p300 = scmp.eq.s32.totalorder %s25, 0
    %p301 = por %p299, %p300
    %p302 = scmp.ne.s32.totalorder %s291, %s294
    %p303 = scmp.eq.s32.totalorder %s30, 1
    %p304 = por %p302, %p303
    %p305 = scmp.ne.s32.totalorder %s294, %s295
    %p306 = scmp.eq.s32.totalorder %s30, 0
    %p307 = por %p305, %p306
    %p308 = scmp.ne.s32.totalorder %s294, %s295
    %p309 = scmp.eq.s32.totalorder %s31, 1
    %p310 = por %p308, %p309
    %p312 = scmp.ne.s32.totalorder %s295, %s311
    %p313 = scmp.eq.s32.totalorder %s31, 0
    %p314 = por %p312, %p313
    %s315 = ssub.s32 %s25, %s32
    %p316 = scmp.eq.s32.totalorder %s315, 0
    %s318 = sadd.s32 %s317, 1
    %s319 = scalar_select %p316, %s317, %s318
    %p322 = pneg %p316
    %p323 = scmp.eq.s32.totalorder %s25, 1
    %p324 = por %p322, %p323
    %p325 = scmp.ne.s32.totalorder %s317, %s320
    %p326 = scmp.eq.s32.totalorder %s25, 0
    %p327 = por %p325, %p326
    %p328 = scmp.ne.s32.totalorder %s317, %s320
    %p329 = scmp.eq.s32.totalorder %s30, 1
    %p330 = por %p328, %p329
    %p331 = scmp.ne.s32.totalorder %s320, %s321
    %p332 = scmp.eq.s32.totalorder %s30, 0
    %p333 = por %p331, %p332
    %p334 = scmp.ne.s32.totalorder %s320, %s321
    %p335 = scmp.eq.s32.totalorder %s31, 1
    %p336 = por %p334, %p335
    %p338 = scmp.ne.s32.totalorder %s321, %s337
    %p339 = scmp.eq.s32.totalorder %s31, 0
    %p340 = por %p338, %p339
    %p341 = scmp.le.s32.totalorder 1, %s25
    %p342 = scmp.lt.s32.totalorder %s25, 3
    %p343 = pnand %p341, %p342
    %p344 = pneg %p343
    // Predicated region
    $region9: #{docqa_forward.23} parent=5 // pred_check
      _
    $region10: #{docqa_forward.23} parent=5 // pred_check_branch
      %346 = sbr.rel (%p343) target = $region12
    $region11: #{docqa_forward.23} parent=5 // pred_region
      %s347 = ssub.s32 %s25, 1
      // Predicated region
      $region13: #{docqa_forward.23} parent=11 // pred_check
        %p348 = pneg %p150
      $region14: #{docqa_forward.23} parent=11 // pred_check_branch
        %350 = sbr.rel (%p348) target = $region16
      $region15: #{docqa_forward.23} parent=11 // pred_region
        _
      $region16: #{docqa_forward.23} parent=11 // pred_fallthru
        _
      // Predicated region
      $region17: #{docqa_forward.23} parent=11 // pred_check
        %p351 = pneg %p171
      $region18: #{docqa_forward.23} parent=11 // pred_check_branch
        %353 = sbr.rel (%p351) target = $region20
      $region19: #{docqa_forward.23} parent=11 // pred_region
        _
      $region20: #{docqa_forward.23} parent=11 // pred_fallthru
        _
      // Predicated region
      $region21: #{docqa_forward.23} parent=11 // pred_check
        %p354 = pneg %p192
      $region22: #{docqa_forward.23} parent=11 // pred_check_branch
        %356 = sbr.rel (%p354) target = $region24
      $region23: #{docqa_forward.23} parent=11 // pred_region
        _
      $region24: #{docqa_forward.23} parent=11 // pred_fallthru
        _
      // Predicated region
      $region25: #{docqa_forward.23} parent=11 // pred_check
        %p357 = pneg %p213
      $region26: #{docqa_forward.23} parent=11 // pred_check_branch
        %359 = sbr.rel (%p357) target = $region28
      $region27: #{docqa_forward.23} parent=11 // pred_region
        _
      $region28: #{docqa_forward.23} parent=11 // pred_fallthru
        _
      // Predicated region
      $region29: #{docqa_forward.23} parent=11 // pred_check
        %p360 = pneg %p234
      $region30: #{docqa_forward.23} parent=11 // pred_check_branch
        %362 = sbr.rel (%p360) target = $region32
      $region31: #{docqa_forward.23} parent=11 // pred_region
        _
      $region32: #{docqa_forward.23} parent=11 // pred_fallthru
        _
      // Predicated region
      $region33: #{docqa_forward.23} parent=11 // pred_check
        %p363 = pneg %p255
      $region34: #{docqa_forward.23} parent=11 // pred_check_branch
        %365 = sbr.rel (%p363) target = $region36
      $region35: #{docqa_forward.23} parent=11 // pred_region
        _
      $region36: #{docqa_forward.23} parent=11 // pred_fallthru
        _
    $region12: #{docqa_forward.23} parent=5 // pred_fallthru
      _
    %p366 = scmp.lt.s32.totalorder %s25, 2
    // Predicated region
    $region37: #{docqa_forward.23} parent=5 // pred_check
      %p367 = pneg %p366
    $region38: #{docqa_forward.23} parent=5 // pred_check_branch
      %369 = sbr.rel (%p367) target = $region40
    $region39: #{docqa_forward.23} parent=5 // pred_region
      // Predicated region
      $region41: #{docqa_forward.23} parent=39 // pred_check
        %p370 = pneg %p45
      $region42: #{docqa_forward.23} parent=39 // pred_check_branch
        %372 = sbr.rel (%p370) target = $region44
      $region43: #{docqa_forward.23} parent=39 // pred_region
        %p373 = scmp.lt.s32.totalorder %s25, 1
        %s374 = scalar_select %p373, %s25, 1
        %s375 = smul.addr %s374, 2
        %s376 = smul.addr %s375, 8
        %s377 = scalar_lea.vmem %s0, %s376
      $region44: #{docqa_forward.23} parent=39 // pred_fallthru
        _
      // Predicated region
      $region45: #{docqa_forward.23} parent=39 // pred_check
        %p378 = pneg %p71
      $region46: #{docqa_forward.23} parent=39 // pred_check_branch
        %380 = sbr.rel (%p378) target = $region48
      $region47: #{docqa_forward.23} parent=39 // pred_region
        %p381 = scmp.lt.s32.totalorder %s25, 1
        %s382 = scalar_select %p381, %s25, 1
        %s383 = smul.addr %s382, 2
        %s384 = smul.addr %s383, 8
        %s385 = scalar_lea.vmem %s1, %s384
      $region48: #{docqa_forward.23} parent=39 // pred_fallthru
        _
      // Predicated region
      $region49: #{docqa_forward.23} parent=39 // pred_check
        %p386 = pneg %p97
      $region50: #{docqa_forward.23} parent=39 // pred_check_branch
        %388 = sbr.rel (%p386) target = $region52
      $region51: #{docqa_forward.23} parent=39 // pred_region
        %p389 = scmp.lt.s32.totalorder %s25, 1
        %s390 = scalar_select %p389, %s25, 1
        %s391 = smul.addr %s390, 2
        %s392 = smul.addr %s391, 8
        %s393 = scalar_lea.vmem %s2, %s392
      $region52: #{docqa_forward.23} parent=39 // pred_fallthru
        _
      // Predicated region
      $region53: #{docqa_forward.23} parent=39 // pred_check
        %p394 = pneg %p123
      $region54: #{docqa_forward.23} parent=39 // pred_check_branch
        %396 = sbr.rel (%p394) target = $region56
      $region55: #{docqa_forward.23} parent=39 // pred_region
        %p397 = scmp.lt.s32.totalorder %s25, 1
        %s398 = scalar_select %p397, %s25, 1
        %s399 = smul.addr %s398, 2
        %s400 = smul.addr %s399, 8
        %s401 = scalar_lea.vmem %s3, %s400
      $region56: #{docqa_forward.23} parent=39 // pred_fallthru
        _
    $region40: #{docqa_forward.23} parent=5 // pred_fallthru
      _
    %p402 = scmp.le.s32.totalorder 1, %s25
    %p403 = scmp.lt.s32.totalorder %s25, 3
    %p404 = pnand %p402, %p403
    %p405 = pneg %p404
    // Predicated region
    $region57: #{docqa_forward.23} parent=5 // pred_check
      _
    $region58: #{docqa_forward.23} parent=5 // pred_check_branch
      %407 = sbr.rel (%p404) target = $region60
    $region59: #{docqa_forward.23} parent=5 // pred_region
      %s408 = ssub.s32 %s25, 1
      %p409 = scmp.lt.s32.totalorder %s30, 1
      %s410 = scalar_select %p409, %s30, 1
      %s411 = smul.addr %s410, 2
      %s412 = smul.addr %s411, 8
      %s413 = scalar_lea.vmem %s0, %s412
      %p414 = pneg %p51
      %p415 = pneg %p48
      %p416 = scmp.lt.s32.totalorder %s30, 1
      %s417 = scalar_select %p416, %s30, 1
      %s418 = smul.addr %s417, 2
      %s419 = smul.addr %s418, 8
      %s420 = scalar_lea.vmem %s1, %s419
      %p421 = pneg %p77
      %p422 = pneg %p74
      %p423 = scmp.lt.s32.totalorder %s30, 1
      %s424 = scalar_select %p423, %s30, 1
      %s425 = smul.addr %s424, 2
      %s426 = smul.addr %s425, 8
      %s427 = scalar_lea.vmem %s2, %s426
      %p428 = pneg %p103
      %p429 = pneg %p100
      %p430 = scmp.lt.s32.totalorder %s30, 1
      %s431 = scalar_select %p430, %s30, 1
      %s432 = smul.addr %s431, 2
      %s433 = smul.addr %s432, 8
      %s434 = scalar_lea.vmem %s3, %s433
      %p435 = pneg %p129
      %p436 = pneg %p126
      %p437 = pneg %p150
      %p438 = pneg %p147
      %p439 = pneg %p171
      %p440 = pneg %p168
      %p441 = pneg %p192
      %p442 = pneg %p189
      %p443 = pneg %p213
      %p444 = pneg %p210
      %p445 = pneg %p234
      %p446 = pneg %p231
      %p447 = pneg %p255
      %p448 = pneg %p252
      %p449 = pneg %p281
      %p450 = pneg %p278
      %p451 = scmp.lt.s32.totalorder %s30, 1
      %s452 = scalar_select %p451, %s30, 1
      %s453 = smul.addr %s452, 2
      %s454 = smul.addr %s453, 8
      %s455 = scalar_lea.vmem %s10, %s454
      %p456 = pneg %p307
      %p457 = pneg %p304
      %p458 = scmp.lt.s32.totalorder %s30, 1
      %s459 = scalar_select %p458, %s30, 1
      %s460 = smul.addr %s459, 2
      %s461 = smul.addr %s460, 8
      %s462 = scalar_lea.vmem %s11, %s461
      %p463 = pneg %p333
      %p464 = pneg %p330
      %p465 = scmp.lt.s32.totalorder %s30, 1
      %s466 = scalar_select %p465, %s30, 1
      %s467 = scalar_lea.vmem %s12, %s466
      %p468 = scmp.lt.s32.totalorder %s30, 1
      %s469 = scalar_select %p468, %s30, 1
      %s470 = smul.addr %s469, 2
      %s471 = smul.addr %s470, 8
      %s472 = scalar_lea.vmem %s0, %s471
      %p473 = scmp.lt.s32.totalorder %s30, 1
      %s474 = scalar_select %p473, %s30, 1
      %s475 = smul.addr %s474, 2
      %s476 = smul.addr %s475, 8
      %s477 = scalar_lea.vmem %s1, %s476
      %p478 = scmp.lt.s32.totalorder %s30, 1
      %s479 = scalar_select %p478, %s30, 1
      %s480 = smul.addr %s479, 2
      %s481 = smul.addr %s480, 8
      %s482 = scalar_lea.vmem %s2, %s481
      %p483 = scmp.lt.s32.totalorder %s30, 1
      %s484 = scalar_select %p483, %s30, 1
      %s485 = smul.addr %s484, 2
      %s486 = smul.addr %s485, 8
      %s487 = scalar_lea.vmem %s3, %s486
      %p488 = scmp.lt.s32.totalorder %s30, 1
      %s489 = scalar_select %p488, %s30, 1
      %s490 = smul.addr %s489, 2
      %s491 = smul.addr %s490, 8
      %s492 = scalar_lea.vmem %s10, %s491
      %p493 = scmp.lt.s32.totalorder %s30, 1
      %s494 = scalar_select %p493, %s30, 1
      %s495 = smul.addr %s494, 2
      %s496 = smul.addr %s495, 8
      %s497 = scalar_lea.vmem %s11, %s496
      %p498 = scmp.lt.s32.totalorder %s30, 1
      %s499 = scalar_select %p498, %s30, 1
      %s500 = scalar_lea.vmem %s12, %s499
      %v501 = vld [vmem:[%s472] sm:$0xff]
      %v502 = vld [vmem:[%s472 + $0x8] sm:$0xf]
      %v503 = vld [vmem:[%s477] sm:$0xff]
      %v504 = vld [vmem:[%s477 + $0x8] sm:$0xf]
      %v505 = vld [vmem:[%s482] sm:$0xff]
      %v506 = vld [vmem:[%s482 + $0x8] sm:$0xf]
      %v507 = vld [vmem:[%s487] sm:$0xff]
      %v508 = vld [vmem:[%s487 + $0x8] sm:$0xf]
      %v509 = vld [vmem:[%s4] sm:$0x1]
      %v511 = vperm.slane %v509, 0
      %v513 = vmul.f32 %v501, %v511
      %v514 = vmul.f32 %v502, %v511
      %vm515 = vcmask 261120
      %v516 = vsel %vm515, %v513, 0.0
      %517 = vadd.xlane.f32.xlu0 %v516
      %v518 = vpop.xlane.xlu0 %517
      %vm519 = vcmask 257024
      %v520 = vsel %vm519, %v514, 0.0
      %521 = vadd.xlane.f32.xlu0 %v520
      %v522 = vpop.xlane.xlu0 %521
      %v523 = vld [vmem:[#allocation2] sm:$0x1]
      %v525 = vperm.slane %v523, 0
      %v527 = vadd.f32 %v518, %v525
      %v528 = vadd.f32 %v522, %v525
      %v529 = vld [vmem:[%s6] sm:$0x1]
      %v531 = vperm.slane %v529, 0
      %v533 = vmul.f32 %v503, %v531
      %v534 = vmul.f32 %v504, %v531
      %v535 = vsel %vm515, %v533, 0.0
      %536 = vadd.xlane.f32.xlu0 %v535
      %v537 = vpop.xlane.xlu0 %536
      %v538 = vsel %vm519, %v534, 0.0
      %539 = vadd.xlane.f32.xlu0 %v538
      %v540 = vpop.xlane.xlu0 %539
      %v541 = vld [vmem:[#allocation3] sm:$0x1]
      %v543 = vperm.slane %v541, 0
      %v545 = vadd.f32 %v537, %v543
      %v546 = vadd.f32 %v540, %v543
      %vm547 = vcmp.gt.f32.partialorder %v507, 0.5
      %vm548 = vcmp.gt.f32.partialorder %v508, 0.5
      %v549 = vsel %vm547, -1e+09, %v527
      %v550 = vsel %vm548, -1e+09, %v528
      %v551 = vsel %vm547, -1e+09, %v545
      %v552 = vsel %vm548, -1e+09, %v546
      %vm553 = vcmask 7168
      %v554 = vsel %vm553, %v549, -inf
      %vm555 = vcmask 3072
      %v556 = vsel %vm555, %v550, -inf
      %v557 = vmax.f32 %v554, %v556
      %v558 = vrot.slane %v557, 4
      %v559 = vmax.f32 %v557, %v558
      %v560 = vrot.slane %v559, 2
      %v561 = vmax.f32 %v559, %v560
      %v562 = vrot.slane %v561, 1
      %v563 = vmax.f32 %v561, %v562
      %v564 = vsub.f32 %v549, %v563
      %v565 = vsub.f32 %v550, %v563
      %v566 = vmul.f32 %v564, 1.442695
      %v567 = vpow.pop %v566
      %v568 = vmul.f32 %v565, 1.442695
      %v569 = vpow.pop %v568
      %v570 = vsel %vm553, %v567, 0.0
      %v571 = vsel %vm555, %v569, 0.0
      %v572 = vadd.f32 %v570, %v571
      %v573 = vrot.slane %v572, 4
      %v574 = vadd.f32 %v572, %v573
      %v575 = vrot.slane %v574, 2
      %v576 = vadd.f32 %v574, %v575
      %v577 = vrot.slane %v576, 1
      %v578 = vadd.f32 %v576, %v577
      %v579 = vrcp.pop %v578
      %v580 = vmul.f32 %v578, %v579
      %v581 = vsub.f32 1.0, %v580
      %v582 = vmul.f32 %v579, %v581
      %v583 = vadd.f32 %v579, %v582
      %vm584 = vweird.f32 %v578
      %vm585 = vweird.f32 %v579
      %vm586 = vmor %vm584, %vm585
      %v587 = vsel %vm586, %v579, %v583
      %v588 = vand.u32 2147483647, %v578
      %vm589 = vcmp.eq.f32.partialorder %v588, 8.507059e+37
      %v590 = vand.u32 %v578, 2147483648
      %v591 = vor.u32 1.1754944e-38, %v590
      %v592 = vsel %vm589, %v591, %v587
      %v593 = vmul.f32 %v567, %v592
      %v594 = vmul.f32 %v569, %v592
      %v595 = vsel %vm553, %v551, -inf
      %v596 = vsel %vm555, %v552, -inf
      %v597 = vmax.f32 %v595, %v596
      %v598 = vrot.slane %v597, 4
      %v599 = vmax.f32 %v597, %v598
      %v600 = vrot.slane %v599, 2
      %v601 = vmax.f32 %v599, %v600
      %v602 = vrot.slane %v601, 1
      %v603 = vmax.f32 %v601, %v602
      %v604 = vsub.f32 %v551, %v603
      %v605 = vsub.f32 %v552, %v603
      %v606 = vmul.f32 %v604, 1.442695
      %v607 = vpow.pop %v606
      %v608 = vmul.f32 %v605, 1.442695
      %v609 = vpow.pop %v608
      %v610 = vsel %vm553, %v607, 0.0
      %v611 = vsel %vm555, %v609, 0.0
      %v612 = vadd.f32 %v610, %v611
      %v613 = vrot.slane %v612, 4
      %v614 = vadd.f32 %v612, %v613
      %v615 = vrot.slane %v614, 2
      %v616 = vadd.f32 %v614, %v615
      %v617 = vrot.slane %v616, 1
      %v618 = vadd.f32 %v616, %v617
      %v619 = vrcp.pop %v618
      %v620 = vmul.f32 %v618, %v619
      %v621 = vsub.f32 1.0, %v620
      %v622 = vmul.f32 %v619, %v621
      %v623 = vadd.f32 %v619, %v622
      %vm624 = vweird.f32 %v618
      %vm625 = vweird.f32 %v619
      %vm626 = vmor %vm624, %vm625
      %v627 = vsel %vm626, %v619, %v623
      %v628 = vand.u32 2147483647, %v618
      %vm629 = vcmp.eq.f32.partialorder %v628, 8.507059e+37
      %v630 = vand.u32 %v618, 2147483648
      %v631 = vor.u32 1.1754944e-38, %v630
      %v632 = vsel %vm629, %v631, %v627
      %v633 = vmul.f32 %v607, %v632
      %v634 = vmul.f32 %v609, %v632
      %636 = vset.pattern.permute.xlu0 0
      %637 = vperm.xlu0 %636, %v593
      %v638 = vpop.permute.xlu0 %637
      %641 = vset.pattern.permute.xlu0 0
      %642 = vperm.xlu0 %641, %v594
      %v643 = vpop.permute.xlu0 %642
      %v645 = vmul.f32 %v638, %v505
      %v646 = vmul.f32 %v643, %v506
      %v647 = vsel %vm515, %v645, 0.0
      %v648 = vsel %vm519, %v646, 0.0
      %v649 = vadd.f32 %v647, %v648
      %v650 = vrot.slane %v649, 4
      %v651 = vadd.f32 %v649, %v650
      %v652 = vrot.slane %v651, 2
      %v653 = vadd.f32 %v651, %v652
      %v654 = vrot.slane %v653, 1
      %v655 = vadd.f32 %v653, %v654
      %657 = vset.pattern.permute.xlu0 0
      %658 = vperm.xlu0 %657, %v633
      %v659 = vpop.permute.xlu0 %658
      %662 = vset.pattern.permute.xlu0 0
      %663 = vperm.xlu0 %662, %v634
      %v664 = vpop.permute.xlu0 %663
      %v666 = vmul.f32 %v659, %v505
      %v667 = vmul.f32 %v664, %v506
      %v668 = vsel %vm515, %v666, 0.0
      %v669 = vsel %vm519, %v667, 0.0
      %v670 = vadd.f32 %v668, %v669
      %v671 = vrot.slane %v670, 4
      %v672 = vadd.f32 %v670, %v671
      %v673 = vrot.slane %v672, 2
      %v674 = vadd.f32 %v672, %v673
      %v675 = vrot.slane %v674, 1
      %v676 = vadd.f32 %v674, %v675
      %v677 = vld [vmem:[%s8] sm:$0x1]
      %v678 = vmul.f32 %v655, %v677
      %vm679 = vcmask 253952
      %v680 = vsel %vm679, %v678, 0.0
      %681 = vadd.xlane.f32.xlu0 %v680
      %v682 = vpop.xlane.xlu0 %681
      %v684 = vperm.slane %v677, 0
      %685 = vrot.lane.b32.xlu0 %v684, 96
      %v686 = vpop.permute.xlu0 %685
      %v688 = vmul.f32 %v676, %v686
      %v689 = vsel %vm679, %v688, 0.0
      %690 = vadd.xlane.f32.xlu0 %v689
      %v691 = vpop.xlane.xlu0 %690
      %v692 = vadd.f32 %v682, %v691
      %v693 = vld [vmem:[#allocation4] sm:$0x1]
      %v694 = vadd.f32 %v692, %v693
      %695 = vst.msk [vmem:[%s492] sm:$0xff] %vm553, %v549
      %696 = vst.msk [vmem:[%s492 + $0x8] sm:$0xf] %vm555, %v550
      %697 = vst.msk [vmem:[%s497] sm:$0xff] %vm553, %v551
      %698 = vst.msk [vmem:[%s497 + $0x8] sm:$0xf] %vm555, %v552
      %vm699 = vcmask 0
      %700 = vst.msk [vmem:[%s500] sm:$0x1] %vm699, %v694
      %p701 = scmp.lt.s32.totalorder %s30, 1
      %s702 = scalar_select %p701, %s30, 1
      %s703 = smul.addr %s702, 2
      %s704 = smul.addr %s703, 8
      %s705 = scalar_lea.vmem %s10, %s704
      %p706 = scmp.lt.s32.totalorder %s30, 1
      %s707 = scalar_select %p706, %s30, 1
      %s708 = smul.addr %s707, 2
      %s709 = smul.addr %s708, 8
      %s710 = scalar_lea.vmem %s11, %s709
      %p711 = scmp.lt.s32.totalorder %s30, 1
      %s712 = scalar_select %p711, %s30, 1
      %s713 = scalar_lea.vmem %s12, %s712
      // Predicated region
      $region61: #{docqa_forward.23} parent=59 // pred_check
        %p714 = pneg %p278
      $region62: #{docqa_forward.23} parent=59 // pred_check_branch
        %716 = sbr.rel (%p714) target = $region64
      $region63: #{docqa_forward.23} parent=59 // pred_region
        _
      $region64: #{docqa_forward.23} parent=59 // pred_fallthru
        _
      // Predicated region
      $region65: #{docqa_forward.23} parent=59 // pred_check
        %p717 = pneg %p304
      $region66: #{docqa_forward.23} parent=59 // pred_check_branch
        %719 = sbr.rel (%p717) target = $region68
      $region67: #{docqa_forward.23} parent=59 // pred_region
        _
      $region68: #{docqa_forward.23} parent=59 // pred_fallthru
        _
      // Predicated region
      $region69: #{docqa_forward.23} parent=59 // pred_check
        %p720 = pneg %p330
      $region70: #{docqa_forward.23} parent=59 // pred_check_branch
        %722 = sbr.rel (%p720) target = $region72
      $region71: #{docqa_forward.23} parent=59 // pred_region
        _
      $region72: #{docqa_forward.23} parent=59 // pred_fallthru
        _
    $region60: #{docqa_forward.23} parent=5 // pred_fallthru
      _
    %p723 = scmp.le.s32.totalorder 2, %s25
    // Predicated region
    $region73: #{docqa_forward.23} parent=5 // pred_check
      %p724 = pneg %p723
    $region74: #{docqa_forward.23} parent=5 // pred_check_branch
      %726 = sbr.rel (%p724) target = $region76
    $region75: #{docqa_forward.23} parent=5 // pred_region
      %s727 = ssub.s32 %s25, 2
      // Predicated region
      $region77: #{docqa_forward.23} parent=75 // pred_check
        %p728 = pneg %p284
      $region78: #{docqa_forward.23} parent=75 // pred_check_branch
        %730 = sbr.rel (%p728) target = $region80
      $region79: #{docqa_forward.23} parent=75 // pred_region
        %p731 = scmp.lt.s32.totalorder %s31, 1
        %s732 = scalar_select %p731, %s31, 1
        %s733 = smul.addr %s732, 2
        %s734 = smul.addr %s733, 8
        %s735 = scalar_lea.vmem %s10, %s734
      $region80: #{docqa_forward.23} parent=75 // pred_fallthru
        _
      // Predicated region
      $region81: #{docqa_forward.23} parent=75 // pred_check
        %p736 = pneg %p310
      $region82: #{docqa_forward.23} parent=75 // pred_check_branch
        %738 = sbr.rel (%p736) target = $region84
      $region83: #{docqa_forward.23} parent=75 // pred_region
        %p739 = scmp.lt.s32.totalorder %s31, 1
        %s740 = scalar_select %p739, %s31, 1
        %s741 = smul.addr %s740, 2
        %s742 = smul.addr %s741, 8
        %s743 = scalar_lea.vmem %s11, %s742
      $region84: #{docqa_forward.23} parent=75 // pred_fallthru
        _
      // Predicated region
      $region85: #{docqa_forward.23} parent=75 // pred_check
        %p744 = pneg %p336
      $region86: #{docqa_forward.23} parent=75 // pred_check_branch
        %746 = sbr.rel (%p744) target = $region88
      $region87: #{docqa_forward.23} parent=75 // pred_region
        %p747 = scmp.lt.s32.totalorder %s31, 1
        %s748 = scalar_select %p747, %s31, 1
        %s749 = scalar_lea.vmem %s12, %s748
      $region88: #{docqa_forward.23} parent=75 // pred_fallthru
        _
    $region76: #{docqa_forward.23} parent=5 // pred_fallthru
      _
  $region6: #{docqa_forward.23} parent=0 // loop_footer
    %s29 = sadd.s32 1, %s25
  $region7: #{docqa_forward.23} parent=0 // loop_footer_branch
    %24 = sbr.rel target = $region3
  $region8: #{docqa_forward.23} parent=0 // loop_exit
    _

</llo_original>
